<compile_context>
chip_gen: v7x
topology: tpu7x:2x2x1
jax: 0.10.0
libtpu: 0.0.40
codegen_flags: <defaults>
</compile_context>

<pallas_src>
import functools

import numpy as np
import jax
import jax.numpy as jnp
from jax import lax
from jax.experimental import pallas as pl
from jax.experimental.pallas import tpu as pltpu

KSIZE = 5      # conv kernel size (both convs)
CPAD = 128     # every lane dimension inside the kernel is padded to this


# ----------------------------- Pallas kernel --------------------------------

def _fused_cnn_kernel(x1t_ref, w1p_ref, b1p_ref, pm1_ref,
                      w2p_ref, b2p_ref, tmask_ref, pm2_ref,
                      w1fc_ref, b1fc_ref, w2fc_ref, b2fc_ref,
                      out_ref, *, ksize, c1, w2, n_groups, cpad):
    f32 = jnp.float32

    # conv1: im2col taps folded into one contraction, + bias + ReLU.
    y1 = jnp.dot(x1t_ref[...], w1p_ref[...], preferred_element_type=f32)
    y1 = jnp.maximum(y1 + b1p_ref[...], 0.0)                        # (N*H*W, 128)

    # pool1: 2x2 average pool expressed as one block-diagonal matmul.
    p1 = jnp.dot(pm1_ref[...], y1, preferred_element_type=f32)      # (N*H2*W2, 128)
    p1 = p1[:, :c1]                                                 # real 32 channels

    # conv2: in-kernel im2col via masked sublane rolls; one MXU dot per tap.
    n_sp2 = p1.shape[0]
    pad = ksize // 2
    acc2 = jnp.zeros((n_sp2, cpad), f32)
    for ky in range(ksize):
        for kx in range(ksize):
            t = ky * ksize + kx
            dr = (ky - pad) * w2 + (kx - pad)
            src = pltpu.roll(p1, (-dr) % n_sp2, 0) if dr else p1
            tap = src * tmask_ref[t]                                # zero out-of-image rows
            acc2 = acc2 + jnp.dot(tap, w2p_ref[t], preferred_element_type=f32)
    y2 = jnp.maximum(acc2 + b2p_ref[...], 0.0)                      # (N*H2*W2, 128)

    # pool2: rows ordered (spatial-group major, image minor) in sublane groups of 8.
    p2 = jnp.dot(pm2_ref[...], y2, preferred_element_type=f32)      # (n_groups*8, 128)

    # NCHW flatten (PyTorch order is baked into w1fc) realized as a lane-dense concat.
    flat = jnp.concatenate(
        [p2[g * 8:(g + 1) * 8, :] for g in range(n_groups)], axis=1)  # (8, n_groups*128)

    # fc1 + ReLU + fc2
    h1 = jnp.dot(flat, w1fc_ref[...], preferred_element_type=f32) + b1fc_ref[...]
    h1 = jnp.maximum(h1, 0.0)
    out_ref[...] = jnp.dot(h1, w2fc_ref[...],
                           preferred_element_type=f32) + b2fc_ref[...]


# --------------------- one-time parameter preprocessing ---------------------

def _pool_matrix(n, h, w):
    """Block-diagonal 2x2 avg-pool matrix; rows ordered (image, ho, wo)."""
    ho, wo = h // 2, w // 2
    m = np.zeros((n * ho * wo, n * h * w), np.float32)
    for b in range(n):
        for i in range(ho):
            for j in range(wo):
                r = (b * ho + i) * wo + j
                for dy in range(2):
                    for dx in range(2):
                        m[r, b * h * w + (2 * i + dy) * w + (2 * j + dx)] = 0.25
    return m


def _pool_matrix_padded(n, h, w):
    """2x2 avg-pool matrix; rows ordered (ho*wo group, image) in sublane groups of 8."""
    ho, wo = h // 2, w // 2
    m = np.zeros((ho * wo * 8, n * h * w), np.float32)
    for b in range(n):
        for i in range(ho):
            for j in range(wo):
                r = (i * wo + j) * 8 + b
                for dy in range(2):
                    for dx in range(2):
                        m[r, b * h * w + (2 * i + dy) * w + (2 * j + dx)] = 0.25
    return m


def _tap_masks(n, h, w, k):
    """Per-tap validity masks (k*k, n*h*w, 1) for 'same'-padded 5x5 taps on rolled rows."""
    pad = k // 2
    m = np.zeros((k * k, n * h * w, 1), np.float32)
    for ky in range(k):
        for kx in range(k):
            dy, dx = ky - pad, kx - pad
            t = ky * k + kx
            for b in range(n):
                for i in range(h):
                    for j in range(w):
                        if 0 <= i + dy < h and 0 <= j + dx < w:
                            m[t, b * h * w + i * w + j, 0] = 1.0
    return m


def preprocess_params(params, batch, inp, cpad=CPAD):
    """Hoist all weight re-layouts / paddings out of the per-forward hot path."""
    k = KSIZE
    conv1_w = params["conv1_w"].astype(jnp.float32)
    conv2_w = params["conv2_w"].astype(jnp.float32)
    fc1_w = params["fc1_w"].astype(jnp.float32)
    fc2_w = params["fc2_w"].astype(jnp.float32)

    c1out, cin = conv1_w.shape[0], conv1_w.shape[1]
    c2out = conv2_w.shape[0]
    hid, nc = fc1_w.shape[0], fc2_w.shape[0]
    h1 = inp // 2                       # spatial after pool1
    h2 = inp // 4                       # spatial after pool2
    ng = h2 * h2                        # pooled spatial positions
    ktaps = k * k * cin

    assert batch <= 8, "kernel packs the batch into one sublane group"
    assert ktaps <= cpad and c1out <= cpad and c2out <= cpad and nc <= cpad
    assert fc1_w.shape[1] == c2out * ng

    # conv1: (Cout, Cin, k, k) -> (k*k*Cin, Cout), zero-padded to (cpad, cpad)
    w1 = jnp.transpose(conv1_w, (2, 3, 1, 0)).reshape(ktaps, c1out)
    w1p = jnp.zeros((cpad, cpad), jnp.float32).at[:ktaps, :c1out].set(w1)
    b1p = jnp.zeros((1, cpad), jnp.float32).at[0, :c1out].set(params["conv1_b"])

    # conv2: (Cout, Cin, k, k) -> (k*k, Cin, Cout), Cout zero-padded to cpad
    w2 = jnp.transpose(conv2_w, (2, 3, 1, 0)).reshape(k * k, c1out, c2out)
    w2p = jnp.zeros((k * k, c1out, cpad), jnp.float32).at[:, :, :c2out].set(w2)
    b2p = jnp.zeros((1, cpad), jnp.float32).at[0, :c2out].set(params["conv2_b"])

    # fc1: bake PyTorch's NCHW flatten order into a one-time weight permutation.
    w1r = jnp.transpose(fc1_w.reshape(hid, c2out, ng), (2, 1, 0))          # [g, c, j]
    w1fc = jnp.zeros((ng, cpad, hid), jnp.float32).at[:, :c2out, :].set(w1r)
    w1fc = w1fc.reshape(ng * cpad, hid)
    b1fc = params["fc1_b"].reshape(1, hid).astype(jnp.float32)

    w2fc = jnp.zeros((hid, cpad), jnp.float32).at[:, :nc].set(fc2_w.T)
    b2fc = jnp.zeros((1, cpad), jnp.float32).at[0, :nc].set(params["fc2_b"])

    return {
        "w1p": w1p, "b1p": b1p,
        "pm1": jnp.asarray(_pool_matrix(batch, inp, inp)),
        "w2p": w2p, "b2p": b2p,
        "tmask": jnp.asarray(_tap_masks(batch, h1, h1, k)),
        "pm2": jnp.asarray(_pool_matrix_padded(batch, h1, h1)),
        "w1fc": w1fc, "b1fc": b1fc, "w2fc": w2fc, "b2fc": b2fc,
    }


# ------------------------------ forward pass --------------------------------

def _conv1_taps(x_nchw, k, cpad):
    """im2col for conv1 only (raw input is tiny): (N,Cin,H,W) -> (N*H*W, cpad)."""
    n, cin, h, w = x_nchw.shape
    pad = k // 2
    xp = jnp.pad(x_nchw, ((0, 0), (0, 0), (pad, pad), (pad, pad)))
    cols = []
    for ky in range(k):
        for kx in range(k):
            win = xp[:, :, ky:ky + h, kx:kx + w]                     # (N, Cin, H, W)
            cols.append(jnp.transpose(win, (0, 2, 3, 1)).reshape(n * h * w, cin))
    taps = jnp.concatenate(cols, axis=1)                             # (N*H*W, k*k*Cin)
    return jnp.pad(taps, ((0, 0), (0, cpad - k * k * cin)))


@functools.partial(jax.jit, static_argnames=("num_classes",))
def simple_cnn_forward(x_nchw, prep, *, num_classes=10):
    n, _, h, w = x_nchw.shape
    cpad = int(prep["w1p"].shape[1])
    c1 = int(prep["w2p"].shape[1])
    n_groups = int(prep["pm2"].shape[0]) // 8
    assert n <= 8

    x1t = _conv1_taps(x_nchw.astype(jnp.float32), KSIZE, cpad)       # (N*H*W, 128)

    kernel = functools.partial(
        _fused_cnn_kernel,
        ksize=KSIZE, c1=c1, w2=w // 2, n_groups=n_groups, cpad=cpad)

    out = pl.pallas_call(
        kernel,
        out_shape=jax.ShapeDtypeStruct((8, cpad), jnp.float32),
        grid=(1,),
        in_specs=[
            pl.BlockSpec(x1t.shape, lambda i: (0, 0)),
            pl.BlockSpec(prep["w1p"].shape, lambda i: (0, 0)),
            pl.BlockSpec(prep["b1p"].shape, lambda i: (0, 0)),
            pl.BlockSpec(prep["pm1"].shape, lambda i: (0, 0)),
            pl.BlockSpec(prep["w2p"].shape, lambda i: (0, 0, 0)),
            pl.BlockSpec(prep["b2p"].shape, lambda i: (0, 0)),
            pl.BlockSpec(prep["tmask"].shape, lambda i: (0, 0, 0)),
            pl.BlockSpec(prep["pm2"].shape, lambda i: (0, 0)),
            pl.BlockSpec(prep["w1fc"].shape, lambda i: (0, 0)),
            pl.BlockSpec(prep["b1fc"].shape, lambda i: (0, 0)),
            pl.BlockSpec(prep["w2fc"].shape, lambda i: (0, 0)),
            pl.BlockSpec(prep["b2fc"].shape, lambda i: (0, 0)),
        ],
        out_specs=pl.BlockSpec((8, cpad), lambda i: (0, 0)),
        compiler_params=pltpu.CompilerParams(dimension_semantics=("parallel",)),
    )(x1t, prep["w1p"], prep["b1p"], prep["pm1"], prep["w2p"], prep["b2p"],
      prep["tmask"], prep["pm2"], prep["w1fc"], prep["b1fc"], prep["w2fc"],
      prep["b2fc"])

    return out[:n, :num_classes]


# --------------------------- pure-JAX reference -----------------------------

_HI = jax.lax.Precision.HIGHEST


def reference_forward(x, p):
    def conv(x, w, b):
        y = lax.conv_general_dilated(x, w, (1, 1), ((2, 2), (2, 2)),
                                     dimension_numbers=("NCHW", "OIHW", "NCHW"),
                                     precision=_HI)
        return y + b[None, :, None, None]

    def pool(x):
        s = lax.reduce_window(x, 0.0, lax.add, (1, 1, 2, 2), (1, 1, 2, 2), "VALID")
        return s / 4.0

    y = pool(jnp.maximum(conv(x, p["conv1_w"], p["conv1_b"]), 0.0))
    y = pool(jnp.maximum(conv(y, p["conv2_w"], p["conv2_b"]), 0.0))
    flat = y.reshape(x.shape[0], -1)
    h = jnp.maximum(jnp.dot(flat, p["fc1_w"].T, precision=_HI) + p["fc1_b"], 0.0)
    return jnp.dot(h, p["fc2_w"].T, precision=_HI) + p["fc2_b"]


# --------------------------------- main --------------------------------------

if __name__ == "__main__":
    N, C_DIM, INP, NUM_CLASSES = 2, 1, 16, 10
    FLAT_DIM = INP * INP * 4          # matches SimpleCNN.flat_dim

    key = jax.random.PRNGKey(0)
    ks = jax.random.split(key, 9)
    x = jax.random.normal(ks[0], (N, C_DIM, INP, INP), jnp.float32)

    params = {
        "conv1_w": 0.05 * jax.random.normal(ks[1], (32, C_DIM, KSIZE, KSIZE), jnp.float32),
        "conv1_b": 0.05 * jax.random.normal(ks[2], (32,), jnp.float32),
        "conv2_w": 0.05 * jax.random.normal(ks[3], (64, 32, KSIZE, KSIZE), jnp.float32),
        "conv2_b": 0.05 * jax.random.normal(ks[4], (64,), jnp.float32),
        "fc1_w": 0.05 * jax.random.normal(ks[5], (128, FLAT_DIM), jnp.float32),
        "fc1_b": 0.05 * jax.random.normal(ks[6], (128,), jnp.float32),
        "fc2_w": 0.05 * jax.random.normal(ks[7], (NUM_CLASSES, 128), jnp.float32),
        "fc2_b": 0.05 * jax.random.normal(ks[8], (NUM_CLASSES,), jnp.float32),
    }

    prep = preprocess_params(params, batch=N, inp=INP)   # one-time weight re-layouts

    out = simple_cnn_forward(x, prep, num_classes=NUM_CLASSES)
    jax.block_until_ready(out)
    assert out.shape == (N, NUM_CLASSES), out.shape

    ref = reference_forward(x, params)
    # default (non-HIGHEST) MXU precision -> relaxed tolerance vs. the f32 reference
    np.testing.assert_allclose(np.asarray(out), np.asarray(ref), atol=3e-2, rtol=3e-2)

    print("KERNEL_OK")
</pallas_src>

<mosaic_0001>
module attributes {stable_mosaic.version = 11 : i64} {
  func.func @_fused_cnn_kernel(%arg0: i32, %arg1: memref<512x128xf32, #tpu.memory_space<vmem>>, %arg2: memref<128x128xf32, #tpu.memory_space<vmem>>, %arg3: memref<1x128xf32, #tpu.memory_space<vmem>>, %arg4: memref<128x512xf32, #tpu.memory_space<vmem>>, %arg5: memref<25x32x128xf32, #tpu.memory_space<vmem>>, %arg6: memref<1x128xf32, #tpu.memory_space<vmem>>, %arg7: memref<25x128x1xf32, #tpu.memory_space<vmem>>, %arg8: memref<128x128xf32, #tpu.memory_space<vmem>>, %arg9: memref<2048x128xf32, #tpu.memory_space<vmem>>, %arg10: memref<1x128xf32, #tpu.memory_space<vmem>>, %arg11: memref<128x128xf32, #tpu.memory_space<vmem>>, %arg12: memref<1x128xf32, #tpu.memory_space<vmem>>, %arg13: memref<8x128xf32, #tpu.memory_space<vmem>>) attributes {dimension_semantics = [#tpu.dimension_semantics<parallel>], iteration_bounds = array<i64: 1>, scalar_prefetch = 0 : i64, scratch_operands = 0 : i64, tpu.core_type = #tpu.core_type<tc>, window_params = [{pipeline_mode = #tpu.pipeline_mode<synchronous>, transform_indices = @transform_0, window_bounds = array<i64: 512, 128>}, {pipeline_mode = #tpu.pipeline_mode<synchronous>, transform_indices = @transform_1, window_bounds = array<i64: 128, 128>}, {pipeline_mode = #tpu.pipeline_mode<synchronous>, transform_indices = @transform_2, window_bounds = array<i64: 1, 128>}, {pipeline_mode = #tpu.pipeline_mode<synchronous>, transform_indices = @transform_3, window_bounds = array<i64: 128, 512>}, {pipeline_mode = #tpu.pipeline_mode<synchronous>, transform_indices = @transform_4, window_bounds = array<i64: 25, 32, 128>}, {pipeline_mode = #tpu.pipeline_mode<synchronous>, transform_indices = @transform_5, window_bounds = array<i64: 1, 128>}, {pipeline_mode = #tpu.pipeline_mode<synchronous>, transform_indices = @transform_6, window_bounds = array<i64: 25, 128, 1>}, {pipeline_mode = #tpu.pipeline_mode<synchronous>, transform_indices = @transform_7, window_bounds = array<i64: 128, 128>}, {pipeline_mode = #tpu.pipeline_mode<synchronous>, transform_indices = @transform_8, window_bounds = array<i64: 2048, 128>}, {pipeline_mode = #tpu.pipeline_mode<synchronous>, transform_indices = @transform_9, window_bounds = array<i64: 1, 128>}, {pipeline_mode = #tpu.pipeline_mode<synchronous>, transform_indices = @transform_10, window_bounds = array<i64: 128, 128>}, {pipeline_mode = #tpu.pipeline_mode<synchronous>, transform_indices = @transform_11, window_bounds = array<i64: 1, 128>}, {pipeline_mode = #tpu.pipeline_mode<synchronous>, transform_indices = @transform_12, window_bounds = array<i64: 8, 128>}]} {
    %c0 = arith.constant 0 : index
    %c0_0 = arith.constant 0 : index
    %0 = vector.load %arg1[%c0, %c0_0] : memref<512x128xf32, #tpu.memory_space<vmem>>, vector<512x128xf32>
    %c0_1 = arith.constant 0 : index
    %c0_2 = arith.constant 0 : index
    %1 = vector.load %arg2[%c0_1, %c0_2] : memref<128x128xf32, #tpu.memory_space<vmem>>, vector<128x128xf32>
    %cst = arith.constant dense<0.000000e+00> : vector<512x128xf32>
    %2 = tpu.matmul %0, %1, %cst {dimension_numbers = #tpu.dot_dimension_numbers<[1], [0], [0], [1], [0, 0, 1, 1], [], []>} : vector<512x128xf32>, vector<128x128xf32>, vector<512x128xf32> -> vector<512x128xf32>
    %c0_3 = arith.constant 0 : index
    %c0_4 = arith.constant 0 : index
    %3 = vector.load %arg3[%c0_3, %c0_4] : memref<1x128xf32, #tpu.memory_space<vmem>>, vector<1x128xf32>
    %4 = vector.broadcast %3 : vector<1x128xf32> to vector<512x128xf32>
    %5 = arith.addf %2, %4 : vector<512x128xf32>
    %cst_5 = arith.constant 0.000000e+00 : f32
    %6 = vector.broadcast %cst_5 : f32 to vector<512x128xf32>
    %7 = arith.maximumf %5, %6 : vector<512x128xf32>
    %c0_6 = arith.constant 0 : index
    %c0_7 = arith.constant 0 : index
    %8 = vector.load %arg4[%c0_6, %c0_7] : memref<128x512xf32, #tpu.memory_space<vmem>>, vector<128x512xf32>
    %cst_8 = arith.constant dense<0.000000e+00> : vector<128x128xf32>
    %9 = tpu.matmul %8, %7, %cst_8 {dimension_numbers = #tpu.dot_dimension_numbers<[1], [0], [0], [1], [0, 0, 1, 1], [], []>} : vector<128x512xf32>, vector<512x128xf32>, vector<128x128xf32> -> vector<128x128xf32>
    %10 = vector.extract_strided_slice %9 {offsets = [0, 0], sizes = [128, 32], strides = [1, 1]} : vector<128x128xf32> to vector<128x32xf32>
    %cst_9 = arith.constant 0.000000e+00 : f32
    %11 = vector.broadcast %cst_9 : f32 to vector<128x128xf32>
    %c18_i32 = arith.constant 18 : i32
    %12 = tpu.dynamic_rotate %10 by %c18_i32 dim 0 : vector<128x32xf32>, i32 -> vector<128x32xf32>
    %c0_10 = arith.constant 0 : index
    %c0_11 = arith.constant 0 : index
    %c0_12 = arith.constant 0 : index
    %13 = vector.load %arg7[%c0_10, %c0_11, %c0_12] : memref<25x128x1xf32, #tpu.memory_space<vmem>>, vector<1x128x1xf32>
    %14 = vector.shape_cast %13 : vector<1x128x1xf32> to vector<128x1xf32>
    %15 = vector.broadcast %14 : vector<128x1xf32> to vector<128x32xf32>
    %16 = arith.mulf %12, %15 : vector<128x32xf32>
    %c0_13 = arith.constant 0 : index
    %c0_14 = arith.constant 0 : index
    %c0_15 = arith.constant 0 : index
    %17 = vector.load %arg5[%c0_13, %c0_14, %c0_15] : memref<25x32x128xf32, #tpu.memory_space<vmem>>, vector<1x32x128xf32>
    %18 = vector.shape_cast %17 : vector<1x32x128xf32> to vector<32x128xf32>
    %cst_16 = arith.constant dense<0.000000e+00> : vector<128x128xf32>
    %19 = tpu.matmul %16, %18, %cst_16 {dimension_numbers = #tpu.dot_dimension_numbers<[1], [0], [0], [1], [0, 0, 1, 1], [], []>} : vector<128x32xf32>, vector<32x128xf32>, vector<128x128xf32> -> vector<128x128xf32>
    %20 = arith.addf %11, %19 : vector<128x128xf32>
    %c17_i32 = arith.constant 17 : i32
    %21 = tpu.dynamic_rotate %10 by %c17_i32 dim 0 : vector<128x32xf32>, i32 -> vector<128x32xf32>
    %c1 = arith.constant 1 : index
    %c0_17 = arith.constant 0 : index
    %c0_18 = arith.constant 0 : index
    %22 = vector.load %arg7[%c1, %c0_17, %c0_18] : memref<25x128x1xf32, #tpu.memory_space<vmem>>, vector<1x128x1xf32>
    %23 = vector.shape_cast %22 : vector<1x128x1xf32> to vector<128x1xf32>
    %24 = vector.broadcast %23 : vector<128x1xf32> to vector<128x32xf32>
    %25 = arith.mulf %21, %24 : vector<128x32xf32>
    %c1_19 = arith.constant 1 : index
    %c0_20 = arith.constant 0 : index
    %c0_21 = arith.constant 0 : index
    %26 = vector.load %arg5[%c1_19, %c0_20, %c0_21] : memref<25x32x128xf32, #tpu.memory_space<vmem>>, vector<1x32x128xf32>
    %27 = vector.shape_cast %26 : vector<1x32x128xf32> to vector<32x128xf32>
    %cst_22 = arith.constant dense<0.000000e+00> : vector<128x128xf32>
    %28 = tpu.matmul %25, %27, %cst_22 {dimension_numbers = #tpu.dot_dimension_numbers<[1], [0], [0], [1], [0, 0, 1, 1], [], []>} : vector<128x32xf32>, vector<32x128xf32>, vector<128x128xf32> -> vector<128x128xf32>
    %29 = arith.addf %20, %28 : vector<128x128xf32>
    %c16_i32 = arith.constant 16 : i32
    %30 = tpu.dynamic_rotate %10 by %c16_i32 dim 0 : vector<128x32xf32>, i32 -> vector<128x32xf32>
    %c2 = arith.constant 2 : index
    %c0_23 = arith.constant 0 : index
    %c0_24 = arith.constant 0 : index
    %31 = vector.load %arg7[%c2, %c0_23, %c0_24] : memref<25x128x1xf32, #tpu.memory_space<vmem>>, vector<1x128x1xf32>
    %32 = vector.shape_cast %31 : vector<1x128x1xf32> to vector<128x1xf32>
    %33 = vector.broadcast %32 : vector<128x1xf32> to vector<128x32xf32>
    %34 = arith.mulf %30, %33 : vector<128x32xf32>
    %c2_25 = arith.constant 2 : index
    %c0_26 = arith.constant 0 : index
    %c0_27 = arith.constant 0 : index
    %35 = vector.load %arg5[%c2_25, %c0_26, %c0_27] : memref<25x32x128xf32, #tpu.memory_space<vmem>>, vector<1x32x128xf32>
    %36 = vector.shape_cast %35 : vector<1x32x128xf32> to vector<32x128xf32>
    %cst_28 = arith.constant dense<0.000000e+00> : vector<128x128xf32>
    %37 = tpu.matmul %34, %36, %cst_28 {dimension_numbers = #tpu.dot_dimension_numbers<[1], [0], [0], [1], [0, 0, 1, 1], [], []>} : vector<128x32xf32>, vector<32x128xf32>, vector<128x128xf32> -> vector<128x128xf32>
    %38 = arith.addf %29, %37 : vector<128x128xf32>
    %c15_i32 = arith.constant 15 : i32
    %39 = tpu.dynamic_rotate %10 by %c15_i32 dim 0 : vector<128x32xf32>, i32 -> vector<128x32xf32>
    %c3 = arith.constant 3 : index
    %c0_29 = arith.constant 0 : index
    %c0_30 = arith.constant 0 : index
    %40 = vector.load %arg7[%c3, %c0_29, %c0_30] : memref<25x128x1xf32, #tpu.memory_space<vmem>>, vector<1x128x1xf32>
    %41 = vector.shape_cast %40 : vector<1x128x1xf32> to vector<128x1xf32>
    %42 = vector.broadcast %41 : vector<128x1xf32> to vector<128x32xf32>
    %43 = arith.mulf %39, %42 : vector<128x32xf32>
    %c3_31 = arith.constant 3 : index
    %c0_32 = arith.constant 0 : index
    %c0_33 = arith.constant 0 : index
    %44 = vector.load %arg5[%c3_31, %c0_32, %c0_33] : memref<25x32x128xf32, #tpu.memory_space<vmem>>, vector<1x32x128xf32>
    %45 = vector.shape_cast %44 : vector<1x32x128xf32> to vector<32x128xf32>
    %cst_34 = arith.constant dense<0.000000e+00> : vector<128x128xf32>
    %46 = tpu.matmul %43, %45, %cst_34 {dimension_numbers = #tpu.dot_dimension_numbers<[1], [0], [0], [1], [0, 0, 1, 1], [], []>} : vector<128x32xf32>, vector<32x128xf32>, vector<128x128xf32> -> vector<128x128xf32>
    %47 = arith.addf %38, %46 : vector<128x128xf32>
    %c14_i32 = arith.constant 14 : i32
    %48 = tpu.dynamic_rotate %10 by %c14_i32 dim 0 : vector<128x32xf32>, i32 -> vector<128x32xf32>
    %c4 = arith.constant 4 : index
    %c0_35 = arith.constant 0 : index
    %c0_36 = arith.constant 0 : index
    %49 = vector.load %arg7[%c4, %c0_35, %c0_36] : memref<25x128x1xf32, #tpu.memory_space<vmem>>, vector<1x128x1xf32>
    %50 = vector.shape_cast %49 : vector<1x128x1xf32> to vector<128x1xf32>
    %51 = vector.broadcast %50 : vector<128x1xf32> to vector<128x32xf32>
    %52 = arith.mulf %48, %51 : vector<128x32xf32>
    %c4_37 = arith.constant 4 : index
    %c0_38 = arith.constant 0 : index
    %c0_39 = arith.constant 0 : index
    %53 = vector.load %arg5[%c4_37, %c0_38, %c0_39] : memref<25x32x128xf32, #tpu.memory_space<vmem>>, vector<1x32x128xf32>
    %54 = vector.shape_cast %53 : vector<1x32x128xf32> to vector<32x128xf32>
    %cst_40 = arith.constant dense<0.000000e+00> : vector<128x128xf32>
    %55 = tpu.matmul %52, %54, %cst_40 {dimension_numbers = #tpu.dot_dimension_numbers<[1], [0], [0], [1], [0, 0, 1, 1], [], []>} : vector<128x32xf32>, vector<32x128xf32>, vector<128x128xf32> -> vector<128x128xf32>
    %56 = arith.addf %47, %55 : vector<128x128xf32>
    %c10_i32 = arith.constant 10 : i32
    %57 = tpu.dynamic_rotate %10 by %c10_i32 dim 0 : vector<128x32xf32>, i32 -> vector<128x32xf32>
    %c5 = arith.constant 5 : index
    %c0_41 = arith.constant 0 : index
    %c0_42 = arith.constant 0 : index
    %58 = vector.load %arg7[%c5, %c0_41, %c0_42] : memref<25x128x1xf32, #tpu.memory_space<vmem>>, vector<1x128x1xf32>
    %59 = vector.shape_cast %58 : vector<1x128x1xf32> to vector<128x1xf32>
    %60 = vector.broadcast %59 : vector<128x1xf32> to vector<128x32xf32>
    %61 = arith.mulf %57, %60 : vector<128x32xf32>
    %c5_43 = arith.constant 5 : index
    %c0_44 = arith.constant 0 : index
    %c0_45 = arith.constant 0 : index
    %62 = vector.load %arg5[%c5_43, %c0_44, %c0_45] : memref<25x32x128xf32, #tpu.memory_space<vmem>>, vector<1x32x128xf32>
    %63 = vector.shape_cast %62 : vector<1x32x128xf32> to vector<32x128xf32>
    %cst_46 = arith.constant dense<0.000000e+00> : vector<128x128xf32>
    %64 = tpu.matmul %61, %63, %cst_46 {dimension_numbers = #tpu.dot_dimension_numbers<[1], [0], [0], [1], [0, 0, 1, 1], [], []>} : vector<128x32xf32>, vector<32x128xf32>, vector<128x128xf32> -> vector<128x128xf32>
    %65 = arith.addf %56, %64 : vector<128x128xf32>
    %c9_i32 = arith.constant 9 : i32
    %66 = tpu.dynamic_rotate %10 by %c9_i32 dim 0 : vector<128x32xf32>, i32 -> vector<128x32xf32>
    %c6 = arith.constant 6 : index
    %c0_47 = arith.constant 0 : index
    %c0_48 = arith.constant 0 : index
    %67 = vector.load %arg7[%c6, %c0_47, %c0_48] : memref<25x128x1xf32, #tpu.memory_space<vmem>>, vector<1x128x1xf32>
    %68 = vector.shape_cast %67 : vector<1x128x1xf32> to vector<128x1xf32>
    %69 = vector.broadcast %68 : vector<128x1xf32> to vector<128x32xf32>
    %70 = arith.mulf %66, %69 : vector<128x32xf32>
    %c6_49 = arith.constant 6 : index
    %c0_50 = arith.constant 0 : index
    %c0_51 = arith.constant 0 : index
    %71 = vector.load %arg5[%c6_49, %c0_50, %c0_51] : memref<25x32x128xf32, #tpu.memory_space<vmem>>, vector<1x32x128xf32>
    %72 = vector.shape_cast %71 : vector<1x32x128xf32> to vector<32x128xf32>
    %cst_52 = arith.constant dense<0.000000e+00> : vector<128x128xf32>
    %73 = tpu.matmul %70, %72, %cst_52 {dimension_numbers = #tpu.dot_dimension_numbers<[1], [0], [0], [1], [0, 0, 1, 1], [], []>} : vector<128x32xf32>, vector<32x128xf32>, vector<128x128xf32> -> vector<128x128xf32>
    %74 = arith.addf %65, %73 : vector<128x128xf32>
    %c8_i32 = arith.constant 8 : i32
    %75 = tpu.dynamic_rotate %10 by %c8_i32 dim 0 : vector<128x32xf32>, i32 -> vector<128x32xf32>
    %c7 = arith.constant 7 : index
    %c0_53 = arith.constant 0 : index
    %c0_54 = arith.constant 0 : index
    %76 = vector.load %arg7[%c7, %c0_53, %c0_54] : memref<25x128x1xf32, #tpu.memory_space<vmem>>, vector<1x128x1xf32>
    %77 = vector.shape_cast %76 : vector<1x128x1xf32> to vector<128x1xf32>
    %78 = vector.broadcast %77 : vector<128x1xf32> to vector<128x32xf32>
    %79 = arith.mulf %75, %78 : vector<128x32xf32>
    %c7_55 = arith.constant 7 : index
    %c0_56 = arith.constant 0 : index
    %c0_57 = arith.constant 0 : index
    %80 = vector.load %arg5[%c7_55, %c0_56, %c0_57] : memref<25x32x128xf32, #tpu.memory_space<vmem>>, vector<1x32x128xf32>
    %81 = vector.shape_cast %80 : vector<1x32x128xf32> to vector<32x128xf32>
    %cst_58 = arith.constant dense<0.000000e+00> : vector<128x128xf32>
    %82 = tpu.matmul %79, %81, %cst_58 {dimension_numbers = #tpu.dot_dimension_numbers<[1], [0], [0], [1], [0, 0, 1, 1], [], []>} : vector<128x32xf32>, vector<32x128xf32>, vector<128x128xf32> -> vector<128x128xf32>
    %83 = arith.addf %74, %82 : vector<128x128xf32>
    %c7_i32 = arith.constant 7 : i32
    %84 = tpu.dynamic_rotate %10 by %c7_i32 dim 0 : vector<128x32xf32>, i32 -> vector<128x32xf32>
    %c8 = arith.constant 8 : index
    %c0_59 = arith.constant 0 : index
    %c0_60 = arith.constant 0 : index
    %85 = vector.load %arg7[%c8, %c0_59, %c0_60] : memref<25x128x1xf32, #tpu.memory_space<vmem>>, vector<1x128x1xf32>
    %86 = vector.shape_cast %85 : vector<1x128x1xf32> to vector<128x1xf32>
    %87 = vector.broadcast %86 : vector<128x1xf32> to vector<128x32xf32>
    %88 = arith.mulf %84, %87 : vector<128x32xf32>
    %c8_61 = arith.constant 8 : index
    %c0_62 = arith.constant 0 : index
    %c0_63 = arith.constant 0 : index
    %89 = vector.load %arg5[%c8_61, %c0_62, %c0_63] : memref<25x32x128xf32, #tpu.memory_space<vmem>>, vector<1x32x128xf32>
    %90 = vector.shape_cast %89 : vector<1x32x128xf32> to vector<32x128xf32>
    %cst_64 = arith.constant dense<0.000000e+00> : vector<128x128xf32>
    %91 = tpu.matmul %88, %90, %cst_64 {dimension_numbers = #tpu.dot_dimension_numbers<[1], [0], [0], [1], [0, 0, 1, 1], [], []>} : vector<128x32xf32>, vector<32x128xf32>, vector<128x128xf32> -> vector<128x128xf32>
    %92 = arith.addf %83, %91 : vector<128x128xf32>
    %c6_i32 = arith.constant 6 : i32
    %93 = tpu.dynamic_rotate %10 by %c6_i32 dim 0 : vector<128x32xf32>, i32 -> vector<128x32xf32>
    %c9 = arith.constant 9 : index
    %c0_65 = arith.constant 0 : index
    %c0_66 = arith.constant 0 : index
    %94 = vector.load %arg7[%c9, %c0_65, %c0_66] : memref<25x128x1xf32, #tpu.memory_space<vmem>>, vector<1x128x1xf32>
    %95 = vector.shape_cast %94 : vector<1x128x1xf32> to vector<128x1xf32>
    %96 = vector.broadcast %95 : vector<128x1xf32> to vector<128x32xf32>
    %97 = arith.mulf %93, %96 : vector<128x32xf32>
    %c9_67 = arith.constant 9 : index
    %c0_68 = arith.constant 0 : index
    %c0_69 = arith.constant 0 : index
    %98 = vector.load %arg5[%c9_67, %c0_68, %c0_69] : memref<25x32x128xf32, #tpu.memory_space<vmem>>, vector<1x32x128xf32>
    %99 = vector.shape_cast %98 : vector<1x32x128xf32> to vector<32x128xf32>
    %cst_70 = arith.constant dense<0.000000e+00> : vector<128x128xf32>
    %100 = tpu.matmul %97, %99, %cst_70 {dimension_numbers = #tpu.dot_dimension_numbers<[1], [0], [0], [1], [0, 0, 1, 1], [], []>} : vector<128x32xf32>, vector<32x128xf32>, vector<128x128xf32> -> vector<128x128xf32>
    %101 = arith.addf %92, %100 : vector<128x128xf32>
    %c2_i32 = arith.constant 2 : i32
    %102 = tpu.dynamic_rotate %10 by %c2_i32 dim 0 : vector<128x32xf32>, i32 -> vector<128x32xf32>
    %c10 = arith.constant 10 : index
    %c0_71 = arith.constant 0 : index
    %c0_72 = arith.constant 0 : index
    %103 = vector.load %arg7[%c10, %c0_71, %c0_72] : memref<25x128x1xf32, #tpu.memory_space<vmem>>, vector<1x128x1xf32>
    %104 = vector.shape_cast %103 : vector<1x128x1xf32> to vector<128x1xf32>
    %105 = vector.broadcast %104 : vector<128x1xf32> to vector<128x32xf32>
    %106 = arith.mulf %102, %105 : vector<128x32xf32>
    %c10_73 = arith.constant 10 : index
    %c0_74 = arith.constant 0 : index
    %c0_75 = arith.constant 0 : index
    %107 = vector.load %arg5[%c10_73, %c0_74, %c0_75] : memref<25x32x128xf32, #tpu.memory_space<vmem>>, vector<1x32x128xf32>
    %108 = vector.shape_cast %107 : vector<1x32x128xf32> to vector<32x128xf32>
    %cst_76 = arith.constant dense<0.000000e+00> : vector<128x128xf32>
    %109 = tpu.matmul %106, %108, %cst_76 {dimension_numbers = #tpu.dot_dimension_numbers<[1], [0], [0], [1], [0, 0, 1, 1], [], []>} : vector<128x32xf32>, vector<32x128xf32>, vector<128x128xf32> -> vector<128x128xf32>
    %110 = arith.addf %101, %109 : vector<128x128xf32>
    %c1_i32 = arith.constant 1 : i32
    %111 = tpu.dynamic_rotate %10 by %c1_i32 dim 0 : vector<128x32xf32>, i32 -> vector<128x32xf32>
    %c11 = arith.constant 11 : index
    %c0_77 = arith.constant 0 : index
    %c0_78 = arith.constant 0 : index
    %112 = vector.load %arg7[%c11, %c0_77, %c0_78] : memref<25x128x1xf32, #tpu.memory_space<vmem>>, vector<1x128x1xf32>
    %113 = vector.shape_cast %112 : vector<1x128x1xf32> to vector<128x1xf32>
    %114 = vector.broadcast %113 : vector<128x1xf32> to vector<128x32xf32>
    %115 = arith.mulf %111, %114 : vector<128x32xf32>
    %c11_79 = arith.constant 11 : index
    %c0_80 = arith.constant 0 : index
    %c0_81 = arith.constant 0 : index
    %116 = vector.load %arg5[%c11_79, %c0_80, %c0_81] : memref<25x32x128xf32, #tpu.memory_space<vmem>>, vector<1x32x128xf32>
    %117 = vector.shape_cast %116 : vector<1x32x128xf32> to vector<32x128xf32>
    %cst_82 = arith.constant dense<0.000000e+00> : vector<128x128xf32>
    %118 = tpu.matmul %115, %117, %cst_82 {dimension_numbers = #tpu.dot_dimension_numbers<[1], [0], [0], [1], [0, 0, 1, 1], [], []>} : vector<128x32xf32>, vector<32x128xf32>, vector<128x128xf32> -> vector<128x128xf32>
    %119 = arith.addf %110, %118 : vector<128x128xf32>
    %c12 = arith.constant 12 : index
    %c0_83 = arith.constant 0 : index
    %c0_84 = arith.constant 0 : index
    %120 = vector.load %arg7[%c12, %c0_83, %c0_84] : memref<25x128x1xf32, #tpu.memory_space<vmem>>, vector<1x128x1xf32>
    %121 = vector.shape_cast %120 : vector<1x128x1xf32> to vector<128x1xf32>
    %122 = vector.broadcast %121 : vector<128x1xf32> to vector<128x32xf32>
    %123 = arith.mulf %10, %122 : vector<128x32xf32>
    %c12_85 = arith.constant 12 : index
    %c0_86 = arith.constant 0 : index
    %c0_87 = arith.constant 0 : index
    %124 = vector.load %arg5[%c12_85, %c0_86, %c0_87] : memref<25x32x128xf32, #tpu.memory_space<vmem>>, vector<1x32x128xf32>
    %125 = vector.shape_cast %124 : vector<1x32x128xf32> to vector<32x128xf32>
    %cst_88 = arith.constant dense<0.000000e+00> : vector<128x128xf32>
    %126 = tpu.matmul %123, %125, %cst_88 {dimension_numbers = #tpu.dot_dimension_numbers<[1], [0], [0], [1], [0, 0, 1, 1], [], []>} : vector<128x32xf32>, vector<32x128xf32>, vector<128x128xf32> -> vector<128x128xf32>
    %127 = arith.addf %119, %126 : vector<128x128xf32>
    %c127_i32 = arith.constant 127 : i32
    %128 = tpu.dynamic_rotate %10 by %c127_i32 dim 0 : vector<128x32xf32>, i32 -> vector<128x32xf32>
    %c13 = arith.constant 13 : index
    %c0_89 = arith.constant 0 : index
    %c0_90 = arith.constant 0 : index
    %129 = vector.load %arg7[%c13, %c0_89, %c0_90] : memref<25x128x1xf32, #tpu.memory_space<vmem>>, vector<1x128x1xf32>
    %130 = vector.shape_cast %129 : vector<1x128x1xf32> to vector<128x1xf32>
    %131 = vector.broadcast %130 : vector<128x1xf32> to vector<128x32xf32>
    %132 = arith.mulf %128, %131 : vector<128x32xf32>
    %c13_91 = arith.constant 13 : index
    %c0_92 = arith.constant 0 : index
    %c0_93 = arith.constant 0 : index
    %133 = vector.load %arg5[%c13_91, %c0_92, %c0_93] : memref<25x32x128xf32, #tpu.memory_space<vmem>>, vector<1x32x128xf32>
    %134 = vector.shape_cast %133 : vector<1x32x128xf32> to vector<32x128xf32>
    %cst_94 = arith.constant dense<0.000000e+00> : vector<128x128xf32>
    %135 = tpu.matmul %132, %134, %cst_94 {dimension_numbers = #tpu.dot_dimension_numbers<[1], [0], [0], [1], [0, 0, 1, 1], [], []>} : vector<128x32xf32>, vector<32x128xf32>, vector<128x128xf32> -> vector<128x128xf32>
    %136 = arith.addf %127, %135 : vector<128x128xf32>
    %c126_i32 = arith.constant 126 : i32
    %137 = tpu.dynamic_rotate %10 by %c126_i32 dim 0 : vector<128x32xf32>, i32 -> vector<128x32xf32>
    %c14 = arith.constant 14 : index
    %c0_95 = arith.constant 0 : index
    %c0_96 = arith.constant 0 : index
    %138 = vector.load %arg7[%c14, %c0_95, %c0_96] : memref<25x128x1xf32, #tpu.memory_space<vmem>>, vector<1x128x1xf32>
    %139 = vector.shape_cast %138 : vector<1x128x1xf32> to vector<128x1xf32>
    %140 = vector.broadcast %139 : vector<128x1xf32> to vector<128x32xf32>
    %141 = arith.mulf %137, %140 : vector<128x32xf32>
    %c14_97 = arith.constant 14 : index
    %c0_98 = arith.constant 0 : index
    %c0_99 = arith.constant 0 : index
    %142 = vector.load %arg5[%c14_97, %c0_98, %c0_99] : memref<25x32x128xf32, #tpu.memory_space<vmem>>, vector<1x32x128xf32>
    %143 = vector.shape_cast %142 : vector<1x32x128xf32> to vector<32x128xf32>
    %cst_100 = arith.constant dense<0.000000e+00> : vector<128x128xf32>
    %144 = tpu.matmul %141, %143, %cst_100 {dimension_numbers = #tpu.dot_dimension_numbers<[1], [0], [0], [1], [0, 0, 1, 1], [], []>} : vector<128x32xf32>, vector<32x128xf32>, vector<128x128xf32> -> vector<128x128xf32>
    %145 = arith.addf %136, %144 : vector<128x128xf32>
    %c122_i32 = arith.constant 122 : i32
    %146 = tpu.dynamic_rotate %10 by %c122_i32 dim 0 : vector<128x32xf32>, i32 -> vector<128x32xf32>
    %c15 = arith.constant 15 : index
    %c0_101 = arith.constant 0 : index
    %c0_102 = arith.constant 0 : index
    %147 = vector.load %arg7[%c15, %c0_101, %c0_102] : memref<25x128x1xf32, #tpu.memory_space<vmem>>, vector<1x128x1xf32>
    %148 = vector.shape_cast %147 : vector<1x128x1xf32> to vector<128x1xf32>
    %149 = vector.broadcast %148 : vector<128x1xf32> to vector<128x32xf32>
    %150 = arith.mulf %146, %149 : vector<128x32xf32>
    %c15_103 = arith.constant 15 : index
    %c0_104 = arith.constant 0 : index
    %c0_105 = arith.constant 0 : index
    %151 = vector.load %arg5[%c15_103, %c0_104, %c0_105] : memref<25x32x128xf32, #tpu.memory_space<vmem>>, vector<1x32x128xf32>
    %152 = vector.shape_cast %151 : vector<1x32x128xf32> to vector<32x128xf32>
    %cst_106 = arith.constant dense<0.000000e+00> : vector<128x128xf32>
    %153 = tpu.matmul %150, %152, %cst_106 {dimension_numbers = #tpu.dot_dimension_numbers<[1], [0], [0], [1], [0, 0, 1, 1], [], []>} : vector<128x32xf32>, vector<32x128xf32>, vector<128x128xf32> -> vector<128x128xf32>
    %154 = arith.addf %145, %153 : vector<128x128xf32>
    %c121_i32 = arith.constant 121 : i32
    %155 = tpu.dynamic_rotate %10 by %c121_i32 dim 0 : vector<128x32xf32>, i32 -> vector<128x32xf32>
    %c16 = arith.constant 16 : index
    %c0_107 = arith.constant 0 : index
    %c0_108 = arith.constant 0 : index
    %156 = vector.load %arg7[%c16, %c0_107, %c0_108] : memref<25x128x1xf32, #tpu.memory_space<vmem>>, vector<1x128x1xf32>
    %157 = vector.shape_cast %156 : vector<1x128x1xf32> to vector<128x1xf32>
    %158 = vector.broadcast %157 : vector<128x1xf32> to vector<128x32xf32>
    %159 = arith.mulf %155, %158 : vector<128x32xf32>
    %c16_109 = arith.constant 16 : index
    %c0_110 = arith.constant 0 : index
    %c0_111 = arith.constant 0 : index
    %160 = vector.load %arg5[%c16_109, %c0_110, %c0_111] : memref<25x32x128xf32, #tpu.memory_space<vmem>>, vector<1x32x128xf32>
    %161 = vector.shape_cast %160 : vector<1x32x128xf32> to vector<32x128xf32>
    %cst_112 = arith.constant dense<0.000000e+00> : vector<128x128xf32>
    %162 = tpu.matmul %159, %161, %cst_112 {dimension_numbers = #tpu.dot_dimension_numbers<[1], [0], [0], [1], [0, 0, 1, 1], [], []>} : vector<128x32xf32>, vector<32x128xf32>, vector<128x128xf32> -> vector<128x128xf32>
    %163 = arith.addf %154, %162 : vector<128x128xf32>
    %c120_i32 = arith.constant 120 : i32
    %164 = tpu.dynamic_rotate %10 by %c120_i32 dim 0 : vector<128x32xf32>, i32 -> vector<128x32xf32>
    %c17 = arith.constant 17 : index
    %c0_113 = arith.constant 0 : index
    %c0_114 = arith.constant 0 : index
    %165 = vector.load %arg7[%c17, %c0_113, %c0_114] : memref<25x128x1xf32, #tpu.memory_space<vmem>>, vector<1x128x1xf32>
    %166 = vector.shape_cast %165 : vector<1x128x1xf32> to vector<128x1xf32>
    %167 = vector.broadcast %166 : vector<128x1xf32> to vector<128x32xf32>
    %168 = arith.mulf %164, %167 : vector<128x32xf32>
    %c17_115 = arith.constant 17 : index
    %c0_116 = arith.constant 0 : index
    %c0_117 = arith.constant 0 : index
    %169 = vector.load %arg5[%c17_115, %c0_116, %c0_117] : memref<25x32x128xf32, #tpu.memory_space<vmem>>, vector<1x32x128xf32>
    %170 = vector.shape_cast %169 : vector<1x32x128xf32> to vector<32x128xf32>
    %cst_118 = arith.constant dense<0.000000e+00> : vector<128x128xf32>
    %171 = tpu.matmul %168, %170, %cst_118 {dimension_numbers = #tpu.dot_dimension_numbers<[1], [0], [0], [1], [0, 0, 1, 1], [], []>} : vector<128x32xf32>, vector<32x128xf32>, vector<128x128xf32> -> vector<128x128xf32>
    %172 = arith.addf %163, %171 : vector<128x128xf32>
    %c119_i32 = arith.constant 119 : i32
    %173 = tpu.dynamic_rotate %10 by %c119_i32 dim 0 : vector<128x32xf32>, i32 -> vector<128x32xf32>
    %c18 = arith.constant 18 : index
    %c0_119 = arith.constant 0 : index
    %c0_120 = arith.constant 0 : index
    %174 = vector.load %arg7[%c18, %c0_119, %c0_120] : memref<25x128x1xf32, #tpu.memory_space<vmem>>, vector<1x128x1xf32>
    %175 = vector.shape_cast %174 : vector<1x128x1xf32> to vector<128x1xf32>
    %176 = vector.broadcast %175 : vector<128x1xf32> to vector<128x32xf32>
    %177 = arith.mulf %173, %176 : vector<128x32xf32>
    %c18_121 = arith.constant 18 : index
    %c0_122 = arith.constant 0 : index
    %c0_123 = arith.constant 0 : index
    %178 = vector.load %arg5[%c18_121, %c0_122, %c0_123] : memref<25x32x128xf32, #tpu.memory_space<vmem>>, vector<1x32x128xf32>
    %179 = vector.shape_cast %178 : vector<1x32x128xf32> to vector<32x128xf32>
    %cst_124 = arith.constant dense<0.000000e+00> : vector<128x128xf32>
    %180 = tpu.matmul %177, %179, %cst_124 {dimension_numbers = #tpu.dot_dimension_numbers<[1], [0], [0], [1], [0, 0, 1, 1], [], []>} : vector<128x32xf32>, vector<32x128xf32>, vector<128x128xf32> -> vector<128x128xf32>
    %181 = arith.addf %172, %180 : vector<128x128xf32>
    %c118_i32 = arith.constant 118 : i32
    %182 = tpu.dynamic_rotate %10 by %c118_i32 dim 0 : vector<128x32xf32>, i32 -> vector<128x32xf32>
    %c19 = arith.constant 19 : index
    %c0_125 = arith.constant 0 : index
    %c0_126 = arith.constant 0 : index
    %183 = vector.load %arg7[%c19, %c0_125, %c0_126] : memref<25x128x1xf32, #tpu.memory_space<vmem>>, vector<1x128x1xf32>
    %184 = vector.shape_cast %183 : vector<1x128x1xf32> to vector<128x1xf32>
    %185 = vector.broadcast %184 : vector<128x1xf32> to vector<128x32xf32>
    %186 = arith.mulf %182, %185 : vector<128x32xf32>
    %c19_127 = arith.constant 19 : index
    %c0_128 = arith.constant 0 : index
    %c0_129 = arith.constant 0 : index
    %187 = vector.load %arg5[%c19_127, %c0_128, %c0_129] : memref<25x32x128xf32, #tpu.memory_space<vmem>>, vector<1x32x128xf32>
    %188 = vector.shape_cast %187 : vector<1x32x128xf32> to vector<32x128xf32>
    %cst_130 = arith.constant dense<0.000000e+00> : vector<128x128xf32>
    %189 = tpu.matmul %186, %188, %cst_130 {dimension_numbers = #tpu.dot_dimension_numbers<[1], [0], [0], [1], [0, 0, 1, 1], [], []>} : vector<128x32xf32>, vector<32x128xf32>, vector<128x128xf32> -> vector<128x128xf32>
    %190 = arith.addf %181, %189 : vector<128x128xf32>
    %c114_i32 = arith.constant 114 : i32
    %191 = tpu.dynamic_rotate %10 by %c114_i32 dim 0 : vector<128x32xf32>, i32 -> vector<128x32xf32>
    %c20 = arith.constant 20 : index
    %c0_131 = arith.constant 0 : index
    %c0_132 = arith.constant 0 : index
    %192 = vector.load %arg7[%c20, %c0_131, %c0_132] : memref<25x128x1xf32, #tpu.memory_space<vmem>>, vector<1x128x1xf32>
    %193 = vector.shape_cast %192 : vector<1x128x1xf32> to vector<128x1xf32>
    %194 = vector.broadcast %193 : vector<128x1xf32> to vector<128x32xf32>
    %195 = arith.mulf %191, %194 : vector<128x32xf32>
    %c20_133 = arith.constant 20 : index
    %c0_134 = arith.constant 0 : index
    %c0_135 = arith.constant 0 : index
    %196 = vector.load %arg5[%c20_133, %c0_134, %c0_135] : memref<25x32x128xf32, #tpu.memory_space<vmem>>, vector<1x32x128xf32>
    %197 = vector.shape_cast %196 : vector<1x32x128xf32> to vector<32x128xf32>
    %cst_136 = arith.constant dense<0.000000e+00> : vector<128x128xf32>
    %198 = tpu.matmul %195, %197, %cst_136 {dimension_numbers = #tpu.dot_dimension_numbers<[1], [0], [0], [1], [0, 0, 1, 1], [], []>} : vector<128x32xf32>, vector<32x128xf32>, vector<128x128xf32> -> vector<128x128xf32>
    %199 = arith.addf %190, %198 : vector<128x128xf32>
    %c113_i32 = arith.constant 113 : i32
    %200 = tpu.dynamic_rotate %10 by %c113_i32 dim 0 : vector<128x32xf32>, i32 -> vector<128x32xf32>
    %c21 = arith.constant 21 : index
    %c0_137 = arith.constant 0 : index
    %c0_138 = arith.constant 0 : index
    %201 = vector.load %arg7[%c21, %c0_137, %c0_138] : memref<25x128x1xf32, #tpu.memory_space<vmem>>, vector<1x128x1xf32>
    %202 = vector.shape_cast %201 : vector<1x128x1xf32> to vector<128x1xf32>
    %203 = vector.broadcast %202 : vector<128x1xf32> to vector<128x32xf32>
    %204 = arith.mulf %200, %203 : vector<128x32xf32>
    %c21_139 = arith.constant 21 : index
    %c0_140 = arith.constant 0 : index
    %c0_141 = arith.constant 0 : index
    %205 = vector.load %arg5[%c21_139, %c0_140, %c0_141] : memref<25x32x128xf32, #tpu.memory_space<vmem>>, vector<1x32x128xf32>
    %206 = vector.shape_cast %205 : vector<1x32x128xf32> to vector<32x128xf32>
    %cst_142 = arith.constant dense<0.000000e+00> : vector<128x128xf32>
    %207 = tpu.matmul %204, %206, %cst_142 {dimension_numbers = #tpu.dot_dimension_numbers<[1], [0], [0], [1], [0, 0, 1, 1], [], []>} : vector<128x32xf32>, vector<32x128xf32>, vector<128x128xf32> -> vector<128x128xf32>
    %208 = arith.addf %199, %207 : vector<128x128xf32>
    %c112_i32 = arith.constant 112 : i32
    %209 = tpu.dynamic_rotate %10 by %c112_i32 dim 0 : vector<128x32xf32>, i32 -> vector<128x32xf32>
    %c22 = arith.constant 22 : index
    %c0_143 = arith.constant 0 : index
    %c0_144 = arith.constant 0 : index
    %210 = vector.load %arg7[%c22, %c0_143, %c0_144] : memref<25x128x1xf32, #tpu.memory_space<vmem>>, vector<1x128x1xf32>
    %211 = vector.shape_cast %210 : vector<1x128x1xf32> to vector<128x1xf32>
    %212 = vector.broadcast %211 : vector<128x1xf32> to vector<128x32xf32>
    %213 = arith.mulf %209, %212 : vector<128x32xf32>
    %c22_145 = arith.constant 22 : index
    %c0_146 = arith.constant 0 : index
    %c0_147 = arith.constant 0 : index
    %214 = vector.load %arg5[%c22_145, %c0_146, %c0_147] : memref<25x32x128xf32, #tpu.memory_space<vmem>>, vector<1x32x128xf32>
    %215 = vector.shape_cast %214 : vector<1x32x128xf32> to vector<32x128xf32>
    %cst_148 = arith.constant dense<0.000000e+00> : vector<128x128xf32>
    %216 = tpu.matmul %213, %215, %cst_148 {dimension_numbers = #tpu.dot_dimension_numbers<[1], [0], [0], [1], [0, 0, 1, 1], [], []>} : vector<128x32xf32>, vector<32x128xf32>, vector<128x128xf32> -> vector<128x128xf32>
    %217 = arith.addf %208, %216 : vector<128x128xf32>
    %c111_i32 = arith.constant 111 : i32
    %218 = tpu.dynamic_rotate %10 by %c111_i32 dim 0 : vector<128x32xf32>, i32 -> vector<128x32xf32>
    %c23 = arith.constant 23 : index
    %c0_149 = arith.constant 0 : index
    %c0_150 = arith.constant 0 : index
    %219 = vector.load %arg7[%c23, %c0_149, %c0_150] : memref<25x128x1xf32, #tpu.memory_space<vmem>>, vector<1x128x1xf32>
    %220 = vector.shape_cast %219 : vector<1x128x1xf32> to vector<128x1xf32>
    %221 = vector.broadcast %220 : vector<128x1xf32> to vector<128x32xf32>
    %222 = arith.mulf %218, %221 : vector<128x32xf32>
    %c23_151 = arith.constant 23 : index
    %c0_152 = arith.constant 0 : index
    %c0_153 = arith.constant 0 : index
    %223 = vector.load %arg5[%c23_151, %c0_152, %c0_153] : memref<25x32x128xf32, #tpu.memory_space<vmem>>, vector<1x32x128xf32>
    %224 = vector.shape_cast %223 : vector<1x32x128xf32> to vector<32x128xf32>
    %cst_154 = arith.constant dense<0.000000e+00> : vector<128x128xf32>
    %225 = tpu.matmul %222, %224, %cst_154 {dimension_numbers = #tpu.dot_dimension_numbers<[1], [0], [0], [1], [0, 0, 1, 1], [], []>} : vector<128x32xf32>, vector<32x128xf32>, vector<128x128xf32> -> vector<128x128xf32>
    %226 = arith.addf %217, %225 : vector<128x128xf32>
    %c110_i32 = arith.constant 110 : i32
    %227 = tpu.dynamic_rotate %10 by %c110_i32 dim 0 : vector<128x32xf32>, i32 -> vector<128x32xf32>
    %c24 = arith.constant 24 : index
    %c0_155 = arith.constant 0 : index
    %c0_156 = arith.constant 0 : index
    %228 = vector.load %arg7[%c24, %c0_155, %c0_156] : memref<25x128x1xf32, #tpu.memory_space<vmem>>, vector<1x128x1xf32>
    %229 = vector.shape_cast %228 : vector<1x128x1xf32> to vector<128x1xf32>
    %230 = vector.broadcast %229 : vector<128x1xf32> to vector<128x32xf32>
    %231 = arith.mulf %227, %230 : vector<128x32xf32>
    %c24_157 = arith.constant 24 : index
    %c0_158 = arith.constant 0 : index
    %c0_159 = arith.constant 0 : index
    %232 = vector.load %arg5[%c24_157, %c0_158, %c0_159] : memref<25x32x128xf32, #tpu.memory_space<vmem>>, vector<1x32x128xf32>
    %233 = vector.shape_cast %232 : vector<1x32x128xf32> to vector<32x128xf32>
    %cst_160 = arith.constant dense<0.000000e+00> : vector<128x128xf32>
    %234 = tpu.matmul %231, %233, %cst_160 {dimension_numbers = #tpu.dot_dimension_numbers<[1], [0], [0], [1], [0, 0, 1, 1], [], []>} : vector<128x32xf32>, vector<32x128xf32>, vector<128x128xf32> -> vector<128x128xf32>
    %235 = arith.addf %226, %234 : vector<128x128xf32>
    %c0_161 = arith.constant 0 : index
    %c0_162 = arith.constant 0 : index
    %236 = vector.load %arg6[%c0_161, %c0_162] : memref<1x128xf32, #tpu.memory_space<vmem>>, vector<1x128xf32>
    %237 = vector.broadcast %236 : vector<1x128xf32> to vector<128x128xf32>
    %238 = arith.addf %235, %237 : vector<128x128xf32>
    %cst_163 = arith.constant 0.000000e+00 : f32
    %239 = vector.broadcast %cst_163 : f32 to vector<128x128xf32>
    %240 = arith.maximumf %238, %239 : vector<128x128xf32>
    %c0_164 = arith.constant 0 : index
    %c0_165 = arith.constant 0 : index
    %241 = vector.load %arg8[%c0_164, %c0_165] : memref<128x128xf32, #tpu.memory_space<vmem>>, vector<128x128xf32>
    %cst_166 = arith.constant dense<0.000000e+00> : vector<128x128xf32>
    %242 = tpu.matmul %241, %240, %cst_166 {dimension_numbers = #tpu.dot_dimension_numbers<[1], [0], [0], [1], [0, 0, 1, 1], [], []>} : vector<128x128xf32>, vector<128x128xf32>, vector<128x128xf32> -> vector<128x128xf32>
    %243 = vector.extract_strided_slice %242 {offsets = [0, 0], sizes = [8, 128], strides = [1, 1]} : vector<128x128xf32> to vector<8x128xf32>
    %244 = vector.extract_strided_slice %242 {offsets = [8, 0], sizes = [8, 128], strides = [1, 1]} : vector<128x128xf32> to vector<8x128xf32>
    %245 = vector.extract_strided_slice %242 {offsets = [16, 0], sizes = [8, 128], strides = [1, 1]} : vector<128x128xf32> to vector<8x128xf32>
    %246 = vector.extract_strided_slice %242 {offsets = [24, 0], sizes = [8, 128], strides = [1, 1]} : vector<128x128xf32> to vector<8x128xf32>
    %247 = vector.extract_strided_slice %242 {offsets = [32, 0], sizes = [8, 128], strides = [1, 1]} : vector<128x128xf32> to vector<8x128xf32>
    %248 = vector.extract_strided_slice %242 {offsets = [40, 0], sizes = [8, 128], strides = [1, 1]} : vector<128x128xf32> to vector<8x128xf32>
    %249 = vector.extract_strided_slice %242 {offsets = [48, 0], sizes = [8, 128], strides = [1, 1]} : vector<128x128xf32> to vector<8x128xf32>
    %250 = vector.extract_strided_slice %242 {offsets = [56, 0], sizes = [8, 128], strides = [1, 1]} : vector<128x128xf32> to vector<8x128xf32>
    %251 = vector.extract_strided_slice %242 {offsets = [64, 0], sizes = [8, 128], strides = [1, 1]} : vector<128x128xf32> to vector<8x128xf32>
    %252 = vector.extract_strided_slice %242 {offsets = [72, 0], sizes = [8, 128], strides = [1, 1]} : vector<128x128xf32> to vector<8x128xf32>
    %253 = vector.extract_strided_slice %242 {offsets = [80, 0], sizes = [8, 128], strides = [1, 1]} : vector<128x128xf32> to vector<8x128xf32>
    %254 = vector.extract_strided_slice %242 {offsets = [88, 0], sizes = [8, 128], strides = [1, 1]} : vector<128x128xf32> to vector<8x128xf32>
    %255 = vector.extract_strided_slice %242 {offsets = [96, 0], sizes = [8, 128], strides = [1, 1]} : vector<128x128xf32> to vector<8x128xf32>
    %256 = vector.extract_strided_slice %242 {offsets = [104, 0], sizes = [8, 128], strides = [1, 1]} : vector<128x128xf32> to vector<8x128xf32>
    %257 = vector.extract_strided_slice %242 {offsets = [112, 0], sizes = [8, 128], strides = [1, 1]} : vector<128x128xf32> to vector<8x128xf32>
    %258 = vector.extract_strided_slice %242 {offsets = [120, 0], sizes = [8, 128], strides = [1, 1]} : vector<128x128xf32> to vector<8x128xf32>
    %259 = tpu.concatenate %243, %244, %245, %246, %247, %248, %249, %250, %251, %252, %253, %254, %255, %256, %257, %258 in 1 : vector<8x128xf32>, vector<8x128xf32>, vector<8x128xf32>, vector<8x128xf32>, vector<8x128xf32>, vector<8x128xf32>, vector<8x128xf32>, vector<8x128xf32>, vector<8x128xf32>, vector<8x128xf32>, vector<8x128xf32>, vector<8x128xf32>, vector<8x128xf32>, vector<8x128xf32>, vector<8x128xf32>, vector<8x128xf32> -> vector<8x2048xf32>
    %c0_167 = arith.constant 0 : index
    %c0_168 = arith.constant 0 : index
    %260 = vector.load %arg9[%c0_167, %c0_168] : memref<2048x128xf32, #tpu.memory_space<vmem>>, vector<2048x128xf32>
    %cst_169 = arith.constant dense<0.000000e+00> : vector<8x128xf32>
    %261 = tpu.matmul %259, %260, %cst_169 {dimension_numbers = #tpu.dot_dimension_numbers<[1], [0], [0], [1], [0, 0, 1, 1], [], []>} : vector<8x2048xf32>, vector<2048x128xf32>, vector<8x128xf32> -> vector<8x128xf32>
    %c0_170 = arith.constant 0 : index
    %c0_171 = arith.constant 0 : index
    %262 = vector.load %arg10[%c0_170, %c0_171] : memref<1x128xf32, #tpu.memory_space<vmem>>, vector<1x128xf32>
    %263 = vector.broadcast %262 : vector<1x128xf32> to vector<8x128xf32>
    %264 = arith.addf %261, %263 : vector<8x128xf32>
    %cst_172 = arith.constant 0.000000e+00 : f32
    %265 = vector.broadcast %cst_172 : f32 to vector<8x128xf32>
    %266 = arith.maximumf %264, %265 : vector<8x128xf32>
    %c0_173 = arith.constant 0 : index
    %c0_174 = arith.constant 0 : index
    %267 = vector.load %arg11[%c0_173, %c0_174] : memref<128x128xf32, #tpu.memory_space<vmem>>, vector<128x128xf32>
    %cst_175 = arith.constant dense<0.000000e+00> : vector<8x128xf32>
    %268 = tpu.matmul %266, %267, %cst_175 {dimension_numbers = #tpu.dot_dimension_numbers<[1], [0], [0], [1], [0, 0, 1, 1], [], []>} : vector<8x128xf32>, vector<128x128xf32>, vector<8x128xf32> -> vector<8x128xf32>
    %c0_176 = arith.constant 0 : index
    %c0_177 = arith.constant 0 : index
    %269 = vector.load %arg12[%c0_176, %c0_177] : memref<1x128xf32, #tpu.memory_space<vmem>>, vector<1x128xf32>
    %270 = vector.broadcast %269 : vector<1x128xf32> to vector<8x128xf32>
    %271 = arith.addf %268, %270 : vector<8x128xf32>
    %c0_178 = arith.constant 0 : index
    %c0_179 = arith.constant 0 : index
    %272 = vector.load %arg13[%c0_178, %c0_179] : memref<8x128xf32, #tpu.memory_space<vmem>>, vector<8x128xf32>
    tpu.vector_store %arg13[%c0_178, %c0_179], %271 {strides = array<i32>} : memref<8x128xf32, #tpu.memory_space<vmem>>, vector<8x128xf32>,
    return
  }
  func.func @transform_0(%arg0: i32) -> (i32, i32) {
    %c0_i32 = arith.constant 0 : i32
    %c0_i32_0 = arith.constant 0 : i32
    %c0_i32_1 = arith.constant 0 : i32
    return %c0_i32, %c0_i32_0 : i32, i32
  }
  func.func @transform_1(%arg0: i32) -> (i32, i32) {
    %c0_i32 = arith.constant 0 : i32
    %c0_i32_0 = arith.constant 0 : i32
    %c0_i32_1 = arith.constant 0 : i32
    return %c0_i32, %c0_i32_0 : i32, i32
  }
  func.func @transform_2(%arg0: i32) -> (i32, i32) {
    %c0_i32 = arith.constant 0 : i32
    %c0_i32_0 = arith.constant 0 : i32
    %c0_i32_1 = arith.constant 0 : i32
    return %c0_i32, %c0_i32_0 : i32, i32
  }
  func.func @transform_3(%arg0: i32) -> (i32, i32) {
    %c0_i32 = arith.constant 0 : i32
    %c0_i32_0 = arith.constant 0 : i32
    %c0_i32_1 = arith.constant 0 : i32
    return %c0_i32, %c0_i32_0 : i32, i32
  }
  func.func @transform_4(%arg0: i32) -> (i32, i32, i32) {
    %c0_i32 = arith.constant 0 : i32
    %c0_i32_0 = arith.constant 0 : i32
    %c0_i32_1 = arith.constant 0 : i32
    %c0_i32_2 = arith.constant 0 : i32
    return %c0_i32, %c0_i32_0, %c0_i32_1 : i32, i32, i32
  }
  func.func @transform_5(%arg0: i32) -> (i32, i32) {
    %c0_i32 = arith.constant 0 : i32
    %c0_i32_0 = arith.constant 0 : i32
    %c0_i32_1 = arith.constant 0 : i32
    return %c0_i32, %c0_i32_0 : i32, i32
  }
  func.func @transform_6(%arg0: i32) -> (i32, i32, i32) {
    %c0_i32 = arith.constant 0 : i32
    %c0_i32_0 = arith.constant 0 : i32
    %c0_i32_1 = arith.constant 0 : i32
    %c0_i32_2 = arith.constant 0 : i32
    return %c0_i32, %c0_i32_0, %c0_i32_1 : i32, i32, i32
  }
  func.func @transform_7(%arg0: i32) -> (i32, i32) {
    %c0_i32 = arith.constant 0 : i32
    %c0_i32_0 = arith.constant 0 : i32
    %c0_i32_1 = arith.constant 0 : i32
    return %c0_i32, %c0_i32_0 : i32, i32
  }
  func.func @transform_8(%arg0: i32) -> (i32, i32) {
    %c0_i32 = arith.constant 0 : i32
    %c0_i32_0 = arith.constant 0 : i32
    %c0_i32_1 = arith.constant 0 : i32
    return %c0_i32, %c0_i32_0 : i32, i32
  }
  func.func @transform_9(%arg0: i32) -> (i32, i32) {
    %c0_i32 = arith.constant 0 : i32
    %c0_i32_0 = arith.constant 0 : i32
    %c0_i32_1 = arith.constant 0 : i32
    return %c0_i32, %c0_i32_0 : i32, i32
  }
  func.func @transform_10(%arg0: i32) -> (i32, i32) {
    %c0_i32 = arith.constant 0 : i32
    %c0_i32_0 = arith.constant 0 : i32
    %c0_i32_1 = arith.constant 0 : i32
    return %c0_i32, %c0_i32_0 : i32, i32
  }
  func.func @transform_11(%arg0: i32) -> (i32, i32) {
    %c0_i32 = arith.constant 0 : i32
    %c0_i32_0 = arith.constant 0 : i32
    %c0_i32_1 = arith.constant 0 : i32
    return %c0_i32, %c0_i32_0 : i32, i32
  }
  func.func @transform_12(%arg0: i32) -> (i32, i32) {
    %c0_i32 = arith.constant 0 : i32
    %c0_i32_0 = arith.constant 0 : i32
    %c0_i32_1 = arith.constant 0 : i32
    return %c0_i32, %c0_i32_0 : i32, i32
  }
}

</mosaic_0001>

<llo_original>
// kernel: simple_cnn_forward.1
$region0: #{simple_cnn_forward.1}
  #allocation0 [shape = 'u32[]', space=smem, size = 0x4, offset = 0x4, fixed_abs, tag = 'smem constant byte address 0x4 - core index']
  #allocation1 [shape = 'u32[144,128]{1,0:T(1,128)}', space=vmem, size = 0x12000, scoped, tag = 'internal scratch']
  %s0 = inlined_call_operand.vmem [shape: f32[512,128], index: 0, kind: input, shape index: {}]
  %s1 = inlined_call_operand.vmem [shape: f32[128,128], index: 1, kind: input, shape index: {}]
  %s2 = inlined_call_operand.vmem [shape: f32[1,128], index: 2, kind: input, shape index: {}]
  %s3 = inlined_call_operand.vmem [shape: f32[128,512], index: 3, kind: input, shape index: {}]
  %s4 = inlined_call_operand.vmem [shape: f32[25,32,128], index: 4, kind: input, shape index: {}]
  %s5 = inlined_call_operand.vmem [shape: f32[1,128], index: 5, kind: input, shape index: {}]
  %s6 = inlined_call_operand.vmem [shape: f32[25,128,1], index: 6, kind: input, shape index: {}]
  %s7 = inlined_call_operand.vmem [shape: f32[128,128], index: 7, kind: input, shape index: {}]
  %s8 = inlined_call_operand.vmem [shape: f32[2048,128], index: 8, kind: input, shape index: {}]
  %s9 = inlined_call_operand.vmem [shape: f32[1,128], index: 9, kind: input, shape index: {}]
  %s10 = inlined_call_operand.vmem [shape: f32[128,128], index: 10, kind: input, shape index: {}]
  %s11 = inlined_call_operand.vmem [shape: f32[1,128], index: 11, kind: input, shape index: {}]
  %s12 = inlined_call_operand.vmem [shape: f32[8,128], index: 12, kind: output, shape index: {}]
  %s13 = sld [smem:[#allocation0]]
  $region58: #{simple_cnn_forward.1} parent=0
    _
  %s15 = ssub.s32 1, %s13
  %s16 = scalar_select 0, %s15, %s13
  // Predicated region
  $region2: #{simple_cnn_forward.1} parent=0 // pred_check
    _
  $region3: #{simple_cnn_forward.1} parent=0 // pred_check_branch
    %18 = sbr.rel (0) target = $region5
  $region4: #{simple_cnn_forward.1} parent=0 // pred_region
    _
  $region5: #{simple_cnn_forward.1} parent=0 // pred_fallthru
    _
  // Predicated region
  $region6: #{simple_cnn_forward.1} parent=0 // pred_check
    _
  $region7: #{simple_cnn_forward.1} parent=0 // pred_check_branch
    %20 = sbr.rel (0) target = $region9
  $region8: #{simple_cnn_forward.1} parent=0 // pred_region
    _
  $region9: #{simple_cnn_forward.1} parent=0 // pred_fallthru
    _
  // Predicated region
  $region10: #{simple_cnn_forward.1} parent=0 // pred_check
    _
  $region11: #{simple_cnn_forward.1} parent=0 // pred_check_branch
    %22 = sbr.rel (0) target = $region13
  $region12: #{simple_cnn_forward.1} parent=0 // pred_region
    _
  $region13: #{simple_cnn_forward.1} parent=0 // pred_fallthru
    _
  // Predicated region
  $region14: #{simple_cnn_forward.1} parent=0 // pred_check
    _
  $region15: #{simple_cnn_forward.1} parent=0 // pred_check_branch
    %24 = sbr.rel (0) target = $region17
  $region16: #{simple_cnn_forward.1} parent=0 // pred_region
    _
  $region17: #{simple_cnn_forward.1} parent=0 // pred_fallthru
    _
  // Predicated region
  $region18: #{simple_cnn_forward.1} parent=0 // pred_check
    _
  $region19: #{simple_cnn_forward.1} parent=0 // pred_check_branch
    %26 = sbr.rel (0) target = $region21
  $region20: #{simple_cnn_forward.1} parent=0 // pred_region
    _
  $region21: #{simple_cnn_forward.1} parent=0 // pred_fallthru
    _
  // Predicated region
  $region22: #{simple_cnn_forward.1} parent=0 // pred_check
    _
  $region23: #{simple_cnn_forward.1} parent=0 // pred_check_branch
    %28 = sbr.rel (0) target = $region25
  $region24: #{simple_cnn_forward.1} parent=0 // pred_region
    _
  $region25: #{simple_cnn_forward.1} parent=0 // pred_fallthru
    _
  // Predicated region
  $region26: #{simple_cnn_forward.1} parent=0 // pred_check
    _
  $region27: #{simple_cnn_forward.1} parent=0 // pred_check_branch
    %30 = sbr.rel (0) target = $region29
  $region28: #{simple_cnn_forward.1} parent=0 // pred_region
    _
  $region29: #{simple_cnn_forward.1} parent=0 // pred_fallthru
    _
  // Predicated region
  $region30: #{simple_cnn_forward.1} parent=0 // pred_check
    _
  $region31: #{simple_cnn_forward.1} parent=0 // pred_check_branch
    %32 = sbr.rel (0) target = $region33
  $region32: #{simple_cnn_forward.1} parent=0 // pred_region
    _
  $region33: #{simple_cnn_forward.1} parent=0 // pred_fallthru
    _
  // Predicated region
  $region34: #{simple_cnn_forward.1} parent=0 // pred_check
    _
  $region35: #{simple_cnn_forward.1} parent=0 // pred_check_branch
    %34 = sbr.rel (0) target = $region37
  $region36: #{simple_cnn_forward.1} parent=0 // pred_region
    _
  $region37: #{simple_cnn_forward.1} parent=0 // pred_fallthru
    _
  // Predicated region
  $region38: #{simple_cnn_forward.1} parent=0 // pred_check
    _
  $region39: #{simple_cnn_forward.1} parent=0 // pred_check_branch
    %36 = sbr.rel (0) target = $region41
  $region40: #{simple_cnn_forward.1} parent=0 // pred_region
    _
  $region41: #{simple_cnn_forward.1} parent=0 // pred_fallthru
    _
  // Predicated region
  $region42: #{simple_cnn_forward.1} parent=0 // pred_check
    _
  $region43: #{simple_cnn_forward.1} parent=0 // pred_check_branch
    %38 = sbr.rel (0) target = $region45
  $region44: #{simple_cnn_forward.1} parent=0 // pred_region
    _
  $region45: #{simple_cnn_forward.1} parent=0 // pred_fallthru
    _
  // Predicated region
  $region46: #{simple_cnn_forward.1} parent=0 // pred_check
    _
  $region47: #{simple_cnn_forward.1} parent=0 // pred_check_branch
    %40 = sbr.rel (0) target = $region49
  $region48: #{simple_cnn_forward.1} parent=0 // pred_region
    _
  $region49: #{simple_cnn_forward.1} parent=0 // pred_fallthru
    _
  %v41 = vld [vmem:[%s0] sm:$0xff]
  %v42 = vld [vmem:[%s0 + $0x8] sm:$0xff]
  %v43 = vld [vmem:[%s0 + $0x10] sm:$0xff]
  %v44 = vld [vmem:[%s0 + $0x18] sm:$0xff]
  %v45 = vld [vmem:[%s0 + $0x20] sm:$0xff]
  %v46 = vld [vmem:[%s0 + $0x28] sm:$0xff]
  %v47 = vld [vmem:[%s0 + $0x30] sm:$0xff]
  %v48 = vld [vmem:[%s0 + $0x38] sm:$0xff]
  %v49 = vld [vmem:[%s0 + $0x40] sm:$0xff]
  %v50 = vld [vmem:[%s0 + $0x48] sm:$0xff]
  %v51 = vld [vmem:[%s0 + $0x50] sm:$0xff]
  %v52 = vld [vmem:[%s0 + $0x58] sm:$0xff]
  %v53 = vld [vmem:[%s0 + $0x60] sm:$0xff]
  %v54 = vld [vmem:[%s0 + $0x68] sm:$0xff]
  %v55 = vld [vmem:[%s0 + $0x70] sm:$0xff]
  %v56 = vld [vmem:[%s0 + $0x78] sm:$0xff]
  %v57 = vld [vmem:[%s0 + $0x80] sm:$0xff]
  %v58 = vld [vmem:[%s0 + $0x88] sm:$0xff]
  %v59 = vld [vmem:[%s0 + $0x90] sm:$0xff]
  %v60 = vld [vmem:[%s0 + $0x98] sm:$0xff]
  %v61 = vld [vmem:[%s0 + $0xa0] sm:$0xff]
  %v62 = vld [vmem:[%s0 + $0xa8] sm:$0xff]
  %v63 = vld [vmem:[%s0 + $0xb0] sm:$0xff]
  %v64 = vld [vmem:[%s0 + $0xb8] sm:$0xff]
  %v65 = vld [vmem:[%s0 + $0xc0] sm:$0xff]
  %v66 = vld [vmem:[%s0 + $0xc8] sm:$0xff]
  %v67 = vld [vmem:[%s0 + $0xd0] sm:$0xff]
  %v68 = vld [vmem:[%s0 + $0xd8] sm:$0xff]
  %v69 = vld [vmem:[%s0 + $0xe0] sm:$0xff]
  %v70 = vld [vmem:[%s0 + $0xe8] sm:$0xff]
  %v71 = vld [vmem:[%s0 + $0xf0] sm:$0xff]
  %v72 = vld [vmem:[%s0 + $0xf8] sm:$0xff]
  %v73 = vld [vmem:[%s0 + $0x100] sm:$0xff]
  %v74 = vld [vmem:[%s0 + $0x108] sm:$0xff]
  %v75 = vld [vmem:[%s0 + $0x110] sm:$0xff]
  %v76 = vld [vmem:[%s0 + $0x118] sm:$0xff]
  %v77 = vld [vmem:[%s0 + $0x120] sm:$0xff]
  %v78 = vld [vmem:[%s0 + $0x128] sm:$0xff]
  %v79 = vld [vmem:[%s0 + $0x130] sm:$0xff]
  %v80 = vld [vmem:[%s0 + $0x138] sm:$0xff]
  %v81 = vld [vmem:[%s0 + $0x140] sm:$0xff]
  %v82 = vld [vmem:[%s0 + $0x148] sm:$0xff]
  %v83 = vld [vmem:[%s0 + $0x150] sm:$0xff]
  %v84 = vld [vmem:[%s0 + $0x158] sm:$0xff]
  %v85 = vld [vmem:[%s0 + $0x160] sm:$0xff]
  %v86 = vld [vmem:[%s0 + $0x168] sm:$0xff]
  %v87 = vld [vmem:[%s0 + $0x170] sm:$0xff]
  %v88 = vld [vmem:[%s0 + $0x178] sm:$0xff]
  %v89 = vld [vmem:[%s0 + $0x180] sm:$0xff]
  %v90 = vld [vmem:[%s0 + $0x188] sm:$0xff]
  %v91 = vld [vmem:[%s0 + $0x190] sm:$0xff]
  %v92 = vld [vmem:[%s0 + $0x198] sm:$0xff]
  %v93 = vld [vmem:[%s0 + $0x1a0] sm:$0xff]
  %v94 = vld [vmem:[%s0 + $0x1a8] sm:$0xff]
  %v95 = vld [vmem:[%s0 + $0x1b0] sm:$0xff]
  %v96 = vld [vmem:[%s0 + $0x1b8] sm:$0xff]
  %v97 = vld [vmem:[%s0 + $0x1c0] sm:$0xff]
  %v98 = vld [vmem:[%s0 + $0x1c8] sm:$0xff]
  %v99 = vld [vmem:[%s0 + $0x1d0] sm:$0xff]
  %v100 = vld [vmem:[%s0 + $0x1d8] sm:$0xff]
  %v101 = vld [vmem:[%s0 + $0x1e0] sm:$0xff]
  %v102 = vld [vmem:[%s0 + $0x1e8] sm:$0xff]
  %v103 = vld [vmem:[%s0 + $0x1f0] sm:$0xff]
  %v104 = vld [vmem:[%s0 + $0x1f8] sm:$0xff]
  %v105 = vld [vmem:[%s1] sm:$0xff]
  %v106 = vld [vmem:[%s1 + $0x8] sm:$0xff]
  %v107 = vld [vmem:[%s1 + $0x10] sm:$0xff]
  %v108 = vld [vmem:[%s1 + $0x18] sm:$0xff]
  %v109 = vld [vmem:[%s1 + $0x20] sm:$0xff]
  %v110 = vld [vmem:[%s1 + $0x28] sm:$0xff]
  %v111 = vld [vmem:[%s1 + $0x30] sm:$0xff]
  %v112 = vld [vmem:[%s1 + $0x38] sm:$0xff]
  %v113 = vld [vmem:[%s1 + $0x40] sm:$0xff]
  %v114 = vld [vmem:[%s1 + $0x48] sm:$0xff]
  %v115 = vld [vmem:[%s1 + $0x50] sm:$0xff]
  %v116 = vld [vmem:[%s1 + $0x58] sm:$0xff]
  %v117 = vld [vmem:[%s1 + $0x60] sm:$0xff]
  %v118 = vld [vmem:[%s1 + $0x68] sm:$0xff]
  %v119 = vld [vmem:[%s1 + $0x70] sm:$0xff]
  %v120 = vld [vmem:[%s1 + $0x78] sm:$0xff]
  %v121 = vld [vmem:[%s2] sm:$0x1]
  %v123 = vlaneseq
  %v124 = vshrl.u32 %v123, 7
  %v125 = vsub.s32 0, %v124
  %v126 = vrot.slane %v121, %v125
  %128 = vmatprep.subr.mxu0 0.0
  %129 = vmatpush1.msra.mxu0 %v105
  %130 = vmatprep.subr.mxu0 0.0
  %131 = vmatpush1.msra.mxu0 %v106
  %132 = vmatprep.subr.mxu0 0.0
  %133 = vmatpush1.msra.mxu0 %v107
  %134 = vmatprep.subr.mxu0 0.0
  %135 = vmatpush1.msra.mxu0 %v108
  %136 = vmatprep.subr.mxu0 0.0
  %137 = vmatpush1.msra.mxu0 %v109
  %138 = vmatprep.subr.mxu0 0.0
  %139 = vmatpush1.msra.mxu0 %v110
  %140 = vmatprep.subr.mxu0 0.0
  %141 = vmatpush1.msra.mxu0 %v111
  %142 = vmatprep.subr.mxu0 0.0
  %143 = vmatpush1.msra.mxu0 %v112
  %144 = vmatprep.subr.mxu0 0.0
  %145 = vmatpush1.msra.mxu0 %v113
  %146 = vmatprep.subr.mxu0 0.0
  %147 = vmatpush1.msra.mxu0 %v114
  %148 = vmatprep.subr.mxu0 0.0
  %149 = vmatpush1.msra.mxu0 %v115
  %150 = vmatprep.subr.mxu0 0.0
  %151 = vmatpush1.msra.mxu0 %v116
  %152 = vmatprep.subr.mxu0 0.0
  %153 = vmatpush1.msra.mxu0 %v117
  %154 = vmatprep.subr.mxu0 0.0
  %155 = vmatpush1.msra.mxu0 %v118
  %156 = vmatprep.subr.mxu0 0.0
  %157 = vmatpush1.msra.mxu0 %v119
  %158 = vmatprep.subr.mxu0 0.0
  %159 = vmatpush1.msra.mxu0 %v120
  %160 = vmatprep.subr.mxu0 0.0
  %161 = vmatpush1.msra.mxu0 0.0
  %162 = vmatprep.subr.mxu0 0.0
  %163 = vmatpush1.msra.mxu0 0.0
  %164 = vmatprep.subr.mxu0 0.0
  %165 = vmatpush1.msra.mxu0 0.0
  %166 = vmatprep.subr.mxu0 0.0
  %167 = vmatpush1.msra.mxu0 0.0
  %168 = vmatprep.subr.mxu0 0.0
  %169 = vmatpush1.msra.mxu0 0.0
  %170 = vmatprep.subr.mxu0 0.0
  %171 = vmatpush1.msra.mxu0 0.0
  %172 = vmatprep.subr.mxu0 0.0
  %173 = vmatpush1.msra.mxu0 0.0
  %174 = vmatprep.subr.mxu0 0.0
  %175 = vmatpush1.msra.mxu0 0.0
  %176 = vmatprep.subr.mxu0 0.0
  %177 = vmatpush1.msra.mxu0 0.0
  %178 = vmatprep.subr.mxu0 0.0
  %179 = vmatpush1.msra.mxu0 0.0
  %180 = vmatprep.subr.mxu0 0.0
  %181 = vmatpush1.msra.mxu0 0.0
  %182 = vmatprep.subr.mxu0 0.0
  %183 = vmatpush1.msra.mxu0 0.0
  %184 = vmatprep.subr.mxu0 0.0
  %185 = vmatpush1.msra.mxu0 0.0
  %186 = vmatprep.subr.mxu0 0.0
  %187 = vmatpush1.msra.mxu0 0.0
  %188 = vmatprep.subr.mxu0 0.0
  %189 = vmatpush1.msra.mxu0 0.0
  %190 = vmatprep.subr.mxu0 0.0
  %191 = vmatpush1.msra.mxu0 0.0
  %192 = vmatprep.mubr.f32.mxu0 0.0
  %193 = vmatmul.mubr.f32.gmra.mrb[0].mxu0 %v41
  %v194 = vpop.f32.mrb[0].mxu0
  %v195 = vadd.f32 %v126, %v194
  %v196 = vpop.f32.mrb[0].mxu0
  %197 = vmatprep.mubr.f32.mxu0 0.0
  %198 = vmatmul.mubr.f32.gmra.mrb[0].mxu0 %v42
  %v199 = vpop.f32.mrb[0].mxu0
  %v200 = vadd.f32 %v126, %v199
  %v201 = vpop.f32.mrb[0].mxu0
  %202 = vmatprep.mubr.f32.mxu0 0.0
  %203 = vmatmul.mubr.f32.gmra.mrb[0].mxu0 %v43
  %v204 = vpop.f32.mrb[0].mxu0
  %v205 = vadd.f32 %v126, %v204
  %v206 = vpop.f32.mrb[0].mxu0
  %207 = vmatprep.mubr.f32.mxu0 0.0
  %208 = vmatmul.mubr.f32.gmra.mrb[0].mxu0 %v44
  %v209 = vpop.f32.mrb[0].mxu0
  %v210 = vadd.f32 %v126, %v209
  %v211 = vpop.f32.mrb[0].mxu0
  %212 = vmatprep.mubr.f32.mxu0 0.0
  %213 = vmatmul.mubr.f32.gmra.mrb[0].mxu0 %v45
  %v214 = vpop.f32.mrb[0].mxu0
  %v215 = vadd.f32 %v126, %v214
  %v216 = vpop.f32.mrb[0].mxu0
  %217 = vmatprep.mubr.f32.mxu0 0.0
  %218 = vmatmul.mubr.f32.gmra.mrb[0].mxu0 %v46
  %v219 = vpop.f32.mrb[0].mxu0
  %v220 = vadd.f32 %v126, %v219
  %v221 = vpop.f32.mrb[0].mxu0
  %222 = vmatprep.mubr.f32.mxu0 0.0
  %223 = vmatmul.mubr.f32.gmra.mrb[0].mxu0 %v47
  %v224 = vpop.f32.mrb[0].mxu0
  %v225 = vadd.f32 %v126, %v224
  %v226 = vpop.f32.mrb[0].mxu0
  %227 = vmatprep.mubr.f32.mxu0 0.0
  %228 = vmatmul.mubr.f32.gmra.mrb[0].mxu0 %v48
  %v229 = vpop.f32.mrb[0].mxu0
  %v230 = vadd.f32 %v126, %v229
  %v231 = vpop.f32.mrb[0].mxu0
  %232 = vmatprep.mubr.f32.mxu0 0.0
  %233 = vmatmul.mubr.f32.gmra.mrb[0].mxu0 %v49
  %v234 = vpop.f32.mrb[0].mxu0
  %v235 = vadd.f32 %v126, %v234
  %v236 = vpop.f32.mrb[0].mxu0
  %237 = vmatprep.mubr.f32.mxu0 0.0
  %238 = vmatmul.mubr.f32.gmra.mrb[0].mxu0 %v50
  %v239 = vpop.f32.mrb[0].mxu0
  %v240 = vadd.f32 %v126, %v239
  %v241 = vpop.f32.mrb[0].mxu0
  %242 = vmatprep.mubr.f32.mxu0 0.0
  %243 = vmatmul.mubr.f32.gmra.mrb[0].mxu0 %v51
  %v244 = vpop.f32.mrb[0].mxu0
  %v245 = vadd.f32 %v126, %v244
  %v246 = vpop.f32.mrb[0].mxu0
  %247 = vmatprep.mubr.f32.mxu0 0.0
  %248 = vmatmul.mubr.f32.gmra.mrb[0].mxu0 %v52
  %v249 = vpop.f32.mrb[0].mxu0
  %v250 = vadd.f32 %v126, %v249
  %v251 = vpop.f32.mrb[0].mxu0
  %252 = vmatprep.mubr.f32.mxu0 0.0
  %253 = vmatmul.mubr.f32.gmra.mrb[0].mxu0 %v53
  %v254 = vpop.f32.mrb[0].mxu0
  %v255 = vadd.f32 %v126, %v254
  %v256 = vpop.f32.mrb[0].mxu0
  %257 = vmatprep.mubr.f32.mxu0 0.0
  %258 = vmatmul.mubr.f32.gmra.mrb[0].mxu0 %v54
  %v259 = vpop.f32.mrb[0].mxu0
  %v260 = vadd.f32 %v126, %v259
  %v261 = vpop.f32.mrb[0].mxu0
  %262 = vmatprep.mubr.f32.mxu0 0.0
  %263 = vmatmul.mubr.f32.gmra.mrb[0].mxu0 %v55
  %v264 = vpop.f32.mrb[0].mxu0
  %v265 = vadd.f32 %v126, %v264
  %v266 = vpop.f32.mrb[0].mxu0
  %267 = vmatprep.mubr.f32.mxu0 0.0
  %268 = vmatmul.mubr.f32.gmra.mrb[0].mxu0 %v56
  %v269 = vpop.f32.mrb[0].mxu0
  %v270 = vadd.f32 %v126, %v269
  %v271 = vpop.f32.mrb[0].mxu0
  %272 = vmatprep.mubr.f32.mxu0 0.0
  %273 = vmatmul.mubr.f32.gmra.mrb[0].mxu0 %v57
  %v274 = vpop.f32.mrb[0].mxu0
  %v275 = vadd.f32 %v126, %v274
  %v276 = vpop.f32.mrb[0].mxu0
  %277 = vmatprep.mubr.f32.mxu0 0.0
  %278 = vmatmul.mubr.f32.gmra.mrb[0].mxu0 %v58
  %v279 = vpop.f32.mrb[0].mxu0
  %v280 = vadd.f32 %v126, %v279
  %v281 = vpop.f32.mrb[0].mxu0
  %282 = vmatprep.mubr.f32.mxu0 0.0
  %283 = vmatmul.mubr.f32.gmra.mrb[0].mxu0 %v59
  %v284 = vpop.f32.mrb[0].mxu0
  %v285 = vadd.f32 %v126, %v284
  %v286 = vpop.f32.mrb[0].mxu0
  %287 = vmatprep.mubr.f32.mxu0 0.0
  %288 = vmatmul.mubr.f32.gmra.mrb[0].mxu0 %v60
  %v289 = vpop.f32.mrb[0].mxu0
  %v290 = vadd.f32 %v126, %v289
  %v291 = vpop.f32.mrb[0].mxu0
  %292 = vmatprep.mubr.f32.mxu0 0.0
  %293 = vmatmul.mubr.f32.gmra.mrb[0].mxu0 %v61
  %v294 = vpop.f32.mrb[0].mxu0
  %v295 = vadd.f32 %v126, %v294
  %v296 = vpop.f32.mrb[0].mxu0
  %297 = vmatprep.mubr.f32.mxu0 0.0
  %298 = vmatmul.mubr.f32.gmra.mrb[0].mxu0 %v62
  %v299 = vpop.f32.mrb[0].mxu0
  %v300 = vadd.f32 %v126, %v299
  %v301 = vpop.f32.mrb[0].mxu0
  %302 = vmatprep.mubr.f32.mxu0 0.0
  %303 = vmatmul.mubr.f32.gmra.mrb[0].mxu0 %v63
  %v304 = vpop.f32.mrb[0].mxu0
  %v305 = vadd.f32 %v126, %v304
  %v306 = vpop.f32.mrb[0].mxu0
  %307 = vmatprep.mubr.f32.mxu0 0.0
  %308 = vmatmul.mubr.f32.gmra.mrb[0].mxu0 %v64
  %v309 = vpop.f32.mrb[0].mxu0
  %v310 = vadd.f32 %v126, %v309
  %v311 = vpop.f32.mrb[0].mxu0
  %312 = vmatprep.mubr.f32.mxu0 0.0
  %313 = vmatmul.mubr.f32.gmra.mrb[0].mxu0 %v65
  %v314 = vpop.f32.mrb[0].mxu0
  %v315 = vadd.f32 %v126, %v314
  %v316 = vpop.f32.mrb[0].mxu0
  %317 = vmatprep.mubr.f32.mxu0 0.0
  %318 = vmatmul.mubr.f32.gmra.mrb[0].mxu0 %v66
  %v319 = vpop.f32.mrb[0].mxu0
  %v320 = vadd.f32 %v126, %v319
  %v321 = vpop.f32.mrb[0].mxu0
  %322 = vmatprep.mubr.f32.mxu0 0.0
  %323 = vmatmul.mubr.f32.gmra.mrb[0].mxu0 %v67
  %v324 = vpop.f32.mrb[0].mxu0
  %v325 = vadd.f32 %v126, %v324
  %v326 = vpop.f32.mrb[0].mxu0
  %327 = vmatprep.mubr.f32.mxu0 0.0
  %328 = vmatmul.mubr.f32.gmra.mrb[0].mxu0 %v68
  %v329 = vpop.f32.mrb[0].mxu0
  %v330 = vadd.f32 %v126, %v329
  %v331 = vpop.f32.mrb[0].mxu0
  %332 = vmatprep.mubr.f32.mxu0 0.0
  %333 = vmatmul.mubr.f32.gmra.mrb[0].mxu0 %v69
  %v334 = vpop.f32.mrb[0].mxu0
  %v335 = vadd.f32 %v126, %v334
  %v336 = vpop.f32.mrb[0].mxu0
  %337 = vmatprep.mubr.f32.mxu0 0.0
  %338 = vmatmul.mubr.f32.gmra.mrb[0].mxu0 %v70
  %v339 = vpop.f32.mrb[0].mxu0
  %v340 = vadd.f32 %v126, %v339
  %v341 = vpop.f32.mrb[0].mxu0
  %342 = vmatprep.mubr.f32.mxu0 0.0
  %343 = vmatmul.mubr.f32.gmra.mrb[0].mxu0 %v71
  %v344 = vpop.f32.mrb[0].mxu0
  %v345 = vadd.f32 %v126, %v344
  %v346 = vpop.f32.mrb[0].mxu0
  %347 = vmatprep.mubr.f32.mxu0 0.0
  %348 = vmatmul.mubr.f32.gmra.mrb[0].mxu0 %v72
  %v349 = vpop.f32.mrb[0].mxu0
  %v350 = vadd.f32 %v126, %v349
  %v351 = vpop.f32.mrb[0].mxu0
  %352 = vmatprep.mubr.f32.mxu0 0.0
  %353 = vmatmul.mubr.f32.gmra.mrb[0].mxu0 %v73
  %v354 = vpop.f32.mrb[0].mxu0
  %v355 = vadd.f32 %v126, %v354
  %v356 = vpop.f32.mrb[0].mxu0
  %357 = vmatprep.mubr.f32.mxu0 0.0
  %358 = vmatmul.mubr.f32.gmra.mrb[0].mxu0 %v74
  %v359 = vpop.f32.mrb[0].mxu0
  %v360 = vadd.f32 %v126, %v359
  %v361 = vpop.f32.mrb[0].mxu0
  %362 = vmatprep.mubr.f32.mxu0 0.0
  %363 = vmatmul.mubr.f32.gmra.mrb[0].mxu0 %v75
  %v364 = vpop.f32.mrb[0].mxu0
  %v365 = vadd.f32 %v126, %v364
  %v366 = vpop.f32.mrb[0].mxu0
  %367 = vmatprep.mubr.f32.mxu0 0.0
  %368 = vmatmul.mubr.f32.gmra.mrb[0].mxu0 %v76
  %v369 = vpop.f32.mrb[0].mxu0
  %v370 = vadd.f32 %v126, %v369
  %v371 = vpop.f32.mrb[0].mxu0
  %372 = vmatprep.mubr.f32.mxu0 0.0
  %373 = vmatmul.mubr.f32.gmra.mrb[0].mxu0 %v77
  %v374 = vpop.f32.mrb[0].mxu0
  %v375 = vadd.f32 %v126, %v374
  %v376 = vpop.f32.mrb[0].mxu0
  %377 = vmatprep.mubr.f32.mxu0 0.0
  %378 = vmatmul.mubr.f32.gmra.mrb[0].mxu0 %v78
  %v379 = vpop.f32.mrb[0].mxu0
  %v380 = vadd.f32 %v126, %v379
  %v381 = vpop.f32.mrb[0].mxu0
  %382 = vmatprep.mubr.f32.mxu0 0.0
  %383 = vmatmul.mubr.f32.gmra.mrb[0].mxu0 %v79
  %v384 = vpop.f32.mrb[0].mxu0
  %v385 = vadd.f32 %v126, %v384
  %v386 = vpop.f32.mrb[0].mxu0
  %387 = vmatprep.mubr.f32.mxu0 0.0
  %388 = vmatmul.mubr.f32.gmra.mrb[0].mxu0 %v80
  %v389 = vpop.f32.mrb[0].mxu0
  %v390 = vadd.f32 %v126, %v389
  %v391 = vpop.f32.mrb[0].mxu0
  %392 = vmatprep.mubr.f32.mxu0 0.0
  %393 = vmatmul.mubr.f32.gmra.mrb[0].mxu0 %v81
  %v394 = vpop.f32.mrb[0].mxu0
  %v395 = vadd.f32 %v126, %v394
  %v396 = vpop.f32.mrb[0].mxu0
  %397 = vmatprep.mubr.f32.mxu0 0.0
  %398 = vmatmul.mubr.f32.gmra.mrb[0].mxu0 %v82
  %v399 = vpop.f32.mrb[0].mxu0
  %v400 = vadd.f32 %v126, %v399
  %v401 = vpop.f32.mrb[0].mxu0
  %402 = vmatprep.mubr.f32.mxu0 0.0
  %403 = vmatmul.mubr.f32.gmra.mrb[0].mxu0 %v83
  %v404 = vpop.f32.mrb[0].mxu0
  %v405 = vadd.f32 %v126, %v404
  %v406 = vpop.f32.mrb[0].mxu0
  %407 = vmatprep.mubr.f32.mxu0 0.0
  %408 = vmatmul.mubr.f32.gmra.mrb[0].mxu0 %v84
  %v409 = vpop.f32.mrb[0].mxu0
  %v410 = vadd.f32 %v126, %v409
  %v411 = vpop.f32.mrb[0].mxu0
  %412 = vmatprep.mubr.f32.mxu0 0.0
  %413 = vmatmul.mubr.f32.gmra.mrb[0].mxu0 %v85
  %v414 = vpop.f32.mrb[0].mxu0
  %v415 = vadd.f32 %v126, %v414
  %v416 = vpop.f32.mrb[0].mxu0
  %417 = vmatprep.mubr.f32.mxu0 0.0
  %418 = vmatmul.mubr.f32.gmra.mrb[0].mxu0 %v86
  %v419 = vpop.f32.mrb[0].mxu0
  %v420 = vadd.f32 %v126, %v419
  %v421 = vpop.f32.mrb[0].mxu0
  %422 = vmatprep.mubr.f32.mxu0 0.0
  %423 = vmatmul.mubr.f32.gmra.mrb[0].mxu0 %v87
  %v424 = vpop.f32.mrb[0].mxu0
  %v425 = vadd.f32 %v126, %v424
  %v426 = vpop.f32.mrb[0].mxu0
  %427 = vmatprep.mubr.f32.mxu0 0.0
  %428 = vmatmul.mubr.f32.gmra.mrb[0].mxu0 %v88
  %v429 = vpop.f32.mrb[0].mxu0
  %v430 = vadd.f32 %v126, %v429
  %v431 = vpop.f32.mrb[0].mxu0
  %432 = vmatprep.mubr.f32.mxu0 0.0
  %433 = vmatmul.mubr.f32.gmra.mrb[0].mxu0 %v89
  %v434 = vpop.f32.mrb[0].mxu0
  %v435 = vadd.f32 %v126, %v434
  %v436 = vpop.f32.mrb[0].mxu0
  %437 = vmatprep.mubr.f32.mxu0 0.0
  %438 = vmatmul.mubr.f32.gmra.mrb[0].mxu0 %v90
  %v439 = vpop.f32.mrb[0].mxu0
  %v440 = vadd.f32 %v126, %v439
  %v441 = vpop.f32.mrb[0].mxu0
  %442 = vmatprep.mubr.f32.mxu0 0.0
  %443 = vmatmul.mubr.f32.gmra.mrb[0].mxu0 %v91
  %v444 = vpop.f32.mrb[0].mxu0
  %v445 = vadd.f32 %v126, %v444
  %v446 = vpop.f32.mrb[0].mxu0
  %447 = vmatprep.mubr.f32.mxu0 0.0
  %448 = vmatmul.mubr.f32.gmra.mrb[0].mxu0 %v92
  %v449 = vpop.f32.mrb[0].mxu0
  %v450 = vadd.f32 %v126, %v449
  %v451 = vpop.f32.mrb[0].mxu0
  %452 = vmatprep.mubr.f32.mxu0 0.0
  %453 = vmatmul.mubr.f32.gmra.mrb[0].mxu0 %v93
  %v454 = vpop.f32.mrb[0].mxu0
  %v455 = vadd.f32 %v126, %v454
  %v456 = vpop.f32.mrb[0].mxu0
  %457 = vmatprep.mubr.f32.mxu0 0.0
  %458 = vmatmul.mubr.f32.gmra.mrb[0].mxu0 %v94
  %v459 = vpop.f32.mrb[0].mxu0
  %v460 = vadd.f32 %v126, %v459
  %v461 = vpop.f32.mrb[0].mxu0
  %462 = vmatprep.mubr.f32.mxu0 0.0
  %463 = vmatmul.mubr.f32.gmra.mrb[0].mxu0 %v95
  %v464 = vpop.f32.mrb[0].mxu0
  %v465 = vadd.f32 %v126, %v464
  %v466 = vpop.f32.mrb[0].mxu0
  %467 = vmatprep.mubr.f32.mxu0 0.0
  %468 = vmatmul.mubr.f32.gmra.mrb[0].mxu0 %v96
  %v469 = vpop.f32.mrb[0].mxu0
  %v470 = vadd.f32 %v126, %v469
  %v471 = vpop.f32.mrb[0].mxu0
  %472 = vmatprep.mubr.f32.mxu0 0.0
  %473 = vmatmul.mubr.f32.gmra.mrb[0].mxu0 %v97
  %v474 = vpop.f32.mrb[0].mxu0
  %v475 = vadd.f32 %v126, %v474
  %v476 = vpop.f32.mrb[0].mxu0
  %477 = vmatprep.mubr.f32.mxu0 0.0
  %478 = vmatmul.mubr.f32.gmra.mrb[0].mxu0 %v98
  %v479 = vpop.f32.mrb[0].mxu0
  %v480 = vadd.f32 %v126, %v479
  %v481 = vpop.f32.mrb[0].mxu0
  %482 = vmatprep.mubr.f32.mxu0 0.0
  %483 = vmatmul.mubr.f32.gmra.mrb[0].mxu0 %v99
  %v484 = vpop.f32.mrb[0].mxu0
  %v485 = vadd.f32 %v126, %v484
  %v486 = vpop.f32.mrb[0].mxu0
  %487 = vmatprep.mubr.f32.mxu0 0.0
  %488 = vmatmul.mubr.f32.gmra.mrb[0].mxu0 %v100
  %v489 = vpop.f32.mrb[0].mxu0
  %v490 = vadd.f32 %v126, %v489
  %v491 = vpop.f32.mrb[0].mxu0
  %492 = vmatprep.mubr.f32.mxu0 0.0
  %493 = vmatmul.mubr.f32.gmra.mrb[0].mxu0 %v101
  %v494 = vpop.f32.mrb[0].mxu0
  %v495 = vadd.f32 %v126, %v494
  %v496 = vpop.f32.mrb[0].mxu0
  %497 = vmatprep.mubr.f32.mxu0 0.0
  %498 = vmatmul.mubr.f32.gmra.mrb[0].mxu0 %v102
  %v499 = vpop.f32.mrb[0].mxu0
  %v500 = vadd.f32 %v126, %v499
  %v501 = vpop.f32.mrb[0].mxu0
  %502 = vmatprep.mubr.f32.mxu0 0.0
  %503 = vmatmul.mubr.f32.gmra.mrb[0].mxu0 %v103
  %v504 = vpop.f32.mrb[0].mxu0
  %v505 = vadd.f32 %v126, %v504
  %v506 = vpop.f32.mrb[0].mxu0
  %507 = vmatprep.mubr.f32.mxu0 0.0
  %508 = vmatmul.mubr.f32.gmra.mrb[0].mxu0 %v104
  %v509 = vpop.f32.mrb[0].mxu0
  %v510 = vadd.f32 %v126, %v509
  %v511 = vpop.f32.mrb[0].mxu0
  %512 = vdwg.mxu0
  %v513 = vmax.f32 %v195, 0.0
  %v514 = vmax.f32 %v200, 0.0
  %v515 = vmax.f32 %v205, 0.0
  %v516 = vmax.f32 %v210, 0.0
  %v517 = vmax.f32 %v215, 0.0
  %v518 = vmax.f32 %v220, 0.0
  %v519 = vmax.f32 %v225, 0.0
  %v520 = vmax.f32 %v230, 0.0
  %v521 = vmax.f32 %v235, 0.0
  %v522 = vmax.f32 %v240, 0.0
  %v523 = vmax.f32 %v245, 0.0
  %v524 = vmax.f32 %v250, 0.0
  %v525 = vmax.f32 %v255, 0.0
  %v526 = vmax.f32 %v260, 0.0
  %v527 = vmax.f32 %v265, 0.0
  %v528 = vmax.f32 %v270, 0.0
  %v529 = vmax.f32 %v275, 0.0
  %v530 = vmax.f32 %v280, 0.0
  %v531 = vmax.f32 %v285, 0.0
  %v532 = vmax.f32 %v290, 0.0
  %v533 = vmax.f32 %v295, 0.0
  %v534 = vmax.f32 %v300, 0.0
  %v535 = vmax.f32 %v305, 0.0
  %v536 = vmax.f32 %v310, 0.0
  %v537 = vmax.f32 %v315, 0.0
  %v538 = vmax.f32 %v320, 0.0
  %v539 = vmax.f32 %v325, 0.0
  %v540 = vmax.f32 %v330, 0.0
  %v541 = vmax.f32 %v335, 0.0
  %v542 = vmax.f32 %v340, 0.0
  %v543 = vmax.f32 %v345, 0.0
  %v544 = vmax.f32 %v350, 0.0
  %v545 = vmax.f32 %v355, 0.0
  %v546 = vmax.f32 %v360, 0.0
  %v547 = vmax.f32 %v365, 0.0
  %v548 = vmax.f32 %v370, 0.0
  %v549 = vmax.f32 %v375, 0.0
  %v550 = vmax.f32 %v380, 0.0
  %v551 = vmax.f32 %v385, 0.0
  %v552 = vmax.f32 %v390, 0.0
  %v553 = vmax.f32 %v395, 0.0
  %v554 = vmax.f32 %v400, 0.0
  %v555 = vmax.f32 %v405, 0.0
  %v556 = vmax.f32 %v410, 0.0
  %v557 = vmax.f32 %v415, 0.0
  %v558 = vmax.f32 %v420, 0.0
  %v559 = vmax.f32 %v425, 0.0
  %v560 = vmax.f32 %v430, 0.0
  %v561 = vmax.f32 %v435, 0.0
  %v562 = vmax.f32 %v440, 0.0
  %v563 = vmax.f32 %v445, 0.0
  %v564 = vmax.f32 %v450, 0.0
  %v565 = vmax.f32 %v455, 0.0
  %v566 = vmax.f32 %v460, 0.0
  %v567 = vmax.f32 %v465, 0.0
  %v568 = vmax.f32 %v470, 0.0
  %v569 = vmax.f32 %v475, 0.0
  %v570 = vmax.f32 %v480, 0.0
  %v571 = vmax.f32 %v485, 0.0
  %v572 = vmax.f32 %v490, 0.0
  %v573 = vmax.f32 %v495, 0.0
  %v574 = vmax.f32 %v500, 0.0
  %v575 = vmax.f32 %v505, 0.0
  %v576 = vmax.f32 %v510, 0.0
  %v577 = vld [vmem:[%s3] sm:$0xff]
  %v578 = vld [vmem:[%s3 + $0x8] sm:$0xff]
  %v579 = vld [vmem:[%s3 + $0x10] sm:$0xff]
  %v580 = vld [vmem:[%s3 + $0x18] sm:$0xff]
  %v581 = vld [vmem:[%s3 + $0x20] sm:$0xff]
  %v582 = vld [vmem:[%s3 + $0x28] sm:$0xff]
  %v583 = vld [vmem:[%s3 + $0x30] sm:$0xff]
  %v584 = vld [vmem:[%s3 + $0x38] sm:$0xff]
  %v585 = vld [vmem:[%s3 + $0x40] sm:$0xff]
  %v586 = vld [vmem:[%s3 + $0x48] sm:$0xff]
  %v587 = vld [vmem:[%s3 + $0x50] sm:$0xff]
  %v588 = vld [vmem:[%s3 + $0x58] sm:$0xff]
  %v589 = vld [vmem:[%s3 + $0x60] sm:$0xff]
  %v590 = vld [vmem:[%s3 + $0x68] sm:$0xff]
  %v591 = vld [vmem:[%s3 + $0x70] sm:$0xff]
  %v592 = vld [vmem:[%s3 + $0x78] sm:$0xff]
  %v593 = vld [vmem:[%s3 + $0x80] sm:$0xff]
  %v594 = vld [vmem:[%s3 + $0x88] sm:$0xff]
  %v595 = vld [vmem:[%s3 + $0x90] sm:$0xff]
  %v596 = vld [vmem:[%s3 + $0x98] sm:$0xff]
  %v597 = vld [vmem:[%s3 + $0xa0] sm:$0xff]
  %v598 = vld [vmem:[%s3 + $0xa8] sm:$0xff]
  %v599 = vld [vmem:[%s3 + $0xb0] sm:$0xff]
  %v600 = vld [vmem:[%s3 + $0xb8] sm:$0xff]
  %v601 = vld [vmem:[%s3 + $0xc0] sm:$0xff]
  %v602 = vld [vmem:[%s3 + $0xc8] sm:$0xff]
  %v603 = vld [vmem:[%s3 + $0xd0] sm:$0xff]
  %v604 = vld [vmem:[%s3 + $0xd8] sm:$0xff]
  %v605 = vld [vmem:[%s3 + $0xe0] sm:$0xff]
  %v606 = vld [vmem:[%s3 + $0xe8] sm:$0xff]
  %v607 = vld [vmem:[%s3 + $0xf0] sm:$0xff]
  %v608 = vld [vmem:[%s3 + $0xf8] sm:$0xff]
  %v609 = vld [vmem:[%s3 + $0x100] sm:$0xff]
  %v610 = vld [vmem:[%s3 + $0x108] sm:$0xff]
  %v611 = vld [vmem:[%s3 + $0x110] sm:$0xff]
  %v612 = vld [vmem:[%s3 + $0x118] sm:$0xff]
  %v613 = vld [vmem:[%s3 + $0x120] sm:$0xff]
  %v614 = vld [vmem:[%s3 + $0x128] sm:$0xff]
  %v615 = vld [vmem:[%s3 + $0x130] sm:$0xff]
  %v616 = vld [vmem:[%s3 + $0x138] sm:$0xff]
  %v617 = vld [vmem:[%s3 + $0x140] sm:$0xff]
  %v618 = vld [vmem:[%s3 + $0x148] sm:$0xff]
  %v619 = vld [vmem:[%s3 + $0x150] sm:$0xff]
  %v620 = vld [vmem:[%s3 + $0x158] sm:$0xff]
  %v621 = vld [vmem:[%s3 + $0x160] sm:$0xff]
  %v622 = vld [vmem:[%s3 + $0x168] sm:$0xff]
  %v623 = vld [vmem:[%s3 + $0x170] sm:$0xff]
  %v624 = vld [vmem:[%s3 + $0x178] sm:$0xff]
  %v625 = vld [vmem:[%s3 + $0x180] sm:$0xff]
  %v626 = vld [vmem:[%s3 + $0x188] sm:$0xff]
  %v627 = vld [vmem:[%s3 + $0x190] sm:$0xff]
  %v628 = vld [vmem:[%s3 + $0x198] sm:$0xff]
  %v629 = vld [vmem:[%s3 + $0x1a0] sm:$0xff]
  %v630 = vld [vmem:[%s3 + $0x1a8] sm:$0xff]
  %v631 = vld [vmem:[%s3 + $0x1b0] sm:$0xff]
  %v632 = vld [vmem:[%s3 + $0x1b8] sm:$0xff]
  %v633 = vld [vmem:[%s3 + $0x1c0] sm:$0xff]
  %v634 = vld [vmem:[%s3 + $0x1c8] sm:$0xff]
  %v635 = vld [vmem:[%s3 + $0x1d0] sm:$0xff]
  %v636 = vld [vmem:[%s3 + $0x1d8] sm:$0xff]
  %v637 = vld [vmem:[%s3 + $0x1e0] sm:$0xff]
  %v638 = vld [vmem:[%s3 + $0x1e8] sm:$0xff]
  %v639 = vld [vmem:[%s3 + $0x1f0] sm:$0xff]
  %v640 = vld [vmem:[%s3 + $0x1f8] sm:$0xff]
  %641 = vmatprep.subr.mxu0 0.0
  %642 = vmatpush1.msra.mxu0 %v513
  %643 = vmatprep.subr.mxu0 0.0
  %644 = vmatpush1.msra.mxu0 %v514
  %645 = vmatprep.subr.mxu0 0.0
  %646 = vmatpush1.msra.mxu0 %v515
  %647 = vmatprep.subr.mxu0 0.0
  %648 = vmatpush1.msra.mxu0 %v516
  %649 = vmatprep.subr.mxu0 0.0
  %650 = vmatpush1.msra.mxu0 %v517
  %651 = vmatprep.subr.mxu0 0.0
  %652 = vmatpush1.msra.mxu0 %v518
  %653 = vmatprep.subr.mxu0 0.0
  %654 = vmatpush1.msra.mxu0 %v519
  %655 = vmatprep.subr.mxu0 0.0
  %656 = vmatpush1.msra.mxu0 %v520
  %657 = vmatprep.subr.mxu0 0.0
  %658 = vmatpush1.msra.mxu0 %v521
  %659 = vmatprep.subr.mxu0 0.0
  %660 = vmatpush1.msra.mxu0 %v522
  %661 = vmatprep.subr.mxu0 0.0
  %662 = vmatpush1.msra.mxu0 %v523
  %663 = vmatprep.subr.mxu0 0.0
  %664 = vmatpush1.msra.mxu0 %v524
  %665 = vmatprep.subr.mxu0 0.0
  %666 = vmatpush1.msra.mxu0 %v525
  %667 = vmatprep.subr.mxu0 0.0
  %668 = vmatpush1.msra.mxu0 %v526
  %669 = vmatprep.subr.mxu0 0.0
  %670 = vmatpush1.msra.mxu0 %v527
  %671 = vmatprep.subr.mxu0 0.0
  %672 = vmatpush1.msra.mxu0 %v528
  %673 = vmatprep.subr.mxu0 0.0
  %674 = vmatpush1.msra.mxu0 %v529
  %675 = vmatprep.subr.mxu0 0.0
  %676 = vmatpush1.msra.mxu0 %v530
  %677 = vmatprep.subr.mxu0 0.0
  %678 = vmatpush1.msra.mxu0 %v531
  %679 = vmatprep.subr.mxu0 0.0
  %680 = vmatpush1.msra.mxu0 %v532
  %681 = vmatprep.subr.mxu0 0.0
  %682 = vmatpush1.msra.mxu0 %v533
  %683 = vmatprep.subr.mxu0 0.0
  %684 = vmatpush1.msra.mxu0 %v534
  %685 = vmatprep.subr.mxu0 0.0
  %686 = vmatpush1.msra.mxu0 %v535
  %687 = vmatprep.subr.mxu0 0.0
  %688 = vmatpush1.msra.mxu0 %v536
  %689 = vmatprep.subr.mxu0 0.0
  %690 = vmatpush1.msra.mxu0 %v537
  %691 = vmatprep.subr.mxu0 0.0
  %692 = vmatpush1.msra.mxu0 %v538
  %693 = vmatprep.subr.mxu0 0.0
  %694 = vmatpush1.msra.mxu0 %v539
  %695 = vmatprep.subr.mxu0 0.0
  %696 = vmatpush1.msra.mxu0 %v540
  %697 = vmatprep.subr.mxu0 0.0
  %698 = vmatpush1.msra.mxu0 %v541
  %699 = vmatprep.subr.mxu0 0.0
  %700 = vmatpush1.msra.mxu0 %v542
  %701 = vmatprep.subr.mxu0 0.0
  %702 = vmatpush1.msra.mxu0 %v543
  %703 = vmatprep.subr.mxu0 0.0
  %704 = vmatpush1.msra.mxu0 %v544
  %705 = vmatprep.mubr.f32.mxu0 %v578
  %706 = vmatmul.mubr.f32.gmra.mrb[0].mxu0 %v577
  %v707 = vpop.f32.mrb[0].mxu0
  %v708 = vadd.f32 0.0, %v707
  %v709 = vpop.f32.mrb[0].mxu0
  %710 = vmatprep.mubr.f32.mxu0 %v582
  %711 = vmatmul.mubr.f32.gmra.mrb[0].mxu0 %v581
  %v712 = vpop.f32.mrb[0].mxu0
  %v713 = vadd.f32 0.0, %v712
  %v714 = vpop.f32.mrb[0].mxu0
  %715 = vmatprep.mubr.f32.mxu0 %v586
  %716 = vmatmul.mubr.f32.gmra.mrb[0].mxu0 %v585
  %v717 = vpop.f32.mrb[0].mxu0
  %v718 = vadd.f32 0.0, %v717
  %v719 = vpop.f32.mrb[0].mxu0
  %720 = vmatprep.mubr.f32.mxu0 %v590
  %721 = vmatmul.mubr.f32.gmra.mrb[0].mxu0 %v589
  %v722 = vpop.f32.mrb[0].mxu0
  %v723 = vadd.f32 0.0, %v722
  %v724 = vpop.f32.mrb[0].mxu0
  %725 = vmatprep.mubr.f32.mxu0 %v594
  %726 = vmatmul.mubr.f32.gmra.mrb[0].mxu0 %v593
  %v727 = vpop.f32.mrb[0].mxu0
  %v728 = vadd.f32 0.0, %v727
  %v729 = vpop.f32.mrb[0].mxu0
  %730 = vmatprep.mubr.f32.mxu0 %v598
  %731 = vmatmul.mubr.f32.gmra.mrb[0].mxu0 %v597
  %v732 = vpop.f32.mrb[0].mxu0
  %v733 = vadd.f32 0.0, %v732
  %v734 = vpop.f32.mrb[0].mxu0
  %735 = vmatprep.mubr.f32.mxu0 %v602
  %736 = vmatmul.mubr.f32.gmra.mrb[0].mxu0 %v601
  %v737 = vpop.f32.mrb[0].mxu0
  %v738 = vadd.f32 0.0, %v737
  %v739 = vpop.f32.mrb[0].mxu0
  %740 = vmatprep.mubr.f32.mxu0 %v606
  %741 = vmatmul.mubr.f32.gmra.mrb[0].mxu0 %v605
  %v742 = vpop.f32.mrb[0].mxu0
  %v743 = vadd.f32 0.0, %v742
  %v744 = vpop.f32.mrb[0].mxu0
  %745 = vmatprep.mubr.f32.mxu0 %v610
  %746 = vmatmul.mubr.f32.gmra.mrb[0].mxu0 %v609
  %v747 = vpop.f32.mrb[0].mxu0
  %v748 = vadd.f32 0.0, %v747
  %v749 = vpop.f32.mrb[0].mxu0
  %750 = vmatprep.mubr.f32.mxu0 %v614
  %751 = vmatmul.mubr.f32.gmra.mrb[0].mxu0 %v613
  %v752 = vpop.f32.mrb[0].mxu0
  %v753 = vadd.f32 0.0, %v752
  %v754 = vpop.f32.mrb[0].mxu0
  %755 = vmatprep.mubr.f32.mxu0 %v618
  %756 = vmatmul.mubr.f32.gmra.mrb[0].mxu0 %v617
  %v757 = vpop.f32.mrb[0].mxu0
  %v758 = vadd.f32 0.0, %v757
  %v759 = vpop.f32.mrb[0].mxu0
  %760 = vmatprep.mubr.f32.mxu0 %v622
  %761 = vmatmul.mubr.f32.gmra.mrb[0].mxu0 %v621
  %v762 = vpop.f32.mrb[0].mxu0
  %v763 = vadd.f32 0.0, %v762
  %v764 = vpop.f32.mrb[0].mxu0
  %765 = vmatprep.mubr.f32.mxu0 %v626
  %766 = vmatmul.mubr.f32.gmra.mrb[0].mxu0 %v625
  %v767 = vpop.f32.mrb[0].mxu0
  %v768 = vadd.f32 0.0, %v767
  %v769 = vpop.f32.mrb[0].mxu0
  %770 = vmatprep.mubr.f32.mxu0 %v630
  %771 = vmatmul.mubr.f32.gmra.mrb[0].mxu0 %v629
  %v772 = vpop.f32.mrb[0].mxu0
  %v773 = vadd.f32 0.0, %v772
  %v774 = vpop.f32.mrb[0].mxu0
  %775 = vmatprep.mubr.f32.mxu0 %v634
  %776 = vmatmul.mubr.f32.gmra.mrb[0].mxu0 %v633
  %v777 = vpop.f32.mrb[0].mxu0
  %v778 = vadd.f32 0.0, %v777
  %v779 = vpop.f32.mrb[0].mxu0
  %780 = vmatprep.mubr.f32.mxu0 %v638
  %781 = vmatmul.mubr.f32.gmra.mrb[0].mxu0 %v637
  %v782 = vpop.f32.mrb[0].mxu0
  %v783 = vadd.f32 0.0, %v782
  %v784 = vpop.f32.mrb[0].mxu0
  %785 = vdwg.mxu0
  %786 = vmatprep.subr.mxu0 0.0
  %787 = vmatpush1.msra.mxu0 %v545
  %788 = vmatprep.subr.mxu0 0.0
  %789 = vmatpush1.msra.mxu0 %v546
  %790 = vmatprep.subr.mxu0 0.0
  %791 = vmatpush1.msra.mxu0 %v547
  %792 = vmatprep.subr.mxu0 0.0
  %793 = vmatpush1.msra.mxu0 %v548
  %794 = vmatprep.subr.mxu0 0.0
  %795 = vmatpush1.msra.mxu0 %v549
  %796 = vmatprep.subr.mxu0 0.0
  %797 = vmatpush1.msra.mxu0 %v550
  %798 = vmatprep.subr.mxu0 0.0
  %799 = vmatpush1.msra.mxu0 %v551
  %800 = vmatprep.subr.mxu0 0.0
  %801 = vmatpush1.msra.mxu0 %v552
  %802 = vmatprep.subr.mxu0 0.0
  %803 = vmatpush1.msra.mxu0 %v553
  %804 = vmatprep.subr.mxu0 0.0
  %805 = vmatpush1.msra.mxu0 %v554
  %806 = vmatprep.subr.mxu0 0.0
  %807 = vmatpush1.msra.mxu0 %v555
  %808 = vmatprep.subr.mxu0 0.0
  %809 = vmatpush1.msra.mxu0 %v556
  %810 = vmatprep.subr.mxu0 0.0
  %811 = vmatpush1.msra.mxu0 %v557
  %812 = vmatprep.subr.mxu0 0.0
  %813 = vmatpush1.msra.mxu0 %v558
  %814 = vmatprep.subr.mxu0 0.0
  %815 = vmatpush1.msra.mxu0 %v559
  %816 = vmatprep.subr.mxu0 0.0
  %817 = vmatpush1.msra.mxu0 %v560
  %818 = vmatprep.subr.mxu0 0.0
  %819 = vmatpush1.msra.mxu0 %v561
  %820 = vmatprep.subr.mxu0 0.0
  %821 = vmatpush1.msra.mxu0 %v562
  %822 = vmatprep.subr.mxu0 0.0
  %823 = vmatpush1.msra.mxu0 %v563
  %824 = vmatprep.subr.mxu0 0.0
  %825 = vmatpush1.msra.mxu0 %v564
  %826 = vmatprep.subr.mxu0 0.0
  %827 = vmatpush1.msra.mxu0 %v565
  %828 = vmatprep.subr.mxu0 0.0
  %829 = vmatpush1.msra.mxu0 %v566
  %830 = vmatprep.subr.mxu0 0.0
  %831 = vmatpush1.msra.mxu0 %v567
  %832 = vmatprep.subr.mxu0 0.0
  %833 = vmatpush1.msra.mxu0 %v568
  %834 = vmatprep.subr.mxu0 0.0
  %835 = vmatpush1.msra.mxu0 %v569
  %836 = vmatprep.subr.mxu0 0.0
  %837 = vmatpush1.msra.mxu0 %v570
  %838 = vmatprep.subr.mxu0 0.0
  %839 = vmatpush1.msra.mxu0 %v571
  %840 = vmatprep.subr.mxu0 0.0
  %841 = vmatpush1.msra.mxu0 %v572
  %842 = vmatprep.subr.mxu0 0.0
  %843 = vmatpush1.msra.mxu0 %v573
  %844 = vmatprep.subr.mxu0 0.0
  %845 = vmatpush1.msra.mxu0 %v574
  %846 = vmatprep.subr.mxu0 0.0
  %847 = vmatpush1.msra.mxu0 %v575
  %848 = vmatprep.subr.mxu0 0.0
  %849 = vmatpush1.msra.mxu0 %v576
  %850 = vmatprep.mubr.f32.mxu0 %v580
  %851 = vmatmul.mubr.f32.gmra.mrb[0].mxu0 %v579
  %v852 = vpop.f32.mrb[0].mxu0
  %v853 = vadd.f32 %v708, %v852
  %v854 = vpop.f32.mrb[0].mxu0
  %855 = vmatprep.mubr.f32.mxu0 %v584
  %856 = vmatmul.mubr.f32.gmra.mrb[0].mxu0 %v583
  %v857 = vpop.f32.mrb[0].mxu0
  %v858 = vadd.f32 %v713, %v857
  %v859 = vpop.f32.mrb[0].mxu0
  %860 = vmatprep.mubr.f32.mxu0 %v588
  %861 = vmatmul.mubr.f32.gmra.mrb[0].mxu0 %v587
  %v862 = vpop.f32.mrb[0].mxu0
  %v863 = vadd.f32 %v718, %v862
  %v864 = vpop.f32.mrb[0].mxu0
  %865 = vmatprep.mubr.f32.mxu0 %v592
  %866 = vmatmul.mubr.f32.gmra.mrb[0].mxu0 %v591
  %v867 = vpop.f32.mrb[0].mxu0
  %v868 = vadd.f32 %v723, %v867
  %v869 = vpop.f32.mrb[0].mxu0
  %870 = vmatprep.mubr.f32.mxu0 %v596
  %871 = vmatmul.mubr.f32.gmra.mrb[0].mxu0 %v595
  %v872 = vpop.f32.mrb[0].mxu0
  %v873 = vadd.f32 %v728, %v872
  %v874 = vpop.f32.mrb[0].mxu0
  %875 = vmatprep.mubr.f32.mxu0 %v600
  %876 = vmatmul.mubr.f32.gmra.mrb[0].mxu0 %v599
  %v877 = vpop.f32.mrb[0].mxu0
  %v878 = vadd.f32 %v733, %v877
  %v879 = vpop.f32.mrb[0].mxu0
  %880 = vmatprep.mubr.f32.mxu0 %v604
  %881 = vmatmul.mubr.f32.gmra.mrb[0].mxu0 %v603
  %v882 = vpop.f32.mrb[0].mxu0
  %v883 = vadd.f32 %v738, %v882
  %v884 = vpop.f32.mrb[0].mxu0
  %885 = vmatprep.mubr.f32.mxu0 %v608
  %886 = vmatmul.mubr.f32.gmra.mrb[0].mxu0 %v607
  %v887 = vpop.f32.mrb[0].mxu0
  %v888 = vadd.f32 %v743, %v887
  %v889 = vpop.f32.mrb[0].mxu0
  %890 = vmatprep.mubr.f32.mxu0 %v612
  %891 = vmatmul.mubr.f32.gmra.mrb[0].mxu0 %v611
  %v892 = vpop.f32.mrb[0].mxu0
  %v893 = vadd.f32 %v748, %v892
  %v894 = vpop.f32.mrb[0].mxu0
  %895 = vmatprep.mubr.f32.mxu0 %v616
  %896 = vmatmul.mubr.f32.gmra.mrb[0].mxu0 %v615
  %v897 = vpop.f32.mrb[0].mxu0
  %v898 = vadd.f32 %v753, %v897
  %v899 = vpop.f32.mrb[0].mxu0
  %900 = vmatprep.mubr.f32.mxu0 %v620
  %901 = vmatmul.mubr.f32.gmra.mrb[0].mxu0 %v619
  %v902 = vpop.f32.mrb[0].mxu0
  %v903 = vadd.f32 %v758, %v902
  %v904 = vpop.f32.mrb[0].mxu0
  %905 = vmatprep.mubr.f32.mxu0 %v624
  %906 = vmatmul.mubr.f32.gmra.mrb[0].mxu0 %v623
  %v907 = vpop.f32.mrb[0].mxu0
  %v908 = vadd.f32 %v763, %v907
  %v909 = vpop.f32.mrb[0].mxu0
  %910 = vmatprep.mubr.f32.mxu0 %v628
  %911 = vmatmul.mubr.f32.gmra.mrb[0].mxu0 %v627
  %v912 = vpop.f32.mrb[0].mxu0
  %v913 = vadd.f32 %v768, %v912
  %v914 = vpop.f32.mrb[0].mxu0
  %915 = vmatprep.mubr.f32.mxu0 %v632
  %916 = vmatmul.mubr.f32.gmra.mrb[0].mxu0 %v631
  %v917 = vpop.f32.mrb[0].mxu0
  %v918 = vadd.f32 %v773, %v917
  %v919 = vpop.f32.mrb[0].mxu0
  %920 = vmatprep.mubr.f32.mxu0 %v636
  %921 = vmatmul.mubr.f32.gmra.mrb[0].mxu0 %v635
  %v922 = vpop.f32.mrb[0].mxu0
  %v923 = vadd.f32 %v778, %v922
  %v924 = vpop.f32.mrb[0].mxu0
  %925 = vmatprep.mubr.f32.mxu0 %v640
  %926 = vmatmul.mubr.f32.gmra.mrb[0].mxu0 %v639
  %v927 = vpop.f32.mrb[0].mxu0
  %v928 = vadd.f32 %v783, %v927
  %v929 = vpop.f32.mrb[0].mxu0
  %930 = vdwg.mxu0
  %v931 = vrot.slane %v853, 6
  %v932 = vrot.slane %v858, 6
  %v933 = vrot.slane %v863, 6
  %v934 = vrot.slane %v868, 6
  %v935 = vrot.slane %v873, 6
  %v936 = vrot.slane %v878, 6
  %v937 = vrot.slane %v883, 6
  %v938 = vrot.slane %v888, 6
  %v939 = vrot.slane %v893, 6
  %v940 = vrot.slane %v898, 6
  %v941 = vrot.slane %v903, 6
  %v942 = vrot.slane %v908, 6
  %v943 = vrot.slane %v913, 6
  %v944 = vrot.slane %v918, 6
  %v945 = vrot.slane %v923, 6
  %v946 = vrot.slane %v928, 6
  %v947 = vlaneseq
  %v948 = vshrl.u32 %v947, 7
  %vm949 = vcmp.lt.s32.totalorder %v948, 2
  %v950 = vsel %vm949, %v945, %v946
  %v951 = vsel %vm949, %v944, %v945
  %v952 = vsel %vm949, %v943, %v944
  %v953 = vsel %vm949, %v942, %v943
  %v954 = vsel %vm949, %v941, %v942
  %v955 = vsel %vm949, %v940, %v941
  %v956 = vsel %vm949, %v939, %v940
  %v957 = vsel %vm949, %v938, %v939
  %v958 = vsel %vm949, %v937, %v938
  %v959 = vsel %vm949, %v936, %v937
  %v960 = vsel %vm949, %v935, %v936
  %v961 = vsel %vm949, %v934, %v935
  %v962 = vsel %vm949, %v933, %v934
  %v963 = vsel %vm949, %v932, %v933
  %v964 = vsel %vm949, %v931, %v932
  %v965 = vsel %vm949, %v946, %v931
  %v966 = vld [vmem:[%s6] sm:$0xff]
  %v967 = vld [vmem:[%s6 + $0x8] sm:$0xff]
  %v968 = vld [vmem:[%s6 + $0x10] sm:$0xff]
  %v969 = vld [vmem:[%s6 + $0x18] sm:$0xff]
  %v970 = vld [vmem:[%s6 + $0x20] sm:$0xff]
  %v971 = vld [vmem:[%s6 + $0x28] sm:$0xff]
  %v972 = vld [vmem:[%s6 + $0x30] sm:$0xff]
  %v973 = vld [vmem:[%s6 + $0x38] sm:$0xff]
  %v974 = vld [vmem:[%s6 + $0x40] sm:$0xff]
  %v975 = vld [vmem:[%s6 + $0x48] sm:$0xff]
  %v976 = vld [vmem:[%s6 + $0x50] sm:$0xff]
  %v977 = vld [vmem:[%s6 + $0x58] sm:$0xff]
  %v978 = vld [vmem:[%s6 + $0x60] sm:$0xff]
  %v979 = vld [vmem:[%s6 + $0x68] sm:$0xff]
  %v980 = vld [vmem:[%s6 + $0x70] sm:$0xff]
  %v981 = vld [vmem:[%s6 + $0x78] sm:$0xff]
  %983 = vset.pattern.permute.xlu0 0
  %984 = vperm.xlu0 %983, %v966
  %v985 = vpop.permute.xlu0 %984
  %988 = vset.pattern.permute.xlu0 0
  %989 = vperm.xlu0 %988, %v967
  %v990 = vpop.permute.xlu0 %989
  %993 = vset.pattern.permute.xlu0 0
  %994 = vperm.xlu0 %993, %v968
  %v995 = vpop.permute.xlu0 %994
  %998 = vset.pattern.permute.xlu0 0
  %999 = vperm.xlu0 %998, %v969
  %v1000 = vpop.permute.xlu0 %999
  %1003 = vset.pattern.permute.xlu0 0
  %1004 = vperm.xlu0 %1003, %v970
  %v1005 = vpop.permute.xlu0 %1004
  %1008 = vset.pattern.permute.xlu0 0
  %1009 = vperm.xlu0 %1008, %v971
  %v1010 = vpop.permute.xlu0 %1009
  %1013 = vset.pattern.permute.xlu0 0
  %1014 = vperm.xlu0 %1013, %v972
  %v1015 = vpop.permute.xlu0 %1014
  %1018 = vset.pattern.permute.xlu0 0
  %1019 = vperm.xlu0 %1018, %v973
  %v1020 = vpop.permute.xlu0 %1019
  %1023 = vset.pattern.permute.xlu0 0
  %1024 = vperm.xlu0 %1023, %v974
  %v1025 = vpop.permute.xlu0 %1024
  %1028 = vset.pattern.permute.xlu0 0
  %1029 = vperm.xlu0 %1028, %v975
  %v1030 = vpop.permute.xlu0 %1029
  %1033 = vset.pattern.permute.xlu0 0
  %1034 = vperm.xlu0 %1033, %v976
  %v1035 = vpop.permute.xlu0 %1034
  %1038 = vset.pattern.permute.xlu0 0
  %1039 = vperm.xlu0 %1038, %v977
  %v1040 = vpop.permute.xlu0 %1039
  %1043 = vset.pattern.permute.xlu0 0
  %1044 = vperm.xlu0 %1043, %v978
  %v1045 = vpop.permute.xlu0 %1044
  %1048 = vset.pattern.permute.xlu0 0
  %1049 = vperm.xlu0 %1048, %v979
  %v1050 = vpop.permute.xlu0 %1049
  %1053 = vset.pattern.permute.xlu0 0
  %1054 = vperm.xlu0 %1053, %v980
  %v1055 = vpop.permute.xlu0 %1054
  %1058 = vset.pattern.permute.xlu0 0
  %1059 = vperm.xlu0 %1058, %v981
  %v1060 = vpop.permute.xlu0 %1059
  %v1062 = vmul.f32 %v951, %v985
  %v1063 = vmul.f32 %v950, %v990
  %v1064 = vmul.f32 %v965, %v995
  %v1065 = vmul.f32 %v964, %v1000
  %v1066 = vmul.f32 %v963, %v1005
  %v1067 = vmul.f32 %v962, %v1010
  %v1068 = vmul.f32 %v961, %v1015
  %v1069 = vmul.f32 %v960, %v1020
  %v1070 = vmul.f32 %v959, %v1025
  %v1071 = vmul.f32 %v958, %v1030
  %v1072 = vmul.f32 %v957, %v1035
  %v1073 = vmul.f32 %v956, %v1040
  %v1074 = vmul.f32 %v955, %v1045
  %v1075 = vmul.f32 %v954, %v1050
  %v1076 = vmul.f32 %v953, %v1055
  %v1077 = vmul.f32 %v952, %v1060
  %v1078 = vld [vmem:[%s4] sm:$0xff]
  %v1079 = vld [vmem:[%s4 + $0x8] sm:$0xff]
  %v1080 = vld [vmem:[%s4 + $0x10] sm:$0xff]
  %v1081 = vld [vmem:[%s4 + $0x18] sm:$0xff]
  %v1082 = vrot.slane %v853, 7
  %v1083 = vrot.slane %v858, 7
  %v1084 = vrot.slane %v863, 7
  %v1085 = vrot.slane %v868, 7
  %v1086 = vrot.slane %v873, 7
  %v1087 = vrot.slane %v878, 7
  %v1088 = vrot.slane %v883, 7
  %v1089 = vrot.slane %v888, 7
  %v1090 = vrot.slane %v893, 7
  %v1091 = vrot.slane %v898, 7
  %v1092 = vrot.slane %v903, 7
  %v1093 = vrot.slane %v908, 7
  %v1094 = vrot.slane %v913, 7
  %v1095 = vrot.slane %v918, 7
  %v1096 = vrot.slane %v923, 7
  %v1097 = vrot.slane %v928, 7
  %vm1098 = vcmp.lt.s32.totalorder %v948, 1
  %v1099 = vsel %vm1098, %v1096, %v1097
  %v1100 = vsel %vm1098, %v1095, %v1096
  %v1101 = vsel %vm1098, %v1094, %v1095
  %v1102 = vsel %vm1098, %v1093, %v1094
  %v1103 = vsel %vm1098, %v1092, %v1093
  %v1104 = vsel %vm1098, %v1091, %v1092
  %v1105 = vsel %vm1098, %v1090, %v1091
  %v1106 = vsel %vm1098, %v1089, %v1090
  %v1107 = vsel %vm1098, %v1088, %v1089
  %v1108 = vsel %vm1098, %v1087, %v1088
  %v1109 = vsel %vm1098, %v1086, %v1087
  %v1110 = vsel %vm1098, %v1085, %v1086
  %v1111 = vsel %vm1098, %v1084, %v1085
  %v1112 = vsel %vm1098, %v1083, %v1084
  %v1113 = vsel %vm1098, %v1082, %v1083
  %v1114 = vsel %vm1098, %v1097, %v1082
  %s1115 = scalar_lea.vmem %s6, 128
  %v1116 = vld [vmem:[%s1115] sm:$0xff]
  %v1117 = vld [vmem:[%s1115 + $0x8] sm:$0xff]
  %v1118 = vld [vmem:[%s1115 + $0x10] sm:$0xff]
  %v1119 = vld [vmem:[%s1115 + $0x18] sm:$0xff]
  %v1120 = vld [vmem:[%s1115 + $0x20] sm:$0xff]
  %v1121 = vld [vmem:[%s1115 + $0x28] sm:$0xff]
  %v1122 = vld [vmem:[%s1115 + $0x30] sm:$0xff]
  %v1123 = vld [vmem:[%s1115 + $0x38] sm:$0xff]
  %v1124 = vld [vmem:[%s1115 + $0x40] sm:$0xff]
  %v1125 = vld [vmem:[%s1115 + $0x48] sm:$0xff]
  %v1126 = vld [vmem:[%s1115 + $0x50] sm:$0xff]
  %v1127 = vld [vmem:[%s1115 + $0x58] sm:$0xff]
  %v1128 = vld [vmem:[%s1115 + $0x60] sm:$0xff]
  %v1129 = vld [vmem:[%s1115 + $0x68] sm:$0xff]
  %v1130 = vld [vmem:[%s1115 + $0x70] sm:$0xff]
  %v1131 = vld [vmem:[%s1115 + $0x78] sm:$0xff]
  %1133 = vset.pattern.permute.xlu0 0
  %1134 = vperm.xlu0 %1133, %v1116
  %v1135 = vpop.permute.xlu0 %1134
  %1138 = vset.pattern.permute.xlu0 0
  %1139 = vperm.xlu0 %1138, %v1117
  %v1140 = vpop.permute.xlu0 %1139
  %1143 = vset.pattern.permute.xlu0 0
  %1144 = vperm.xlu0 %1143, %v1118
  %v1145 = vpop.permute.xlu0 %1144
  %1148 = vset.pattern.permute.xlu0 0
  %1149 = vperm.xlu0 %1148, %v1119
  %v1150 = vpop.permute.xlu0 %1149
  %1153 = vset.pattern.permute.xlu0 0
  %1154 = vperm.xlu0 %1153, %v1120
  %v1155 = vpop.permute.xlu0 %1154
  %1158 = vset.pattern.permute.xlu0 0
  %1159 = vperm.xlu0 %1158, %v1121
  %v1160 = vpop.permute.xlu0 %1159
  %1163 = vset.pattern.permute.xlu0 0
  %1164 = vperm.xlu0 %1163, %v1122
  %v1165 = vpop.permute.xlu0 %1164
  %1168 = vset.pattern.permute.xlu0 0
  %1169 = vperm.xlu0 %1168, %v1123
  %v1170 = vpop.permute.xlu0 %1169
  %1173 = vset.pattern.permute.xlu0 0
  %1174 = vperm.xlu0 %1173, %v1124
  %v1175 = vpop.permute.xlu0 %1174
  %1178 = vset.pattern.permute.xlu0 0
  %1179 = vperm.xlu0 %1178, %v1125
  %v1180 = vpop.permute.xlu0 %1179
  %1183 = vset.pattern.permute.xlu0 0
  %1184 = vperm.xlu0 %1183, %v1126
  %v1185 = vpop.permute.xlu0 %1184
  %1188 = vset.pattern.permute.xlu0 0
  %1189 = vperm.xlu0 %1188, %v1127
  %v1190 = vpop.permute.xlu0 %1189
  %1193 = vset.pattern.permute.xlu0 0
  %1194 = vperm.xlu0 %1193, %v1128
  %v1195 = vpop.permute.xlu0 %1194
  %1198 = vset.pattern.permute.xlu0 0
  %1199 = vperm.xlu0 %1198, %v1129
  %v1200 = vpop.permute.xlu0 %1199
  %1203 = vset.pattern.permute.xlu0 0
  %1204 = vperm.xlu0 %1203, %v1130
  %v1205 = vpop.permute.xlu0 %1204
  %1208 = vset.pattern.permute.xlu0 0
  %1209 = vperm.xlu0 %1208, %v1131
  %v1210 = vpop.permute.xlu0 %1209
  %v1212 = vmul.f32 %v1100, %v1135
  %v1213 = vmul.f32 %v1099, %v1140
  %v1214 = vmul.f32 %v1114, %v1145
  %v1215 = vmul.f32 %v1113, %v1150
  %v1216 = vmul.f32 %v1112, %v1155
  %v1217 = vmul.f32 %v1111, %v1160
  %v1218 = vmul.f32 %v1110, %v1165
  %v1219 = vmul.f32 %v1109, %v1170
  %v1220 = vmul.f32 %v1108, %v1175
  %v1221 = vmul.f32 %v1107, %v1180
  %v1222 = vmul.f32 %v1106, %v1185
  %v1223 = vmul.f32 %v1105, %v1190
  %v1224 = vmul.f32 %v1104, %v1195
  %v1225 = vmul.f32 %v1103, %v1200
  %v1226 = vmul.f32 %v1102, %v1205
  %v1227 = vmul.f32 %v1101, %v1210
  %s1228 = scalar_lea.vmem %s4, 32
  %v1229 = vld [vmem:[%s1228] sm:$0xff]
  %v1230 = vld [vmem:[%s1228 + $0x8] sm:$0xff]
  %v1231 = vld [vmem:[%s1228 + $0x10] sm:$0xff]
  %v1232 = vld [vmem:[%s1228 + $0x18] sm:$0xff]
  %vm1233 = vcmask 261120
  %v1235 = vsel %vm1233, %v1212, 0
  %v1238 = vsel %vm1233, %v1213, 0
  %v1241 = vsel %vm1233, %v1214, 0
  %v1244 = vsel %vm1233, %v1215, 0
  %v1247 = vsel %vm1233, %v1216, 0
  %v1250 = vsel %vm1233, %v1217, 0
  %v1253 = vsel %vm1233, %v1218, 0
  %v1256 = vsel %vm1233, %v1219, 0
  %v1259 = vsel %vm1233, %v1220, 0
  %v1262 = vsel %vm1233, %v1221, 0
  %v1265 = vsel %vm1233, %v1222, 0
  %v1268 = vsel %vm1233, %v1223, 0
  %v1271 = vsel %vm1233, %v1224, 0
  %v1274 = vsel %vm1233, %v1225, 0
  %v1277 = vsel %vm1233, %v1226, 0
  %v1280 = vsel %vm1233, %v1227, 0
  %1282 = vmatprep.subr.mxu0 0.0
  %1283 = vmatpush1.msra.mxu0 %v1229
  %1284 = vmatprep.subr.mxu0 0.0
  %1285 = vmatpush1.msra.mxu0 %v1230
  %1286 = vmatprep.subr.mxu0 0.0
  %1287 = vmatpush1.msra.mxu0 %v1231
  %1288 = vmatprep.subr.mxu0 0.0
  %1289 = vmatpush1.msra.mxu0 %v1232
  %1290 = vmatprep.subr.mxu0 0.0
  %1291 = vmatpush1.msra.mxu0 0.0
  %1292 = vmatprep.subr.mxu0 0.0
  %1293 = vmatpush1.msra.mxu0 0.0
  %1294 = vmatprep.subr.mxu0 0.0
  %1295 = vmatpush1.msra.mxu0 0.0
  %1296 = vmatprep.subr.mxu0 0.0
  %1297 = vmatpush1.msra.mxu0 0.0
  %1298 = vmatprep.subr.mxu0 0.0
  %1299 = vmatpush1.msra.mxu0 0.0
  %1300 = vmatprep.subr.mxu0 0.0
  %1301 = vmatpush1.msra.mxu0 0.0
  %1302 = vmatprep.subr.mxu0 0.0
  %1303 = vmatpush1.msra.mxu0 0.0
  %1304 = vmatprep.subr.mxu0 0.0
  %1305 = vmatpush1.msra.mxu0 0.0
  %1306 = vmatprep.subr.mxu0 0.0
  %1307 = vmatpush1.msra.mxu0 0.0
  %1308 = vmatprep.subr.mxu0 0.0
  %1309 = vmatpush1.msra.mxu0 0.0
  %1310 = vmatprep.subr.mxu0 0.0
  %1311 = vmatpush1.msra.mxu0 0.0
  %1312 = vmatprep.subr.mxu0 0.0
  %1313 = vmatpush1.msra.mxu0 0.0
  %1314 = vmatprep.subr.mxu0 0.0
  %1315 = vmatpush1.msra.mxu0 0.0
  %1316 = vmatprep.subr.mxu0 0.0
  %1317 = vmatpush1.msra.mxu0 0.0
  %1318 = vmatprep.subr.mxu0 0.0
  %1319 = vmatpush1.msra.mxu0 0.0
  %1320 = vmatprep.subr.mxu0 0.0
  %1321 = vmatpush1.msra.mxu0 0.0
  %1322 = vmatprep.subr.mxu0 0.0
  %1323 = vmatpush1.msra.mxu0 0.0
  %1324 = vmatprep.subr.mxu0 0.0
  %1325 = vmatpush1.msra.mxu0 0.0
  %1326 = vmatprep.subr.mxu0 0.0
  %1327 = vmatpush1.msra.mxu0 0.0
  %1328 = vmatprep.subr.mxu0 0.0
  %1329 = vmatpush1.msra.mxu0 0.0
  %1330 = vmatprep.subr.mxu0 0.0
  %1331 = vmatpush1.msra.mxu0 0.0
  %1332 = vmatprep.subr.mxu0 0.0
  %1333 = vmatpush1.msra.mxu0 0.0
  %1334 = vmatprep.subr.mxu0 0.0
  %1335 = vmatpush1.msra.mxu0 0.0
  %1336 = vmatprep.subr.mxu0 0.0
  %1337 = vmatpush1.msra.mxu0 0.0
  %1338 = vmatprep.subr.mxu0 0.0
  %1339 = vmatpush1.msra.mxu0 0.0
  %1340 = vmatprep.subr.mxu0 0.0
  %1341 = vmatpush1.msra.mxu0 0.0
  %1342 = vmatprep.subr.mxu0 0.0
  %1343 = vmatpush1.msra.mxu0 0.0
  %1344 = vmatprep.subr.mxu0 0.0
  %1345 = vmatpush1.msra.mxu0 0.0
  %1346 = vmatprep.mubr.f32.mxu0 0.0
  %1347 = vmatmul.mubr.f32.gmra.mrb[0].mxu0 %v1235
  %v1348 = vpop.f32.mrb[0].mxu0
  %v1349 = vadd.f32 0.0, %v1348
  %v1350 = vpop.f32.mrb[0].mxu0
  %1351 = vmatprep.mubr.f32.mxu0 0.0
  %1352 = vmatmul.mubr.f32.gmra.mrb[0].mxu0 %v1238
  %v1353 = vpop.f32.mrb[0].mxu0
  %v1354 = vadd.f32 0.0, %v1353
  %v1355 = vpop.f32.mrb[0].mxu0
  %1356 = vmatprep.mubr.f32.mxu0 0.0
  %1357 = vmatmul.mubr.f32.gmra.mrb[0].mxu0 %v1241
  %v1358 = vpop.f32.mrb[0].mxu0
  %v1359 = vadd.f32 0.0, %v1358
  %v1360 = vpop.f32.mrb[0].mxu0
  %1361 = vmatprep.mubr.f32.mxu0 0.0
  %1362 = vmatmul.mubr.f32.gmra.mrb[0].mxu0 %v1244
  %v1363 = vpop.f32.mrb[0].mxu0
  %v1364 = vadd.f32 0.0, %v1363
  %v1365 = vpop.f32.mrb[0].mxu0
  %1366 = vmatprep.mubr.f32.mxu0 0.0
  %1367 = vmatmul.mubr.f32.gmra.mrb[0].mxu0 %v1247
  %v1368 = vpop.f32.mrb[0].mxu0
  %v1369 = vadd.f32 0.0, %v1368
  %v1370 = vpop.f32.mrb[0].mxu0
  %1371 = vmatprep.mubr.f32.mxu0 0.0
  %1372 = vmatmul.mubr.f32.gmra.mrb[0].mxu0 %v1250
  %v1373 = vpop.f32.mrb[0].mxu0
  %v1374 = vadd.f32 0.0, %v1373
  %v1375 = vpop.f32.mrb[0].mxu0
  %1376 = vmatprep.mubr.f32.mxu0 0.0
  %1377 = vmatmul.mubr.f32.gmra.mrb[0].mxu0 %v1253
  %v1378 = vpop.f32.mrb[0].mxu0
  %v1379 = vadd.f32 0.0, %v1378
  %v1380 = vpop.f32.mrb[0].mxu0
  %1381 = vmatprep.mubr.f32.mxu0 0.0
  %1382 = vmatmul.mubr.f32.gmra.mrb[0].mxu0 %v1256
  %v1383 = vpop.f32.mrb[0].mxu0
  %v1384 = vadd.f32 0.0, %v1383
  %v1385 = vpop.f32.mrb[0].mxu0
  %1386 = vmatprep.mubr.f32.mxu0 0.0
  %1387 = vmatmul.mubr.f32.gmra.mrb[0].mxu0 %v1259
  %v1388 = vpop.f32.mrb[0].mxu0
  %v1389 = vadd.f32 0.0, %v1388
  %v1390 = vpop.f32.mrb[0].mxu0
  %1391 = vmatprep.mubr.f32.mxu0 0.0
  %1392 = vmatmul.mubr.f32.gmra.mrb[0].mxu0 %v1262
  %v1393 = vpop.f32.mrb[0].mxu0
  %v1394 = vadd.f32 0.0, %v1393
  %v1395 = vpop.f32.mrb[0].mxu0
  %1396 = vmatprep.mubr.f32.mxu0 0.0
  %1397 = vmatmul.mubr.f32.gmra.mrb[0].mxu0 %v1265
  %v1398 = vpop.f32.mrb[0].mxu0
  %v1399 = vadd.f32 0.0, %v1398
  %v1400 = vpop.f32.mrb[0].mxu0
  %1401 = vmatprep.mubr.f32.mxu0 0.0
  %1402 = vmatmul.mubr.f32.gmra.mrb[0].mxu0 %v1268
  %v1403 = vpop.f32.mrb[0].mxu0
  %v1404 = vadd.f32 0.0, %v1403
  %v1405 = vpop.f32.mrb[0].mxu0
  %1406 = vmatprep.mubr.f32.mxu0 0.0
  %1407 = vmatmul.mubr.f32.gmra.mrb[0].mxu0 %v1271
  %v1408 = vpop.f32.mrb[0].mxu0
  %v1409 = vadd.f32 0.0, %v1408
  %v1410 = vpop.f32.mrb[0].mxu0
  %1411 = vmatprep.mubr.f32.mxu0 0.0
  %1412 = vmatmul.mubr.f32.gmra.mrb[0].mxu0 %v1274
  %v1413 = vpop.f32.mrb[0].mxu0
  %v1414 = vadd.f32 0.0, %v1413
  %v1415 = vpop.f32.mrb[0].mxu0
  %1416 = vmatprep.mubr.f32.mxu0 0.0
  %1417 = vmatmul.mubr.f32.gmra.mrb[0].mxu0 %v1277
  %v1418 = vpop.f32.mrb[0].mxu0
  %v1419 = vadd.f32 0.0, %v1418
  %v1420 = vpop.f32.mrb[0].mxu0
  %1421 = vmatprep.mubr.f32.mxu0 0.0
  %1422 = vmatmul.mubr.f32.gmra.mrb[0].mxu0 %v1280
  %v1423 = vpop.f32.mrb[0].mxu0
  %v1424 = vadd.f32 0.0, %v1423
  %v1425 = vpop.f32.mrb[0].mxu0
  %1426 = vdwg.mxu0
  %v1428 = vsel %vm1233, %v1062, 0
  %v1431 = vsel %vm1233, %v1063, 0
  %v1434 = vsel %vm1233, %v1064, 0
  %v1437 = vsel %vm1233, %v1065, 0
  %v1440 = vsel %vm1233, %v1066, 0
  %v1443 = vsel %vm1233, %v1067, 0
  %v1446 = vsel %vm1233, %v1068, 0
  %v1449 = vsel %vm1233, %v1069, 0
  %v1452 = vsel %vm1233, %v1070, 0
  %v1455 = vsel %vm1233, %v1071, 0
  %v1458 = vsel %vm1233, %v1072, 0
  %v1461 = vsel %vm1233, %v1073, 0
  %v1464 = vsel %vm1233, %v1074, 0
  %v1467 = vsel %vm1233, %v1075, 0
  %v1470 = vsel %vm1233, %v1076, 0
  %v1473 = vsel %vm1233, %v1077, 0
  %1475 = vmatprep.subr.mxu0 0.0
  %1476 = vmatpush1.msra.mxu0 %v1078
  %1477 = vmatprep.subr.mxu0 0.0
  %1478 = vmatpush1.msra.mxu0 %v1079
  %1479 = vmatprep.subr.mxu0 0.0
  %1480 = vmatpush1.msra.mxu0 %v1080
  %1481 = vmatprep.subr.mxu0 0.0
  %1482 = vmatpush1.msra.mxu0 %v1081
  %1483 = vmatprep.subr.mxu0 0.0
  %1484 = vmatpush1.msra.mxu0 0.0
  %1485 = vmatprep.subr.mxu0 0.0
  %1486 = vmatpush1.msra.mxu0 0.0
  %1487 = vmatprep.subr.mxu0 0.0
  %1488 = vmatpush1.msra.mxu0 0.0
  %1489 = vmatprep.subr.mxu0 0.0
  %1490 = vmatpush1.msra.mxu0 0.0
  %1491 = vmatprep.subr.mxu0 0.0
  %1492 = vmatpush1.msra.mxu0 0.0
  %1493 = vmatprep.subr.mxu0 0.0
  %1494 = vmatpush1.msra.mxu0 0.0
  %1495 = vmatprep.subr.mxu0 0.0
  %1496 = vmatpush1.msra.mxu0 0.0
  %1497 = vmatprep.subr.mxu0 0.0
  %1498 = vmatpush1.msra.mxu0 0.0
  %1499 = vmatprep.subr.mxu0 0.0
  %1500 = vmatpush1.msra.mxu0 0.0
  %1501 = vmatprep.subr.mxu0 0.0
  %1502 = vmatpush1.msra.mxu0 0.0
  %1503 = vmatprep.subr.mxu0 0.0
  %1504 = vmatpush1.msra.mxu0 0.0
  %1505 = vmatprep.subr.mxu0 0.0
  %1506 = vmatpush1.msra.mxu0 0.0
  %1507 = vmatprep.subr.mxu0 0.0
  %1508 = vmatpush1.msra.mxu0 0.0
  %1509 = vmatprep.subr.mxu0 0.0
  %1510 = vmatpush1.msra.mxu0 0.0
  %1511 = vmatprep.subr.mxu0 0.0
  %1512 = vmatpush1.msra.mxu0 0.0
  %1513 = vmatprep.subr.mxu0 0.0
  %1514 = vmatpush1.msra.mxu0 0.0
  %1515 = vmatprep.subr.mxu0 0.0
  %1516 = vmatpush1.msra.mxu0 0.0
  %1517 = vmatprep.subr.mxu0 0.0
  %1518 = vmatpush1.msra.mxu0 0.0
  %1519 = vmatprep.subr.mxu0 0.0
  %1520 = vmatpush1.msra.mxu0 0.0
  %1521 = vmatprep.subr.mxu0 0.0
  %1522 = vmatpush1.msra.mxu0 0.0
  %1523 = vmatprep.subr.mxu0 0.0
  %1524 = vmatpush1.msra.mxu0 0.0
  %1525 = vmatprep.subr.mxu0 0.0
  %1526 = vmatpush1.msra.mxu0 0.0
  %1527 = vmatprep.subr.mxu0 0.0
  %1528 = vmatpush1.msra.mxu0 0.0
  %1529 = vmatprep.subr.mxu0 0.0
  %1530 = vmatpush1.msra.mxu0 0.0
  %1531 = vmatprep.subr.mxu0 0.0
  %1532 = vmatpush1.msra.mxu0 0.0
  %1533 = vmatprep.subr.mxu0 0.0
  %1534 = vmatpush1.msra.mxu0 0.0
  %1535 = vmatprep.subr.mxu0 0.0
  %1536 = vmatpush1.msra.mxu0 0.0
  %1537 = vmatprep.subr.mxu0 0.0
  %1538 = vmatpush1.msra.mxu0 0.0
  %1539 = vmatprep.mubr.f32.mxu0 0.0
  %1540 = vmatmul.mubr.f32.gmra.mrb[0].mxu0 %v1428
  %v1541 = vpop.f32.mrb[0].mxu0
  %v1542 = vadd.f32 %v1349, %v1541
  %v1543 = vpop.f32.mrb[0].mxu0
  %1544 = vmatprep.mubr.f32.mxu0 0.0
  %1545 = vmatmul.mubr.f32.gmra.mrb[0].mxu0 %v1431
  %v1546 = vpop.f32.mrb[0].mxu0
  %v1547 = vadd.f32 %v1354, %v1546
  %v1548 = vpop.f32.mrb[0].mxu0
  %1549 = vmatprep.mubr.f32.mxu0 0.0
  %1550 = vmatmul.mubr.f32.gmra.mrb[0].mxu0 %v1434
  %v1551 = vpop.f32.mrb[0].mxu0
  %v1552 = vadd.f32 %v1359, %v1551
  %v1553 = vpop.f32.mrb[0].mxu0
  %1554 = vmatprep.mubr.f32.mxu0 0.0
  %1555 = vmatmul.mubr.f32.gmra.mrb[0].mxu0 %v1437
  %v1556 = vpop.f32.mrb[0].mxu0
  %v1557 = vadd.f32 %v1364, %v1556
  %v1558 = vpop.f32.mrb[0].mxu0
  %1559 = vmatprep.mubr.f32.mxu0 0.0
  %1560 = vmatmul.mubr.f32.gmra.mrb[0].mxu0 %v1440
  %v1561 = vpop.f32.mrb[0].mxu0
  %v1562 = vadd.f32 %v1369, %v1561
  %v1563 = vpop.f32.mrb[0].mxu0
  %1564 = vmatprep.mubr.f32.mxu0 0.0
  %1565 = vmatmul.mubr.f32.gmra.mrb[0].mxu0 %v1443
  %v1566 = vpop.f32.mrb[0].mxu0
  %v1567 = vadd.f32 %v1374, %v1566
  %v1568 = vpop.f32.mrb[0].mxu0
  %1569 = vmatprep.mubr.f32.mxu0 0.0
  %1570 = vmatmul.mubr.f32.gmra.mrb[0].mxu0 %v1446
  %v1571 = vpop.f32.mrb[0].mxu0
  %v1572 = vadd.f32 %v1379, %v1571
  %v1573 = vpop.f32.mrb[0].mxu0
  %1574 = vmatprep.mubr.f32.mxu0 0.0
  %1575 = vmatmul.mubr.f32.gmra.mrb[0].mxu0 %v1449
  %v1576 = vpop.f32.mrb[0].mxu0
  %v1577 = vadd.f32 %v1384, %v1576
  %v1578 = vpop.f32.mrb[0].mxu0
  %1579 = vmatprep.mubr.f32.mxu0 0.0
  %1580 = vmatmul.mubr.f32.gmra.mrb[0].mxu0 %v1452
  %v1581 = vpop.f32.mrb[0].mxu0
  %v1582 = vadd.f32 %v1389, %v1581
  %v1583 = vpop.f32.mrb[0].mxu0
  %1584 = vmatprep.mubr.f32.mxu0 0.0
  %1585 = vmatmul.mubr.f32.gmra.mrb[0].mxu0 %v1455
  %v1586 = vpop.f32.mrb[0].mxu0
  %v1587 = vadd.f32 %v1394, %v1586
  %v1588 = vpop.f32.mrb[0].mxu0
  %1589 = vmatprep.mubr.f32.mxu0 0.0
  %1590 = vmatmul.mubr.f32.gmra.mrb[0].mxu0 %v1458
  %v1591 = vpop.f32.mrb[0].mxu0
  %v1592 = vadd.f32 %v1399, %v1591
  %v1593 = vpop.f32.mrb[0].mxu0
  %1594 = vmatprep.mubr.f32.mxu0 0.0
  %1595 = vmatmul.mubr.f32.gmra.mrb[0].mxu0 %v1461
  %v1596 = vpop.f32.mrb[0].mxu0
  %v1597 = vadd.f32 %v1404, %v1596
  %v1598 = vpop.f32.mrb[0].mxu0
  %1599 = vmatprep.mubr.f32.mxu0 0.0
  %1600 = vmatmul.mubr.f32.gmra.mrb[0].mxu0 %v1464
  %v1601 = vpop.f32.mrb[0].mxu0
  %v1602 = vadd.f32 %v1409, %v1601
  %v1603 = vpop.f32.mrb[0].mxu0
  %1604 = vmatprep.mubr.f32.mxu0 0.0
  %1605 = vmatmul.mubr.f32.gmra.mrb[0].mxu0 %v1467
  %v1606 = vpop.f32.mrb[0].mxu0
  %v1607 = vadd.f32 %v1414, %v1606
  %v1608 = vpop.f32.mrb[0].mxu0
  %1609 = vmatprep.mubr.f32.mxu0 0.0
  %1610 = vmatmul.mubr.f32.gmra.mrb[0].mxu0 %v1470
  %v1611 = vpop.f32.mrb[0].mxu0
  %v1612 = vadd.f32 %v1419, %v1611
  %v1613 = vpop.f32.mrb[0].mxu0
  %1614 = vmatprep.mubr.f32.mxu0 0.0
  %1615 = vmatmul.mubr.f32.gmra.mrb[0].mxu0 %v1473
  %v1616 = vpop.f32.mrb[0].mxu0
  %v1617 = vadd.f32 %v1424, %v1616
  %v1618 = vpop.f32.mrb[0].mxu0
  %1619 = vdwg.mxu0
  %s1620 = scalar_lea.vmem %s6, 256
  %v1621 = vld [vmem:[%s1620] sm:$0xff]
  %v1622 = vld [vmem:[%s1620 + $0x8] sm:$0xff]
  %v1623 = vld [vmem:[%s1620 + $0x10] sm:$0xff]
  %v1624 = vld [vmem:[%s1620 + $0x18] sm:$0xff]
  %v1625 = vld [vmem:[%s1620 + $0x20] sm:$0xff]
  %v1626 = vld [vmem:[%s1620 + $0x28] sm:$0xff]
  %v1627 = vld [vmem:[%s1620 + $0x30] sm:$0xff]
  %v1628 = vld [vmem:[%s1620 + $0x38] sm:$0xff]
  %v1629 = vld [vmem:[%s1620 + $0x40] sm:$0xff]
  %v1630 = vld [vmem:[%s1620 + $0x48] sm:$0xff]
  %v1631 = vld [vmem:[%s1620 + $0x50] sm:$0xff]
  %v1632 = vld [vmem:[%s1620 + $0x58] sm:$0xff]
  %v1633 = vld [vmem:[%s1620 + $0x60] sm:$0xff]
  %v1634 = vld [vmem:[%s1620 + $0x68] sm:$0xff]
  %v1635 = vld [vmem:[%s1620 + $0x70] sm:$0xff]
  %v1636 = vld [vmem:[%s1620 + $0x78] sm:$0xff]
  %1638 = vset.pattern.permute.xlu0 0
  %1639 = vperm.xlu0 %1638, %v1621
  %v1640 = vpop.permute.xlu0 %1639
  %1643 = vset.pattern.permute.xlu0 0
  %1644 = vperm.xlu0 %1643, %v1622
  %v1645 = vpop.permute.xlu0 %1644
  %1648 = vset.pattern.permute.xlu0 0
  %1649 = vperm.xlu0 %1648, %v1623
  %v1650 = vpop.permute.xlu0 %1649
  %1653 = vset.pattern.permute.xlu0 0
  %1654 = vperm.xlu0 %1653, %v1624
  %v1655 = vpop.permute.xlu0 %1654
  %1658 = vset.pattern.permute.xlu0 0
  %1659 = vperm.xlu0 %1658, %v1625
  %v1660 = vpop.permute.xlu0 %1659
  %1663 = vset.pattern.permute.xlu0 0
  %1664 = vperm.xlu0 %1663, %v1626
  %v1665 = vpop.permute.xlu0 %1664
  %1668 = vset.pattern.permute.xlu0 0
  %1669 = vperm.xlu0 %1668, %v1627
  %v1670 = vpop.permute.xlu0 %1669
  %1673 = vset.pattern.permute.xlu0 0
  %1674 = vperm.xlu0 %1673, %v1628
  %v1675 = vpop.permute.xlu0 %1674
  %1678 = vset.pattern.permute.xlu0 0
  %1679 = vperm.xlu0 %1678, %v1629
  %v1680 = vpop.permute.xlu0 %1679
  %1683 = vset.pattern.permute.xlu0 0
  %1684 = vperm.xlu0 %1683, %v1630
  %v1685 = vpop.permute.xlu0 %1684
  %1688 = vset.pattern.permute.xlu0 0
  %1689 = vperm.xlu0 %1688, %v1631
  %v1690 = vpop.permute.xlu0 %1689
  %1693 = vset.pattern.permute.xlu0 0
  %1694 = vperm.xlu0 %1693, %v1632
  %v1695 = vpop.permute.xlu0 %1694
  %1698 = vset.pattern.permute.xlu0 0
  %1699 = vperm.xlu0 %1698, %v1633
  %v1700 = vpop.permute.xlu0 %1699
  %1703 = vset.pattern.permute.xlu0 0
  %1704 = vperm.xlu0 %1703, %v1634
  %v1705 = vpop.permute.xlu0 %1704
  %1708 = vset.pattern.permute.xlu0 0
  %1709 = vperm.xlu0 %1708, %v1635
  %v1710 = vpop.permute.xlu0 %1709
  %1713 = vset.pattern.permute.xlu0 0
  %1714 = vperm.xlu0 %1713, %v1636
  %v1715 = vpop.permute.xlu0 %1714
  %v1717 = vmul.f32 %v923, %v1640
  %v1718 = vmul.f32 %v928, %v1645
  %v1719 = vmul.f32 %v853, %v1650
  %v1720 = vmul.f32 %v858, %v1655
  %v1721 = vmul.f32 %v863, %v1660
  %v1722 = vmul.f32 %v868, %v1665
  %v1723 = vmul.f32 %v873, %v1670
  %v1724 = vmul.f32 %v878, %v1675
  %v1725 = vmul.f32 %v883, %v1680
  %v1726 = vmul.f32 %v888, %v1685
  %v1727 = vmul.f32 %v893, %v1690
  %v1728 = vmul.f32 %v898, %v1695
  %v1729 = vmul.f32 %v903, %v1700
  %v1730 = vmul.f32 %v908, %v1705
  %v1731 = vmul.f32 %v913, %v1710
  %v1732 = vmul.f32 %v918, %v1715
  %s1733 = scalar_lea.vmem %s4, 64
  %v1734 = vld [vmem:[%s1733] sm:$0xff]
  %v1735 = vld [vmem:[%s1733 + $0x8] sm:$0xff]
  %v1736 = vld [vmem:[%s1733 + $0x10] sm:$0xff]
  %v1737 = vld [vmem:[%s1733 + $0x18] sm:$0xff]
  %v1739 = vsel %vm1233, %v1717, 0
  %v1742 = vsel %vm1233, %v1718, 0
  %v1745 = vsel %vm1233, %v1719, 0
  %v1748 = vsel %vm1233, %v1720, 0
  %v1751 = vsel %vm1233, %v1721, 0
  %v1754 = vsel %vm1233, %v1722, 0
  %v1757 = vsel %vm1233, %v1723, 0
  %v1760 = vsel %vm1233, %v1724, 0
  %v1763 = vsel %vm1233, %v1725, 0
  %v1766 = vsel %vm1233, %v1726, 0
  %v1769 = vsel %vm1233, %v1727, 0
  %v1772 = vsel %vm1233, %v1728, 0
  %v1775 = vsel %vm1233, %v1729, 0
  %v1778 = vsel %vm1233, %v1730, 0
  %v1781 = vsel %vm1233, %v1731, 0
  %v1784 = vsel %vm1233, %v1732, 0
  %1786 = vmatprep.subr.mxu0 0.0
  %1787 = vmatpush1.msra.mxu0 %v1734
  %1788 = vmatprep.subr.mxu0 0.0
  %1789 = vmatpush1.msra.mxu0 %v1735
  %1790 = vmatprep.subr.mxu0 0.0
  %1791 = vmatpush1.msra.mxu0 %v1736
  %1792 = vmatprep.subr.mxu0 0.0
  %1793 = vmatpush1.msra.mxu0 %v1737
  %1794 = vmatprep.subr.mxu0 0.0
  %1795 = vmatpush1.msra.mxu0 0.0
  %1796 = vmatprep.subr.mxu0 0.0
  %1797 = vmatpush1.msra.mxu0 0.0
  %1798 = vmatprep.subr.mxu0 0.0
  %1799 = vmatpush1.msra.mxu0 0.0
  %1800 = vmatprep.subr.mxu0 0.0
  %1801 = vmatpush1.msra.mxu0 0.0
  %1802 = vmatprep.subr.mxu0 0.0
  %1803 = vmatpush1.msra.mxu0 0.0
  %1804 = vmatprep.subr.mxu0 0.0
  %1805 = vmatpush1.msra.mxu0 0.0
  %1806 = vmatprep.subr.mxu0 0.0
  %1807 = vmatpush1.msra.mxu0 0.0
  %1808 = vmatprep.subr.mxu0 0.0
  %1809 = vmatpush1.msra.mxu0 0.0
  %1810 = vmatprep.subr.mxu0 0.0
  %1811 = vmatpush1.msra.mxu0 0.0
  %1812 = vmatprep.subr.mxu0 0.0
  %1813 = vmatpush1.msra.mxu0 0.0
  %1814 = vmatprep.subr.mxu0 0.0
  %1815 = vmatpush1.msra.mxu0 0.0
  %1816 = vmatprep.subr.mxu0 0.0
  %1817 = vmatpush1.msra.mxu0 0.0
  %1818 = vmatprep.subr.mxu0 0.0
  %1819 = vmatpush1.msra.mxu0 0.0
  %1820 = vmatprep.subr.mxu0 0.0
  %1821 = vmatpush1.msra.mxu0 0.0
  %1822 = vmatprep.subr.mxu0 0.0
  %1823 = vmatpush1.msra.mxu0 0.0
  %1824 = vmatprep.subr.mxu0 0.0
  %1825 = vmatpush1.msra.mxu0 0.0
  %1826 = vmatprep.subr.mxu0 0.0
  %1827 = vmatpush1.msra.mxu0 0.0
  %1828 = vmatprep.subr.mxu0 0.0
  %1829 = vmatpush1.msra.mxu0 0.0
  %1830 = vmatprep.subr.mxu0 0.0
  %1831 = vmatpush1.msra.mxu0 0.0
  %1832 = vmatprep.subr.mxu0 0.0
  %1833 = vmatpush1.msra.mxu0 0.0
  %1834 = vmatprep.subr.mxu0 0.0
  %1835 = vmatpush1.msra.mxu0 0.0
  %1836 = vmatprep.subr.mxu0 0.0
  %1837 = vmatpush1.msra.mxu0 0.0
  %1838 = vmatprep.subr.mxu0 0.0
  %1839 = vmatpush1.msra.mxu0 0.0
  %1840 = vmatprep.subr.mxu0 0.0
  %1841 = vmatpush1.msra.mxu0 0.0
  %1842 = vmatprep.subr.mxu0 0.0
  %1843 = vmatpush1.msra.mxu0 0.0
  %1844 = vmatprep.subr.mxu0 0.0
  %1845 = vmatpush1.msra.mxu0 0.0
  %1846 = vmatprep.subr.mxu0 0.0
  %1847 = vmatpush1.msra.mxu0 0.0
  %1848 = vmatprep.subr.mxu0 0.0
  %1849 = vmatpush1.msra.mxu0 0.0
  %1850 = vmatprep.mubr.f32.mxu0 0.0
  %1851 = vmatmul.mubr.f32.gmra.mrb[0].mxu0 %v1739
  %v1852 = vpop.f32.mrb[0].mxu0
  %v1853 = vadd.f32 0.0, %v1852
  %v1854 = vpop.f32.mrb[0].mxu0
  %1855 = vmatprep.mubr.f32.mxu0 0.0
  %1856 = vmatmul.mubr.f32.gmra.mrb[0].mxu0 %v1742
  %v1857 = vpop.f32.mrb[0].mxu0
  %v1858 = vadd.f32 0.0, %v1857
  %v1859 = vpop.f32.mrb[0].mxu0
  %1860 = vmatprep.mubr.f32.mxu0 0.0
  %1861 = vmatmul.mubr.f32.gmra.mrb[0].mxu0 %v1745
  %v1862 = vpop.f32.mrb[0].mxu0
  %v1863 = vadd.f32 0.0, %v1862
  %v1864 = vpop.f32.mrb[0].mxu0
  %1865 = vmatprep.mubr.f32.mxu0 0.0
  %1866 = vmatmul.mubr.f32.gmra.mrb[0].mxu0 %v1748
  %v1867 = vpop.f32.mrb[0].mxu0
  %v1868 = vadd.f32 0.0, %v1867
  %v1869 = vpop.f32.mrb[0].mxu0
  %1870 = vmatprep.mubr.f32.mxu0 0.0
  %1871 = vmatmul.mubr.f32.gmra.mrb[0].mxu0 %v1751
  %v1872 = vpop.f32.mrb[0].mxu0
  %v1873 = vadd.f32 0.0, %v1872
  %v1874 = vpop.f32.mrb[0].mxu0
  %1875 = vmatprep.mubr.f32.mxu0 0.0
  %1876 = vmatmul.mubr.f32.gmra.mrb[0].mxu0 %v1754
  %v1877 = vpop.f32.mrb[0].mxu0
  %v1878 = vadd.f32 0.0, %v1877
  %v1879 = vpop.f32.mrb[0].mxu0
  %1880 = vmatprep.mubr.f32.mxu0 0.0
  %1881 = vmatmul.mubr.f32.gmra.mrb[0].mxu0 %v1757
  %v1882 = vpop.f32.mrb[0].mxu0
  %v1883 = vadd.f32 0.0, %v1882
  %v1884 = vpop.f32.mrb[0].mxu0
  %1885 = vmatprep.mubr.f32.mxu0 0.0
  %1886 = vmatmul.mubr.f32.gmra.mrb[0].mxu0 %v1760
  %v1887 = vpop.f32.mrb[0].mxu0
  %v1888 = vadd.f32 0.0, %v1887
  %v1889 = vpop.f32.mrb[0].mxu0
  %1890 = vmatprep.mubr.f32.mxu0 0.0
  %1891 = vmatmul.mubr.f32.gmra.mrb[0].mxu0 %v1763
  %v1892 = vpop.f32.mrb[0].mxu0
  %v1893 = vadd.f32 0.0, %v1892
  %v1894 = vpop.f32.mrb[0].mxu0
  %1895 = vmatprep.mubr.f32.mxu0 0.0
  %1896 = vmatmul.mubr.f32.gmra.mrb[0].mxu0 %v1766
  %v1897 = vpop.f32.mrb[0].mxu0
  %v1898 = vadd.f32 0.0, %v1897
  %v1899 = vpop.f32.mrb[0].mxu0
  %1900 = vmatprep.mubr.f32.mxu0 0.0
  %1901 = vmatmul.mubr.f32.gmra.mrb[0].mxu0 %v1769
  %v1902 = vpop.f32.mrb[0].mxu0
  %v1903 = vadd.f32 0.0, %v1902
  %v1904 = vpop.f32.mrb[0].mxu0
  %1905 = vmatprep.mubr.f32.mxu0 0.0
  %1906 = vmatmul.mubr.f32.gmra.mrb[0].mxu0 %v1772
  %v1907 = vpop.f32.mrb[0].mxu0
  %v1908 = vadd.f32 0.0, %v1907
  %v1909 = vpop.f32.mrb[0].mxu0
  %1910 = vmatprep.mubr.f32.mxu0 0.0
  %1911 = vmatmul.mubr.f32.gmra.mrb[0].mxu0 %v1775
  %v1912 = vpop.f32.mrb[0].mxu0
  %v1913 = vadd.f32 0.0, %v1912
  %v1914 = vpop.f32.mrb[0].mxu0
  %1915 = vmatprep.mubr.f32.mxu0 0.0
  %1916 = vmatmul.mubr.f32.gmra.mrb[0].mxu0 %v1778
  %v1917 = vpop.f32.mrb[0].mxu0
  %v1918 = vadd.f32 0.0, %v1917
  %v1919 = vpop.f32.mrb[0].mxu0
  %1920 = vmatprep.mubr.f32.mxu0 0.0
  %1921 = vmatmul.mubr.f32.gmra.mrb[0].mxu0 %v1781
  %v1922 = vpop.f32.mrb[0].mxu0
  %v1923 = vadd.f32 0.0, %v1922
  %v1924 = vpop.f32.mrb[0].mxu0
  %1925 = vmatprep.mubr.f32.mxu0 0.0
  %1926 = vmatmul.mubr.f32.gmra.mrb[0].mxu0 %v1784
  %v1927 = vpop.f32.mrb[0].mxu0
  %v1928 = vadd.f32 0.0, %v1927
  %v1929 = vpop.f32.mrb[0].mxu0
  %1930 = vdwg.mxu0
  %v1931 = vadd.f32 %v1542, %v1853
  %v1932 = vadd.f32 %v1547, %v1858
  %v1933 = vadd.f32 %v1552, %v1863
  %v1934 = vadd.f32 %v1557, %v1868
  %v1935 = vadd.f32 %v1562, %v1873
  %v1936 = vadd.f32 %v1567, %v1878
  %v1937 = vadd.f32 %v1572, %v1883
  %v1938 = vadd.f32 %v1577, %v1888
  %v1939 = vadd.f32 %v1582, %v1893
  %v1940 = vadd.f32 %v1587, %v1898
  %v1941 = vadd.f32 %v1592, %v1903
  %v1942 = vadd.f32 %v1597, %v1908
  %v1943 = vadd.f32 %v1602, %v1913
  %v1944 = vadd.f32 %v1607, %v1918
  %v1945 = vadd.f32 %v1612, %v1923
  %v1946 = vadd.f32 %v1617, %v1928
  %v1947 = vrot.slane %v853, 1
  %v1948 = vrot.slane %v858, 1
  %v1949 = vrot.slane %v863, 1
  %v1950 = vrot.slane %v868, 1
  %v1951 = vrot.slane %v873, 1
  %v1952 = vrot.slane %v878, 1
  %v1953 = vrot.slane %v883, 1
  %v1954 = vrot.slane %v888, 1
  %v1955 = vrot.slane %v893, 1
  %v1956 = vrot.slane %v898, 1
  %v1957 = vrot.slane %v903, 1
  %v1958 = vrot.slane %v908, 1
  %v1959 = vrot.slane %v913, 1
  %v1960 = vrot.slane %v918, 1
  %v1961 = vrot.slane %v923, 1
  %v1962 = vrot.slane %v928, 1
  %vm1963 = vcmp.lt.s32.totalorder %v948, 7
  %v1964 = vsel %vm1963, %v1961, %v1962
  %v1965 = vsel %vm1963, %v1960, %v1961
  %v1966 = vsel %vm1963, %v1959, %v1960
  %v1967 = vsel %vm1963, %v1958, %v1959
  %v1968 = vsel %vm1963, %v1957, %v1958
  %v1969 = vsel %vm1963, %v1956, %v1957
  %v1970 = vsel %vm1963, %v1955, %v1956
  %v1971 = vsel %vm1963, %v1954, %v1955
  %v1972 = vsel %vm1963, %v1953, %v1954
  %v1973 = vsel %vm1963, %v1952, %v1953
  %v1974 = vsel %vm1963, %v1951, %v1952
  %v1975 = vsel %vm1963, %v1950, %v1951
  %v1976 = vsel %vm1963, %v1949, %v1950
  %v1977 = vsel %vm1963, %v1948, %v1949
  %v1978 = vsel %vm1963, %v1947, %v1948
  %v1979 = vsel %vm1963, %v1962, %v1947
  %s1980 = scalar_lea.vmem %s6, 384
  %v1981 = vld [vmem:[%s1980] sm:$0xff]
  %v1982 = vld [vmem:[%s1980 + $0x8] sm:$0xff]
  %v1983 = vld [vmem:[%s1980 + $0x10] sm:$0xff]
  %v1984 = vld [vmem:[%s1980 + $0x18] sm:$0xff]
  %v1985 = vld [vmem:[%s1980 + $0x20] sm:$0xff]
  %v1986 = vld [vmem:[%s1980 + $0x28] sm:$0xff]
  %v1987 = vld [vmem:[%s1980 + $0x30] sm:$0xff]
  %v1988 = vld [vmem:[%s1980 + $0x38] sm:$0xff]
  %v1989 = vld [vmem:[%s1980 + $0x40] sm:$0xff]
  %v1990 = vld [vmem:[%s1980 + $0x48] sm:$0xff]
  %v1991 = vld [vmem:[%s1980 + $0x50] sm:$0xff]
  %v1992 = vld [vmem:[%s1980 + $0x58] sm:$0xff]
  %v1993 = vld [vmem:[%s1980 + $0x60] sm:$0xff]
  %v1994 = vld [vmem:[%s1980 + $0x68] sm:$0xff]
  %v1995 = vld [vmem:[%s1980 + $0x70] sm:$0xff]
  %v1996 = vld [vmem:[%s1980 + $0x78] sm:$0xff]
  %1998 = vset.pattern.permute.xlu0 0
  %1999 = vperm.xlu0 %1998, %v1981
  %v2000 = vpop.permute.xlu0 %1999
  %2003 = vset.pattern.permute.xlu0 0
  %2004 = vperm.xlu0 %2003, %v1982
  %v2005 = vpop.permute.xlu0 %2004
  %2008 = vset.pattern.permute.xlu0 0
  %2009 = vperm.xlu0 %2008, %v1983
  %v2010 = vpop.permute.xlu0 %2009
  %2013 = vset.pattern.permute.xlu0 0
  %2014 = vperm.xlu0 %2013, %v1984
  %v2015 = vpop.permute.xlu0 %2014
  %2018 = vset.pattern.permute.xlu0 0
  %2019 = vperm.xlu0 %2018, %v1985
  %v2020 = vpop.permute.xlu0 %2019
  %2023 = vset.pattern.permute.xlu0 0
  %2024 = vperm.xlu0 %2023, %v1986
  %v2025 = vpop.permute.xlu0 %2024
  %2028 = vset.pattern.permute.xlu0 0
  %2029 = vperm.xlu0 %2028, %v1987
  %v2030 = vpop.permute.xlu0 %2029
  %2033 = vset.pattern.permute.xlu0 0
  %2034 = vperm.xlu0 %2033, %v1988
  %v2035 = vpop.permute.xlu0 %2034
  %2038 = vset.pattern.permute.xlu0 0
  %2039 = vperm.xlu0 %2038, %v1989
  %v2040 = vpop.permute.xlu0 %2039
  %2043 = vset.pattern.permute.xlu0 0
  %2044 = vperm.xlu0 %2043, %v1990
  %v2045 = vpop.permute.xlu0 %2044
  %2048 = vset.pattern.permute.xlu0 0
  %2049 = vperm.xlu0 %2048, %v1991
  %v2050 = vpop.permute.xlu0 %2049
  %2053 = vset.pattern.permute.xlu0 0
  %2054 = vperm.xlu0 %2053, %v1992
  %v2055 = vpop.permute.xlu0 %2054
  %2058 = vset.pattern.permute.xlu0 0
  %2059 = vperm.xlu0 %2058, %v1993
  %v2060 = vpop.permute.xlu0 %2059
  %2063 = vset.pattern.permute.xlu0 0
  %2064 = vperm.xlu0 %2063, %v1994
  %v2065 = vpop.permute.xlu0 %2064
  %2068 = vset.pattern.permute.xlu0 0
  %2069 = vperm.xlu0 %2068, %v1995
  %v2070 = vpop.permute.xlu0 %2069
  %2073 = vset.pattern.permute.xlu0 0
  %2074 = vperm.xlu0 %2073, %v1996
  %v2075 = vpop.permute.xlu0 %2074
  %v2077 = vmul.f32 %v1964, %v2000
  %v2078 = vmul.f32 %v1979, %v2005
  %v2079 = vmul.f32 %v1978, %v2010
  %v2080 = vmul.f32 %v1977, %v2015
  %v2081 = vmul.f32 %v1976, %v2020
  %v2082 = vmul.f32 %v1975, %v2025
  %v2083 = vmul.f32 %v1974, %v2030
  %v2084 = vmul.f32 %v1973, %v2035
  %v2085 = vmul.f32 %v1972, %v2040
  %v2086 = vmul.f32 %v1971, %v2045
  %v2087 = vmul.f32 %v1970, %v2050
  %v2088 = vmul.f32 %v1969, %v2055
  %v2089 = vmul.f32 %v1968, %v2060
  %v2090 = vmul.f32 %v1967, %v2065
  %v2091 = vmul.f32 %v1966, %v2070
  %v2092 = vmul.f32 %v1965, %v2075
  %s2093 = scalar_lea.vmem %s4, 96
  %v2094 = vld [vmem:[%s2093] sm:$0xff]
  %v2095 = vld [vmem:[%s2093 + $0x8] sm:$0xff]
  %v2096 = vld [vmem:[%s2093 + $0x10] sm:$0xff]
  %v2097 = vld [vmem:[%s2093 + $0x18] sm:$0xff]
  %v2099 = vsel %vm1233, %v2077, 0
  %v2102 = vsel %vm1233, %v2078, 0
  %v2105 = vsel %vm1233, %v2079, 0
  %v2108 = vsel %vm1233, %v2080, 0
  %v2111 = vsel %vm1233, %v2081, 0
  %v2114 = vsel %vm1233, %v2082, 0
  %v2117 = vsel %vm1233, %v2083, 0
  %v2120 = vsel %vm1233, %v2084, 0
  %v2123 = vsel %vm1233, %v2085, 0
  %v2126 = vsel %vm1233, %v2086, 0
  %v2129 = vsel %vm1233, %v2087, 0
  %v2132 = vsel %vm1233, %v2088, 0
  %v2135 = vsel %vm1233, %v2089, 0
  %v2138 = vsel %vm1233, %v2090, 0
  %v2141 = vsel %vm1233, %v2091, 0
  %v2144 = vsel %vm1233, %v2092, 0
  %2146 = vmatprep.subr.mxu0 0.0
  %2147 = vmatpush1.msra.mxu0 %v2094
  %2148 = vmatprep.subr.mxu0 0.0
  %2149 = vmatpush1.msra.mxu0 %v2095
  %2150 = vmatprep.subr.mxu0 0.0
  %2151 = vmatpush1.msra.mxu0 %v2096
  %2152 = vmatprep.subr.mxu0 0.0
  %2153 = vmatpush1.msra.mxu0 %v2097
  %2154 = vmatprep.subr.mxu0 0.0
  %2155 = vmatpush1.msra.mxu0 0.0
  %2156 = vmatprep.subr.mxu0 0.0
  %2157 = vmatpush1.msra.mxu0 0.0
  %2158 = vmatprep.subr.mxu0 0.0
  %2159 = vmatpush1.msra.mxu0 0.0
  %2160 = vmatprep.subr.mxu0 0.0
  %2161 = vmatpush1.msra.mxu0 0.0
  %2162 = vmatprep.subr.mxu0 0.0
  %2163 = vmatpush1.msra.mxu0 0.0
  %2164 = vmatprep.subr.mxu0 0.0
  %2165 = vmatpush1.msra.mxu0 0.0
  %2166 = vmatprep.subr.mxu0 0.0
  %2167 = vmatpush1.msra.mxu0 0.0
  %2168 = vmatprep.subr.mxu0 0.0
  %2169 = vmatpush1.msra.mxu0 0.0
  %2170 = vmatprep.subr.mxu0 0.0
  %2171 = vmatpush1.msra.mxu0 0.0
  %2172 = vmatprep.subr.mxu0 0.0
  %2173 = vmatpush1.msra.mxu0 0.0
  %2174 = vmatprep.subr.mxu0 0.0
  %2175 = vmatpush1.msra.mxu0 0.0
  %2176 = vmatprep.subr.mxu0 0.0
  %2177 = vmatpush1.msra.mxu0 0.0
  %2178 = vmatprep.subr.mxu0 0.0
  %2179 = vmatpush1.msra.mxu0 0.0
  %2180 = vmatprep.subr.mxu0 0.0
  %2181 = vmatpush1.msra.mxu0 0.0
  %2182 = vmatprep.subr.mxu0 0.0
  %2183 = vmatpush1.msra.mxu0 0.0
  %2184 = vmatprep.subr.mxu0 0.0
  %2185 = vmatpush1.msra.mxu0 0.0
  %2186 = vmatprep.subr.mxu0 0.0
  %2187 = vmatpush1.msra.mxu0 0.0
  %2188 = vmatprep.subr.mxu0 0.0
  %2189 = vmatpush1.msra.mxu0 0.0
  %2190 = vmatprep.subr.mxu0 0.0
  %2191 = vmatpush1.msra.mxu0 0.0
  %2192 = vmatprep.subr.mxu0 0.0
  %2193 = vmatpush1.msra.mxu0 0.0
  %2194 = vmatprep.subr.mxu0 0.0
  %2195 = vmatpush1.msra.mxu0 0.0
  %2196 = vmatprep.subr.mxu0 0.0
  %2197 = vmatpush1.msra.mxu0 0.0
  %2198 = vmatprep.subr.mxu0 0.0
  %2199 = vmatpush1.msra.mxu0 0.0
  %2200 = vmatprep.subr.mxu0 0.0
  %2201 = vmatpush1.msra.mxu0 0.0
  %2202 = vmatprep.subr.mxu0 0.0
  %2203 = vmatpush1.msra.mxu0 0.0
  %2204 = vmatprep.subr.mxu0 0.0
  %2205 = vmatpush1.msra.mxu0 0.0
  %2206 = vmatprep.subr.mxu0 0.0
  %2207 = vmatpush1.msra.mxu0 0.0
  %2208 = vmatprep.subr.mxu0 0.0
  %2209 = vmatpush1.msra.mxu0 0.0
  %2210 = vmatprep.mubr.f32.mxu0 0.0
  %2211 = vmatmul.mubr.f32.gmra.mrb[0].mxu0 %v2099
  %v2212 = vpop.f32.mrb[0].mxu0
  %v2213 = vadd.f32 0.0, %v2212
  %v2214 = vpop.f32.mrb[0].mxu0
  %2215 = vmatprep.mubr.f32.mxu0 0.0
  %2216 = vmatmul.mubr.f32.gmra.mrb[0].mxu0 %v2102
  %v2217 = vpop.f32.mrb[0].mxu0
  %v2218 = vadd.f32 0.0, %v2217
  %v2219 = vpop.f32.mrb[0].mxu0
  %2220 = vmatprep.mubr.f32.mxu0 0.0
  %2221 = vmatmul.mubr.f32.gmra.mrb[0].mxu0 %v2105
  %v2222 = vpop.f32.mrb[0].mxu0
  %v2223 = vadd.f32 0.0, %v2222
  %v2224 = vpop.f32.mrb[0].mxu0
  %2225 = vmatprep.mubr.f32.mxu0 0.0
  %2226 = vmatmul.mubr.f32.gmra.mrb[0].mxu0 %v2108
  %v2227 = vpop.f32.mrb[0].mxu0
  %v2228 = vadd.f32 0.0, %v2227
  %v2229 = vpop.f32.mrb[0].mxu0
  %2230 = vmatprep.mubr.f32.mxu0 0.0
  %2231 = vmatmul.mubr.f32.gmra.mrb[0].mxu0 %v2111
  %v2232 = vpop.f32.mrb[0].mxu0
  %v2233 = vadd.f32 0.0, %v2232
  %v2234 = vpop.f32.mrb[0].mxu0
  %2235 = vmatprep.mubr.f32.mxu0 0.0
  %2236 = vmatmul.mubr.f32.gmra.mrb[0].mxu0 %v2114
  %v2237 = vpop.f32.mrb[0].mxu0
  %v2238 = vadd.f32 0.0, %v2237
  %v2239 = vpop.f32.mrb[0].mxu0
  %2240 = vmatprep.mubr.f32.mxu0 0.0
  %2241 = vmatmul.mubr.f32.gmra.mrb[0].mxu0 %v2117
  %v2242 = vpop.f32.mrb[0].mxu0
  %v2243 = vadd.f32 0.0, %v2242
  %v2244 = vpop.f32.mrb[0].mxu0
  %2245 = vmatprep.mubr.f32.mxu0 0.0
  %2246 = vmatmul.mubr.f32.gmra.mrb[0].mxu0 %v2120
  %v2247 = vpop.f32.mrb[0].mxu0
  %v2248 = vadd.f32 0.0, %v2247
  %v2249 = vpop.f32.mrb[0].mxu0
  %2250 = vmatprep.mubr.f32.mxu0 0.0
  %2251 = vmatmul.mubr.f32.gmra.mrb[0].mxu0 %v2123
  %v2252 = vpop.f32.mrb[0].mxu0
  %v2253 = vadd.f32 0.0, %v2252
  %v2254 = vpop.f32.mrb[0].mxu0
  %2255 = vmatprep.mubr.f32.mxu0 0.0
  %2256 = vmatmul.mubr.f32.gmra.mrb[0].mxu0 %v2126
  %v2257 = vpop.f32.mrb[0].mxu0
  %v2258 = vadd.f32 0.0, %v2257
  %v2259 = vpop.f32.mrb[0].mxu0
  %2260 = vmatprep.mubr.f32.mxu0 0.0
  %2261 = vmatmul.mubr.f32.gmra.mrb[0].mxu0 %v2129
  %v2262 = vpop.f32.mrb[0].mxu0
  %v2263 = vadd.f32 0.0, %v2262
  %v2264 = vpop.f32.mrb[0].mxu0
  %2265 = vmatprep.mubr.f32.mxu0 0.0
  %2266 = vmatmul.mubr.f32.gmra.mrb[0].mxu0 %v2132
  %v2267 = vpop.f32.mrb[0].mxu0
  %v2268 = vadd.f32 0.0, %v2267
  %v2269 = vpop.f32.mrb[0].mxu0
  %2270 = vmatprep.mubr.f32.mxu0 0.0
  %2271 = vmatmul.mubr.f32.gmra.mrb[0].mxu0 %v2135
  %v2272 = vpop.f32.mrb[0].mxu0
  %v2273 = vadd.f32 0.0, %v2272
  %v2274 = vpop.f32.mrb[0].mxu0
  %2275 = vmatprep.mubr.f32.mxu0 0.0
  %2276 = vmatmul.mubr.f32.gmra.mrb[0].mxu0 %v2138
  %v2277 = vpop.f32.mrb[0].mxu0
  %v2278 = vadd.f32 0.0, %v2277
  %v2279 = vpop.f32.mrb[0].mxu0
  %2280 = vmatprep.mubr.f32.mxu0 0.0
  %2281 = vmatmul.mubr.f32.gmra.mrb[0].mxu0 %v2141
  %v2282 = vpop.f32.mrb[0].mxu0
  %v2283 = vadd.f32 0.0, %v2282
  %v2284 = vpop.f32.mrb[0].mxu0
  %2285 = vmatprep.mubr.f32.mxu0 0.0
  %2286 = vmatmul.mubr.f32.gmra.mrb[0].mxu0 %v2144
  %v2287 = vpop.f32.mrb[0].mxu0
  %v2288 = vadd.f32 0.0, %v2287
  %v2289 = vpop.f32.mrb[0].mxu0
  %2290 = vdwg.mxu0
  %v2291 = vadd.f32 %v1931, %v2213
  %v2292 = vadd.f32 %v1932, %v2218
  %v2293 = vadd.f32 %v1933, %v2223
  %v2294 = vadd.f32 %v1934, %v2228
  %v2295 = vadd.f32 %v1935, %v2233
  %v2296 = vadd.f32 %v1936, %v2238
  %v2297 = vadd.f32 %v1937, %v2243
  %v2298 = vadd.f32 %v1938, %v2248
  %v2299 = vadd.f32 %v1939, %v2253
  %v2300 = vadd.f32 %v1940, %v2258
  %v2301 = vadd.f32 %v1941, %v2263
  %v2302 = vadd.f32 %v1942, %v2268
  %v2303 = vadd.f32 %v1943, %v2273
  %v2304 = vadd.f32 %v1944, %v2278
  %v2305 = vadd.f32 %v1945, %v2283
  %v2306 = vadd.f32 %v1946, %v2288
  %v2307 = vrot.slane %v853, 2
  %v2308 = vrot.slane %v858, 2
  %v2309 = vrot.slane %v863, 2
  %v2310 = vrot.slane %v868, 2
  %v2311 = vrot.slane %v873, 2
  %v2312 = vrot.slane %v878, 2
  %v2313 = vrot.slane %v883, 2
  %v2314 = vrot.slane %v888, 2
  %v2315 = vrot.slane %v893, 2
  %v2316 = vrot.slane %v898, 2
  %v2317 = vrot.slane %v903, 2
  %v2318 = vrot.slane %v908, 2
  %v2319 = vrot.slane %v913, 2
  %v2320 = vrot.slane %v918, 2
  %v2321 = vrot.slane %v923, 2
  %v2322 = vrot.slane %v928, 2
  %vm2323 = vcmp.lt.s32.totalorder %v948, 6
  %v2324 = vsel %vm2323, %v2321, %v2322
  %v2325 = vsel %vm2323, %v2320, %v2321
  %v2326 = vsel %vm2323, %v2319, %v2320
  %v2327 = vsel %vm2323, %v2318, %v2319
  %v2328 = vsel %vm2323, %v2317, %v2318
  %v2329 = vsel %vm2323, %v2316, %v2317
  %v2330 = vsel %vm2323, %v2315, %v2316
  %v2331 = vsel %vm2323, %v2314, %v2315
  %v2332 = vsel %vm2323, %v2313, %v2314
  %v2333 = vsel %vm2323, %v2312, %v2313
  %v2334 = vsel %vm2323, %v2311, %v2312
  %v2335 = vsel %vm2323, %v2310, %v2311
  %v2336 = vsel %vm2323, %v2309, %v2310
  %v2337 = vsel %vm2323, %v2308, %v2309
  %v2338 = vsel %vm2323, %v2307, %v2308
  %v2339 = vsel %vm2323, %v2322, %v2307
  %s2340 = scalar_lea.vmem %s6, 512
  %v2341 = vld [vmem:[%s2340] sm:$0xff]
  %v2342 = vld [vmem:[%s2340 + $0x8] sm:$0xff]
  %v2343 = vld [vmem:[%s2340 + $0x10] sm:$0xff]
  %v2344 = vld [vmem:[%s2340 + $0x18] sm:$0xff]
  %v2345 = vld [vmem:[%s2340 + $0x20] sm:$0xff]
  %v2346 = vld [vmem:[%s2340 + $0x28] sm:$0xff]
  %v2347 = vld [vmem:[%s2340 + $0x30] sm:$0xff]
  %v2348 = vld [vmem:[%s2340 + $0x38] sm:$0xff]
  %v2349 = vld [vmem:[%s2340 + $0x40] sm:$0xff]
  %v2350 = vld [vmem:[%s2340 + $0x48] sm:$0xff]
  %v2351 = vld [vmem:[%s2340 + $0x50] sm:$0xff]
  %v2352 = vld [vmem:[%s2340 + $0x58] sm:$0xff]
  %v2353 = vld [vmem:[%s2340 + $0x60] sm:$0xff]
  %v2354 = vld [vmem:[%s2340 + $0x68] sm:$0xff]
  %v2355 = vld [vmem:[%s2340 + $0x70] sm:$0xff]
  %v2356 = vld [vmem:[%s2340 + $0x78] sm:$0xff]
  %2358 = vset.pattern.permute.xlu0 0
  %2359 = vperm.xlu0 %2358, %v2341
  %v2360 = vpop.permute.xlu0 %2359
  %2363 = vset.pattern.permute.xlu0 0
  %2364 = vperm.xlu0 %2363, %v2342
  %v2365 = vpop.permute.xlu0 %2364
  %2368 = vset.pattern.permute.xlu0 0
  %2369 = vperm.xlu0 %2368, %v2343
  %v2370 = vpop.permute.xlu0 %2369
  %2373 = vset.pattern.permute.xlu0 0
  %2374 = vperm.xlu0 %2373, %v2344
  %v2375 = vpop.permute.xlu0 %2374
  %2378 = vset.pattern.permute.xlu0 0
  %2379 = vperm.xlu0 %2378, %v2345
  %v2380 = vpop.permute.xlu0 %2379
  %2383 = vset.pattern.permute.xlu0 0
  %2384 = vperm.xlu0 %2383, %v2346
  %v2385 = vpop.permute.xlu0 %2384
  %2388 = vset.pattern.permute.xlu0 0
  %2389 = vperm.xlu0 %2388, %v2347
  %v2390 = vpop.permute.xlu0 %2389
  %2393 = vset.pattern.permute.xlu0 0
  %2394 = vperm.xlu0 %2393, %v2348
  %v2395 = vpop.permute.xlu0 %2394
  %2398 = vset.pattern.permute.xlu0 0
  %2399 = vperm.xlu0 %2398, %v2349
  %v2400 = vpop.permute.xlu0 %2399
  %2403 = vset.pattern.permute.xlu0 0
  %2404 = vperm.xlu0 %2403, %v2350
  %v2405 = vpop.permute.xlu0 %2404
  %2408 = vset.pattern.permute.xlu0 0
  %2409 = vperm.xlu0 %2408, %v2351
  %v2410 = vpop.permute.xlu0 %2409
  %2413 = vset.pattern.permute.xlu0 0
  %2414 = vperm.xlu0 %2413, %v2352
  %v2415 = vpop.permute.xlu0 %2414
  %2418 = vset.pattern.permute.xlu0 0
  %2419 = vperm.xlu0 %2418, %v2353
  %v2420 = vpop.permute.xlu0 %2419
  %2423 = vset.pattern.permute.xlu0 0
  %2424 = vperm.xlu0 %2423, %v2354
  %v2425 = vpop.permute.xlu0 %2424
  %2428 = vset.pattern.permute.xlu0 0
  %2429 = vperm.xlu0 %2428, %v2355
  %v2430 = vpop.permute.xlu0 %2429
  %2433 = vset.pattern.permute.xlu0 0
  %2434 = vperm.xlu0 %2433, %v2356
  %v2435 = vpop.permute.xlu0 %2434
  %v2437 = vmul.f32 %v2324, %v2360
  %v2438 = vmul.f32 %v2339, %v2365
  %v2439 = vmul.f32 %v2338, %v2370
  %v2440 = vmul.f32 %v2337, %v2375
  %v2441 = vmul.f32 %v2336, %v2380
  %v2442 = vmul.f32 %v2335, %v2385
  %v2443 = vmul.f32 %v2334, %v2390
  %v2444 = vmul.f32 %v2333, %v2395
  %v2445 = vmul.f32 %v2332, %v2400
  %v2446 = vmul.f32 %v2331, %v2405
  %v2447 = vmul.f32 %v2330, %v2410
  %v2448 = vmul.f32 %v2329, %v2415
  %v2449 = vmul.f32 %v2328, %v2420
  %v2450 = vmul.f32 %v2327, %v2425
  %v2451 = vmul.f32 %v2326, %v2430
  %v2452 = vmul.f32 %v2325, %v2435
  %s2453 = scalar_lea.vmem %s4, 128
  %v2454 = vld [vmem:[%s2453] sm:$0xff]
  %v2455 = vld [vmem:[%s2453 + $0x8] sm:$0xff]
  %v2456 = vld [vmem:[%s2453 + $0x10] sm:$0xff]
  %v2457 = vld [vmem:[%s2453 + $0x18] sm:$0xff]
  %v2459 = vsel %vm1233, %v2437, 0
  %v2462 = vsel %vm1233, %v2438, 0
  %v2465 = vsel %vm1233, %v2439, 0
  %v2468 = vsel %vm1233, %v2440, 0
  %v2471 = vsel %vm1233, %v2441, 0
  %v2474 = vsel %vm1233, %v2442, 0
  %v2477 = vsel %vm1233, %v2443, 0
  %v2480 = vsel %vm1233, %v2444, 0
  %v2483 = vsel %vm1233, %v2445, 0
  %v2486 = vsel %vm1233, %v2446, 0
  %v2489 = vsel %vm1233, %v2447, 0
  %v2492 = vsel %vm1233, %v2448, 0
  %v2495 = vsel %vm1233, %v2449, 0
  %v2498 = vsel %vm1233, %v2450, 0
  %v2501 = vsel %vm1233, %v2451, 0
  %v2504 = vsel %vm1233, %v2452, 0
  %2506 = vmatprep.subr.mxu0 0.0
  %2507 = vmatpush1.msra.mxu0 %v2454
  %2508 = vmatprep.subr.mxu0 0.0
  %2509 = vmatpush1.msra.mxu0 %v2455
  %2510 = vmatprep.subr.mxu0 0.0
  %2511 = vmatpush1.msra.mxu0 %v2456
  %2512 = vmatprep.subr.mxu0 0.0
  %2513 = vmatpush1.msra.mxu0 %v2457
  %2514 = vmatprep.subr.mxu0 0.0
  %2515 = vmatpush1.msra.mxu0 0.0
  %2516 = vmatprep.subr.mxu0 0.0
  %2517 = vmatpush1.msra.mxu0 0.0
  %2518 = vmatprep.subr.mxu0 0.0
  %2519 = vmatpush1.msra.mxu0 0.0
  %2520 = vmatprep.subr.mxu0 0.0
  %2521 = vmatpush1.msra.mxu0 0.0
  %2522 = vmatprep.subr.mxu0 0.0
  %2523 = vmatpush1.msra.mxu0 0.0
  %2524 = vmatprep.subr.mxu0 0.0
  %2525 = vmatpush1.msra.mxu0 0.0
  %2526 = vmatprep.subr.mxu0 0.0
  %2527 = vmatpush1.msra.mxu0 0.0
  %2528 = vmatprep.subr.mxu0 0.0
  %2529 = vmatpush1.msra.mxu0 0.0
  %2530 = vmatprep.subr.mxu0 0.0
  %2531 = vmatpush1.msra.mxu0 0.0
  %2532 = vmatprep.subr.mxu0 0.0
  %2533 = vmatpush1.msra.mxu0 0.0
  %2534 = vmatprep.subr.mxu0 0.0
  %2535 = vmatpush1.msra.mxu0 0.0
  %2536 = vmatprep.subr.mxu0 0.0
  %2537 = vmatpush1.msra.mxu0 0.0
  %2538 = vmatprep.subr.mxu0 0.0
  %2539 = vmatpush1.msra.mxu0 0.0
  %2540 = vmatprep.subr.mxu0 0.0
  %2541 = vmatpush1.msra.mxu0 0.0
  %2542 = vmatprep.subr.mxu0 0.0
  %2543 = vmatpush1.msra.mxu0 0.0
  %2544 = vmatprep.subr.mxu0 0.0
  %2545 = vmatpush1.msra.mxu0 0.0
  %2546 = vmatprep.subr.mxu0 0.0
  %2547 = vmatpush1.msra.mxu0 0.0
  %2548 = vmatprep.subr.mxu0 0.0
  %2549 = vmatpush1.msra.mxu0 0.0
  %2550 = vmatprep.subr.mxu0 0.0
  %2551 = vmatpush1.msra.mxu0 0.0
  %2552 = vmatprep.subr.mxu0 0.0
  %2553 = vmatpush1.msra.mxu0 0.0
  %2554 = vmatprep.subr.mxu0 0.0
  %2555 = vmatpush1.msra.mxu0 0.0
  %2556 = vmatprep.subr.mxu0 0.0
  %2557 = vmatpush1.msra.mxu0 0.0
  %2558 = vmatprep.subr.mxu0 0.0
  %2559 = vmatpush1.msra.mxu0 0.0
  %2560 = vmatprep.subr.mxu0 0.0
  %2561 = vmatpush1.msra.mxu0 0.0
  %2562 = vmatprep.subr.mxu0 0.0
  %2563 = vmatpush1.msra.mxu0 0.0
  %2564 = vmatprep.subr.mxu0 0.0
  %2565 = vmatpush1.msra.mxu0 0.0
  %2566 = vmatprep.subr.mxu0 0.0
  %2567 = vmatpush1.msra.mxu0 0.0
  %2568 = vmatprep.subr.mxu0 0.0
  %2569 = vmatpush1.msra.mxu0 0.0
  %2570 = vmatprep.mubr.f32.mxu0 0.0
  %2571 = vmatmul.mubr.f32.gmra.mrb[0].mxu0 %v2459
  %v2572 = vpop.f32.mrb[0].mxu0
  %v2573 = vadd.f32 0.0, %v2572
  %v2574 = vpop.f32.mrb[0].mxu0
  %2575 = vmatprep.mubr.f32.mxu0 0.0
  %2576 = vmatmul.mubr.f32.gmra.mrb[0].mxu0 %v2462
  %v2577 = vpop.f32.mrb[0].mxu0
  %v2578 = vadd.f32 0.0, %v2577
  %v2579 = vpop.f32.mrb[0].mxu0
  %2580 = vmatprep.mubr.f32.mxu0 0.0
  %2581 = vmatmul.mubr.f32.gmra.mrb[0].mxu0 %v2465
  %v2582 = vpop.f32.mrb[0].mxu0
  %v2583 = vadd.f32 0.0, %v2582
  %v2584 = vpop.f32.mrb[0].mxu0
  %2585 = vmatprep.mubr.f32.mxu0 0.0
  %2586 = vmatmul.mubr.f32.gmra.mrb[0].mxu0 %v2468
  %v2587 = vpop.f32.mrb[0].mxu0
  %v2588 = vadd.f32 0.0, %v2587
  %v2589 = vpop.f32.mrb[0].mxu0
  %2590 = vmatprep.mubr.f32.mxu0 0.0
  %2591 = vmatmul.mubr.f32.gmra.mrb[0].mxu0 %v2471
  %v2592 = vpop.f32.mrb[0].mxu0
  %v2593 = vadd.f32 0.0, %v2592
  %v2594 = vpop.f32.mrb[0].mxu0
  %2595 = vmatprep.mubr.f32.mxu0 0.0
  %2596 = vmatmul.mubr.f32.gmra.mrb[0].mxu0 %v2474
  %v2597 = vpop.f32.mrb[0].mxu0
  %v2598 = vadd.f32 0.0, %v2597
  %v2599 = vpop.f32.mrb[0].mxu0
  %2600 = vmatprep.mubr.f32.mxu0 0.0
  %2601 = vmatmul.mubr.f32.gmra.mrb[0].mxu0 %v2477
  %v2602 = vpop.f32.mrb[0].mxu0
  %v2603 = vadd.f32 0.0, %v2602
  %v2604 = vpop.f32.mrb[0].mxu0
  %2605 = vmatprep.mubr.f32.mxu0 0.0
  %2606 = vmatmul.mubr.f32.gmra.mrb[0].mxu0 %v2480
  %v2607 = vpop.f32.mrb[0].mxu0
  %v2608 = vadd.f32 0.0, %v2607
  %v2609 = vpop.f32.mrb[0].mxu0
  %2610 = vmatprep.mubr.f32.mxu0 0.0
  %2611 = vmatmul.mubr.f32.gmra.mrb[0].mxu0 %v2483
  %v2612 = vpop.f32.mrb[0].mxu0
  %v2613 = vadd.f32 0.0, %v2612
  %v2614 = vpop.f32.mrb[0].mxu0
  %2615 = vmatprep.mubr.f32.mxu0 0.0
  %2616 = vmatmul.mubr.f32.gmra.mrb[0].mxu0 %v2486
  %v2617 = vpop.f32.mrb[0].mxu0
  %v2618 = vadd.f32 0.0, %v2617
  %v2619 = vpop.f32.mrb[0].mxu0
  %2620 = vmatprep.mubr.f32.mxu0 0.0
  %2621 = vmatmul.mubr.f32.gmra.mrb[0].mxu0 %v2489
  %v2622 = vpop.f32.mrb[0].mxu0
  %v2623 = vadd.f32 0.0, %v2622
  %v2624 = vpop.f32.mrb[0].mxu0
  %2625 = vmatprep.mubr.f32.mxu0 0.0
  %2626 = vmatmul.mubr.f32.gmra.mrb[0].mxu0 %v2492
  %v2627 = vpop.f32.mrb[0].mxu0
  %v2628 = vadd.f32 0.0, %v2627
  %v2629 = vpop.f32.mrb[0].mxu0
  %2630 = vmatprep.mubr.f32.mxu0 0.0
  %2631 = vmatmul.mubr.f32.gmra.mrb[0].mxu0 %v2495
  %v2632 = vpop.f32.mrb[0].mxu0
  %v2633 = vadd.f32 0.0, %v2632
  %v2634 = vpop.f32.mrb[0].mxu0
  %2635 = vmatprep.mubr.f32.mxu0 0.0
  %2636 = vmatmul.mubr.f32.gmra.mrb[0].mxu0 %v2498
  %v2637 = vpop.f32.mrb[0].mxu0
  %v2638 = vadd.f32 0.0, %v2637
  %v2639 = vpop.f32.mrb[0].mxu0
  %2640 = vmatprep.mubr.f32.mxu0 0.0
  %2641 = vmatmul.mubr.f32.gmra.mrb[0].mxu0 %v2501
  %v2642 = vpop.f32.mrb[0].mxu0
  %v2643 = vadd.f32 0.0, %v2642
  %v2644 = vpop.f32.mrb[0].mxu0
  %2645 = vmatprep.mubr.f32.mxu0 0.0
  %2646 = vmatmul.mubr.f32.gmra.mrb[0].mxu0 %v2504
  %v2647 = vpop.f32.mrb[0].mxu0
  %v2648 = vadd.f32 0.0, %v2647
  %v2649 = vpop.f32.mrb[0].mxu0
  %2650 = vdwg.mxu0
  %v2651 = vadd.f32 %v2291, %v2573
  %v2652 = vadd.f32 %v2292, %v2578
  %v2653 = vadd.f32 %v2293, %v2583
  %v2654 = vadd.f32 %v2294, %v2588
  %v2655 = vadd.f32 %v2295, %v2593
  %v2656 = vadd.f32 %v2296, %v2598
  %v2657 = vadd.f32 %v2297, %v2603
  %v2658 = vadd.f32 %v2298, %v2608
  %v2659 = vadd.f32 %v2299, %v2613
  %v2660 = vadd.f32 %v2300, %v2618
  %v2661 = vadd.f32 %v2301, %v2623
  %v2662 = vadd.f32 %v2302, %v2628
  %v2663 = vadd.f32 %v2303, %v2633
  %v2664 = vadd.f32 %v2304, %v2638
  %v2665 = vadd.f32 %v2305, %v2643
  %v2666 = vadd.f32 %v2306, %v2648
  %s2667 = scalar_lea.vmem %s6, 640
  %v2668 = vld [vmem:[%s2667] sm:$0xff]
  %v2669 = vld [vmem:[%s2667 + $0x8] sm:$0xff]
  %v2670 = vld [vmem:[%s2667 + $0x10] sm:$0xff]
  %v2671 = vld [vmem:[%s2667 + $0x18] sm:$0xff]
  %v2672 = vld [vmem:[%s2667 + $0x20] sm:$0xff]
  %v2673 = vld [vmem:[%s2667 + $0x28] sm:$0xff]
  %v2674 = vld [vmem:[%s2667 + $0x30] sm:$0xff]
  %v2675 = vld [vmem:[%s2667 + $0x38] sm:$0xff]
  %v2676 = vld [vmem:[%s2667 + $0x40] sm:$0xff]
  %v2677 = vld [vmem:[%s2667 + $0x48] sm:$0xff]
  %v2678 = vld [vmem:[%s2667 + $0x50] sm:$0xff]
  %v2679 = vld [vmem:[%s2667 + $0x58] sm:$0xff]
  %v2680 = vld [vmem:[%s2667 + $0x60] sm:$0xff]
  %v2681 = vld [vmem:[%s2667 + $0x68] sm:$0xff]
  %v2682 = vld [vmem:[%s2667 + $0x70] sm:$0xff]
  %v2683 = vld [vmem:[%s2667 + $0x78] sm:$0xff]
  %2685 = vset.pattern.permute.xlu0 0
  %2686 = vperm.xlu0 %2685, %v2668
  %v2687 = vpop.permute.xlu0 %2686
  %2690 = vset.pattern.permute.xlu0 0
  %2691 = vperm.xlu0 %2690, %v2669
  %v2692 = vpop.permute.xlu0 %2691
  %2695 = vset.pattern.permute.xlu0 0
  %2696 = vperm.xlu0 %2695, %v2670
  %v2697 = vpop.permute.xlu0 %2696
  %2700 = vset.pattern.permute.xlu0 0
  %2701 = vperm.xlu0 %2700, %v2671
  %v2702 = vpop.permute.xlu0 %2701
  %2705 = vset.pattern.permute.xlu0 0
  %2706 = vperm.xlu0 %2705, %v2672
  %v2707 = vpop.permute.xlu0 %2706
  %2710 = vset.pattern.permute.xlu0 0
  %2711 = vperm.xlu0 %2710, %v2673
  %v2712 = vpop.permute.xlu0 %2711
  %2715 = vset.pattern.permute.xlu0 0
  %2716 = vperm.xlu0 %2715, %v2674
  %v2717 = vpop.permute.xlu0 %2716
  %2720 = vset.pattern.permute.xlu0 0
  %2721 = vperm.xlu0 %2720, %v2675
  %v2722 = vpop.permute.xlu0 %2721
  %2725 = vset.pattern.permute.xlu0 0
  %2726 = vperm.xlu0 %2725, %v2676
  %v2727 = vpop.permute.xlu0 %2726
  %2730 = vset.pattern.permute.xlu0 0
  %2731 = vperm.xlu0 %2730, %v2677
  %v2732 = vpop.permute.xlu0 %2731
  %2735 = vset.pattern.permute.xlu0 0
  %2736 = vperm.xlu0 %2735, %v2678
  %v2737 = vpop.permute.xlu0 %2736
  %2740 = vset.pattern.permute.xlu0 0
  %2741 = vperm.xlu0 %2740, %v2679
  %v2742 = vpop.permute.xlu0 %2741
  %2745 = vset.pattern.permute.xlu0 0
  %2746 = vperm.xlu0 %2745, %v2680
  %v2747 = vpop.permute.xlu0 %2746
  %2750 = vset.pattern.permute.xlu0 0
  %2751 = vperm.xlu0 %2750, %v2681
  %v2752 = vpop.permute.xlu0 %2751
  %2755 = vset.pattern.permute.xlu0 0
  %2756 = vperm.xlu0 %2755, %v2682
  %v2757 = vpop.permute.xlu0 %2756
  %2760 = vset.pattern.permute.xlu0 0
  %2761 = vperm.xlu0 %2760, %v2683
  %v2762 = vpop.permute.xlu0 %2761
  %v2764 = vmul.f32 %v950, %v2687
  %v2765 = vmul.f32 %v965, %v2692
  %v2766 = vmul.f32 %v964, %v2697
  %v2767 = vmul.f32 %v963, %v2702
  %v2768 = vmul.f32 %v962, %v2707
  %v2769 = vmul.f32 %v961, %v2712
  %v2770 = vmul.f32 %v960, %v2717
  %v2771 = vmul.f32 %v959, %v2722
  %v2772 = vmul.f32 %v958, %v2727
  %v2773 = vmul.f32 %v957, %v2732
  %v2774 = vmul.f32 %v956, %v2737
  %v2775 = vmul.f32 %v955, %v2742
  %v2776 = vmul.f32 %v954, %v2747
  %v2777 = vmul.f32 %v953, %v2752
  %v2778 = vmul.f32 %v952, %v2757
  %v2779 = vmul.f32 %v951, %v2762
  %s2780 = scalar_lea.vmem %s4, 160
  %v2781 = vld [vmem:[%s2780] sm:$0xff]
  %v2782 = vld [vmem:[%s2780 + $0x8] sm:$0xff]
  %v2783 = vld [vmem:[%s2780 + $0x10] sm:$0xff]
  %v2784 = vld [vmem:[%s2780 + $0x18] sm:$0xff]
  %v2786 = vsel %vm1233, %v2764, 0
  %v2789 = vsel %vm1233, %v2765, 0
  %v2792 = vsel %vm1233, %v2766, 0
  %v2795 = vsel %vm1233, %v2767, 0
  %v2798 = vsel %vm1233, %v2768, 0
  %v2801 = vsel %vm1233, %v2769, 0
  %v2804 = vsel %vm1233, %v2770, 0
  %v2807 = vsel %vm1233, %v2771, 0
  %v2810 = vsel %vm1233, %v2772, 0
  %v2813 = vsel %vm1233, %v2773, 0
  %v2816 = vsel %vm1233, %v2774, 0
  %v2819 = vsel %vm1233, %v2775, 0
  %v2822 = vsel %vm1233, %v2776, 0
  %v2825 = vsel %vm1233, %v2777, 0
  %v2828 = vsel %vm1233, %v2778, 0
  %v2831 = vsel %vm1233, %v2779, 0
  %2833 = vmatprep.subr.mxu0 0.0
  %2834 = vmatpush1.msra.mxu0 %v2781
  %2835 = vmatprep.subr.mxu0 0.0
  %2836 = vmatpush1.msra.mxu0 %v2782
  %2837 = vmatprep.subr.mxu0 0.0
  %2838 = vmatpush1.msra.mxu0 %v2783
  %2839 = vmatprep.subr.mxu0 0.0
  %2840 = vmatpush1.msra.mxu0 %v2784
  %2841 = vmatprep.subr.mxu0 0.0
  %2842 = vmatpush1.msra.mxu0 0.0
  %2843 = vmatprep.subr.mxu0 0.0
  %2844 = vmatpush1.msra.mxu0 0.0
  %2845 = vmatprep.subr.mxu0 0.0
  %2846 = vmatpush1.msra.mxu0 0.0
  %2847 = vmatprep.subr.mxu0 0.0
  %2848 = vmatpush1.msra.mxu0 0.0
  %2849 = vmatprep.subr.mxu0 0.0
  %2850 = vmatpush1.msra.mxu0 0.0
  %2851 = vmatprep.subr.mxu0 0.0
  %2852 = vmatpush1.msra.mxu0 0.0
  %2853 = vmatprep.subr.mxu0 0.0
  %2854 = vmatpush1.msra.mxu0 0.0
  %2855 = vmatprep.subr.mxu0 0.0
  %2856 = vmatpush1.msra.mxu0 0.0
  %2857 = vmatprep.subr.mxu0 0.0
  %2858 = vmatpush1.msra.mxu0 0.0
  %2859 = vmatprep.subr.mxu0 0.0
  %2860 = vmatpush1.msra.mxu0 0.0
  %2861 = vmatprep.subr.mxu0 0.0
  %2862 = vmatpush1.msra.mxu0 0.0
  %2863 = vmatprep.subr.mxu0 0.0
  %2864 = vmatpush1.msra.mxu0 0.0
  %2865 = vmatprep.subr.mxu0 0.0
  %2866 = vmatpush1.msra.mxu0 0.0
  %2867 = vmatprep.subr.mxu0 0.0
  %2868 = vmatpush1.msra.mxu0 0.0
  %2869 = vmatprep.subr.mxu0 0.0
  %2870 = vmatpush1.msra.mxu0 0.0
  %2871 = vmatprep.subr.mxu0 0.0
  %2872 = vmatpush1.msra.mxu0 0.0
  %2873 = vmatprep.subr.mxu0 0.0
  %2874 = vmatpush1.msra.mxu0 0.0
  %2875 = vmatprep.subr.mxu0 0.0
  %2876 = vmatpush1.msra.mxu0 0.0
  %2877 = vmatprep.subr.mxu0 0.0
  %2878 = vmatpush1.msra.mxu0 0.0
  %2879 = vmatprep.subr.mxu0 0.0
  %2880 = vmatpush1.msra.mxu0 0.0
  %2881 = vmatprep.subr.mxu0 0.0
  %2882 = vmatpush1.msra.mxu0 0.0
  %2883 = vmatprep.subr.mxu0 0.0
  %2884 = vmatpush1.msra.mxu0 0.0
  %2885 = vmatprep.subr.mxu0 0.0
  %2886 = vmatpush1.msra.mxu0 0.0
  %2887 = vmatprep.subr.mxu0 0.0
  %2888 = vmatpush1.msra.mxu0 0.0
  %2889 = vmatprep.subr.mxu0 0.0
  %2890 = vmatpush1.msra.mxu0 0.0
  %2891 = vmatprep.subr.mxu0 0.0
  %2892 = vmatpush1.msra.mxu0 0.0
  %2893 = vmatprep.subr.mxu0 0.0
  %2894 = vmatpush1.msra.mxu0 0.0
  %2895 = vmatprep.subr.mxu0 0.0
  %2896 = vmatpush1.msra.mxu0 0.0
  %2897 = vmatprep.mubr.f32.mxu0 0.0
  %2898 = vmatmul.mubr.f32.gmra.mrb[0].mxu0 %v2786
  %v2899 = vpop.f32.mrb[0].mxu0
  %v2900 = vadd.f32 0.0, %v2899
  %v2901 = vpop.f32.mrb[0].mxu0
  %2902 = vmatprep.mubr.f32.mxu0 0.0
  %2903 = vmatmul.mubr.f32.gmra.mrb[0].mxu0 %v2789
  %v2904 = vpop.f32.mrb[0].mxu0
  %v2905 = vadd.f32 0.0, %v2904
  %v2906 = vpop.f32.mrb[0].mxu0
  %2907 = vmatprep.mubr.f32.mxu0 0.0
  %2908 = vmatmul.mubr.f32.gmra.mrb[0].mxu0 %v2792
  %v2909 = vpop.f32.mrb[0].mxu0
  %v2910 = vadd.f32 0.0, %v2909
  %v2911 = vpop.f32.mrb[0].mxu0
  %2912 = vmatprep.mubr.f32.mxu0 0.0
  %2913 = vmatmul.mubr.f32.gmra.mrb[0].mxu0 %v2795
  %v2914 = vpop.f32.mrb[0].mxu0
  %v2915 = vadd.f32 0.0, %v2914
  %v2916 = vpop.f32.mrb[0].mxu0
  %2917 = vmatprep.mubr.f32.mxu0 0.0
  %2918 = vmatmul.mubr.f32.gmra.mrb[0].mxu0 %v2798
  %v2919 = vpop.f32.mrb[0].mxu0
  %v2920 = vadd.f32 0.0, %v2919
  %v2921 = vpop.f32.mrb[0].mxu0
  %2922 = vmatprep.mubr.f32.mxu0 0.0
  %2923 = vmatmul.mubr.f32.gmra.mrb[0].mxu0 %v2801
  %v2924 = vpop.f32.mrb[0].mxu0
  %v2925 = vadd.f32 0.0, %v2924
  %v2926 = vpop.f32.mrb[0].mxu0
  %2927 = vmatprep.mubr.f32.mxu0 0.0
  %2928 = vmatmul.mubr.f32.gmra.mrb[0].mxu0 %v2804
  %v2929 = vpop.f32.mrb[0].mxu0
  %v2930 = vadd.f32 0.0, %v2929
  %v2931 = vpop.f32.mrb[0].mxu0
  %2932 = vmatprep.mubr.f32.mxu0 0.0
  %2933 = vmatmul.mubr.f32.gmra.mrb[0].mxu0 %v2807
  %v2934 = vpop.f32.mrb[0].mxu0
  %v2935 = vadd.f32 0.0, %v2934
  %v2936 = vpop.f32.mrb[0].mxu0
  %2937 = vmatprep.mubr.f32.mxu0 0.0
  %2938 = vmatmul.mubr.f32.gmra.mrb[0].mxu0 %v2810
  %v2939 = vpop.f32.mrb[0].mxu0
  %v2940 = vadd.f32 0.0, %v2939
  %v2941 = vpop.f32.mrb[0].mxu0
  %2942 = vmatprep.mubr.f32.mxu0 0.0
  %2943 = vmatmul.mubr.f32.gmra.mrb[0].mxu0 %v2813
  %v2944 = vpop.f32.mrb[0].mxu0
  %v2945 = vadd.f32 0.0, %v2944
  %v2946 = vpop.f32.mrb[0].mxu0
  %2947 = vmatprep.mubr.f32.mxu0 0.0
  %2948 = vmatmul.mubr.f32.gmra.mrb[0].mxu0 %v2816
  %v2949 = vpop.f32.mrb[0].mxu0
  %v2950 = vadd.f32 0.0, %v2949
  %v2951 = vpop.f32.mrb[0].mxu0
  %2952 = vmatprep.mubr.f32.mxu0 0.0
  %2953 = vmatmul.mubr.f32.gmra.mrb[0].mxu0 %v2819
  %v2954 = vpop.f32.mrb[0].mxu0
  %v2955 = vadd.f32 0.0, %v2954
  %v2956 = vpop.f32.mrb[0].mxu0
  %2957 = vmatprep.mubr.f32.mxu0 0.0
  %2958 = vmatmul.mubr.f32.gmra.mrb[0].mxu0 %v2822
  %v2959 = vpop.f32.mrb[0].mxu0
  %v2960 = vadd.f32 0.0, %v2959
  %v2961 = vpop.f32.mrb[0].mxu0
  %2962 = vmatprep.mubr.f32.mxu0 0.0
  %2963 = vmatmul.mubr.f32.gmra.mrb[0].mxu0 %v2825
  %v2964 = vpop.f32.mrb[0].mxu0
  %v2965 = vadd.f32 0.0, %v2964
  %v2966 = vpop.f32.mrb[0].mxu0
  %2967 = vmatprep.mubr.f32.mxu0 0.0
  %2968 = vmatmul.mubr.f32.gmra.mrb[0].mxu0 %v2828
  %v2969 = vpop.f32.mrb[0].mxu0
  %v2970 = vadd.f32 0.0, %v2969
  %v2971 = vpop.f32.mrb[0].mxu0
  %2972 = vmatprep.mubr.f32.mxu0 0.0
  %2973 = vmatmul.mubr.f32.gmra.mrb[0].mxu0 %v2831
  %v2974 = vpop.f32.mrb[0].mxu0
  %v2975 = vadd.f32 0.0, %v2974
  %v2976 = vpop.f32.mrb[0].mxu0
  %2977 = vdwg.mxu0
  %v2978 = vadd.f32 %v2651, %v2900
  %v2979 = vadd.f32 %v2652, %v2905
  %v2980 = vadd.f32 %v2653, %v2910
  %v2981 = vadd.f32 %v2654, %v2915
  %v2982 = vadd.f32 %v2655, %v2920
  %v2983 = vadd.f32 %v2656, %v2925
  %v2984 = vadd.f32 %v2657, %v2930
  %v2985 = vadd.f32 %v2658, %v2935
  %v2986 = vadd.f32 %v2659, %v2940
  %v2987 = vadd.f32 %v2660, %v2945
  %v2988 = vadd.f32 %v2661, %v2950
  %v2989 = vadd.f32 %v2662, %v2955
  %v2990 = vadd.f32 %v2663, %v2960
  %v2991 = vadd.f32 %v2664, %v2965
  %v2992 = vadd.f32 %v2665, %v2970
  %v2993 = vadd.f32 %v2666, %v2975
  %s2994 = scalar_lea.vmem %s6, 768
  %v2995 = vld [vmem:[%s2994] sm:$0xff]
  %v2996 = vld [vmem:[%s2994 + $0x8] sm:$0xff]
  %v2997 = vld [vmem:[%s2994 + $0x10] sm:$0xff]
  %v2998 = vld [vmem:[%s2994 + $0x18] sm:$0xff]
  %v2999 = vld [vmem:[%s2994 + $0x20] sm:$0xff]
  %v3000 = vld [vmem:[%s2994 + $0x28] sm:$0xff]
  %v3001 = vld [vmem:[%s2994 + $0x30] sm:$0xff]
  %v3002 = vld [vmem:[%s2994 + $0x38] sm:$0xff]
  %v3003 = vld [vmem:[%s2994 + $0x40] sm:$0xff]
  %v3004 = vld [vmem:[%s2994 + $0x48] sm:$0xff]
  %v3005 = vld [vmem:[%s2994 + $0x50] sm:$0xff]
  %v3006 = vld [vmem:[%s2994 + $0x58] sm:$0xff]
  %v3007 = vld [vmem:[%s2994 + $0x60] sm:$0xff]
  %v3008 = vld [vmem:[%s2994 + $0x68] sm:$0xff]
  %v3009 = vld [vmem:[%s2994 + $0x70] sm:$0xff]
  %v3010 = vld [vmem:[%s2994 + $0x78] sm:$0xff]
  %3012 = vset.pattern.permute.xlu0 0
  %3013 = vperm.xlu0 %3012, %v2995
  %v3014 = vpop.permute.xlu0 %3013
  %3017 = vset.pattern.permute.xlu0 0
  %3018 = vperm.xlu0 %3017, %v2996
  %v3019 = vpop.permute.xlu0 %3018
  %3022 = vset.pattern.permute.xlu0 0
  %3023 = vperm.xlu0 %3022, %v2997
  %v3024 = vpop.permute.xlu0 %3023
  %3027 = vset.pattern.permute.xlu0 0
  %3028 = vperm.xlu0 %3027, %v2998
  %v3029 = vpop.permute.xlu0 %3028
  %3032 = vset.pattern.permute.xlu0 0
  %3033 = vperm.xlu0 %3032, %v2999
  %v3034 = vpop.permute.xlu0 %3033
  %3037 = vset.pattern.permute.xlu0 0
  %3038 = vperm.xlu0 %3037, %v3000
  %v3039 = vpop.permute.xlu0 %3038
  %3042 = vset.pattern.permute.xlu0 0
  %3043 = vperm.xlu0 %3042, %v3001
  %v3044 = vpop.permute.xlu0 %3043
  %3047 = vset.pattern.permute.xlu0 0
  %3048 = vperm.xlu0 %3047, %v3002
  %v3049 = vpop.permute.xlu0 %3048
  %3052 = vset.pattern.permute.xlu0 0
  %3053 = vperm.xlu0 %3052, %v3003
  %v3054 = vpop.permute.xlu0 %3053
  %3057 = vset.pattern.permute.xlu0 0
  %3058 = vperm.xlu0 %3057, %v3004
  %v3059 = vpop.permute.xlu0 %3058
  %3062 = vset.pattern.permute.xlu0 0
  %3063 = vperm.xlu0 %3062, %v3005
  %v3064 = vpop.permute.xlu0 %3063
  %3067 = vset.pattern.permute.xlu0 0
  %3068 = vperm.xlu0 %3067, %v3006
  %v3069 = vpop.permute.xlu0 %3068
  %3072 = vset.pattern.permute.xlu0 0
  %3073 = vperm.xlu0 %3072, %v3007
  %v3074 = vpop.permute.xlu0 %3073
  %3077 = vset.pattern.permute.xlu0 0
  %3078 = vperm.xlu0 %3077, %v3008
  %v3079 = vpop.permute.xlu0 %3078
  %3082 = vset.pattern.permute.xlu0 0
  %3083 = vperm.xlu0 %3082, %v3009
  %v3084 = vpop.permute.xlu0 %3083
  %3087 = vset.pattern.permute.xlu0 0
  %3088 = vperm.xlu0 %3087, %v3010
  %v3089 = vpop.permute.xlu0 %3088
  %v3091 = vmul.f32 %v1099, %v3014
  %v3092 = vmul.f32 %v1114, %v3019
  %v3093 = vmul.f32 %v1113, %v3024
  %v3094 = vmul.f32 %v1112, %v3029
  %v3095 = vmul.f32 %v1111, %v3034
  %v3096 = vmul.f32 %v1110, %v3039
  %v3097 = vmul.f32 %v1109, %v3044
  %v3098 = vmul.f32 %v1108, %v3049
  %v3099 = vmul.f32 %v1107, %v3054
  %v3100 = vmul.f32 %v1106, %v3059
  %v3101 = vmul.f32 %v1105, %v3064
  %v3102 = vmul.f32 %v1104, %v3069
  %v3103 = vmul.f32 %v1103, %v3074
  %v3104 = vmul.f32 %v1102, %v3079
  %v3105 = vmul.f32 %v1101, %v3084
  %v3106 = vmul.f32 %v1100, %v3089
  %s3107 = scalar_lea.vmem %s4, 192
  %v3108 = vld [vmem:[%s3107] sm:$0xff]
  %v3109 = vld [vmem:[%s3107 + $0x8] sm:$0xff]
  %v3110 = vld [vmem:[%s3107 + $0x10] sm:$0xff]
  %v3111 = vld [vmem:[%s3107 + $0x18] sm:$0xff]
  %v3113 = vsel %vm1233, %v3091, 0
  %v3116 = vsel %vm1233, %v3092, 0
  %v3119 = vsel %vm1233, %v3093, 0
  %v3122 = vsel %vm1233, %v3094, 0
  %v3125 = vsel %vm1233, %v3095, 0
  %v3128 = vsel %vm1233, %v3096, 0
  %v3131 = vsel %vm1233, %v3097, 0
  %v3134 = vsel %vm1233, %v3098, 0
  %v3137 = vsel %vm1233, %v3099, 0
  %v3140 = vsel %vm1233, %v3100, 0
  %v3143 = vsel %vm1233, %v3101, 0
  %v3146 = vsel %vm1233, %v3102, 0
  %v3149 = vsel %vm1233, %v3103, 0
  %v3152 = vsel %vm1233, %v3104, 0
  %v3155 = vsel %vm1233, %v3105, 0
  %v3158 = vsel %vm1233, %v3106, 0
  %3160 = vmatprep.subr.mxu0 0.0
  %3161 = vmatpush1.msra.mxu0 %v3108
  %3162 = vmatprep.subr.mxu0 0.0
  %3163 = vmatpush1.msra.mxu0 %v3109
  %3164 = vmatprep.subr.mxu0 0.0
  %3165 = vmatpush1.msra.mxu0 %v3110
  %3166 = vmatprep.subr.mxu0 0.0
  %3167 = vmatpush1.msra.mxu0 %v3111
  %3168 = vmatprep.subr.mxu0 0.0
  %3169 = vmatpush1.msra.mxu0 0.0
  %3170 = vmatprep.subr.mxu0 0.0
  %3171 = vmatpush1.msra.mxu0 0.0
  %3172 = vmatprep.subr.mxu0 0.0
  %3173 = vmatpush1.msra.mxu0 0.0
  %3174 = vmatprep.subr.mxu0 0.0
  %3175 = vmatpush1.msra.mxu0 0.0
  %3176 = vmatprep.subr.mxu0 0.0
  %3177 = vmatpush1.msra.mxu0 0.0
  %3178 = vmatprep.subr.mxu0 0.0
  %3179 = vmatpush1.msra.mxu0 0.0
  %3180 = vmatprep.subr.mxu0 0.0
  %3181 = vmatpush1.msra.mxu0 0.0
  %3182 = vmatprep.subr.mxu0 0.0
  %3183 = vmatpush1.msra.mxu0 0.0
  %3184 = vmatprep.subr.mxu0 0.0
  %3185 = vmatpush1.msra.mxu0 0.0
  %3186 = vmatprep.subr.mxu0 0.0
  %3187 = vmatpush1.msra.mxu0 0.0
  %3188 = vmatprep.subr.mxu0 0.0
  %3189 = vmatpush1.msra.mxu0 0.0
  %3190 = vmatprep.subr.mxu0 0.0
  %3191 = vmatpush1.msra.mxu0 0.0
  %3192 = vmatprep.subr.mxu0 0.0
  %3193 = vmatpush1.msra.mxu0 0.0
  %3194 = vmatprep.subr.mxu0 0.0
  %3195 = vmatpush1.msra.mxu0 0.0
  %3196 = vmatprep.subr.mxu0 0.0
  %3197 = vmatpush1.msra.mxu0 0.0
  %3198 = vmatprep.subr.mxu0 0.0
  %3199 = vmatpush1.msra.mxu0 0.0
  %3200 = vmatprep.subr.mxu0 0.0
  %3201 = vmatpush1.msra.mxu0 0.0
  %3202 = vmatprep.subr.mxu0 0.0
  %3203 = vmatpush1.msra.mxu0 0.0
  %3204 = vmatprep.subr.mxu0 0.0
  %3205 = vmatpush1.msra.mxu0 0.0
  %3206 = vmatprep.subr.mxu0 0.0
  %3207 = vmatpush1.msra.mxu0 0.0
  %3208 = vmatprep.subr.mxu0 0.0
  %3209 = vmatpush1.msra.mxu0 0.0
  %3210 = vmatprep.subr.mxu0 0.0
  %3211 = vmatpush1.msra.mxu0 0.0
  %3212 = vmatprep.subr.mxu0 0.0
  %3213 = vmatpush1.msra.mxu0 0.0
  %3214 = vmatprep.subr.mxu0 0.0
  %3215 = vmatpush1.msra.mxu0 0.0
  %3216 = vmatprep.subr.mxu0 0.0
  %3217 = vmatpush1.msra.mxu0 0.0
  %3218 = vmatprep.subr.mxu0 0.0
  %3219 = vmatpush1.msra.mxu0 0.0
  %3220 = vmatprep.subr.mxu0 0.0
  %3221 = vmatpush1.msra.mxu0 0.0
  %3222 = vmatprep.subr.mxu0 0.0
  %3223 = vmatpush1.msra.mxu0 0.0
  %3224 = vmatprep.mubr.f32.mxu0 0.0
  %3225 = vmatmul.mubr.f32.gmra.mrb[0].mxu0 %v3113
  %v3226 = vpop.f32.mrb[0].mxu0
  %v3227 = vadd.f32 0.0, %v3226
  %v3228 = vpop.f32.mrb[0].mxu0
  %3229 = vmatprep.mubr.f32.mxu0 0.0
  %3230 = vmatmul.mubr.f32.gmra.mrb[0].mxu0 %v3116
  %v3231 = vpop.f32.mrb[0].mxu0
  %v3232 = vadd.f32 0.0, %v3231
  %v3233 = vpop.f32.mrb[0].mxu0
  %3234 = vmatprep.mubr.f32.mxu0 0.0
  %3235 = vmatmul.mubr.f32.gmra.mrb[0].mxu0 %v3119
  %v3236 = vpop.f32.mrb[0].mxu0
  %v3237 = vadd.f32 0.0, %v3236
  %v3238 = vpop.f32.mrb[0].mxu0
  %3239 = vmatprep.mubr.f32.mxu0 0.0
  %3240 = vmatmul.mubr.f32.gmra.mrb[0].mxu0 %v3122
  %v3241 = vpop.f32.mrb[0].mxu0
  %v3242 = vadd.f32 0.0, %v3241
  %v3243 = vpop.f32.mrb[0].mxu0
  %3244 = vmatprep.mubr.f32.mxu0 0.0
  %3245 = vmatmul.mubr.f32.gmra.mrb[0].mxu0 %v3125
  %v3246 = vpop.f32.mrb[0].mxu0
  %v3247 = vadd.f32 0.0, %v3246
  %v3248 = vpop.f32.mrb[0].mxu0
  %3249 = vmatprep.mubr.f32.mxu0 0.0
  %3250 = vmatmul.mubr.f32.gmra.mrb[0].mxu0 %v3128
  %v3251 = vpop.f32.mrb[0].mxu0
  %v3252 = vadd.f32 0.0, %v3251
  %v3253 = vpop.f32.mrb[0].mxu0
  %3254 = vmatprep.mubr.f32.mxu0 0.0
  %3255 = vmatmul.mubr.f32.gmra.mrb[0].mxu0 %v3131
  %v3256 = vpop.f32.mrb[0].mxu0
  %v3257 = vadd.f32 0.0, %v3256
  %v3258 = vpop.f32.mrb[0].mxu0
  %3259 = vmatprep.mubr.f32.mxu0 0.0
  %3260 = vmatmul.mubr.f32.gmra.mrb[0].mxu0 %v3134
  %v3261 = vpop.f32.mrb[0].mxu0
  %v3262 = vadd.f32 0.0, %v3261
  %v3263 = vpop.f32.mrb[0].mxu0
  %3264 = vmatprep.mubr.f32.mxu0 0.0
  %3265 = vmatmul.mubr.f32.gmra.mrb[0].mxu0 %v3137
  %v3266 = vpop.f32.mrb[0].mxu0
  %v3267 = vadd.f32 0.0, %v3266
  %v3268 = vpop.f32.mrb[0].mxu0
  %3269 = vmatprep.mubr.f32.mxu0 0.0
  %3270 = vmatmul.mubr.f32.gmra.mrb[0].mxu0 %v3140
  %v3271 = vpop.f32.mrb[0].mxu0
  %v3272 = vadd.f32 0.0, %v3271
  %v3273 = vpop.f32.mrb[0].mxu0
  %3274 = vmatprep.mubr.f32.mxu0 0.0
  %3275 = vmatmul.mubr.f32.gmra.mrb[0].mxu0 %v3143
  %v3276 = vpop.f32.mrb[0].mxu0
  %v3277 = vadd.f32 0.0, %v3276
  %v3278 = vpop.f32.mrb[0].mxu0
  %3279 = vmatprep.mubr.f32.mxu0 0.0
  %3280 = vmatmul.mubr.f32.gmra.mrb[0].mxu0 %v3146
  %v3281 = vpop.f32.mrb[0].mxu0
  %v3282 = vadd.f32 0.0, %v3281
  %v3283 = vpop.f32.mrb[0].mxu0
  %3284 = vmatprep.mubr.f32.mxu0 0.0
  %3285 = vmatmul.mubr.f32.gmra.mrb[0].mxu0 %v3149
  %v3286 = vpop.f32.mrb[0].mxu0
  %v3287 = vadd.f32 0.0, %v3286
  %v3288 = vpop.f32.mrb[0].mxu0
  %3289 = vmatprep.mubr.f32.mxu0 0.0
  %3290 = vmatmul.mubr.f32.gmra.mrb[0].mxu0 %v3152
  %v3291 = vpop.f32.mrb[0].mxu0
  %v3292 = vadd.f32 0.0, %v3291
  %v3293 = vpop.f32.mrb[0].mxu0
  %3294 = vmatprep.mubr.f32.mxu0 0.0
  %3295 = vmatmul.mubr.f32.gmra.mrb[0].mxu0 %v3155
  %v3296 = vpop.f32.mrb[0].mxu0
  %v3297 = vadd.f32 0.0, %v3296
  %v3298 = vpop.f32.mrb[0].mxu0
  %3299 = vmatprep.mubr.f32.mxu0 0.0
  %3300 = vmatmul.mubr.f32.gmra.mrb[0].mxu0 %v3158
  %v3301 = vpop.f32.mrb[0].mxu0
  %v3302 = vadd.f32 0.0, %v3301
  %v3303 = vpop.f32.mrb[0].mxu0
  %3304 = vdwg.mxu0
  %v3305 = vadd.f32 %v2978, %v3227
  %v3306 = vadd.f32 %v2979, %v3232
  %v3307 = vadd.f32 %v2980, %v3237
  %v3308 = vadd.f32 %v2981, %v3242
  %v3309 = vadd.f32 %v2982, %v3247
  %v3310 = vadd.f32 %v2983, %v3252
  %v3311 = vadd.f32 %v2984, %v3257
  %v3312 = vadd.f32 %v2985, %v3262
  %v3313 = vadd.f32 %v2986, %v3267
  %v3314 = vadd.f32 %v2987, %v3272
  %v3315 = vadd.f32 %v2988, %v3277
  %v3316 = vadd.f32 %v2989, %v3282
  %v3317 = vadd.f32 %v2990, %v3287
  %v3318 = vadd.f32 %v2991, %v3292
  %v3319 = vadd.f32 %v2992, %v3297
  %v3320 = vadd.f32 %v2993, %v3302
  %s3321 = scalar_lea.vmem %s6, 896
  %v3322 = vld [vmem:[%s3321] sm:$0xff]
  %v3323 = vld [vmem:[%s3321 + $0x8] sm:$0xff]
  %v3324 = vld [vmem:[%s3321 + $0x10] sm:$0xff]
  %v3325 = vld [vmem:[%s3321 + $0x18] sm:$0xff]
  %v3326 = vld [vmem:[%s3321 + $0x20] sm:$0xff]
  %v3327 = vld [vmem:[%s3321 + $0x28] sm:$0xff]
  %v3328 = vld [vmem:[%s3321 + $0x30] sm:$0xff]
  %v3329 = vld [vmem:[%s3321 + $0x38] sm:$0xff]
  %v3330 = vld [vmem:[%s3321 + $0x40] sm:$0xff]
  %v3331 = vld [vmem:[%s3321 + $0x48] sm:$0xff]
  %v3332 = vld [vmem:[%s3321 + $0x50] sm:$0xff]
  %v3333 = vld [vmem:[%s3321 + $0x58] sm:$0xff]
  %v3334 = vld [vmem:[%s3321 + $0x60] sm:$0xff]
  %v3335 = vld [vmem:[%s3321 + $0x68] sm:$0xff]
  %v3336 = vld [vmem:[%s3321 + $0x70] sm:$0xff]
  %v3337 = vld [vmem:[%s3321 + $0x78] sm:$0xff]
  %3339 = vset.pattern.permute.xlu0 0
  %3340 = vperm.xlu0 %3339, %v3322
  %v3341 = vpop.permute.xlu0 %3340
  %3344 = vset.pattern.permute.xlu0 0
  %3345 = vperm.xlu0 %3344, %v3323
  %v3346 = vpop.permute.xlu0 %3345
  %3349 = vset.pattern.permute.xlu0 0
  %3350 = vperm.xlu0 %3349, %v3324
  %v3351 = vpop.permute.xlu0 %3350
  %3354 = vset.pattern.permute.xlu0 0
  %3355 = vperm.xlu0 %3354, %v3325
  %v3356 = vpop.permute.xlu0 %3355
  %3359 = vset.pattern.permute.xlu0 0
  %3360 = vperm.xlu0 %3359, %v3326
  %v3361 = vpop.permute.xlu0 %3360
  %3364 = vset.pattern.permute.xlu0 0
  %3365 = vperm.xlu0 %3364, %v3327
  %v3366 = vpop.permute.xlu0 %3365
  %3369 = vset.pattern.permute.xlu0 0
  %3370 = vperm.xlu0 %3369, %v3328
  %v3371 = vpop.permute.xlu0 %3370
  %3374 = vset.pattern.permute.xlu0 0
  %3375 = vperm.xlu0 %3374, %v3329
  %v3376 = vpop.permute.xlu0 %3375
  %3379 = vset.pattern.permute.xlu0 0
  %3380 = vperm.xlu0 %3379, %v3330
  %v3381 = vpop.permute.xlu0 %3380
  %3384 = vset.pattern.permute.xlu0 0
  %3385 = vperm.xlu0 %3384, %v3331
  %v3386 = vpop.permute.xlu0 %3385
  %3389 = vset.pattern.permute.xlu0 0
  %3390 = vperm.xlu0 %3389, %v3332
  %v3391 = vpop.permute.xlu0 %3390
  %3394 = vset.pattern.permute.xlu0 0
  %3395 = vperm.xlu0 %3394, %v3333
  %v3396 = vpop.permute.xlu0 %3395
  %3399 = vset.pattern.permute.xlu0 0
  %3400 = vperm.xlu0 %3399, %v3334
  %v3401 = vpop.permute.xlu0 %3400
  %3404 = vset.pattern.permute.xlu0 0
  %3405 = vperm.xlu0 %3404, %v3335
  %v3406 = vpop.permute.xlu0 %3405
  %3409 = vset.pattern.permute.xlu0 0
  %3410 = vperm.xlu0 %3409, %v3336
  %v3411 = vpop.permute.xlu0 %3410
  %3414 = vset.pattern.permute.xlu0 0
  %3415 = vperm.xlu0 %3414, %v3337
  %v3416 = vpop.permute.xlu0 %3415
  %v3418 = vmul.f32 %v928, %v3341
  %v3419 = vmul.f32 %v853, %v3346
  %v3420 = vmul.f32 %v858, %v3351
  %v3421 = vmul.f32 %v863, %v3356
  %v3422 = vmul.f32 %v868, %v3361
  %v3423 = vmul.f32 %v873, %v3366
  %v3424 = vmul.f32 %v878, %v3371
  %v3425 = vmul.f32 %v883, %v3376
  %v3426 = vmul.f32 %v888, %v3381
  %v3427 = vmul.f32 %v893, %v3386
  %v3428 = vmul.f32 %v898, %v3391
  %v3429 = vmul.f32 %v903, %v3396
  %v3430 = vmul.f32 %v908, %v3401
  %v3431 = vmul.f32 %v913, %v3406
  %v3432 = vmul.f32 %v918, %v3411
  %v3433 = vmul.f32 %v923, %v3416
  %s3434 = scalar_lea.vmem %s4, 224
  %v3435 = vld [vmem:[%s3434] sm:$0xff]
  %v3436 = vld [vmem:[%s3434 + $0x8] sm:$0xff]
  %v3437 = vld [vmem:[%s3434 + $0x10] sm:$0xff]
  %v3438 = vld [vmem:[%s3434 + $0x18] sm:$0xff]
  %v3440 = vsel %vm1233, %v3418, 0
  %v3443 = vsel %vm1233, %v3419, 0
  %v3446 = vsel %vm1233, %v3420, 0
  %v3449 = vsel %vm1233, %v3421, 0
  %v3452 = vsel %vm1233, %v3422, 0
  %v3455 = vsel %vm1233, %v3423, 0
  %v3458 = vsel %vm1233, %v3424, 0
  %v3461 = vsel %vm1233, %v3425, 0
  %v3464 = vsel %vm1233, %v3426, 0
  %v3467 = vsel %vm1233, %v3427, 0
  %v3470 = vsel %vm1233, %v3428, 0
  %v3473 = vsel %vm1233, %v3429, 0
  %v3476 = vsel %vm1233, %v3430, 0
  %v3479 = vsel %vm1233, %v3431, 0
  %v3482 = vsel %vm1233, %v3432, 0
  %v3485 = vsel %vm1233, %v3433, 0
  %3487 = vmatprep.subr.mxu0 0.0
  %3488 = vmatpush1.msra.mxu0 %v3435
  %3489 = vmatprep.subr.mxu0 0.0
  %3490 = vmatpush1.msra.mxu0 %v3436
  %3491 = vmatprep.subr.mxu0 0.0
  %3492 = vmatpush1.msra.mxu0 %v3437
  %3493 = vmatprep.subr.mxu0 0.0
  %3494 = vmatpush1.msra.mxu0 %v3438
  %3495 = vmatprep.subr.mxu0 0.0
  %3496 = vmatpush1.msra.mxu0 0.0
  %3497 = vmatprep.subr.mxu0 0.0
  %3498 = vmatpush1.msra.mxu0 0.0
  %3499 = vmatprep.subr.mxu0 0.0
  %3500 = vmatpush1.msra.mxu0 0.0
  %3501 = vmatprep.subr.mxu0 0.0
  %3502 = vmatpush1.msra.mxu0 0.0
  %3503 = vmatprep.subr.mxu0 0.0
  %3504 = vmatpush1.msra.mxu0 0.0
  %3505 = vmatprep.subr.mxu0 0.0
  %3506 = vmatpush1.msra.mxu0 0.0
  %3507 = vmatprep.subr.mxu0 0.0
  %3508 = vmatpush1.msra.mxu0 0.0
  %3509 = vmatprep.subr.mxu0 0.0
  %3510 = vmatpush1.msra.mxu0 0.0
  %3511 = vmatprep.subr.mxu0 0.0
  %3512 = vmatpush1.msra.mxu0 0.0
  %3513 = vmatprep.subr.mxu0 0.0
  %3514 = vmatpush1.msra.mxu0 0.0
  %3515 = vmatprep.subr.mxu0 0.0
  %3516 = vmatpush1.msra.mxu0 0.0
  %3517 = vmatprep.subr.mxu0 0.0
  %3518 = vmatpush1.msra.mxu0 0.0
  %3519 = vmatprep.subr.mxu0 0.0
  %3520 = vmatpush1.msra.mxu0 0.0
  %3521 = vmatprep.subr.mxu0 0.0
  %3522 = vmatpush1.msra.mxu0 0.0
  %3523 = vmatprep.subr.mxu0 0.0
  %3524 = vmatpush1.msra.mxu0 0.0
  %3525 = vmatprep.subr.mxu0 0.0
  %3526 = vmatpush1.msra.mxu0 0.0
  %3527 = vmatprep.subr.mxu0 0.0
  %3528 = vmatpush1.msra.mxu0 0.0
  %3529 = vmatprep.subr.mxu0 0.0
  %3530 = vmatpush1.msra.mxu0 0.0
  %3531 = vmatprep.subr.mxu0 0.0
  %3532 = vmatpush1.msra.mxu0 0.0
  %3533 = vmatprep.subr.mxu0 0.0
  %3534 = vmatpush1.msra.mxu0 0.0
  %3535 = vmatprep.subr.mxu0 0.0
  %3536 = vmatpush1.msra.mxu0 0.0
  %3537 = vmatprep.subr.mxu0 0.0
  %3538 = vmatpush1.msra.mxu0 0.0
  %3539 = vmatprep.subr.mxu0 0.0
  %3540 = vmatpush1.msra.mxu0 0.0
  %3541 = vmatprep.subr.mxu0 0.0
  %3542 = vmatpush1.msra.mxu0 0.0
  %3543 = vmatprep.subr.mxu0 0.0
  %3544 = vmatpush1.msra.mxu0 0.0
  %3545 = vmatprep.subr.mxu0 0.0
  %3546 = vmatpush1.msra.mxu0 0.0
  %3547 = vmatprep.subr.mxu0 0.0
  %3548 = vmatpush1.msra.mxu0 0.0
  %3549 = vmatprep.subr.mxu0 0.0
  %3550 = vmatpush1.msra.mxu0 0.0
  %3551 = vmatprep.mubr.f32.mxu0 0.0
  %3552 = vmatmul.mubr.f32.gmra.mrb[0].mxu0 %v3440
  %v3553 = vpop.f32.mrb[0].mxu0
  %v3554 = vadd.f32 0.0, %v3553
  %v3555 = vpop.f32.mrb[0].mxu0
  %3556 = vmatprep.mubr.f32.mxu0 0.0
  %3557 = vmatmul.mubr.f32.gmra.mrb[0].mxu0 %v3443
  %v3558 = vpop.f32.mrb[0].mxu0
  %v3559 = vadd.f32 0.0, %v3558
  %v3560 = vpop.f32.mrb[0].mxu0
  %3561 = vmatprep.mubr.f32.mxu0 0.0
  %3562 = vmatmul.mubr.f32.gmra.mrb[0].mxu0 %v3446
  %v3563 = vpop.f32.mrb[0].mxu0
  %v3564 = vadd.f32 0.0, %v3563
  %v3565 = vpop.f32.mrb[0].mxu0
  %3566 = vmatprep.mubr.f32.mxu0 0.0
  %3567 = vmatmul.mubr.f32.gmra.mrb[0].mxu0 %v3449
  %v3568 = vpop.f32.mrb[0].mxu0
  %v3569 = vadd.f32 0.0, %v3568
  %v3570 = vpop.f32.mrb[0].mxu0
  %3571 = vmatprep.mubr.f32.mxu0 0.0
  %3572 = vmatmul.mubr.f32.gmra.mrb[0].mxu0 %v3452
  %v3573 = vpop.f32.mrb[0].mxu0
  %v3574 = vadd.f32 0.0, %v3573
  %v3575 = vpop.f32.mrb[0].mxu0
  %3576 = vmatprep.mubr.f32.mxu0 0.0
  %3577 = vmatmul.mubr.f32.gmra.mrb[0].mxu0 %v3455
  %v3578 = vpop.f32.mrb[0].mxu0
  %v3579 = vadd.f32 0.0, %v3578
  %v3580 = vpop.f32.mrb[0].mxu0
  %3581 = vmatprep.mubr.f32.mxu0 0.0
  %3582 = vmatmul.mubr.f32.gmra.mrb[0].mxu0 %v3458
  %v3583 = vpop.f32.mrb[0].mxu0
  %v3584 = vadd.f32 0.0, %v3583
  %v3585 = vpop.f32.mrb[0].mxu0
  %3586 = vmatprep.mubr.f32.mxu0 0.0
  %3587 = vmatmul.mubr.f32.gmra.mrb[0].mxu0 %v3461
  %v3588 = vpop.f32.mrb[0].mxu0
  %v3589 = vadd.f32 0.0, %v3588
  %v3590 = vpop.f32.mrb[0].mxu0
  %3591 = vmatprep.mubr.f32.mxu0 0.0
  %3592 = vmatmul.mubr.f32.gmra.mrb[0].mxu0 %v3464
  %v3593 = vpop.f32.mrb[0].mxu0
  %v3594 = vadd.f32 0.0, %v3593
  %v3595 = vpop.f32.mrb[0].mxu0
  %3596 = vmatprep.mubr.f32.mxu0 0.0
  %3597 = vmatmul.mubr.f32.gmra.mrb[0].mxu0 %v3467
  %v3598 = vpop.f32.mrb[0].mxu0
  %v3599 = vadd.f32 0.0, %v3598
  %v3600 = vpop.f32.mrb[0].mxu0
  %3601 = vmatprep.mubr.f32.mxu0 0.0
  %3602 = vmatmul.mubr.f32.gmra.mrb[0].mxu0 %v3470
  %v3603 = vpop.f32.mrb[0].mxu0
  %v3604 = vadd.f32 0.0, %v3603
  %v3605 = vpop.f32.mrb[0].mxu0
  %3606 = vmatprep.mubr.f32.mxu0 0.0
  %3607 = vmatmul.mubr.f32.gmra.mrb[0].mxu0 %v3473
  %v3608 = vpop.f32.mrb[0].mxu0
  %v3609 = vadd.f32 0.0, %v3608
  %v3610 = vpop.f32.mrb[0].mxu0
  %3611 = vmatprep.mubr.f32.mxu0 0.0
  %3612 = vmatmul.mubr.f32.gmra.mrb[0].mxu0 %v3476
  %v3613 = vpop.f32.mrb[0].mxu0
  %v3614 = vadd.f32 0.0, %v3613
  %v3615 = vpop.f32.mrb[0].mxu0
  %3616 = vmatprep.mubr.f32.mxu0 0.0
  %3617 = vmatmul.mubr.f32.gmra.mrb[0].mxu0 %v3479
  %v3618 = vpop.f32.mrb[0].mxu0
  %v3619 = vadd.f32 0.0, %v3618
  %v3620 = vpop.f32.mrb[0].mxu0
  %3621 = vmatprep.mubr.f32.mxu0 0.0
  %3622 = vmatmul.mubr.f32.gmra.mrb[0].mxu0 %v3482
  %v3623 = vpop.f32.mrb[0].mxu0
  %v3624 = vadd.f32 0.0, %v3623
  %v3625 = vpop.f32.mrb[0].mxu0
  %3626 = vmatprep.mubr.f32.mxu0 0.0
  %3627 = vmatmul.mubr.f32.gmra.mrb[0].mxu0 %v3485
  %v3628 = vpop.f32.mrb[0].mxu0
  %v3629 = vadd.f32 0.0, %v3628
  %v3630 = vpop.f32.mrb[0].mxu0
  %3631 = vdwg.mxu0
  %v3632 = vadd.f32 %v3305, %v3554
  %v3633 = vadd.f32 %v3306, %v3559
  %v3634 = vadd.f32 %v3307, %v3564
  %v3635 = vadd.f32 %v3308, %v3569
  %v3636 = vadd.f32 %v3309, %v3574
  %v3637 = vadd.f32 %v3310, %v3579
  %v3638 = vadd.f32 %v3311, %v3584
  %v3639 = vadd.f32 %v3312, %v3589
  %v3640 = vadd.f32 %v3313, %v3594
  %v3641 = vadd.f32 %v3314, %v3599
  %v3642 = vadd.f32 %v3315, %v3604
  %v3643 = vadd.f32 %v3316, %v3609
  %v3644 = vadd.f32 %v3317, %v3614
  %v3645 = vadd.f32 %v3318, %v3619
  %v3646 = vadd.f32 %v3319, %v3624
  %v3647 = vadd.f32 %v3320, %v3629
  %s3648 = scalar_lea.vmem %s6, 1024
  %v3649 = vld [vmem:[%s3648] sm:$0xff]
  %v3650 = vld [vmem:[%s3648 + $0x8] sm:$0xff]
  %v3651 = vld [vmem:[%s3648 + $0x10] sm:$0xff]
  %v3652 = vld [vmem:[%s3648 + $0x18] sm:$0xff]
  %v3653 = vld [vmem:[%s3648 + $0x20] sm:$0xff]
  %v3654 = vld [vmem:[%s3648 + $0x28] sm:$0xff]
  %v3655 = vld [vmem:[%s3648 + $0x30] sm:$0xff]
  %v3656 = vld [vmem:[%s3648 + $0x38] sm:$0xff]
  %v3657 = vld [vmem:[%s3648 + $0x40] sm:$0xff]
  %v3658 = vld [vmem:[%s3648 + $0x48] sm:$0xff]
  %v3659 = vld [vmem:[%s3648 + $0x50] sm:$0xff]
  %v3660 = vld [vmem:[%s3648 + $0x58] sm:$0xff]
  %v3661 = vld [vmem:[%s3648 + $0x60] sm:$0xff]
  %v3662 = vld [vmem:[%s3648 + $0x68] sm:$0xff]
  %v3663 = vld [vmem:[%s3648 + $0x70] sm:$0xff]
  %v3664 = vld [vmem:[%s3648 + $0x78] sm:$0xff]
  %3666 = vset.pattern.permute.xlu0 0
  %3667 = vperm.xlu0 %3666, %v3649
  %v3668 = vpop.permute.xlu0 %3667
  %3671 = vset.pattern.permute.xlu0 0
  %3672 = vperm.xlu0 %3671, %v3650
  %v3673 = vpop.permute.xlu0 %3672
  %3676 = vset.pattern.permute.xlu0 0
  %3677 = vperm.xlu0 %3676, %v3651
  %v3678 = vpop.permute.xlu0 %3677
  %3681 = vset.pattern.permute.xlu0 0
  %3682 = vperm.xlu0 %3681, %v3652
  %v3683 = vpop.permute.xlu0 %3682
  %3686 = vset.pattern.permute.xlu0 0
  %3687 = vperm.xlu0 %3686, %v3653
  %v3688 = vpop.permute.xlu0 %3687
  %3691 = vset.pattern.permute.xlu0 0
  %3692 = vperm.xlu0 %3691, %v3654
  %v3693 = vpop.permute.xlu0 %3692
  %3696 = vset.pattern.permute.xlu0 0
  %3697 = vperm.xlu0 %3696, %v3655
  %v3698 = vpop.permute.xlu0 %3697
  %3701 = vset.pattern.permute.xlu0 0
  %3702 = vperm.xlu0 %3701, %v3656
  %v3703 = vpop.permute.xlu0 %3702
  %3706 = vset.pattern.permute.xlu0 0
  %3707 = vperm.xlu0 %3706, %v3657
  %v3708 = vpop.permute.xlu0 %3707
  %3711 = vset.pattern.permute.xlu0 0
  %3712 = vperm.xlu0 %3711, %v3658
  %v3713 = vpop.permute.xlu0 %3712
  %3716 = vset.pattern.permute.xlu0 0
  %3717 = vperm.xlu0 %3716, %v3659
  %v3718 = vpop.permute.xlu0 %3717
  %3721 = vset.pattern.permute.xlu0 0
  %3722 = vperm.xlu0 %3721, %v3660
  %v3723 = vpop.permute.xlu0 %3722
  %3726 = vset.pattern.permute.xlu0 0
  %3727 = vperm.xlu0 %3726, %v3661
  %v3728 = vpop.permute.xlu0 %3727
  %3731 = vset.pattern.permute.xlu0 0
  %3732 = vperm.xlu0 %3731, %v3662
  %v3733 = vpop.permute.xlu0 %3732
  %3736 = vset.pattern.permute.xlu0 0
  %3737 = vperm.xlu0 %3736, %v3663
  %v3738 = vpop.permute.xlu0 %3737
  %3741 = vset.pattern.permute.xlu0 0
  %3742 = vperm.xlu0 %3741, %v3664
  %v3743 = vpop.permute.xlu0 %3742
  %v3745 = vmul.f32 %v1979, %v3668
  %v3746 = vmul.f32 %v1978, %v3673
  %v3747 = vmul.f32 %v1977, %v3678
  %v3748 = vmul.f32 %v1976, %v3683
  %v3749 = vmul.f32 %v1975, %v3688
  %v3750 = vmul.f32 %v1974, %v3693
  %v3751 = vmul.f32 %v1973, %v3698
  %v3752 = vmul.f32 %v1972, %v3703
  %v3753 = vmul.f32 %v1971, %v3708
  %v3754 = vmul.f32 %v1970, %v3713
  %v3755 = vmul.f32 %v1969, %v3718
  %v3756 = vmul.f32 %v1968, %v3723
  %v3757 = vmul.f32 %v1967, %v3728
  %v3758 = vmul.f32 %v1966, %v3733
  %v3759 = vmul.f32 %v1965, %v3738
  %v3760 = vmul.f32 %v1964, %v3743
  %s3761 = scalar_lea.vmem %s4, 256
  %v3762 = vld [vmem:[%s3761] sm:$0xff]
  %v3763 = vld [vmem:[%s3761 + $0x8] sm:$0xff]
  %v3764 = vld [vmem:[%s3761 + $0x10] sm:$0xff]
  %v3765 = vld [vmem:[%s3761 + $0x18] sm:$0xff]
  %v3767 = vsel %vm1233, %v3745, 0
  %v3770 = vsel %vm1233, %v3746, 0
  %v3773 = vsel %vm1233, %v3747, 0
  %v3776 = vsel %vm1233, %v3748, 0
  %v3779 = vsel %vm1233, %v3749, 0
  %v3782 = vsel %vm1233, %v3750, 0
  %v3785 = vsel %vm1233, %v3751, 0
  %v3788 = vsel %vm1233, %v3752, 0
  %v3791 = vsel %vm1233, %v3753, 0
  %v3794 = vsel %vm1233, %v3754, 0
  %v3797 = vsel %vm1233, %v3755, 0
  %v3800 = vsel %vm1233, %v3756, 0
  %v3803 = vsel %vm1233, %v3757, 0
  %v3806 = vsel %vm1233, %v3758, 0
  %v3809 = vsel %vm1233, %v3759, 0
  %v3812 = vsel %vm1233, %v3760, 0
  %3814 = vmatprep.subr.mxu0 0.0
  %3815 = vmatpush1.msra.mxu0 %v3762
  %3816 = vmatprep.subr.mxu0 0.0
  %3817 = vmatpush1.msra.mxu0 %v3763
  %3818 = vmatprep.subr.mxu0 0.0
  %3819 = vmatpush1.msra.mxu0 %v3764
  %3820 = vmatprep.subr.mxu0 0.0
  %3821 = vmatpush1.msra.mxu0 %v3765
  %3822 = vmatprep.subr.mxu0 0.0
  %3823 = vmatpush1.msra.mxu0 0.0
  %3824 = vmatprep.subr.mxu0 0.0
  %3825 = vmatpush1.msra.mxu0 0.0
  %3826 = vmatprep.subr.mxu0 0.0
  %3827 = vmatpush1.msra.mxu0 0.0
  %3828 = vmatprep.subr.mxu0 0.0
  %3829 = vmatpush1.msra.mxu0 0.0
  %3830 = vmatprep.subr.mxu0 0.0
  %3831 = vmatpush1.msra.mxu0 0.0
  %3832 = vmatprep.subr.mxu0 0.0
  %3833 = vmatpush1.msra.mxu0 0.0
  %3834 = vmatprep.subr.mxu0 0.0
  %3835 = vmatpush1.msra.mxu0 0.0
  %3836 = vmatprep.subr.mxu0 0.0
  %3837 = vmatpush1.msra.mxu0 0.0
  %3838 = vmatprep.subr.mxu0 0.0
  %3839 = vmatpush1.msra.mxu0 0.0
  %3840 = vmatprep.subr.mxu0 0.0
  %3841 = vmatpush1.msra.mxu0 0.0
  %3842 = vmatprep.subr.mxu0 0.0
  %3843 = vmatpush1.msra.mxu0 0.0
  %3844 = vmatprep.subr.mxu0 0.0
  %3845 = vmatpush1.msra.mxu0 0.0
  %3846 = vmatprep.subr.mxu0 0.0
  %3847 = vmatpush1.msra.mxu0 0.0
  %3848 = vmatprep.subr.mxu0 0.0
  %3849 = vmatpush1.msra.mxu0 0.0
  %3850 = vmatprep.subr.mxu0 0.0
  %3851 = vmatpush1.msra.mxu0 0.0
  %3852 = vmatprep.subr.mxu0 0.0
  %3853 = vmatpush1.msra.mxu0 0.0
  %3854 = vmatprep.subr.mxu0 0.0
  %3855 = vmatpush1.msra.mxu0 0.0
  %3856 = vmatprep.subr.mxu0 0.0
  %3857 = vmatpush1.msra.mxu0 0.0
  %3858 = vmatprep.subr.mxu0 0.0
  %3859 = vmatpush1.msra.mxu0 0.0
  %3860 = vmatprep.subr.mxu0 0.0
  %3861 = vmatpush1.msra.mxu0 0.0
  %3862 = vmatprep.subr.mxu0 0.0
  %3863 = vmatpush1.msra.mxu0 0.0
  %3864 = vmatprep.subr.mxu0 0.0
  %3865 = vmatpush1.msra.mxu0 0.0
  %3866 = vmatprep.subr.mxu0 0.0
  %3867 = vmatpush1.msra.mxu0 0.0
  %3868 = vmatprep.subr.mxu0 0.0
  %3869 = vmatpush1.msra.mxu0 0.0
  %3870 = vmatprep.subr.mxu0 0.0
  %3871 = vmatpush1.msra.mxu0 0.0
  %3872 = vmatprep.subr.mxu0 0.0
  %3873 = vmatpush1.msra.mxu0 0.0
  %3874 = vmatprep.subr.mxu0 0.0
  %3875 = vmatpush1.msra.mxu0 0.0
  %3876 = vmatprep.subr.mxu0 0.0
  %3877 = vmatpush1.msra.mxu0 0.0
  %3878 = vmatprep.mubr.f32.mxu0 0.0
  %3879 = vmatmul.mubr.f32.gmra.mrb[0].mxu0 %v3767
  %v3880 = vpop.f32.mrb[0].mxu0
  %v3881 = vadd.f32 0.0, %v3880
  %v3882 = vpop.f32.mrb[0].mxu0
  %3883 = vmatprep.mubr.f32.mxu0 0.0
  %3884 = vmatmul.mubr.f32.gmra.mrb[0].mxu0 %v3770
  %v3885 = vpop.f32.mrb[0].mxu0
  %v3886 = vadd.f32 0.0, %v3885
  %v3887 = vpop.f32.mrb[0].mxu0
  %3888 = vmatprep.mubr.f32.mxu0 0.0
  %3889 = vmatmul.mubr.f32.gmra.mrb[0].mxu0 %v3773
  %v3890 = vpop.f32.mrb[0].mxu0
  %v3891 = vadd.f32 0.0, %v3890
  %v3892 = vpop.f32.mrb[0].mxu0
  %3893 = vmatprep.mubr.f32.mxu0 0.0
  %3894 = vmatmul.mubr.f32.gmra.mrb[0].mxu0 %v3776
  %v3895 = vpop.f32.mrb[0].mxu0
  %v3896 = vadd.f32 0.0, %v3895
  %v3897 = vpop.f32.mrb[0].mxu0
  %3898 = vmatprep.mubr.f32.mxu0 0.0
  %3899 = vmatmul.mubr.f32.gmra.mrb[0].mxu0 %v3779
  %v3900 = vpop.f32.mrb[0].mxu0
  %v3901 = vadd.f32 0.0, %v3900
  %v3902 = vpop.f32.mrb[0].mxu0
  %3903 = vmatprep.mubr.f32.mxu0 0.0
  %3904 = vmatmul.mubr.f32.gmra.mrb[0].mxu0 %v3782
  %v3905 = vpop.f32.mrb[0].mxu0
  %v3906 = vadd.f32 0.0, %v3905
  %v3907 = vpop.f32.mrb[0].mxu0
  %3908 = vmatprep.mubr.f32.mxu0 0.0
  %3909 = vmatmul.mubr.f32.gmra.mrb[0].mxu0 %v3785
  %v3910 = vpop.f32.mrb[0].mxu0
  %v3911 = vadd.f32 0.0, %v3910
  %v3912 = vpop.f32.mrb[0].mxu0
  %3913 = vmatprep.mubr.f32.mxu0 0.0
  %3914 = vmatmul.mubr.f32.gmra.mrb[0].mxu0 %v3788
  %v3915 = vpop.f32.mrb[0].mxu0
  %v3916 = vadd.f32 0.0, %v3915
  %v3917 = vpop.f32.mrb[0].mxu0
  %3918 = vmatprep.mubr.f32.mxu0 0.0
  %3919 = vmatmul.mubr.f32.gmra.mrb[0].mxu0 %v3791
  %v3920 = vpop.f32.mrb[0].mxu0
  %v3921 = vadd.f32 0.0, %v3920
  %v3922 = vpop.f32.mrb[0].mxu0
  %3923 = vmatprep.mubr.f32.mxu0 0.0
  %3924 = vmatmul.mubr.f32.gmra.mrb[0].mxu0 %v3794
  %v3925 = vpop.f32.mrb[0].mxu0
  %v3926 = vadd.f32 0.0, %v3925
  %v3927 = vpop.f32.mrb[0].mxu0
  %3928 = vmatprep.mubr.f32.mxu0 0.0
  %3929 = vmatmul.mubr.f32.gmra.mrb[0].mxu0 %v3797
  %v3930 = vpop.f32.mrb[0].mxu0
  %v3931 = vadd.f32 0.0, %v3930
  %v3932 = vpop.f32.mrb[0].mxu0
  %3933 = vmatprep.mubr.f32.mxu0 0.0
  %3934 = vmatmul.mubr.f32.gmra.mrb[0].mxu0 %v3800
  %v3935 = vpop.f32.mrb[0].mxu0
  %v3936 = vadd.f32 0.0, %v3935
  %v3937 = vpop.f32.mrb[0].mxu0
  %3938 = vmatprep.mubr.f32.mxu0 0.0
  %3939 = vmatmul.mubr.f32.gmra.mrb[0].mxu0 %v3803
  %v3940 = vpop.f32.mrb[0].mxu0
  %v3941 = vadd.f32 0.0, %v3940
  %v3942 = vpop.f32.mrb[0].mxu0
  %3943 = vmatprep.mubr.f32.mxu0 0.0
  %3944 = vmatmul.mubr.f32.gmra.mrb[0].mxu0 %v3806
  %v3945 = vpop.f32.mrb[0].mxu0
  %v3946 = vadd.f32 0.0, %v3945
  %v3947 = vpop.f32.mrb[0].mxu0
  %3948 = vmatprep.mubr.f32.mxu0 0.0
  %3949 = vmatmul.mubr.f32.gmra.mrb[0].mxu0 %v3809
  %v3950 = vpop.f32.mrb[0].mxu0
  %v3951 = vadd.f32 0.0, %v3950
  %v3952 = vpop.f32.mrb[0].mxu0
  %3953 = vmatprep.mubr.f32.mxu0 0.0
  %3954 = vmatmul.mubr.f32.gmra.mrb[0].mxu0 %v3812
  %v3955 = vpop.f32.mrb[0].mxu0
  %v3956 = vadd.f32 0.0, %v3955
  %v3957 = vpop.f32.mrb[0].mxu0
  %3958 = vdwg.mxu0
  %v3959 = vadd.f32 %v3632, %v3881
  %v3960 = vadd.f32 %v3633, %v3886
  %v3961 = vadd.f32 %v3634, %v3891
  %v3962 = vadd.f32 %v3635, %v3896
  %v3963 = vadd.f32 %v3636, %v3901
  %v3964 = vadd.f32 %v3637, %v3906
  %v3965 = vadd.f32 %v3638, %v3911
  %v3966 = vadd.f32 %v3639, %v3916
  %v3967 = vadd.f32 %v3640, %v3921
  %v3968 = vadd.f32 %v3641, %v3926
  %v3969 = vadd.f32 %v3642, %v3931
  %v3970 = vadd.f32 %v3643, %v3936
  %v3971 = vadd.f32 %v3644, %v3941
  %v3972 = vadd.f32 %v3645, %v3946
  %v3973 = vadd.f32 %v3646, %v3951
  %v3974 = vadd.f32 %v3647, %v3956
  %s3975 = scalar_lea.vmem %s6, 1152
  %v3976 = vld [vmem:[%s3975] sm:$0xff]
  %v3977 = vld [vmem:[%s3975 + $0x8] sm:$0xff]
  %v3978 = vld [vmem:[%s3975 + $0x10] sm:$0xff]
  %v3979 = vld [vmem:[%s3975 + $0x18] sm:$0xff]
  %v3980 = vld [vmem:[%s3975 + $0x20] sm:$0xff]
  %v3981 = vld [vmem:[%s3975 + $0x28] sm:$0xff]
  %v3982 = vld [vmem:[%s3975 + $0x30] sm:$0xff]
  %v3983 = vld [vmem:[%s3975 + $0x38] sm:$0xff]
  %v3984 = vld [vmem:[%s3975 + $0x40] sm:$0xff]
  %v3985 = vld [vmem:[%s3975 + $0x48] sm:$0xff]
  %v3986 = vld [vmem:[%s3975 + $0x50] sm:$0xff]
  %v3987 = vld [vmem:[%s3975 + $0x58] sm:$0xff]
  %v3988 = vld [vmem:[%s3975 + $0x60] sm:$0xff]
  %v3989 = vld [vmem:[%s3975 + $0x68] sm:$0xff]
  %v3990 = vld [vmem:[%s3975 + $0x70] sm:$0xff]
  %v3991 = vld [vmem:[%s3975 + $0x78] sm:$0xff]
  %3993 = vset.pattern.permute.xlu0 0
  %3994 = vperm.xlu0 %3993, %v3976
  %v3995 = vpop.permute.xlu0 %3994
  %3998 = vset.pattern.permute.xlu0 0
  %3999 = vperm.xlu0 %3998, %v3977
  %v4000 = vpop.permute.xlu0 %3999
  %4003 = vset.pattern.permute.xlu0 0
  %4004 = vperm.xlu0 %4003, %v3978
  %v4005 = vpop.permute.xlu0 %4004
  %4008 = vset.pattern.permute.xlu0 0
  %4009 = vperm.xlu0 %4008, %v3979
  %v4010 = vpop.permute.xlu0 %4009
  %4013 = vset.pattern.permute.xlu0 0
  %4014 = vperm.xlu0 %4013, %v3980
  %v4015 = vpop.permute.xlu0 %4014
  %4018 = vset.pattern.permute.xlu0 0
  %4019 = vperm.xlu0 %4018, %v3981
  %v4020 = vpop.permute.xlu0 %4019
  %4023 = vset.pattern.permute.xlu0 0
  %4024 = vperm.xlu0 %4023, %v3982
  %v4025 = vpop.permute.xlu0 %4024
  %4028 = vset.pattern.permute.xlu0 0
  %4029 = vperm.xlu0 %4028, %v3983
  %v4030 = vpop.permute.xlu0 %4029
  %4033 = vset.pattern.permute.xlu0 0
  %4034 = vperm.xlu0 %4033, %v3984
  %v4035 = vpop.permute.xlu0 %4034
  %4038 = vset.pattern.permute.xlu0 0
  %4039 = vperm.xlu0 %4038, %v3985
  %v4040 = vpop.permute.xlu0 %4039
  %4043 = vset.pattern.permute.xlu0 0
  %4044 = vperm.xlu0 %4043, %v3986
  %v4045 = vpop.permute.xlu0 %4044
  %4048 = vset.pattern.permute.xlu0 0
  %4049 = vperm.xlu0 %4048, %v3987
  %v4050 = vpop.permute.xlu0 %4049
  %4053 = vset.pattern.permute.xlu0 0
  %4054 = vperm.xlu0 %4053, %v3988
  %v4055 = vpop.permute.xlu0 %4054
  %4058 = vset.pattern.permute.xlu0 0
  %4059 = vperm.xlu0 %4058, %v3989
  %v4060 = vpop.permute.xlu0 %4059
  %4063 = vset.pattern.permute.xlu0 0
  %4064 = vperm.xlu0 %4063, %v3990
  %v4065 = vpop.permute.xlu0 %4064
  %4068 = vset.pattern.permute.xlu0 0
  %4069 = vperm.xlu0 %4068, %v3991
  %v4070 = vpop.permute.xlu0 %4069
  %v4072 = vmul.f32 %v2339, %v3995
  %v4073 = vmul.f32 %v2338, %v4000
  %v4074 = vmul.f32 %v2337, %v4005
  %v4075 = vmul.f32 %v2336, %v4010
  %v4076 = vmul.f32 %v2335, %v4015
  %v4077 = vmul.f32 %v2334, %v4020
  %v4078 = vmul.f32 %v2333, %v4025
  %v4079 = vmul.f32 %v2332, %v4030
  %v4080 = vmul.f32 %v2331, %v4035
  %v4081 = vmul.f32 %v2330, %v4040
  %v4082 = vmul.f32 %v2329, %v4045
  %v4083 = vmul.f32 %v2328, %v4050
  %v4084 = vmul.f32 %v2327, %v4055
  %v4085 = vmul.f32 %v2326, %v4060
  %v4086 = vmul.f32 %v2325, %v4065
  %v4087 = vmul.f32 %v2324, %v4070
  %s4088 = scalar_lea.vmem %s4, 288
  %v4089 = vld [vmem:[%s4088] sm:$0xff]
  %v4090 = vld [vmem:[%s4088 + $0x8] sm:$0xff]
  %v4091 = vld [vmem:[%s4088 + $0x10] sm:$0xff]
  %v4092 = vld [vmem:[%s4088 + $0x18] sm:$0xff]
  %v4094 = vsel %vm1233, %v4072, 0
  %v4097 = vsel %vm1233, %v4073, 0
  %v4100 = vsel %vm1233, %v4074, 0
  %v4103 = vsel %vm1233, %v4075, 0
  %v4106 = vsel %vm1233, %v4076, 0
  %v4109 = vsel %vm1233, %v4077, 0
  %v4112 = vsel %vm1233, %v4078, 0
  %v4115 = vsel %vm1233, %v4079, 0
  %v4118 = vsel %vm1233, %v4080, 0
  %v4121 = vsel %vm1233, %v4081, 0
  %v4124 = vsel %vm1233, %v4082, 0
  %v4127 = vsel %vm1233, %v4083, 0
  %v4130 = vsel %vm1233, %v4084, 0
  %v4133 = vsel %vm1233, %v4085, 0
  %v4136 = vsel %vm1233, %v4086, 0
  %v4139 = vsel %vm1233, %v4087, 0
  %4141 = vmatprep.subr.mxu0 0.0
  %4142 = vmatpush1.msra.mxu0 %v4089
  %4143 = vmatprep.subr.mxu0 0.0
  %4144 = vmatpush1.msra.mxu0 %v4090
  %4145 = vmatprep.subr.mxu0 0.0
  %4146 = vmatpush1.msra.mxu0 %v4091
  %4147 = vmatprep.subr.mxu0 0.0
  %4148 = vmatpush1.msra.mxu0 %v4092
  %4149 = vmatprep.subr.mxu0 0.0
  %4150 = vmatpush1.msra.mxu0 0.0
  %4151 = vmatprep.subr.mxu0 0.0
  %4152 = vmatpush1.msra.mxu0 0.0
  %4153 = vmatprep.subr.mxu0 0.0
  %4154 = vmatpush1.msra.mxu0 0.0
  %4155 = vmatprep.subr.mxu0 0.0
  %4156 = vmatpush1.msra.mxu0 0.0
  %4157 = vmatprep.subr.mxu0 0.0
  %4158 = vmatpush1.msra.mxu0 0.0
  %4159 = vmatprep.subr.mxu0 0.0
  %4160 = vmatpush1.msra.mxu0 0.0
  %4161 = vmatprep.subr.mxu0 0.0
  %4162 = vmatpush1.msra.mxu0 0.0
  %4163 = vmatprep.subr.mxu0 0.0
  %4164 = vmatpush1.msra.mxu0 0.0
  %4165 = vmatprep.subr.mxu0 0.0
  %4166 = vmatpush1.msra.mxu0 0.0
  %4167 = vmatprep.subr.mxu0 0.0
  %4168 = vmatpush1.msra.mxu0 0.0
  %4169 = vmatprep.subr.mxu0 0.0
  %4170 = vmatpush1.msra.mxu0 0.0
  %4171 = vmatprep.subr.mxu0 0.0
  %4172 = vmatpush1.msra.mxu0 0.0
  %4173 = vmatprep.subr.mxu0 0.0
  %4174 = vmatpush1.msra.mxu0 0.0
  %4175 = vmatprep.subr.mxu0 0.0
  %4176 = vmatpush1.msra.mxu0 0.0
  %4177 = vmatprep.subr.mxu0 0.0
  %4178 = vmatpush1.msra.mxu0 0.0
  %4179 = vmatprep.subr.mxu0 0.0
  %4180 = vmatpush1.msra.mxu0 0.0
  %4181 = vmatprep.subr.mxu0 0.0
  %4182 = vmatpush1.msra.mxu0 0.0
  %4183 = vmatprep.subr.mxu0 0.0
  %4184 = vmatpush1.msra.mxu0 0.0
  %4185 = vmatprep.subr.mxu0 0.0
  %4186 = vmatpush1.msra.mxu0 0.0
  %4187 = vmatprep.subr.mxu0 0.0
  %4188 = vmatpush1.msra.mxu0 0.0
  %4189 = vmatprep.subr.mxu0 0.0
  %4190 = vmatpush1.msra.mxu0 0.0
  %4191 = vmatprep.subr.mxu0 0.0
  %4192 = vmatpush1.msra.mxu0 0.0
  %4193 = vmatprep.subr.mxu0 0.0
  %4194 = vmatpush1.msra.mxu0 0.0
  %4195 = vmatprep.subr.mxu0 0.0
  %4196 = vmatpush1.msra.mxu0 0.0
  %4197 = vmatprep.subr.mxu0 0.0
  %4198 = vmatpush1.msra.mxu0 0.0
  %4199 = vmatprep.subr.mxu0 0.0
  %4200 = vmatpush1.msra.mxu0 0.0
  %4201 = vmatprep.subr.mxu0 0.0
  %4202 = vmatpush1.msra.mxu0 0.0
  %4203 = vmatprep.subr.mxu0 0.0
  %4204 = vmatpush1.msra.mxu0 0.0
  %4205 = vmatprep.mubr.f32.mxu0 0.0
  %4206 = vmatmul.mubr.f32.gmra.mrb[0].mxu0 %v4094
  %v4207 = vpop.f32.mrb[0].mxu0
  %v4208 = vadd.f32 0.0, %v4207
  %v4209 = vpop.f32.mrb[0].mxu0
  %4210 = vmatprep.mubr.f32.mxu0 0.0
  %4211 = vmatmul.mubr.f32.gmra.mrb[0].mxu0 %v4097
  %v4212 = vpop.f32.mrb[0].mxu0
  %v4213 = vadd.f32 0.0, %v4212
  %v4214 = vpop.f32.mrb[0].mxu0
  %4215 = vmatprep.mubr.f32.mxu0 0.0
  %4216 = vmatmul.mubr.f32.gmra.mrb[0].mxu0 %v4100
  %v4217 = vpop.f32.mrb[0].mxu0
  %v4218 = vadd.f32 0.0, %v4217
  %v4219 = vpop.f32.mrb[0].mxu0
  %4220 = vmatprep.mubr.f32.mxu0 0.0
  %4221 = vmatmul.mubr.f32.gmra.mrb[0].mxu0 %v4103
  %v4222 = vpop.f32.mrb[0].mxu0
  %v4223 = vadd.f32 0.0, %v4222
  %v4224 = vpop.f32.mrb[0].mxu0
  %4225 = vmatprep.mubr.f32.mxu0 0.0
  %4226 = vmatmul.mubr.f32.gmra.mrb[0].mxu0 %v4106
  %v4227 = vpop.f32.mrb[0].mxu0
  %v4228 = vadd.f32 0.0, %v4227
  %v4229 = vpop.f32.mrb[0].mxu0
  %4230 = vmatprep.mubr.f32.mxu0 0.0
  %4231 = vmatmul.mubr.f32.gmra.mrb[0].mxu0 %v4109
  %v4232 = vpop.f32.mrb[0].mxu0
  %v4233 = vadd.f32 0.0, %v4232
  %v4234 = vpop.f32.mrb[0].mxu0
  %4235 = vmatprep.mubr.f32.mxu0 0.0
  %4236 = vmatmul.mubr.f32.gmra.mrb[0].mxu0 %v4112
  %v4237 = vpop.f32.mrb[0].mxu0
  %v4238 = vadd.f32 0.0, %v4237
  %v4239 = vpop.f32.mrb[0].mxu0
  %4240 = vmatprep.mubr.f32.mxu0 0.0
  %4241 = vmatmul.mubr.f32.gmra.mrb[0].mxu0 %v4115
  %v4242 = vpop.f32.mrb[0].mxu0
  %v4243 = vadd.f32 0.0, %v4242
  %v4244 = vpop.f32.mrb[0].mxu0
  %4245 = vmatprep.mubr.f32.mxu0 0.0
  %4246 = vmatmul.mubr.f32.gmra.mrb[0].mxu0 %v4118
  %v4247 = vpop.f32.mrb[0].mxu0
  %v4248 = vadd.f32 0.0, %v4247
  %v4249 = vpop.f32.mrb[0].mxu0
  %4250 = vmatprep.mubr.f32.mxu0 0.0
  %4251 = vmatmul.mubr.f32.gmra.mrb[0].mxu0 %v4121
  %v4252 = vpop.f32.mrb[0].mxu0
  %v4253 = vadd.f32 0.0, %v4252
  %v4254 = vpop.f32.mrb[0].mxu0
  %4255 = vmatprep.mubr.f32.mxu0 0.0
  %4256 = vmatmul.mubr.f32.gmra.mrb[0].mxu0 %v4124
  %v4257 = vpop.f32.mrb[0].mxu0
  %v4258 = vadd.f32 0.0, %v4257
  %v4259 = vpop.f32.mrb[0].mxu0
  %4260 = vmatprep.mubr.f32.mxu0 0.0
  %4261 = vmatmul.mubr.f32.gmra.mrb[0].mxu0 %v4127
  %v4262 = vpop.f32.mrb[0].mxu0
  %v4263 = vadd.f32 0.0, %v4262
  %v4264 = vpop.f32.mrb[0].mxu0
  %4265 = vmatprep.mubr.f32.mxu0 0.0
  %4266 = vmatmul.mubr.f32.gmra.mrb[0].mxu0 %v4130
  %v4267 = vpop.f32.mrb[0].mxu0
  %v4268 = vadd.f32 0.0, %v4267
  %v4269 = vpop.f32.mrb[0].mxu0
  %4270 = vmatprep.mubr.f32.mxu0 0.0
  %4271 = vmatmul.mubr.f32.gmra.mrb[0].mxu0 %v4133
  %v4272 = vpop.f32.mrb[0].mxu0
  %v4273 = vadd.f32 0.0, %v4272
  %v4274 = vpop.f32.mrb[0].mxu0
  %4275 = vmatprep.mubr.f32.mxu0 0.0
  %4276 = vmatmul.mubr.f32.gmra.mrb[0].mxu0 %v4136
  %v4277 = vpop.f32.mrb[0].mxu0
  %v4278 = vadd.f32 0.0, %v4277
  %v4279 = vpop.f32.mrb[0].mxu0
  %4280 = vmatprep.mubr.f32.mxu0 0.0
  %4281 = vmatmul.mubr.f32.gmra.mrb[0].mxu0 %v4139
  %v4282 = vpop.f32.mrb[0].mxu0
  %v4283 = vadd.f32 0.0, %v4282
  %v4284 = vpop.f32.mrb[0].mxu0
  %4285 = vdwg.mxu0
  %v4286 = vadd.f32 %v3959, %v4208
  %v4287 = vadd.f32 %v3960, %v4213
  %v4288 = vadd.f32 %v3961, %v4218
  %v4289 = vadd.f32 %v3962, %v4223
  %v4290 = vadd.f32 %v3963, %v4228
  %v4291 = vadd.f32 %v3964, %v4233
  %v4292 = vadd.f32 %v3965, %v4238
  %v4293 = vadd.f32 %v3966, %v4243
  %v4294 = vadd.f32 %v3967, %v4248
  %v4295 = vadd.f32 %v3968, %v4253
  %v4296 = vadd.f32 %v3969, %v4258
  %v4297 = vadd.f32 %v3970, %v4263
  %v4298 = vadd.f32 %v3971, %v4268
  %v4299 = vadd.f32 %v3972, %v4273
  %v4300 = vadd.f32 %v3973, %v4278
  %v4301 = vadd.f32 %v3974, %v4283
  %s4302 = scalar_lea.vmem %s6, 1280
  %v4303 = vld [vmem:[%s4302] sm:$0xff]
  %v4304 = vld [vmem:[%s4302 + $0x8] sm:$0xff]
  %v4305 = vld [vmem:[%s4302 + $0x10] sm:$0xff]
  %v4306 = vld [vmem:[%s4302 + $0x18] sm:$0xff]
  %v4307 = vld [vmem:[%s4302 + $0x20] sm:$0xff]
  %v4308 = vld [vmem:[%s4302 + $0x28] sm:$0xff]
  %v4309 = vld [vmem:[%s4302 + $0x30] sm:$0xff]
  %v4310 = vld [vmem:[%s4302 + $0x38] sm:$0xff]
  %v4311 = vld [vmem:[%s4302 + $0x40] sm:$0xff]
  %v4312 = vld [vmem:[%s4302 + $0x48] sm:$0xff]
  %v4313 = vld [vmem:[%s4302 + $0x50] sm:$0xff]
  %v4314 = vld [vmem:[%s4302 + $0x58] sm:$0xff]
  %v4315 = vld [vmem:[%s4302 + $0x60] sm:$0xff]
  %v4316 = vld [vmem:[%s4302 + $0x68] sm:$0xff]
  %v4317 = vld [vmem:[%s4302 + $0x70] sm:$0xff]
  %v4318 = vld [vmem:[%s4302 + $0x78] sm:$0xff]
  %4320 = vset.pattern.permute.xlu0 0
  %4321 = vperm.xlu0 %4320, %v4303
  %v4322 = vpop.permute.xlu0 %4321
  %4325 = vset.pattern.permute.xlu0 0
  %4326 = vperm.xlu0 %4325, %v4304
  %v4327 = vpop.permute.xlu0 %4326
  %4330 = vset.pattern.permute.xlu0 0
  %4331 = vperm.xlu0 %4330, %v4305
  %v4332 = vpop.permute.xlu0 %4331
  %4335 = vset.pattern.permute.xlu0 0
  %4336 = vperm.xlu0 %4335, %v4306
  %v4337 = vpop.permute.xlu0 %4336
  %4340 = vset.pattern.permute.xlu0 0
  %4341 = vperm.xlu0 %4340, %v4307
  %v4342 = vpop.permute.xlu0 %4341
  %4345 = vset.pattern.permute.xlu0 0
  %4346 = vperm.xlu0 %4345, %v4308
  %v4347 = vpop.permute.xlu0 %4346
  %4350 = vset.pattern.permute.xlu0 0
  %4351 = vperm.xlu0 %4350, %v4309
  %v4352 = vpop.permute.xlu0 %4351
  %4355 = vset.pattern.permute.xlu0 0
  %4356 = vperm.xlu0 %4355, %v4310
  %v4357 = vpop.permute.xlu0 %4356
  %4360 = vset.pattern.permute.xlu0 0
  %4361 = vperm.xlu0 %4360, %v4311
  %v4362 = vpop.permute.xlu0 %4361
  %4365 = vset.pattern.permute.xlu0 0
  %4366 = vperm.xlu0 %4365, %v4312
  %v4367 = vpop.permute.xlu0 %4366
  %4370 = vset.pattern.permute.xlu0 0
  %4371 = vperm.xlu0 %4370, %v4313
  %v4372 = vpop.permute.xlu0 %4371
  %4375 = vset.pattern.permute.xlu0 0
  %4376 = vperm.xlu0 %4375, %v4314
  %v4377 = vpop.permute.xlu0 %4376
  %4380 = vset.pattern.permute.xlu0 0
  %4381 = vperm.xlu0 %4380, %v4315
  %v4382 = vpop.permute.xlu0 %4381
  %4385 = vset.pattern.permute.xlu0 0
  %4386 = vperm.xlu0 %4385, %v4316
  %v4387 = vpop.permute.xlu0 %4386
  %4390 = vset.pattern.permute.xlu0 0
  %4391 = vperm.xlu0 %4390, %v4317
  %v4392 = vpop.permute.xlu0 %4391
  %4395 = vset.pattern.permute.xlu0 0
  %4396 = vperm.xlu0 %4395, %v4318
  %v4397 = vpop.permute.xlu0 %4396
  %v4399 = vmul.f32 %v965, %v4322
  %v4400 = vmul.f32 %v964, %v4327
  %v4401 = vmul.f32 %v963, %v4332
  %v4402 = vmul.f32 %v962, %v4337
  %v4403 = vmul.f32 %v961, %v4342
  %v4404 = vmul.f32 %v960, %v4347
  %v4405 = vmul.f32 %v959, %v4352
  %v4406 = vmul.f32 %v958, %v4357
  %v4407 = vmul.f32 %v957, %v4362
  %v4408 = vmul.f32 %v956, %v4367
  %v4409 = vmul.f32 %v955, %v4372
  %v4410 = vmul.f32 %v954, %v4377
  %v4411 = vmul.f32 %v953, %v4382
  %v4412 = vmul.f32 %v952, %v4387
  %v4413 = vmul.f32 %v951, %v4392
  %v4414 = vmul.f32 %v950, %v4397
  %s4415 = scalar_lea.vmem %s4, 320
  %v4416 = vld [vmem:[%s4415] sm:$0xff]
  %v4417 = vld [vmem:[%s4415 + $0x8] sm:$0xff]
  %v4418 = vld [vmem:[%s4415 + $0x10] sm:$0xff]
  %v4419 = vld [vmem:[%s4415 + $0x18] sm:$0xff]
  %v4421 = vsel %vm1233, %v4399, 0
  %v4424 = vsel %vm1233, %v4400, 0
  %v4427 = vsel %vm1233, %v4401, 0
  %v4430 = vsel %vm1233, %v4402, 0
  %v4433 = vsel %vm1233, %v4403, 0
  %v4436 = vsel %vm1233, %v4404, 0
  %v4439 = vsel %vm1233, %v4405, 0
  %v4442 = vsel %vm1233, %v4406, 0
  %v4445 = vsel %vm1233, %v4407, 0
  %v4448 = vsel %vm1233, %v4408, 0
  %v4451 = vsel %vm1233, %v4409, 0
  %v4454 = vsel %vm1233, %v4410, 0
  %v4457 = vsel %vm1233, %v4411, 0
  %v4460 = vsel %vm1233, %v4412, 0
  %v4463 = vsel %vm1233, %v4413, 0
  %v4466 = vsel %vm1233, %v4414, 0
  %4468 = vmatprep.subr.mxu0 0.0
  %4469 = vmatpush1.msra.mxu0 %v4416
  %4470 = vmatprep.subr.mxu0 0.0
  %4471 = vmatpush1.msra.mxu0 %v4417
  %4472 = vmatprep.subr.mxu0 0.0
  %4473 = vmatpush1.msra.mxu0 %v4418
  %4474 = vmatprep.subr.mxu0 0.0
  %4475 = vmatpush1.msra.mxu0 %v4419
  %4476 = vmatprep.subr.mxu0 0.0
  %4477 = vmatpush1.msra.mxu0 0.0
  %4478 = vmatprep.subr.mxu0 0.0
  %4479 = vmatpush1.msra.mxu0 0.0
  %4480 = vmatprep.subr.mxu0 0.0
  %4481 = vmatpush1.msra.mxu0 0.0
  %4482 = vmatprep.subr.mxu0 0.0
  %4483 = vmatpush1.msra.mxu0 0.0
  %4484 = vmatprep.subr.mxu0 0.0
  %4485 = vmatpush1.msra.mxu0 0.0
  %4486 = vmatprep.subr.mxu0 0.0
  %4487 = vmatpush1.msra.mxu0 0.0
  %4488 = vmatprep.subr.mxu0 0.0
  %4489 = vmatpush1.msra.mxu0 0.0
  %4490 = vmatprep.subr.mxu0 0.0
  %4491 = vmatpush1.msra.mxu0 0.0
  %4492 = vmatprep.subr.mxu0 0.0
  %4493 = vmatpush1.msra.mxu0 0.0
  %4494 = vmatprep.subr.mxu0 0.0
  %4495 = vmatpush1.msra.mxu0 0.0
  %4496 = vmatprep.subr.mxu0 0.0
  %4497 = vmatpush1.msra.mxu0 0.0
  %4498 = vmatprep.subr.mxu0 0.0
  %4499 = vmatpush1.msra.mxu0 0.0
  %4500 = vmatprep.subr.mxu0 0.0
  %4501 = vmatpush1.msra.mxu0 0.0
  %4502 = vmatprep.subr.mxu0 0.0
  %4503 = vmatpush1.msra.mxu0 0.0
  %4504 = vmatprep.subr.mxu0 0.0
  %4505 = vmatpush1.msra.mxu0 0.0
  %4506 = vmatprep.subr.mxu0 0.0
  %4507 = vmatpush1.msra.mxu0 0.0
  %4508 = vmatprep.subr.mxu0 0.0
  %4509 = vmatpush1.msra.mxu0 0.0
  %4510 = vmatprep.subr.mxu0 0.0
  %4511 = vmatpush1.msra.mxu0 0.0
  %4512 = vmatprep.subr.mxu0 0.0
  %4513 = vmatpush1.msra.mxu0 0.0
  %4514 = vmatprep.subr.mxu0 0.0
  %4515 = vmatpush1.msra.mxu0 0.0
  %4516 = vmatprep.subr.mxu0 0.0
  %4517 = vmatpush1.msra.mxu0 0.0
  %4518 = vmatprep.subr.mxu0 0.0
  %4519 = vmatpush1.msra.mxu0 0.0
  %4520 = vmatprep.subr.mxu0 0.0
  %4521 = vmatpush1.msra.mxu0 0.0
  %4522 = vmatprep.subr.mxu0 0.0
  %4523 = vmatpush1.msra.mxu0 0.0
  %4524 = vmatprep.subr.mxu0 0.0
  %4525 = vmatpush1.msra.mxu0 0.0
  %4526 = vmatprep.subr.mxu0 0.0
  %4527 = vmatpush1.msra.mxu0 0.0
  %4528 = vmatprep.subr.mxu0 0.0
  %4529 = vmatpush1.msra.mxu0 0.0
  %4530 = vmatprep.subr.mxu0 0.0
  %4531 = vmatpush1.msra.mxu0 0.0
  %4532 = vmatprep.mubr.f32.mxu0 0.0
  %4533 = vmatmul.mubr.f32.gmra.mrb[0].mxu0 %v4421
  %v4534 = vpop.f32.mrb[0].mxu0
  %v4535 = vadd.f32 0.0, %v4534
  %v4536 = vpop.f32.mrb[0].mxu0
  %4537 = vmatprep.mubr.f32.mxu0 0.0
  %4538 = vmatmul.mubr.f32.gmra.mrb[0].mxu0 %v4424
  %v4539 = vpop.f32.mrb[0].mxu0
  %v4540 = vadd.f32 0.0, %v4539
  %v4541 = vpop.f32.mrb[0].mxu0
  %4542 = vmatprep.mubr.f32.mxu0 0.0
  %4543 = vmatmul.mubr.f32.gmra.mrb[0].mxu0 %v4427
  %v4544 = vpop.f32.mrb[0].mxu0
  %v4545 = vadd.f32 0.0, %v4544
  %v4546 = vpop.f32.mrb[0].mxu0
  %4547 = vmatprep.mubr.f32.mxu0 0.0
  %4548 = vmatmul.mubr.f32.gmra.mrb[0].mxu0 %v4430
  %v4549 = vpop.f32.mrb[0].mxu0
  %v4550 = vadd.f32 0.0, %v4549
  %v4551 = vpop.f32.mrb[0].mxu0
  %4552 = vmatprep.mubr.f32.mxu0 0.0
  %4553 = vmatmul.mubr.f32.gmra.mrb[0].mxu0 %v4433
  %v4554 = vpop.f32.mrb[0].mxu0
  %v4555 = vadd.f32 0.0, %v4554
  %v4556 = vpop.f32.mrb[0].mxu0
  %4557 = vmatprep.mubr.f32.mxu0 0.0
  %4558 = vmatmul.mubr.f32.gmra.mrb[0].mxu0 %v4436
  %v4559 = vpop.f32.mrb[0].mxu0
  %v4560 = vadd.f32 0.0, %v4559
  %v4561 = vpop.f32.mrb[0].mxu0
  %4562 = vmatprep.mubr.f32.mxu0 0.0
  %4563 = vmatmul.mubr.f32.gmra.mrb[0].mxu0 %v4439
  %v4564 = vpop.f32.mrb[0].mxu0
  %v4565 = vadd.f32 0.0, %v4564
  %v4566 = vpop.f32.mrb[0].mxu0
  %4567 = vmatprep.mubr.f32.mxu0 0.0
  %4568 = vmatmul.mubr.f32.gmra.mrb[0].mxu0 %v4442
  %v4569 = vpop.f32.mrb[0].mxu0
  %v4570 = vadd.f32 0.0, %v4569
  %v4571 = vpop.f32.mrb[0].mxu0
  %4572 = vmatprep.mubr.f32.mxu0 0.0
  %4573 = vmatmul.mubr.f32.gmra.mrb[0].mxu0 %v4445
  %v4574 = vpop.f32.mrb[0].mxu0
  %v4575 = vadd.f32 0.0, %v4574
  %v4576 = vpop.f32.mrb[0].mxu0
  %4577 = vmatprep.mubr.f32.mxu0 0.0
  %4578 = vmatmul.mubr.f32.gmra.mrb[0].mxu0 %v4448
  %v4579 = vpop.f32.mrb[0].mxu0
  %v4580 = vadd.f32 0.0, %v4579
  %v4581 = vpop.f32.mrb[0].mxu0
  %4582 = vmatprep.mubr.f32.mxu0 0.0
  %4583 = vmatmul.mubr.f32.gmra.mrb[0].mxu0 %v4451
  %v4584 = vpop.f32.mrb[0].mxu0
  %v4585 = vadd.f32 0.0, %v4584
  %v4586 = vpop.f32.mrb[0].mxu0
  %4587 = vmatprep.mubr.f32.mxu0 0.0
  %4588 = vmatmul.mubr.f32.gmra.mrb[0].mxu0 %v4454
  %v4589 = vpop.f32.mrb[0].mxu0
  %v4590 = vadd.f32 0.0, %v4589
  %v4591 = vpop.f32.mrb[0].mxu0
  %4592 = vmatprep.mubr.f32.mxu0 0.0
  %4593 = vmatmul.mubr.f32.gmra.mrb[0].mxu0 %v4457
  %v4594 = vpop.f32.mrb[0].mxu0
  %v4595 = vadd.f32 0.0, %v4594
  %v4596 = vpop.f32.mrb[0].mxu0
  %4597 = vmatprep.mubr.f32.mxu0 0.0
  %4598 = vmatmul.mubr.f32.gmra.mrb[0].mxu0 %v4460
  %v4599 = vpop.f32.mrb[0].mxu0
  %v4600 = vadd.f32 0.0, %v4599
  %v4601 = vpop.f32.mrb[0].mxu0
  %4602 = vmatprep.mubr.f32.mxu0 0.0
  %4603 = vmatmul.mubr.f32.gmra.mrb[0].mxu0 %v4463
  %v4604 = vpop.f32.mrb[0].mxu0
  %v4605 = vadd.f32 0.0, %v4604
  %v4606 = vpop.f32.mrb[0].mxu0
  %4607 = vmatprep.mubr.f32.mxu0 0.0
  %4608 = vmatmul.mubr.f32.gmra.mrb[0].mxu0 %v4466
  %v4609 = vpop.f32.mrb[0].mxu0
  %v4610 = vadd.f32 0.0, %v4609
  %v4611 = vpop.f32.mrb[0].mxu0
  %4612 = vdwg.mxu0
  %v4613 = vadd.f32 %v4286, %v4535
  %v4614 = vadd.f32 %v4287, %v4540
  %v4615 = vadd.f32 %v4288, %v4545
  %v4616 = vadd.f32 %v4289, %v4550
  %v4617 = vadd.f32 %v4290, %v4555
  %v4618 = vadd.f32 %v4291, %v4560
  %v4619 = vadd.f32 %v4292, %v4565
  %v4620 = vadd.f32 %v4293, %v4570
  %v4621 = vadd.f32 %v4294, %v4575
  %v4622 = vadd.f32 %v4295, %v4580
  %v4623 = vadd.f32 %v4296, %v4585
  %v4624 = vadd.f32 %v4297, %v4590
  %v4625 = vadd.f32 %v4298, %v4595
  %v4626 = vadd.f32 %v4299, %v4600
  %v4627 = vadd.f32 %v4300, %v4605
  %v4628 = vadd.f32 %v4301, %v4610
  %s4629 = scalar_lea.vmem %s6, 1408
  %v4630 = vld [vmem:[%s4629] sm:$0xff]
  %v4631 = vld [vmem:[%s4629 + $0x8] sm:$0xff]
  %v4632 = vld [vmem:[%s4629 + $0x10] sm:$0xff]
  %v4633 = vld [vmem:[%s4629 + $0x18] sm:$0xff]
  %v4634 = vld [vmem:[%s4629 + $0x20] sm:$0xff]
  %v4635 = vld [vmem:[%s4629 + $0x28] sm:$0xff]
  %v4636 = vld [vmem:[%s4629 + $0x30] sm:$0xff]
  %v4637 = vld [vmem:[%s4629 + $0x38] sm:$0xff]
  %v4638 = vld [vmem:[%s4629 + $0x40] sm:$0xff]
  %v4639 = vld [vmem:[%s4629 + $0x48] sm:$0xff]
  %v4640 = vld [vmem:[%s4629 + $0x50] sm:$0xff]
  %v4641 = vld [vmem:[%s4629 + $0x58] sm:$0xff]
  %v4642 = vld [vmem:[%s4629 + $0x60] sm:$0xff]
  %v4643 = vld [vmem:[%s4629 + $0x68] sm:$0xff]
  %v4644 = vld [vmem:[%s4629 + $0x70] sm:$0xff]
  %v4645 = vld [vmem:[%s4629 + $0x78] sm:$0xff]
  %4647 = vset.pattern.permute.xlu0 0
  %4648 = vperm.xlu0 %4647, %v4630
  %v4649 = vpop.permute.xlu0 %4648
  %4652 = vset.pattern.permute.xlu0 0
  %4653 = vperm.xlu0 %4652, %v4631
  %v4654 = vpop.permute.xlu0 %4653
  %4657 = vset.pattern.permute.xlu0 0
  %4658 = vperm.xlu0 %4657, %v4632
  %v4659 = vpop.permute.xlu0 %4658
  %4662 = vset.pattern.permute.xlu0 0
  %4663 = vperm.xlu0 %4662, %v4633
  %v4664 = vpop.permute.xlu0 %4663
  %4667 = vset.pattern.permute.xlu0 0
  %4668 = vperm.xlu0 %4667, %v4634
  %v4669 = vpop.permute.xlu0 %4668
  %4672 = vset.pattern.permute.xlu0 0
  %4673 = vperm.xlu0 %4672, %v4635
  %v4674 = vpop.permute.xlu0 %4673
  %4677 = vset.pattern.permute.xlu0 0
  %4678 = vperm.xlu0 %4677, %v4636
  %v4679 = vpop.permute.xlu0 %4678
  %4682 = vset.pattern.permute.xlu0 0
  %4683 = vperm.xlu0 %4682, %v4637
  %v4684 = vpop.permute.xlu0 %4683
  %4687 = vset.pattern.permute.xlu0 0
  %4688 = vperm.xlu0 %4687, %v4638
  %v4689 = vpop.permute.xlu0 %4688
  %4692 = vset.pattern.permute.xlu0 0
  %4693 = vperm.xlu0 %4692, %v4639
  %v4694 = vpop.permute.xlu0 %4693
  %4697 = vset.pattern.permute.xlu0 0
  %4698 = vperm.xlu0 %4697, %v4640
  %v4699 = vpop.permute.xlu0 %4698
  %4702 = vset.pattern.permute.xlu0 0
  %4703 = vperm.xlu0 %4702, %v4641
  %v4704 = vpop.permute.xlu0 %4703
  %4707 = vset.pattern.permute.xlu0 0
  %4708 = vperm.xlu0 %4707, %v4642
  %v4709 = vpop.permute.xlu0 %4708
  %4712 = vset.pattern.permute.xlu0 0
  %4713 = vperm.xlu0 %4712, %v4643
  %v4714 = vpop.permute.xlu0 %4713
  %4717 = vset.pattern.permute.xlu0 0
  %4718 = vperm.xlu0 %4717, %v4644
  %v4719 = vpop.permute.xlu0 %4718
  %4722 = vset.pattern.permute.xlu0 0
  %4723 = vperm.xlu0 %4722, %v4645
  %v4724 = vpop.permute.xlu0 %4723
  %v4726 = vmul.f32 %v1114, %v4649
  %v4727 = vmul.f32 %v1113, %v4654
  %v4728 = vmul.f32 %v1112, %v4659
  %v4729 = vmul.f32 %v1111, %v4664
  %v4730 = vmul.f32 %v1110, %v4669
  %v4731 = vmul.f32 %v1109, %v4674
  %v4732 = vmul.f32 %v1108, %v4679
  %v4733 = vmul.f32 %v1107, %v4684
  %v4734 = vmul.f32 %v1106, %v4689
  %v4735 = vmul.f32 %v1105, %v4694
  %v4736 = vmul.f32 %v1104, %v4699
  %v4737 = vmul.f32 %v1103, %v4704
  %v4738 = vmul.f32 %v1102, %v4709
  %v4739 = vmul.f32 %v1101, %v4714
  %v4740 = vmul.f32 %v1100, %v4719
  %v4741 = vmul.f32 %v1099, %v4724
  %s4742 = scalar_lea.vmem %s4, 352
  %v4743 = vld [vmem:[%s4742] sm:$0xff]
  %v4744 = vld [vmem:[%s4742 + $0x8] sm:$0xff]
  %v4745 = vld [vmem:[%s4742 + $0x10] sm:$0xff]
  %v4746 = vld [vmem:[%s4742 + $0x18] sm:$0xff]
  %v4748 = vsel %vm1233, %v4726, 0
  %v4751 = vsel %vm1233, %v4727, 0
  %v4754 = vsel %vm1233, %v4728, 0
  %v4757 = vsel %vm1233, %v4729, 0
  %v4760 = vsel %vm1233, %v4730, 0
  %v4763 = vsel %vm1233, %v4731, 0
  %v4766 = vsel %vm1233, %v4732, 0
  %v4769 = vsel %vm1233, %v4733, 0
  %v4772 = vsel %vm1233, %v4734, 0
  %v4775 = vsel %vm1233, %v4735, 0
  %v4778 = vsel %vm1233, %v4736, 0
  %v4781 = vsel %vm1233, %v4737, 0
  %v4784 = vsel %vm1233, %v4738, 0
  %v4787 = vsel %vm1233, %v4739, 0
  %v4790 = vsel %vm1233, %v4740, 0
  %v4793 = vsel %vm1233, %v4741, 0
  %4795 = vmatprep.subr.mxu0 0.0
  %4796 = vmatpush1.msra.mxu0 %v4743
  %4797 = vmatprep.subr.mxu0 0.0
  %4798 = vmatpush1.msra.mxu0 %v4744
  %4799 = vmatprep.subr.mxu0 0.0
  %4800 = vmatpush1.msra.mxu0 %v4745
  %4801 = vmatprep.subr.mxu0 0.0
  %4802 = vmatpush1.msra.mxu0 %v4746
  %4803 = vmatprep.subr.mxu0 0.0
  %4804 = vmatpush1.msra.mxu0 0.0
  %4805 = vmatprep.subr.mxu0 0.0
  %4806 = vmatpush1.msra.mxu0 0.0
  %4807 = vmatprep.subr.mxu0 0.0
  %4808 = vmatpush1.msra.mxu0 0.0
  %4809 = vmatprep.subr.mxu0 0.0
  %4810 = vmatpush1.msra.mxu0 0.0
  %4811 = vmatprep.subr.mxu0 0.0
  %4812 = vmatpush1.msra.mxu0 0.0
  %4813 = vmatprep.subr.mxu0 0.0
  %4814 = vmatpush1.msra.mxu0 0.0
  %4815 = vmatprep.subr.mxu0 0.0
  %4816 = vmatpush1.msra.mxu0 0.0
  %4817 = vmatprep.subr.mxu0 0.0
  %4818 = vmatpush1.msra.mxu0 0.0
  %4819 = vmatprep.subr.mxu0 0.0
  %4820 = vmatpush1.msra.mxu0 0.0
  %4821 = vmatprep.subr.mxu0 0.0
  %4822 = vmatpush1.msra.mxu0 0.0
  %4823 = vmatprep.subr.mxu0 0.0
  %4824 = vmatpush1.msra.mxu0 0.0
  %4825 = vmatprep.subr.mxu0 0.0
  %4826 = vmatpush1.msra.mxu0 0.0
  %4827 = vmatprep.subr.mxu0 0.0
  %4828 = vmatpush1.msra.mxu0 0.0
  %4829 = vmatprep.subr.mxu0 0.0
  %4830 = vmatpush1.msra.mxu0 0.0
  %4831 = vmatprep.subr.mxu0 0.0
  %4832 = vmatpush1.msra.mxu0 0.0
  %4833 = vmatprep.subr.mxu0 0.0
  %4834 = vmatpush1.msra.mxu0 0.0
  %4835 = vmatprep.subr.mxu0 0.0
  %4836 = vmatpush1.msra.mxu0 0.0
  %4837 = vmatprep.subr.mxu0 0.0
  %4838 = vmatpush1.msra.mxu0 0.0
  %4839 = vmatprep.subr.mxu0 0.0
  %4840 = vmatpush1.msra.mxu0 0.0
  %4841 = vmatprep.subr.mxu0 0.0
  %4842 = vmatpush1.msra.mxu0 0.0
  %4843 = vmatprep.subr.mxu0 0.0
  %4844 = vmatpush1.msra.mxu0 0.0
  %4845 = vmatprep.subr.mxu0 0.0
  %4846 = vmatpush1.msra.mxu0 0.0
  %4847 = vmatprep.subr.mxu0 0.0
  %4848 = vmatpush1.msra.mxu0 0.0
  %4849 = vmatprep.subr.mxu0 0.0
  %4850 = vmatpush1.msra.mxu0 0.0
  %4851 = vmatprep.subr.mxu0 0.0
  %4852 = vmatpush1.msra.mxu0 0.0
  %4853 = vmatprep.subr.mxu0 0.0
  %4854 = vmatpush1.msra.mxu0 0.0
  %4855 = vmatprep.subr.mxu0 0.0
  %4856 = vmatpush1.msra.mxu0 0.0
  %4857 = vmatprep.subr.mxu0 0.0
  %4858 = vmatpush1.msra.mxu0 0.0
  %4859 = vmatprep.mubr.f32.mxu0 0.0
  %4860 = vmatmul.mubr.f32.gmra.mrb[0].mxu0 %v4748
  %v4861 = vpop.f32.mrb[0].mxu0
  %v4862 = vadd.f32 0.0, %v4861
  %v4863 = vpop.f32.mrb[0].mxu0
  %4864 = vmatprep.mubr.f32.mxu0 0.0
  %4865 = vmatmul.mubr.f32.gmra.mrb[0].mxu0 %v4751
  %v4866 = vpop.f32.mrb[0].mxu0
  %v4867 = vadd.f32 0.0, %v4866
  %v4868 = vpop.f32.mrb[0].mxu0
  %4869 = vmatprep.mubr.f32.mxu0 0.0
  %4870 = vmatmul.mubr.f32.gmra.mrb[0].mxu0 %v4754
  %v4871 = vpop.f32.mrb[0].mxu0
  %v4872 = vadd.f32 0.0, %v4871
  %v4873 = vpop.f32.mrb[0].mxu0
  %4874 = vmatprep.mubr.f32.mxu0 0.0
  %4875 = vmatmul.mubr.f32.gmra.mrb[0].mxu0 %v4757
  %v4876 = vpop.f32.mrb[0].mxu0
  %v4877 = vadd.f32 0.0, %v4876
  %v4878 = vpop.f32.mrb[0].mxu0
  %4879 = vmatprep.mubr.f32.mxu0 0.0
  %4880 = vmatmul.mubr.f32.gmra.mrb[0].mxu0 %v4760
  %v4881 = vpop.f32.mrb[0].mxu0
  %v4882 = vadd.f32 0.0, %v4881
  %v4883 = vpop.f32.mrb[0].mxu0
  %4884 = vmatprep.mubr.f32.mxu0 0.0
  %4885 = vmatmul.mubr.f32.gmra.mrb[0].mxu0 %v4763
  %v4886 = vpop.f32.mrb[0].mxu0
  %v4887 = vadd.f32 0.0, %v4886
  %v4888 = vpop.f32.mrb[0].mxu0
  %4889 = vmatprep.mubr.f32.mxu0 0.0
  %4890 = vmatmul.mubr.f32.gmra.mrb[0].mxu0 %v4766
  %v4891 = vpop.f32.mrb[0].mxu0
  %v4892 = vadd.f32 0.0, %v4891
  %v4893 = vpop.f32.mrb[0].mxu0
  %4894 = vmatprep.mubr.f32.mxu0 0.0
  %4895 = vmatmul.mubr.f32.gmra.mrb[0].mxu0 %v4769
  %v4896 = vpop.f32.mrb[0].mxu0
  %v4897 = vadd.f32 0.0, %v4896
  %v4898 = vpop.f32.mrb[0].mxu0
  %4899 = vmatprep.mubr.f32.mxu0 0.0
  %4900 = vmatmul.mubr.f32.gmra.mrb[0].mxu0 %v4772
  %v4901 = vpop.f32.mrb[0].mxu0
  %v4902 = vadd.f32 0.0, %v4901
  %v4903 = vpop.f32.mrb[0].mxu0
  %4904 = vmatprep.mubr.f32.mxu0 0.0
  %4905 = vmatmul.mubr.f32.gmra.mrb[0].mxu0 %v4775
  %v4906 = vpop.f32.mrb[0].mxu0
  %v4907 = vadd.f32 0.0, %v4906
  %v4908 = vpop.f32.mrb[0].mxu0
  %4909 = vmatprep.mubr.f32.mxu0 0.0
  %4910 = vmatmul.mubr.f32.gmra.mrb[0].mxu0 %v4778
  %v4911 = vpop.f32.mrb[0].mxu0
  %v4912 = vadd.f32 0.0, %v4911
  %v4913 = vpop.f32.mrb[0].mxu0
  %4914 = vmatprep.mubr.f32.mxu0 0.0
  %4915 = vmatmul.mubr.f32.gmra.mrb[0].mxu0 %v4781
  %v4916 = vpop.f32.mrb[0].mxu0
  %v4917 = vadd.f32 0.0, %v4916
  %v4918 = vpop.f32.mrb[0].mxu0
  %4919 = vmatprep.mubr.f32.mxu0 0.0
  %4920 = vmatmul.mubr.f32.gmra.mrb[0].mxu0 %v4784
  %v4921 = vpop.f32.mrb[0].mxu0
  %v4922 = vadd.f32 0.0, %v4921
  %v4923 = vpop.f32.mrb[0].mxu0
  %4924 = vmatprep.mubr.f32.mxu0 0.0
  %4925 = vmatmul.mubr.f32.gmra.mrb[0].mxu0 %v4787
  %v4926 = vpop.f32.mrb[0].mxu0
  %v4927 = vadd.f32 0.0, %v4926
  %v4928 = vpop.f32.mrb[0].mxu0
  %4929 = vmatprep.mubr.f32.mxu0 0.0
  %4930 = vmatmul.mubr.f32.gmra.mrb[0].mxu0 %v4790
  %v4931 = vpop.f32.mrb[0].mxu0
  %v4932 = vadd.f32 0.0, %v4931
  %v4933 = vpop.f32.mrb[0].mxu0
  %4934 = vmatprep.mubr.f32.mxu0 0.0
  %4935 = vmatmul.mubr.f32.gmra.mrb[0].mxu0 %v4793
  %v4936 = vpop.f32.mrb[0].mxu0
  %v4937 = vadd.f32 0.0, %v4936
  %v4938 = vpop.f32.mrb[0].mxu0
  %4939 = vdwg.mxu0
  %v4940 = vadd.f32 %v4613, %v4862
  %v4941 = vadd.f32 %v4614, %v4867
  %v4942 = vadd.f32 %v4615, %v4872
  %v4943 = vadd.f32 %v4616, %v4877
  %v4944 = vadd.f32 %v4617, %v4882
  %v4945 = vadd.f32 %v4618, %v4887
  %v4946 = vadd.f32 %v4619, %v4892
  %v4947 = vadd.f32 %v4620, %v4897
  %v4948 = vadd.f32 %v4621, %v4902
  %v4949 = vadd.f32 %v4622, %v4907
  %v4950 = vadd.f32 %v4623, %v4912
  %v4951 = vadd.f32 %v4624, %v4917
  %v4952 = vadd.f32 %v4625, %v4922
  %v4953 = vadd.f32 %v4626, %v4927
  %v4954 = vadd.f32 %v4627, %v4932
  %v4955 = vadd.f32 %v4628, %v4937
  %s4956 = scalar_lea.vmem %s6, 1536
  %v4957 = vld [vmem:[%s4956] sm:$0xff]
  %v4958 = vld [vmem:[%s4956 + $0x8] sm:$0xff]
  %v4959 = vld [vmem:[%s4956 + $0x10] sm:$0xff]
  %v4960 = vld [vmem:[%s4956 + $0x18] sm:$0xff]
  %v4961 = vld [vmem:[%s4956 + $0x20] sm:$0xff]
  %v4962 = vld [vmem:[%s4956 + $0x28] sm:$0xff]
  %v4963 = vld [vmem:[%s4956 + $0x30] sm:$0xff]
  %v4964 = vld [vmem:[%s4956 + $0x38] sm:$0xff]
  %v4965 = vld [vmem:[%s4956 + $0x40] sm:$0xff]
  %v4966 = vld [vmem:[%s4956 + $0x48] sm:$0xff]
  %v4967 = vld [vmem:[%s4956 + $0x50] sm:$0xff]
  %v4968 = vld [vmem:[%s4956 + $0x58] sm:$0xff]
  %v4969 = vld [vmem:[%s4956 + $0x60] sm:$0xff]
  %v4970 = vld [vmem:[%s4956 + $0x68] sm:$0xff]
  %v4971 = vld [vmem:[%s4956 + $0x70] sm:$0xff]
  %v4972 = vld [vmem:[%s4956 + $0x78] sm:$0xff]
  %4974 = vset.pattern.permute.xlu0 0
  %4975 = vperm.xlu0 %4974, %v4957
  %v4976 = vpop.permute.xlu0 %4975
  %4979 = vset.pattern.permute.xlu0 0
  %4980 = vperm.xlu0 %4979, %v4958
  %v4981 = vpop.permute.xlu0 %4980
  %4984 = vset.pattern.permute.xlu0 0
  %4985 = vperm.xlu0 %4984, %v4959
  %v4986 = vpop.permute.xlu0 %4985
  %4989 = vset.pattern.permute.xlu0 0
  %4990 = vperm.xlu0 %4989, %v4960
  %v4991 = vpop.permute.xlu0 %4990
  %4994 = vset.pattern.permute.xlu0 0
  %4995 = vperm.xlu0 %4994, %v4961
  %v4996 = vpop.permute.xlu0 %4995
  %4999 = vset.pattern.permute.xlu0 0
  %5000 = vperm.xlu0 %4999, %v4962
  %v5001 = vpop.permute.xlu0 %5000
  %5004 = vset.pattern.permute.xlu0 0
  %5005 = vperm.xlu0 %5004, %v4963
  %v5006 = vpop.permute.xlu0 %5005
  %5009 = vset.pattern.permute.xlu0 0
  %5010 = vperm.xlu0 %5009, %v4964
  %v5011 = vpop.permute.xlu0 %5010
  %5014 = vset.pattern.permute.xlu0 0
  %5015 = vperm.xlu0 %5014, %v4965
  %v5016 = vpop.permute.xlu0 %5015
  %5019 = vset.pattern.permute.xlu0 0
  %5020 = vperm.xlu0 %5019, %v4966
  %v5021 = vpop.permute.xlu0 %5020
  %5024 = vset.pattern.permute.xlu0 0
  %5025 = vperm.xlu0 %5024, %v4967
  %v5026 = vpop.permute.xlu0 %5025
  %5029 = vset.pattern.permute.xlu0 0
  %5030 = vperm.xlu0 %5029, %v4968
  %v5031 = vpop.permute.xlu0 %5030
  %5034 = vset.pattern.permute.xlu0 0
  %5035 = vperm.xlu0 %5034, %v4969
  %v5036 = vpop.permute.xlu0 %5035
  %5039 = vset.pattern.permute.xlu0 0
  %5040 = vperm.xlu0 %5039, %v4970
  %v5041 = vpop.permute.xlu0 %5040
  %5044 = vset.pattern.permute.xlu0 0
  %5045 = vperm.xlu0 %5044, %v4971
  %v5046 = vpop.permute.xlu0 %5045
  %5049 = vset.pattern.permute.xlu0 0
  %5050 = vperm.xlu0 %5049, %v4972
  %v5051 = vpop.permute.xlu0 %5050
  %v5053 = vmul.f32 %v853, %v4976
  %v5054 = vmul.f32 %v858, %v4981
  %v5055 = vmul.f32 %v863, %v4986
  %v5056 = vmul.f32 %v868, %v4991
  %v5057 = vmul.f32 %v873, %v4996
  %v5058 = vmul.f32 %v878, %v5001
  %v5059 = vmul.f32 %v883, %v5006
  %v5060 = vmul.f32 %v888, %v5011
  %v5061 = vmul.f32 %v893, %v5016
  %v5062 = vmul.f32 %v898, %v5021
  %v5063 = vmul.f32 %v903, %v5026
  %v5064 = vmul.f32 %v908, %v5031
  %v5065 = vmul.f32 %v913, %v5036
  %v5066 = vmul.f32 %v918, %v5041
  %v5067 = vmul.f32 %v923, %v5046
  %v5068 = vmul.f32 %v928, %v5051
  %s5069 = scalar_lea.vmem %s4, 384
  %v5070 = vld [vmem:[%s5069] sm:$0xff]
  %v5071 = vld [vmem:[%s5069 + $0x8] sm:$0xff]
  %v5072 = vld [vmem:[%s5069 + $0x10] sm:$0xff]
  %v5073 = vld [vmem:[%s5069 + $0x18] sm:$0xff]
  %v5075 = vsel %vm1233, %v5053, 0
  %v5078 = vsel %vm1233, %v5054, 0
  %v5081 = vsel %vm1233, %v5055, 0
  %v5084 = vsel %vm1233, %v5056, 0
  %v5087 = vsel %vm1233, %v5057, 0
  %v5090 = vsel %vm1233, %v5058, 0
  %v5093 = vsel %vm1233, %v5059, 0
  %v5096 = vsel %vm1233, %v5060, 0
  %v5099 = vsel %vm1233, %v5061, 0
  %v5102 = vsel %vm1233, %v5062, 0
  %v5105 = vsel %vm1233, %v5063, 0
  %v5108 = vsel %vm1233, %v5064, 0
  %v5111 = vsel %vm1233, %v5065, 0
  %v5114 = vsel %vm1233, %v5066, 0
  %v5117 = vsel %vm1233, %v5067, 0
  %v5120 = vsel %vm1233, %v5068, 0
  %5122 = vmatprep.subr.mxu0 0.0
  %5123 = vmatpush1.msra.mxu0 %v5070
  %5124 = vmatprep.subr.mxu0 0.0
  %5125 = vmatpush1.msra.mxu0 %v5071
  %5126 = vmatprep.subr.mxu0 0.0
  %5127 = vmatpush1.msra.mxu0 %v5072
  %5128 = vmatprep.subr.mxu0 0.0
  %5129 = vmatpush1.msra.mxu0 %v5073
  %5130 = vmatprep.subr.mxu0 0.0
  %5131 = vmatpush1.msra.mxu0 0.0
  %5132 = vmatprep.subr.mxu0 0.0
  %5133 = vmatpush1.msra.mxu0 0.0
  %5134 = vmatprep.subr.mxu0 0.0
  %5135 = vmatpush1.msra.mxu0 0.0
  %5136 = vmatprep.subr.mxu0 0.0
  %5137 = vmatpush1.msra.mxu0 0.0
  %5138 = vmatprep.subr.mxu0 0.0
  %5139 = vmatpush1.msra.mxu0 0.0
  %5140 = vmatprep.subr.mxu0 0.0
  %5141 = vmatpush1.msra.mxu0 0.0
  %5142 = vmatprep.subr.mxu0 0.0
  %5143 = vmatpush1.msra.mxu0 0.0
  %5144 = vmatprep.subr.mxu0 0.0
  %5145 = vmatpush1.msra.mxu0 0.0
  %5146 = vmatprep.subr.mxu0 0.0
  %5147 = vmatpush1.msra.mxu0 0.0
  %5148 = vmatprep.subr.mxu0 0.0
  %5149 = vmatpush1.msra.mxu0 0.0
  %5150 = vmatprep.subr.mxu0 0.0
  %5151 = vmatpush1.msra.mxu0 0.0
  %5152 = vmatprep.subr.mxu0 0.0
  %5153 = vmatpush1.msra.mxu0 0.0
  %5154 = vmatprep.subr.mxu0 0.0
  %5155 = vmatpush1.msra.mxu0 0.0
  %5156 = vmatprep.subr.mxu0 0.0
  %5157 = vmatpush1.msra.mxu0 0.0
  %5158 = vmatprep.subr.mxu0 0.0
  %5159 = vmatpush1.msra.mxu0 0.0
  %5160 = vmatprep.subr.mxu0 0.0
  %5161 = vmatpush1.msra.mxu0 0.0
  %5162 = vmatprep.subr.mxu0 0.0
  %5163 = vmatpush1.msra.mxu0 0.0
  %5164 = vmatprep.subr.mxu0 0.0
  %5165 = vmatpush1.msra.mxu0 0.0
  %5166 = vmatprep.subr.mxu0 0.0
  %5167 = vmatpush1.msra.mxu0 0.0
  %5168 = vmatprep.subr.mxu0 0.0
  %5169 = vmatpush1.msra.mxu0 0.0
  %5170 = vmatprep.subr.mxu0 0.0
  %5171 = vmatpush1.msra.mxu0 0.0
  %5172 = vmatprep.subr.mxu0 0.0
  %5173 = vmatpush1.msra.mxu0 0.0
  %5174 = vmatprep.subr.mxu0 0.0
  %5175 = vmatpush1.msra.mxu0 0.0
  %5176 = vmatprep.subr.mxu0 0.0
  %5177 = vmatpush1.msra.mxu0 0.0
  %5178 = vmatprep.subr.mxu0 0.0
  %5179 = vmatpush1.msra.mxu0 0.0
  %5180 = vmatprep.subr.mxu0 0.0
  %5181 = vmatpush1.msra.mxu0 0.0
  %5182 = vmatprep.subr.mxu0 0.0
  %5183 = vmatpush1.msra.mxu0 0.0
  %5184 = vmatprep.subr.mxu0 0.0
  %5185 = vmatpush1.msra.mxu0 0.0
  %5186 = vmatprep.mubr.f32.mxu0 0.0
  %5187 = vmatmul.mubr.f32.gmra.mrb[0].mxu0 %v5075
  %v5188 = vpop.f32.mrb[0].mxu0
  %v5189 = vadd.f32 0.0, %v5188
  %v5190 = vpop.f32.mrb[0].mxu0
  %5191 = vmatprep.mubr.f32.mxu0 0.0
  %5192 = vmatmul.mubr.f32.gmra.mrb[0].mxu0 %v5078
  %v5193 = vpop.f32.mrb[0].mxu0
  %v5194 = vadd.f32 0.0, %v5193
  %v5195 = vpop.f32.mrb[0].mxu0
  %5196 = vmatprep.mubr.f32.mxu0 0.0
  %5197 = vmatmul.mubr.f32.gmra.mrb[0].mxu0 %v5081
  %v5198 = vpop.f32.mrb[0].mxu0
  %v5199 = vadd.f32 0.0, %v5198
  %v5200 = vpop.f32.mrb[0].mxu0
  %5201 = vmatprep.mubr.f32.mxu0 0.0
  %5202 = vmatmul.mubr.f32.gmra.mrb[0].mxu0 %v5084
  %v5203 = vpop.f32.mrb[0].mxu0
  %v5204 = vadd.f32 0.0, %v5203
  %v5205 = vpop.f32.mrb[0].mxu0
  %5206 = vmatprep.mubr.f32.mxu0 0.0
  %5207 = vmatmul.mubr.f32.gmra.mrb[0].mxu0 %v5087
  %v5208 = vpop.f32.mrb[0].mxu0
  %v5209 = vadd.f32 0.0, %v5208
  %v5210 = vpop.f32.mrb[0].mxu0
  %5211 = vmatprep.mubr.f32.mxu0 0.0
  %5212 = vmatmul.mubr.f32.gmra.mrb[0].mxu0 %v5090
  %v5213 = vpop.f32.mrb[0].mxu0
  %v5214 = vadd.f32 0.0, %v5213
  %v5215 = vpop.f32.mrb[0].mxu0
  %5216 = vmatprep.mubr.f32.mxu0 0.0
  %5217 = vmatmul.mubr.f32.gmra.mrb[0].mxu0 %v5093
  %v5218 = vpop.f32.mrb[0].mxu0
  %v5219 = vadd.f32 0.0, %v5218
  %v5220 = vpop.f32.mrb[0].mxu0
  %5221 = vmatprep.mubr.f32.mxu0 0.0
  %5222 = vmatmul.mubr.f32.gmra.mrb[0].mxu0 %v5096
  %v5223 = vpop.f32.mrb[0].mxu0
  %v5224 = vadd.f32 0.0, %v5223
  %v5225 = vpop.f32.mrb[0].mxu0
  %5226 = vmatprep.mubr.f32.mxu0 0.0
  %5227 = vmatmul.mubr.f32.gmra.mrb[0].mxu0 %v5099
  %v5228 = vpop.f32.mrb[0].mxu0
  %v5229 = vadd.f32 0.0, %v5228
  %v5230 = vpop.f32.mrb[0].mxu0
  %5231 = vmatprep.mubr.f32.mxu0 0.0
  %5232 = vmatmul.mubr.f32.gmra.mrb[0].mxu0 %v5102
  %v5233 = vpop.f32.mrb[0].mxu0
  %v5234 = vadd.f32 0.0, %v5233
  %v5235 = vpop.f32.mrb[0].mxu0
  %5236 = vmatprep.mubr.f32.mxu0 0.0
  %5237 = vmatmul.mubr.f32.gmra.mrb[0].mxu0 %v5105
  %v5238 = vpop.f32.mrb[0].mxu0
  %v5239 = vadd.f32 0.0, %v5238
  %v5240 = vpop.f32.mrb[0].mxu0
  %5241 = vmatprep.mubr.f32.mxu0 0.0
  %5242 = vmatmul.mubr.f32.gmra.mrb[0].mxu0 %v5108
  %v5243 = vpop.f32.mrb[0].mxu0
  %v5244 = vadd.f32 0.0, %v5243
  %v5245 = vpop.f32.mrb[0].mxu0
  %5246 = vmatprep.mubr.f32.mxu0 0.0
  %5247 = vmatmul.mubr.f32.gmra.mrb[0].mxu0 %v5111
  %v5248 = vpop.f32.mrb[0].mxu0
  %v5249 = vadd.f32 0.0, %v5248
  %v5250 = vpop.f32.mrb[0].mxu0
  %5251 = vmatprep.mubr.f32.mxu0 0.0
  %5252 = vmatmul.mubr.f32.gmra.mrb[0].mxu0 %v5114
  %v5253 = vpop.f32.mrb[0].mxu0
  %v5254 = vadd.f32 0.0, %v5253
  %v5255 = vpop.f32.mrb[0].mxu0
  %5256 = vmatprep.mubr.f32.mxu0 0.0
  %5257 = vmatmul.mubr.f32.gmra.mrb[0].mxu0 %v5117
  %v5258 = vpop.f32.mrb[0].mxu0
  %v5259 = vadd.f32 0.0, %v5258
  %v5260 = vpop.f32.mrb[0].mxu0
  %5261 = vmatprep.mubr.f32.mxu0 0.0
  %5262 = vmatmul.mubr.f32.gmra.mrb[0].mxu0 %v5120
  %v5263 = vpop.f32.mrb[0].mxu0
  %v5264 = vadd.f32 0.0, %v5263
  %v5265 = vpop.f32.mrb[0].mxu0
  %5266 = vdwg.mxu0
  %v5267 = vadd.f32 %v4940, %v5189
  %v5268 = vadd.f32 %v4941, %v5194
  %v5269 = vadd.f32 %v4942, %v5199
  %v5270 = vadd.f32 %v4943, %v5204
  %v5271 = vadd.f32 %v4944, %v5209
  %v5272 = vadd.f32 %v4945, %v5214
  %v5273 = vadd.f32 %v4946, %v5219
  %v5274 = vadd.f32 %v4947, %v5224
  %v5275 = vadd.f32 %v4948, %v5229
  %v5276 = vadd.f32 %v4949, %v5234
  %v5277 = vadd.f32 %v4950, %v5239
  %v5278 = vadd.f32 %v4951, %v5244
  %v5279 = vadd.f32 %v4952, %v5249
  %v5280 = vadd.f32 %v4953, %v5254
  %v5281 = vadd.f32 %v4954, %v5259
  %v5282 = vadd.f32 %v4955, %v5264
  %s5283 = scalar_lea.vmem %s6, 1664
  %v5284 = vld [vmem:[%s5283] sm:$0xff]
  %v5285 = vld [vmem:[%s5283 + $0x8] sm:$0xff]
  %v5286 = vld [vmem:[%s5283 + $0x10] sm:$0xff]
  %v5287 = vld [vmem:[%s5283 + $0x18] sm:$0xff]
  %v5288 = vld [vmem:[%s5283 + $0x20] sm:$0xff]
  %v5289 = vld [vmem:[%s5283 + $0x28] sm:$0xff]
  %v5290 = vld [vmem:[%s5283 + $0x30] sm:$0xff]
  %v5291 = vld [vmem:[%s5283 + $0x38] sm:$0xff]
  %v5292 = vld [vmem:[%s5283 + $0x40] sm:$0xff]
  %v5293 = vld [vmem:[%s5283 + $0x48] sm:$0xff]
  %v5294 = vld [vmem:[%s5283 + $0x50] sm:$0xff]
  %v5295 = vld [vmem:[%s5283 + $0x58] sm:$0xff]
  %v5296 = vld [vmem:[%s5283 + $0x60] sm:$0xff]
  %v5297 = vld [vmem:[%s5283 + $0x68] sm:$0xff]
  %v5298 = vld [vmem:[%s5283 + $0x70] sm:$0xff]
  %v5299 = vld [vmem:[%s5283 + $0x78] sm:$0xff]
  %5301 = vset.pattern.permute.xlu0 0
  %5302 = vperm.xlu0 %5301, %v5284
  %v5303 = vpop.permute.xlu0 %5302
  %5306 = vset.pattern.permute.xlu0 0
  %5307 = vperm.xlu0 %5306, %v5285
  %v5308 = vpop.permute.xlu0 %5307
  %5311 = vset.pattern.permute.xlu0 0
  %5312 = vperm.xlu0 %5311, %v5286
  %v5313 = vpop.permute.xlu0 %5312
  %5316 = vset.pattern.permute.xlu0 0
  %5317 = vperm.xlu0 %5316, %v5287
  %v5318 = vpop.permute.xlu0 %5317
  %5321 = vset.pattern.permute.xlu0 0
  %5322 = vperm.xlu0 %5321, %v5288
  %v5323 = vpop.permute.xlu0 %5322
  %5326 = vset.pattern.permute.xlu0 0
  %5327 = vperm.xlu0 %5326, %v5289
  %v5328 = vpop.permute.xlu0 %5327
  %5331 = vset.pattern.permute.xlu0 0
  %5332 = vperm.xlu0 %5331, %v5290
  %v5333 = vpop.permute.xlu0 %5332
  %5336 = vset.pattern.permute.xlu0 0
  %5337 = vperm.xlu0 %5336, %v5291
  %v5338 = vpop.permute.xlu0 %5337
  %5341 = vset.pattern.permute.xlu0 0
  %5342 = vperm.xlu0 %5341, %v5292
  %v5343 = vpop.permute.xlu0 %5342
  %5346 = vset.pattern.permute.xlu0 0
  %5347 = vperm.xlu0 %5346, %v5293
  %v5348 = vpop.permute.xlu0 %5347
  %5351 = vset.pattern.permute.xlu0 0
  %5352 = vperm.xlu0 %5351, %v5294
  %v5353 = vpop.permute.xlu0 %5352
  %5356 = vset.pattern.permute.xlu0 0
  %5357 = vperm.xlu0 %5356, %v5295
  %v5358 = vpop.permute.xlu0 %5357
  %5361 = vset.pattern.permute.xlu0 0
  %5362 = vperm.xlu0 %5361, %v5296
  %v5363 = vpop.permute.xlu0 %5362
  %5366 = vset.pattern.permute.xlu0 0
  %5367 = vperm.xlu0 %5366, %v5297
  %v5368 = vpop.permute.xlu0 %5367
  %5371 = vset.pattern.permute.xlu0 0
  %5372 = vperm.xlu0 %5371, %v5298
  %v5373 = vpop.permute.xlu0 %5372
  %5376 = vset.pattern.permute.xlu0 0
  %5377 = vperm.xlu0 %5376, %v5299
  %v5378 = vpop.permute.xlu0 %5377
  %v5380 = vmul.f32 %v1978, %v5303
  %v5381 = vmul.f32 %v1977, %v5308
  %v5382 = vmul.f32 %v1976, %v5313
  %v5383 = vmul.f32 %v1975, %v5318
  %v5384 = vmul.f32 %v1974, %v5323
  %v5385 = vmul.f32 %v1973, %v5328
  %v5386 = vmul.f32 %v1972, %v5333
  %v5387 = vmul.f32 %v1971, %v5338
  %v5388 = vmul.f32 %v1970, %v5343
  %v5389 = vmul.f32 %v1969, %v5348
  %v5390 = vmul.f32 %v1968, %v5353
  %v5391 = vmul.f32 %v1967, %v5358
  %v5392 = vmul.f32 %v1966, %v5363
  %v5393 = vmul.f32 %v1965, %v5368
  %v5394 = vmul.f32 %v1964, %v5373
  %v5395 = vmul.f32 %v1979, %v5378
  %s5396 = scalar_lea.vmem %s4, 416
  %v5397 = vld [vmem:[%s5396] sm:$0xff]
  %v5398 = vld [vmem:[%s5396 + $0x8] sm:$0xff]
  %v5399 = vld [vmem:[%s5396 + $0x10] sm:$0xff]
  %v5400 = vld [vmem:[%s5396 + $0x18] sm:$0xff]
  %v5402 = vsel %vm1233, %v5380, 0
  %v5405 = vsel %vm1233, %v5381, 0
  %v5408 = vsel %vm1233, %v5382, 0
  %v5411 = vsel %vm1233, %v5383, 0
  %v5414 = vsel %vm1233, %v5384, 0
  %v5417 = vsel %vm1233, %v5385, 0
  %v5420 = vsel %vm1233, %v5386, 0
  %v5423 = vsel %vm1233, %v5387, 0
  %v5426 = vsel %vm1233, %v5388, 0
  %v5429 = vsel %vm1233, %v5389, 0
  %v5432 = vsel %vm1233, %v5390, 0
  %v5435 = vsel %vm1233, %v5391, 0
  %v5438 = vsel %vm1233, %v5392, 0
  %v5441 = vsel %vm1233, %v5393, 0
  %v5444 = vsel %vm1233, %v5394, 0
  %v5447 = vsel %vm1233, %v5395, 0
  %5449 = vmatprep.subr.mxu0 0.0
  %5450 = vmatpush1.msra.mxu0 %v5397
  %5451 = vmatprep.subr.mxu0 0.0
  %5452 = vmatpush1.msra.mxu0 %v5398
  %5453 = vmatprep.subr.mxu0 0.0
  %5454 = vmatpush1.msra.mxu0 %v5399
  %5455 = vmatprep.subr.mxu0 0.0
  %5456 = vmatpush1.msra.mxu0 %v5400
  %5457 = vmatprep.subr.mxu0 0.0
  %5458 = vmatpush1.msra.mxu0 0.0
  %5459 = vmatprep.subr.mxu0 0.0
  %5460 = vmatpush1.msra.mxu0 0.0
  %5461 = vmatprep.subr.mxu0 0.0
  %5462 = vmatpush1.msra.mxu0 0.0
  %5463 = vmatprep.subr.mxu0 0.0
  %5464 = vmatpush1.msra.mxu0 0.0
  %5465 = vmatprep.subr.mxu0 0.0
  %5466 = vmatpush1.msra.mxu0 0.0
  %5467 = vmatprep.subr.mxu0 0.0
  %5468 = vmatpush1.msra.mxu0 0.0
  %5469 = vmatprep.subr.mxu0 0.0
  %5470 = vmatpush1.msra.mxu0 0.0
  %5471 = vmatprep.subr.mxu0 0.0
  %5472 = vmatpush1.msra.mxu0 0.0
  %5473 = vmatprep.subr.mxu0 0.0
  %5474 = vmatpush1.msra.mxu0 0.0
  %5475 = vmatprep.subr.mxu0 0.0
  %5476 = vmatpush1.msra.mxu0 0.0
  %5477 = vmatprep.subr.mxu0 0.0
  %5478 = vmatpush1.msra.mxu0 0.0
  %5479 = vmatprep.subr.mxu0 0.0
  %5480 = vmatpush1.msra.mxu0 0.0
  %5481 = vmatprep.subr.mxu0 0.0
  %5482 = vmatpush1.msra.mxu0 0.0
  %5483 = vmatprep.subr.mxu0 0.0
  %5484 = vmatpush1.msra.mxu0 0.0
  %5485 = vmatprep.subr.mxu0 0.0
  %5486 = vmatpush1.msra.mxu0 0.0
  %5487 = vmatprep.subr.mxu0 0.0
  %5488 = vmatpush1.msra.mxu0 0.0
  %5489 = vmatprep.subr.mxu0 0.0
  %5490 = vmatpush1.msra.mxu0 0.0
  %5491 = vmatprep.subr.mxu0 0.0
  %5492 = vmatpush1.msra.mxu0 0.0
  %5493 = vmatprep.subr.mxu0 0.0
  %5494 = vmatpush1.msra.mxu0 0.0
  %5495 = vmatprep.subr.mxu0 0.0
  %5496 = vmatpush1.msra.mxu0 0.0
  %5497 = vmatprep.subr.mxu0 0.0
  %5498 = vmatpush1.msra.mxu0 0.0
  %5499 = vmatprep.subr.mxu0 0.0
  %5500 = vmatpush1.msra.mxu0 0.0
  %5501 = vmatprep.subr.mxu0 0.0
  %5502 = vmatpush1.msra.mxu0 0.0
  %5503 = vmatprep.subr.mxu0 0.0
  %5504 = vmatpush1.msra.mxu0 0.0
  %5505 = vmatprep.subr.mxu0 0.0
  %5506 = vmatpush1.msra.mxu0 0.0
  %5507 = vmatprep.subr.mxu0 0.0
  %5508 = vmatpush1.msra.mxu0 0.0
  %5509 = vmatprep.subr.mxu0 0.0
  %5510 = vmatpush1.msra.mxu0 0.0
  %5511 = vmatprep.subr.mxu0 0.0
  %5512 = vmatpush1.msra.mxu0 0.0
  %5513 = vmatprep.mubr.f32.mxu0 0.0
  %5514 = vmatmul.mubr.f32.gmra.mrb[0].mxu0 %v5402
  %v5515 = vpop.f32.mrb[0].mxu0
  %v5516 = vadd.f32 0.0, %v5515
  %v5517 = vpop.f32.mrb[0].mxu0
  %5518 = vmatprep.mubr.f32.mxu0 0.0
  %5519 = vmatmul.mubr.f32.gmra.mrb[0].mxu0 %v5405
  %v5520 = vpop.f32.mrb[0].mxu0
  %v5521 = vadd.f32 0.0, %v5520
  %v5522 = vpop.f32.mrb[0].mxu0
  %5523 = vmatprep.mubr.f32.mxu0 0.0
  %5524 = vmatmul.mubr.f32.gmra.mrb[0].mxu0 %v5408
  %v5525 = vpop.f32.mrb[0].mxu0
  %v5526 = vadd.f32 0.0, %v5525
  %v5527 = vpop.f32.mrb[0].mxu0
  %5528 = vmatprep.mubr.f32.mxu0 0.0
  %5529 = vmatmul.mubr.f32.gmra.mrb[0].mxu0 %v5411
  %v5530 = vpop.f32.mrb[0].mxu0
  %v5531 = vadd.f32 0.0, %v5530
  %v5532 = vpop.f32.mrb[0].mxu0
  %5533 = vmatprep.mubr.f32.mxu0 0.0
  %5534 = vmatmul.mubr.f32.gmra.mrb[0].mxu0 %v5414
  %v5535 = vpop.f32.mrb[0].mxu0
  %v5536 = vadd.f32 0.0, %v5535
  %v5537 = vpop.f32.mrb[0].mxu0
  %5538 = vmatprep.mubr.f32.mxu0 0.0
  %5539 = vmatmul.mubr.f32.gmra.mrb[0].mxu0 %v5417
  %v5540 = vpop.f32.mrb[0].mxu0
  %v5541 = vadd.f32 0.0, %v5540
  %v5542 = vpop.f32.mrb[0].mxu0
  %5543 = vmatprep.mubr.f32.mxu0 0.0
  %5544 = vmatmul.mubr.f32.gmra.mrb[0].mxu0 %v5420
  %v5545 = vpop.f32.mrb[0].mxu0
  %v5546 = vadd.f32 0.0, %v5545
  %v5547 = vpop.f32.mrb[0].mxu0
  %5548 = vmatprep.mubr.f32.mxu0 0.0
  %5549 = vmatmul.mubr.f32.gmra.mrb[0].mxu0 %v5423
  %v5550 = vpop.f32.mrb[0].mxu0
  %v5551 = vadd.f32 0.0, %v5550
  %v5552 = vpop.f32.mrb[0].mxu0
  %5553 = vmatprep.mubr.f32.mxu0 0.0
  %5554 = vmatmul.mubr.f32.gmra.mrb[0].mxu0 %v5426
  %v5555 = vpop.f32.mrb[0].mxu0
  %v5556 = vadd.f32 0.0, %v5555
  %v5557 = vpop.f32.mrb[0].mxu0
  %5558 = vmatprep.mubr.f32.mxu0 0.0
  %5559 = vmatmul.mubr.f32.gmra.mrb[0].mxu0 %v5429
  %v5560 = vpop.f32.mrb[0].mxu0
  %v5561 = vadd.f32 0.0, %v5560
  %v5562 = vpop.f32.mrb[0].mxu0
  %5563 = vmatprep.mubr.f32.mxu0 0.0
  %5564 = vmatmul.mubr.f32.gmra.mrb[0].mxu0 %v5432
  %v5565 = vpop.f32.mrb[0].mxu0
  %v5566 = vadd.f32 0.0, %v5565
  %v5567 = vpop.f32.mrb[0].mxu0
  %5568 = vmatprep.mubr.f32.mxu0 0.0
  %5569 = vmatmul.mubr.f32.gmra.mrb[0].mxu0 %v5435
  %v5570 = vpop.f32.mrb[0].mxu0
  %v5571 = vadd.f32 0.0, %v5570
  %v5572 = vpop.f32.mrb[0].mxu0
  %5573 = vmatprep.mubr.f32.mxu0 0.0
  %5574 = vmatmul.mubr.f32.gmra.mrb[0].mxu0 %v5438
  %v5575 = vpop.f32.mrb[0].mxu0
  %v5576 = vadd.f32 0.0, %v5575
  %v5577 = vpop.f32.mrb[0].mxu0
  %5578 = vmatprep.mubr.f32.mxu0 0.0
  %5579 = vmatmul.mubr.f32.gmra.mrb[0].mxu0 %v5441
  %v5580 = vpop.f32.mrb[0].mxu0
  %v5581 = vadd.f32 0.0, %v5580
  %v5582 = vpop.f32.mrb[0].mxu0
  %5583 = vmatprep.mubr.f32.mxu0 0.0
  %5584 = vmatmul.mubr.f32.gmra.mrb[0].mxu0 %v5444
  %v5585 = vpop.f32.mrb[0].mxu0
  %v5586 = vadd.f32 0.0, %v5585
  %v5587 = vpop.f32.mrb[0].mxu0
  %5588 = vmatprep.mubr.f32.mxu0 0.0
  %5589 = vmatmul.mubr.f32.gmra.mrb[0].mxu0 %v5447
  %v5590 = vpop.f32.mrb[0].mxu0
  %v5591 = vadd.f32 0.0, %v5590
  %v5592 = vpop.f32.mrb[0].mxu0
  %5593 = vdwg.mxu0
  %v5594 = vadd.f32 %v5267, %v5516
  %v5595 = vadd.f32 %v5268, %v5521
  %v5596 = vadd.f32 %v5269, %v5526
  %v5597 = vadd.f32 %v5270, %v5531
  %v5598 = vadd.f32 %v5271, %v5536
  %v5599 = vadd.f32 %v5272, %v5541
  %v5600 = vadd.f32 %v5273, %v5546
  %v5601 = vadd.f32 %v5274, %v5551
  %v5602 = vadd.f32 %v5275, %v5556
  %v5603 = vadd.f32 %v5276, %v5561
  %v5604 = vadd.f32 %v5277, %v5566
  %v5605 = vadd.f32 %v5278, %v5571
  %v5606 = vadd.f32 %v5279, %v5576
  %v5607 = vadd.f32 %v5280, %v5581
  %v5608 = vadd.f32 %v5281, %v5586
  %v5609 = vadd.f32 %v5282, %v5591
  %s5610 = scalar_lea.vmem %s6, 1792
  %v5611 = vld [vmem:[%s5610] sm:$0xff]
  %v5612 = vld [vmem:[%s5610 + $0x8] sm:$0xff]
  %v5613 = vld [vmem:[%s5610 + $0x10] sm:$0xff]
  %v5614 = vld [vmem:[%s5610 + $0x18] sm:$0xff]
  %v5615 = vld [vmem:[%s5610 + $0x20] sm:$0xff]
  %v5616 = vld [vmem:[%s5610 + $0x28] sm:$0xff]
  %v5617 = vld [vmem:[%s5610 + $0x30] sm:$0xff]
  %v5618 = vld [vmem:[%s5610 + $0x38] sm:$0xff]
  %v5619 = vld [vmem:[%s5610 + $0x40] sm:$0xff]
  %v5620 = vld [vmem:[%s5610 + $0x48] sm:$0xff]
  %v5621 = vld [vmem:[%s5610 + $0x50] sm:$0xff]
  %v5622 = vld [vmem:[%s5610 + $0x58] sm:$0xff]
  %v5623 = vld [vmem:[%s5610 + $0x60] sm:$0xff]
  %v5624 = vld [vmem:[%s5610 + $0x68] sm:$0xff]
  %v5625 = vld [vmem:[%s5610 + $0x70] sm:$0xff]
  %v5626 = vld [vmem:[%s5610 + $0x78] sm:$0xff]
  %5628 = vset.pattern.permute.xlu0 0
  %5629 = vperm.xlu0 %5628, %v5611
  %v5630 = vpop.permute.xlu0 %5629
  %5633 = vset.pattern.permute.xlu0 0
  %5634 = vperm.xlu0 %5633, %v5612
  %v5635 = vpop.permute.xlu0 %5634
  %5638 = vset.pattern.permute.xlu0 0
  %5639 = vperm.xlu0 %5638, %v5613
  %v5640 = vpop.permute.xlu0 %5639
  %5643 = vset.pattern.permute.xlu0 0
  %5644 = vperm.xlu0 %5643, %v5614
  %v5645 = vpop.permute.xlu0 %5644
  %5648 = vset.pattern.permute.xlu0 0
  %5649 = vperm.xlu0 %5648, %v5615
  %v5650 = vpop.permute.xlu0 %5649
  %5653 = vset.pattern.permute.xlu0 0
  %5654 = vperm.xlu0 %5653, %v5616
  %v5655 = vpop.permute.xlu0 %5654
  %5658 = vset.pattern.permute.xlu0 0
  %5659 = vperm.xlu0 %5658, %v5617
  %v5660 = vpop.permute.xlu0 %5659
  %5663 = vset.pattern.permute.xlu0 0
  %5664 = vperm.xlu0 %5663, %v5618
  %v5665 = vpop.permute.xlu0 %5664
  %5668 = vset.pattern.permute.xlu0 0
  %5669 = vperm.xlu0 %5668, %v5619
  %v5670 = vpop.permute.xlu0 %5669
  %5673 = vset.pattern.permute.xlu0 0
  %5674 = vperm.xlu0 %5673, %v5620
  %v5675 = vpop.permute.xlu0 %5674
  %5678 = vset.pattern.permute.xlu0 0
  %5679 = vperm.xlu0 %5678, %v5621
  %v5680 = vpop.permute.xlu0 %5679
  %5683 = vset.pattern.permute.xlu0 0
  %5684 = vperm.xlu0 %5683, %v5622
  %v5685 = vpop.permute.xlu0 %5684
  %5688 = vset.pattern.permute.xlu0 0
  %5689 = vperm.xlu0 %5688, %v5623
  %v5690 = vpop.permute.xlu0 %5689
  %5693 = vset.pattern.permute.xlu0 0
  %5694 = vperm.xlu0 %5693, %v5624
  %v5695 = vpop.permute.xlu0 %5694
  %5698 = vset.pattern.permute.xlu0 0
  %5699 = vperm.xlu0 %5698, %v5625
  %v5700 = vpop.permute.xlu0 %5699
  %5703 = vset.pattern.permute.xlu0 0
  %5704 = vperm.xlu0 %5703, %v5626
  %v5705 = vpop.permute.xlu0 %5704
  %v5707 = vmul.f32 %v2338, %v5630
  %v5708 = vmul.f32 %v2337, %v5635
  %v5709 = vmul.f32 %v2336, %v5640
  %v5710 = vmul.f32 %v2335, %v5645
  %v5711 = vmul.f32 %v2334, %v5650
  %v5712 = vmul.f32 %v2333, %v5655
  %v5713 = vmul.f32 %v2332, %v5660
  %v5714 = vmul.f32 %v2331, %v5665
  %v5715 = vmul.f32 %v2330, %v5670
  %v5716 = vmul.f32 %v2329, %v5675
  %v5717 = vmul.f32 %v2328, %v5680
  %v5718 = vmul.f32 %v2327, %v5685
  %v5719 = vmul.f32 %v2326, %v5690
  %v5720 = vmul.f32 %v2325, %v5695
  %v5721 = vmul.f32 %v2324, %v5700
  %v5722 = vmul.f32 %v2339, %v5705
  %s5723 = scalar_lea.vmem %s4, 448
  %v5724 = vld [vmem:[%s5723] sm:$0xff]
  %v5725 = vld [vmem:[%s5723 + $0x8] sm:$0xff]
  %v5726 = vld [vmem:[%s5723 + $0x10] sm:$0xff]
  %v5727 = vld [vmem:[%s5723 + $0x18] sm:$0xff]
  %v5729 = vsel %vm1233, %v5707, 0
  %v5732 = vsel %vm1233, %v5708, 0
  %v5735 = vsel %vm1233, %v5709, 0
  %v5738 = vsel %vm1233, %v5710, 0
  %v5741 = vsel %vm1233, %v5711, 0
  %v5744 = vsel %vm1233, %v5712, 0
  %v5747 = vsel %vm1233, %v5713, 0
  %v5750 = vsel %vm1233, %v5714, 0
  %v5753 = vsel %vm1233, %v5715, 0
  %v5756 = vsel %vm1233, %v5716, 0
  %v5759 = vsel %vm1233, %v5717, 0
  %v5762 = vsel %vm1233, %v5718, 0
  %v5765 = vsel %vm1233, %v5719, 0
  %v5768 = vsel %vm1233, %v5720, 0
  %v5771 = vsel %vm1233, %v5721, 0
  %v5774 = vsel %vm1233, %v5722, 0
  %5776 = vmatprep.subr.mxu0 0.0
  %5777 = vmatpush1.msra.mxu0 %v5724
  %5778 = vmatprep.subr.mxu0 0.0
  %5779 = vmatpush1.msra.mxu0 %v5725
  %5780 = vmatprep.subr.mxu0 0.0
  %5781 = vmatpush1.msra.mxu0 %v5726
  %5782 = vmatprep.subr.mxu0 0.0
  %5783 = vmatpush1.msra.mxu0 %v5727
  %5784 = vmatprep.subr.mxu0 0.0
  %5785 = vmatpush1.msra.mxu0 0.0
  %5786 = vmatprep.subr.mxu0 0.0
  %5787 = vmatpush1.msra.mxu0 0.0
  %5788 = vmatprep.subr.mxu0 0.0
  %5789 = vmatpush1.msra.mxu0 0.0
  %5790 = vmatprep.subr.mxu0 0.0
  %5791 = vmatpush1.msra.mxu0 0.0
  %5792 = vmatprep.subr.mxu0 0.0
  %5793 = vmatpush1.msra.mxu0 0.0
  %5794 = vmatprep.subr.mxu0 0.0
  %5795 = vmatpush1.msra.mxu0 0.0
  %5796 = vmatprep.subr.mxu0 0.0
  %5797 = vmatpush1.msra.mxu0 0.0
  %5798 = vmatprep.subr.mxu0 0.0
  %5799 = vmatpush1.msra.mxu0 0.0
  %5800 = vmatprep.subr.mxu0 0.0
  %5801 = vmatpush1.msra.mxu0 0.0
  %5802 = vmatprep.subr.mxu0 0.0
  %5803 = vmatpush1.msra.mxu0 0.0
  %5804 = vmatprep.subr.mxu0 0.0
  %5805 = vmatpush1.msra.mxu0 0.0
  %5806 = vmatprep.subr.mxu0 0.0
  %5807 = vmatpush1.msra.mxu0 0.0
  %5808 = vmatprep.subr.mxu0 0.0
  %5809 = vmatpush1.msra.mxu0 0.0
  %5810 = vmatprep.subr.mxu0 0.0
  %5811 = vmatpush1.msra.mxu0 0.0
  %5812 = vmatprep.subr.mxu0 0.0
  %5813 = vmatpush1.msra.mxu0 0.0
  %5814 = vmatprep.subr.mxu0 0.0
  %5815 = vmatpush1.msra.mxu0 0.0
  %5816 = vmatprep.subr.mxu0 0.0
  %5817 = vmatpush1.msra.mxu0 0.0
  %5818 = vmatprep.subr.mxu0 0.0
  %5819 = vmatpush1.msra.mxu0 0.0
  %5820 = vmatprep.subr.mxu0 0.0
  %5821 = vmatpush1.msra.mxu0 0.0
  %5822 = vmatprep.subr.mxu0 0.0
  %5823 = vmatpush1.msra.mxu0 0.0
  %5824 = vmatprep.subr.mxu0 0.0
  %5825 = vmatpush1.msra.mxu0 0.0
  %5826 = vmatprep.subr.mxu0 0.0
  %5827 = vmatpush1.msra.mxu0 0.0
  %5828 = vmatprep.subr.mxu0 0.0
  %5829 = vmatpush1.msra.mxu0 0.0
  %5830 = vmatprep.subr.mxu0 0.0
  %5831 = vmatpush1.msra.mxu0 0.0
  %5832 = vmatprep.subr.mxu0 0.0
  %5833 = vmatpush1.msra.mxu0 0.0
  %5834 = vmatprep.subr.mxu0 0.0
  %5835 = vmatpush1.msra.mxu0 0.0
  %5836 = vmatprep.subr.mxu0 0.0
  %5837 = vmatpush1.msra.mxu0 0.0
  %5838 = vmatprep.subr.mxu0 0.0
  %5839 = vmatpush1.msra.mxu0 0.0
  %5840 = vmatprep.mubr.f32.mxu0 0.0
  %5841 = vmatmul.mubr.f32.gmra.mrb[0].mxu0 %v5729
  %v5842 = vpop.f32.mrb[0].mxu0
  %v5843 = vadd.f32 0.0, %v5842
  %v5844 = vpop.f32.mrb[0].mxu0
  %5845 = vmatprep.mubr.f32.mxu0 0.0
  %5846 = vmatmul.mubr.f32.gmra.mrb[0].mxu0 %v5732
  %v5847 = vpop.f32.mrb[0].mxu0
  %v5848 = vadd.f32 0.0, %v5847
  %v5849 = vpop.f32.mrb[0].mxu0
  %5850 = vmatprep.mubr.f32.mxu0 0.0
  %5851 = vmatmul.mubr.f32.gmra.mrb[0].mxu0 %v5735
  %v5852 = vpop.f32.mrb[0].mxu0
  %v5853 = vadd.f32 0.0, %v5852
  %v5854 = vpop.f32.mrb[0].mxu0
  %5855 = vmatprep.mubr.f32.mxu0 0.0
  %5856 = vmatmul.mubr.f32.gmra.mrb[0].mxu0 %v5738
  %v5857 = vpop.f32.mrb[0].mxu0
  %v5858 = vadd.f32 0.0, %v5857
  %v5859 = vpop.f32.mrb[0].mxu0
  %5860 = vmatprep.mubr.f32.mxu0 0.0
  %5861 = vmatmul.mubr.f32.gmra.mrb[0].mxu0 %v5741
  %v5862 = vpop.f32.mrb[0].mxu0
  %v5863 = vadd.f32 0.0, %v5862
  %v5864 = vpop.f32.mrb[0].mxu0
  %5865 = vmatprep.mubr.f32.mxu0 0.0
  %5866 = vmatmul.mubr.f32.gmra.mrb[0].mxu0 %v5744
  %v5867 = vpop.f32.mrb[0].mxu0
  %v5868 = vadd.f32 0.0, %v5867
  %v5869 = vpop.f32.mrb[0].mxu0
  %5870 = vmatprep.mubr.f32.mxu0 0.0
  %5871 = vmatmul.mubr.f32.gmra.mrb[0].mxu0 %v5747
  %v5872 = vpop.f32.mrb[0].mxu0
  %v5873 = vadd.f32 0.0, %v5872
  %v5874 = vpop.f32.mrb[0].mxu0
  %5875 = vmatprep.mubr.f32.mxu0 0.0
  %5876 = vmatmul.mubr.f32.gmra.mrb[0].mxu0 %v5750
  %v5877 = vpop.f32.mrb[0].mxu0
  %v5878 = vadd.f32 0.0, %v5877
  %v5879 = vpop.f32.mrb[0].mxu0
  %5880 = vmatprep.mubr.f32.mxu0 0.0
  %5881 = vmatmul.mubr.f32.gmra.mrb[0].mxu0 %v5753
  %v5882 = vpop.f32.mrb[0].mxu0
  %v5883 = vadd.f32 0.0, %v5882
  %v5884 = vpop.f32.mrb[0].mxu0
  %5885 = vmatprep.mubr.f32.mxu0 0.0
  %5886 = vmatmul.mubr.f32.gmra.mrb[0].mxu0 %v5756
  %v5887 = vpop.f32.mrb[0].mxu0
  %v5888 = vadd.f32 0.0, %v5887
  %v5889 = vpop.f32.mrb[0].mxu0
  %5890 = vmatprep.mubr.f32.mxu0 0.0
  %5891 = vmatmul.mubr.f32.gmra.mrb[0].mxu0 %v5759
  %v5892 = vpop.f32.mrb[0].mxu0
  %v5893 = vadd.f32 0.0, %v5892
  %v5894 = vpop.f32.mrb[0].mxu0
  %5895 = vmatprep.mubr.f32.mxu0 0.0
  %5896 = vmatmul.mubr.f32.gmra.mrb[0].mxu0 %v5762
  %v5897 = vpop.f32.mrb[0].mxu0
  %v5898 = vadd.f32 0.0, %v5897
  %v5899 = vpop.f32.mrb[0].mxu0
  %5900 = vmatprep.mubr.f32.mxu0 0.0
  %5901 = vmatmul.mubr.f32.gmra.mrb[0].mxu0 %v5765
  %v5902 = vpop.f32.mrb[0].mxu0
  %v5903 = vadd.f32 0.0, %v5902
  %v5904 = vpop.f32.mrb[0].mxu0
  %5905 = vmatprep.mubr.f32.mxu0 0.0
  %5906 = vmatmul.mubr.f32.gmra.mrb[0].mxu0 %v5768
  %v5907 = vpop.f32.mrb[0].mxu0
  %v5908 = vadd.f32 0.0, %v5907
  %v5909 = vpop.f32.mrb[0].mxu0
  %5910 = vmatprep.mubr.f32.mxu0 0.0
  %5911 = vmatmul.mubr.f32.gmra.mrb[0].mxu0 %v5771
  %v5912 = vpop.f32.mrb[0].mxu0
  %v5913 = vadd.f32 0.0, %v5912
  %v5914 = vpop.f32.mrb[0].mxu0
  %5915 = vmatprep.mubr.f32.mxu0 0.0
  %5916 = vmatmul.mubr.f32.gmra.mrb[0].mxu0 %v5774
  %v5917 = vpop.f32.mrb[0].mxu0
  %v5918 = vadd.f32 0.0, %v5917
  %v5919 = vpop.f32.mrb[0].mxu0
  %5920 = vdwg.mxu0
  %v5921 = vadd.f32 %v5594, %v5843
  %v5922 = vadd.f32 %v5595, %v5848
  %v5923 = vadd.f32 %v5596, %v5853
  %v5924 = vadd.f32 %v5597, %v5858
  %v5925 = vadd.f32 %v5598, %v5863
  %v5926 = vadd.f32 %v5599, %v5868
  %v5927 = vadd.f32 %v5600, %v5873
  %v5928 = vadd.f32 %v5601, %v5878
  %v5929 = vadd.f32 %v5602, %v5883
  %v5930 = vadd.f32 %v5603, %v5888
  %v5931 = vadd.f32 %v5604, %v5893
  %v5932 = vadd.f32 %v5605, %v5898
  %v5933 = vadd.f32 %v5606, %v5903
  %v5934 = vadd.f32 %v5607, %v5908
  %v5935 = vadd.f32 %v5608, %v5913
  %v5936 = vadd.f32 %v5609, %v5918
  %s5937 = scalar_lea.vmem %s6, 1920
  %v5938 = vld [vmem:[%s5937] sm:$0xff]
  %v5939 = vld [vmem:[%s5937 + $0x8] sm:$0xff]
  %v5940 = vld [vmem:[%s5937 + $0x10] sm:$0xff]
  %v5941 = vld [vmem:[%s5937 + $0x18] sm:$0xff]
  %v5942 = vld [vmem:[%s5937 + $0x20] sm:$0xff]
  %v5943 = vld [vmem:[%s5937 + $0x28] sm:$0xff]
  %v5944 = vld [vmem:[%s5937 + $0x30] sm:$0xff]
  %v5945 = vld [vmem:[%s5937 + $0x38] sm:$0xff]
  %v5946 = vld [vmem:[%s5937 + $0x40] sm:$0xff]
  %v5947 = vld [vmem:[%s5937 + $0x48] sm:$0xff]
  %v5948 = vld [vmem:[%s5937 + $0x50] sm:$0xff]
  %v5949 = vld [vmem:[%s5937 + $0x58] sm:$0xff]
  %v5950 = vld [vmem:[%s5937 + $0x60] sm:$0xff]
  %v5951 = vld [vmem:[%s5937 + $0x68] sm:$0xff]
  %v5952 = vld [vmem:[%s5937 + $0x70] sm:$0xff]
  %v5953 = vld [vmem:[%s5937 + $0x78] sm:$0xff]
  %5955 = vset.pattern.permute.xlu0 0
  %5956 = vperm.xlu0 %5955, %v5938
  %v5957 = vpop.permute.xlu0 %5956
  %5960 = vset.pattern.permute.xlu0 0
  %5961 = vperm.xlu0 %5960, %v5939
  %v5962 = vpop.permute.xlu0 %5961
  %5965 = vset.pattern.permute.xlu0 0
  %5966 = vperm.xlu0 %5965, %v5940
  %v5967 = vpop.permute.xlu0 %5966
  %5970 = vset.pattern.permute.xlu0 0
  %5971 = vperm.xlu0 %5970, %v5941
  %v5972 = vpop.permute.xlu0 %5971
  %5975 = vset.pattern.permute.xlu0 0
  %5976 = vperm.xlu0 %5975, %v5942
  %v5977 = vpop.permute.xlu0 %5976
  %5980 = vset.pattern.permute.xlu0 0
  %5981 = vperm.xlu0 %5980, %v5943
  %v5982 = vpop.permute.xlu0 %5981
  %5985 = vset.pattern.permute.xlu0 0
  %5986 = vperm.xlu0 %5985, %v5944
  %v5987 = vpop.permute.xlu0 %5986
  %5990 = vset.pattern.permute.xlu0 0
  %5991 = vperm.xlu0 %5990, %v5945
  %v5992 = vpop.permute.xlu0 %5991
  %5995 = vset.pattern.permute.xlu0 0
  %5996 = vperm.xlu0 %5995, %v5946
  %v5997 = vpop.permute.xlu0 %5996
  %6000 = vset.pattern.permute.xlu0 0
  %6001 = vperm.xlu0 %6000, %v5947
  %v6002 = vpop.permute.xlu0 %6001
  %6005 = vset.pattern.permute.xlu0 0
  %6006 = vperm.xlu0 %6005, %v5948
  %v6007 = vpop.permute.xlu0 %6006
  %6010 = vset.pattern.permute.xlu0 0
  %6011 = vperm.xlu0 %6010, %v5949
  %v6012 = vpop.permute.xlu0 %6011
  %6015 = vset.pattern.permute.xlu0 0
  %6016 = vperm.xlu0 %6015, %v5950
  %v6017 = vpop.permute.xlu0 %6016
  %6020 = vset.pattern.permute.xlu0 0
  %6021 = vperm.xlu0 %6020, %v5951
  %v6022 = vpop.permute.xlu0 %6021
  %6025 = vset.pattern.permute.xlu0 0
  %6026 = vperm.xlu0 %6025, %v5952
  %v6027 = vpop.permute.xlu0 %6026
  %6030 = vset.pattern.permute.xlu0 0
  %6031 = vperm.xlu0 %6030, %v5953
  %v6032 = vpop.permute.xlu0 %6031
  %v6034 = vmul.f32 %v964, %v5957
  %v6035 = vmul.f32 %v963, %v5962
  %v6036 = vmul.f32 %v962, %v5967
  %v6037 = vmul.f32 %v961, %v5972
  %v6038 = vmul.f32 %v960, %v5977
  %v6039 = vmul.f32 %v959, %v5982
  %v6040 = vmul.f32 %v958, %v5987
  %v6041 = vmul.f32 %v957, %v5992
  %v6042 = vmul.f32 %v956, %v5997
  %v6043 = vmul.f32 %v955, %v6002
  %v6044 = vmul.f32 %v954, %v6007
  %v6045 = vmul.f32 %v953, %v6012
  %v6046 = vmul.f32 %v952, %v6017
  %v6047 = vmul.f32 %v951, %v6022
  %v6048 = vmul.f32 %v950, %v6027
  %v6049 = vmul.f32 %v965, %v6032
  %s6050 = scalar_lea.vmem %s4, 480
  %v6051 = vld [vmem:[%s6050] sm:$0xff]
  %v6052 = vld [vmem:[%s6050 + $0x8] sm:$0xff]
  %v6053 = vld [vmem:[%s6050 + $0x10] sm:$0xff]
  %v6054 = vld [vmem:[%s6050 + $0x18] sm:$0xff]
  %v6056 = vsel %vm1233, %v6034, 0
  %v6059 = vsel %vm1233, %v6035, 0
  %v6062 = vsel %vm1233, %v6036, 0
  %v6065 = vsel %vm1233, %v6037, 0
  %v6068 = vsel %vm1233, %v6038, 0
  %v6071 = vsel %vm1233, %v6039, 0
  %v6074 = vsel %vm1233, %v6040, 0
  %v6077 = vsel %vm1233, %v6041, 0
  %v6080 = vsel %vm1233, %v6042, 0
  %v6083 = vsel %vm1233, %v6043, 0
  %v6086 = vsel %vm1233, %v6044, 0
  %v6089 = vsel %vm1233, %v6045, 0
  %v6092 = vsel %vm1233, %v6046, 0
  %v6095 = vsel %vm1233, %v6047, 0
  %v6098 = vsel %vm1233, %v6048, 0
  %v6101 = vsel %vm1233, %v6049, 0
  %6103 = vmatprep.subr.mxu0 0.0
  %6104 = vmatpush1.msra.mxu0 %v6051
  %6105 = vmatprep.subr.mxu0 0.0
  %6106 = vmatpush1.msra.mxu0 %v6052
  %6107 = vmatprep.subr.mxu0 0.0
  %6108 = vmatpush1.msra.mxu0 %v6053
  %6109 = vmatprep.subr.mxu0 0.0
  %6110 = vmatpush1.msra.mxu0 %v6054
  %6111 = vmatprep.subr.mxu0 0.0
  %6112 = vmatpush1.msra.mxu0 0.0
  %6113 = vmatprep.subr.mxu0 0.0
  %6114 = vmatpush1.msra.mxu0 0.0
  %6115 = vmatprep.subr.mxu0 0.0
  %6116 = vmatpush1.msra.mxu0 0.0
  %6117 = vmatprep.subr.mxu0 0.0
  %6118 = vmatpush1.msra.mxu0 0.0
  %6119 = vmatprep.subr.mxu0 0.0
  %6120 = vmatpush1.msra.mxu0 0.0
  %6121 = vmatprep.subr.mxu0 0.0
  %6122 = vmatpush1.msra.mxu0 0.0
  %6123 = vmatprep.subr.mxu0 0.0
  %6124 = vmatpush1.msra.mxu0 0.0
  %6125 = vmatprep.subr.mxu0 0.0
  %6126 = vmatpush1.msra.mxu0 0.0
  %6127 = vmatprep.subr.mxu0 0.0
  %6128 = vmatpush1.msra.mxu0 0.0
  %6129 = vmatprep.subr.mxu0 0.0
  %6130 = vmatpush1.msra.mxu0 0.0
  %6131 = vmatprep.subr.mxu0 0.0
  %6132 = vmatpush1.msra.mxu0 0.0
  %6133 = vmatprep.subr.mxu0 0.0
  %6134 = vmatpush1.msra.mxu0 0.0
  %6135 = vmatprep.subr.mxu0 0.0
  %6136 = vmatpush1.msra.mxu0 0.0
  %6137 = vmatprep.subr.mxu0 0.0
  %6138 = vmatpush1.msra.mxu0 0.0
  %6139 = vmatprep.subr.mxu0 0.0
  %6140 = vmatpush1.msra.mxu0 0.0
  %6141 = vmatprep.subr.mxu0 0.0
  %6142 = vmatpush1.msra.mxu0 0.0
  %6143 = vmatprep.subr.mxu0 0.0
  %6144 = vmatpush1.msra.mxu0 0.0
  %6145 = vmatprep.subr.mxu0 0.0
  %6146 = vmatpush1.msra.mxu0 0.0
  %6147 = vmatprep.subr.mxu0 0.0
  %6148 = vmatpush1.msra.mxu0 0.0
  %6149 = vmatprep.subr.mxu0 0.0
  %6150 = vmatpush1.msra.mxu0 0.0
  %6151 = vmatprep.subr.mxu0 0.0
  %6152 = vmatpush1.msra.mxu0 0.0
  %6153 = vmatprep.subr.mxu0 0.0
  %6154 = vmatpush1.msra.mxu0 0.0
  %6155 = vmatprep.subr.mxu0 0.0
  %6156 = vmatpush1.msra.mxu0 0.0
  %6157 = vmatprep.subr.mxu0 0.0
  %6158 = vmatpush1.msra.mxu0 0.0
  %6159 = vmatprep.subr.mxu0 0.0
  %6160 = vmatpush1.msra.mxu0 0.0
  %6161 = vmatprep.subr.mxu0 0.0
  %6162 = vmatpush1.msra.mxu0 0.0
  %6163 = vmatprep.subr.mxu0 0.0
  %6164 = vmatpush1.msra.mxu0 0.0
  %6165 = vmatprep.subr.mxu0 0.0
  %6166 = vmatpush1.msra.mxu0 0.0
  %6167 = vmatprep.mubr.f32.mxu0 0.0
  %6168 = vmatmul.mubr.f32.gmra.mrb[0].mxu0 %v6056
  %v6169 = vpop.f32.mrb[0].mxu0
  %v6170 = vadd.f32 0.0, %v6169
  %v6171 = vpop.f32.mrb[0].mxu0
  %6172 = vmatprep.mubr.f32.mxu0 0.0
  %6173 = vmatmul.mubr.f32.gmra.mrb[0].mxu0 %v6059
  %v6174 = vpop.f32.mrb[0].mxu0
  %v6175 = vadd.f32 0.0, %v6174
  %v6176 = vpop.f32.mrb[0].mxu0
  %6177 = vmatprep.mubr.f32.mxu0 0.0
  %6178 = vmatmul.mubr.f32.gmra.mrb[0].mxu0 %v6062
  %v6179 = vpop.f32.mrb[0].mxu0
  %v6180 = vadd.f32 0.0, %v6179
  %v6181 = vpop.f32.mrb[0].mxu0
  %6182 = vmatprep.mubr.f32.mxu0 0.0
  %6183 = vmatmul.mubr.f32.gmra.mrb[0].mxu0 %v6065
  %v6184 = vpop.f32.mrb[0].mxu0
  %v6185 = vadd.f32 0.0, %v6184
  %v6186 = vpop.f32.mrb[0].mxu0
  %6187 = vmatprep.mubr.f32.mxu0 0.0
  %6188 = vmatmul.mubr.f32.gmra.mrb[0].mxu0 %v6068
  %v6189 = vpop.f32.mrb[0].mxu0
  %v6190 = vadd.f32 0.0, %v6189
  %v6191 = vpop.f32.mrb[0].mxu0
  %6192 = vmatprep.mubr.f32.mxu0 0.0
  %6193 = vmatmul.mubr.f32.gmra.mrb[0].mxu0 %v6071
  %v6194 = vpop.f32.mrb[0].mxu0
  %v6195 = vadd.f32 0.0, %v6194
  %v6196 = vpop.f32.mrb[0].mxu0
  %6197 = vmatprep.mubr.f32.mxu0 0.0
  %6198 = vmatmul.mubr.f32.gmra.mrb[0].mxu0 %v6074
  %v6199 = vpop.f32.mrb[0].mxu0
  %v6200 = vadd.f32 0.0, %v6199
  %v6201 = vpop.f32.mrb[0].mxu0
  %6202 = vmatprep.mubr.f32.mxu0 0.0
  %6203 = vmatmul.mubr.f32.gmra.mrb[0].mxu0 %v6077
  %v6204 = vpop.f32.mrb[0].mxu0
  %v6205 = vadd.f32 0.0, %v6204
  %v6206 = vpop.f32.mrb[0].mxu0
  %6207 = vmatprep.mubr.f32.mxu0 0.0
  %6208 = vmatmul.mubr.f32.gmra.mrb[0].mxu0 %v6080
  %v6209 = vpop.f32.mrb[0].mxu0
  %v6210 = vadd.f32 0.0, %v6209
  %v6211 = vpop.f32.mrb[0].mxu0
  %6212 = vmatprep.mubr.f32.mxu0 0.0
  %6213 = vmatmul.mubr.f32.gmra.mrb[0].mxu0 %v6083
  %v6214 = vpop.f32.mrb[0].mxu0
  %v6215 = vadd.f32 0.0, %v6214
  %v6216 = vpop.f32.mrb[0].mxu0
  %6217 = vmatprep.mubr.f32.mxu0 0.0
  %6218 = vmatmul.mubr.f32.gmra.mrb[0].mxu0 %v6086
  %v6219 = vpop.f32.mrb[0].mxu0
  %v6220 = vadd.f32 0.0, %v6219
  %v6221 = vpop.f32.mrb[0].mxu0
  %6222 = vmatprep.mubr.f32.mxu0 0.0
  %6223 = vmatmul.mubr.f32.gmra.mrb[0].mxu0 %v6089
  %v6224 = vpop.f32.mrb[0].mxu0
  %v6225 = vadd.f32 0.0, %v6224
  %v6226 = vpop.f32.mrb[0].mxu0
  %6227 = vmatprep.mubr.f32.mxu0 0.0
  %6228 = vmatmul.mubr.f32.gmra.mrb[0].mxu0 %v6092
  %v6229 = vpop.f32.mrb[0].mxu0
  %v6230 = vadd.f32 0.0, %v6229
  %v6231 = vpop.f32.mrb[0].mxu0
  %6232 = vmatprep.mubr.f32.mxu0 0.0
  %6233 = vmatmul.mubr.f32.gmra.mrb[0].mxu0 %v6095
  %v6234 = vpop.f32.mrb[0].mxu0
  %v6235 = vadd.f32 0.0, %v6234
  %v6236 = vpop.f32.mrb[0].mxu0
  %6237 = vmatprep.mubr.f32.mxu0 0.0
  %6238 = vmatmul.mubr.f32.gmra.mrb[0].mxu0 %v6098
  %v6239 = vpop.f32.mrb[0].mxu0
  %v6240 = vadd.f32 0.0, %v6239
  %v6241 = vpop.f32.mrb[0].mxu0
  %6242 = vmatprep.mubr.f32.mxu0 0.0
  %6243 = vmatmul.mubr.f32.gmra.mrb[0].mxu0 %v6101
  %v6244 = vpop.f32.mrb[0].mxu0
  %v6245 = vadd.f32 0.0, %v6244
  %v6246 = vpop.f32.mrb[0].mxu0
  %6247 = vdwg.mxu0
  %v6248 = vadd.f32 %v5921, %v6170
  %v6249 = vadd.f32 %v5922, %v6175
  %v6250 = vadd.f32 %v5923, %v6180
  %v6251 = vadd.f32 %v5924, %v6185
  %v6252 = vadd.f32 %v5925, %v6190
  %v6253 = vadd.f32 %v5926, %v6195
  %v6254 = vadd.f32 %v5927, %v6200
  %v6255 = vadd.f32 %v5928, %v6205
  %v6256 = vadd.f32 %v5929, %v6210
  %v6257 = vadd.f32 %v5930, %v6215
  %v6258 = vadd.f32 %v5931, %v6220
  %v6259 = vadd.f32 %v5932, %v6225
  %v6260 = vadd.f32 %v5933, %v6230
  %v6261 = vadd.f32 %v5934, %v6235
  %v6262 = vadd.f32 %v5935, %v6240
  %v6263 = vadd.f32 %v5936, %v6245
  %s6264 = scalar_lea.vmem %s6, 2048
  %v6265 = vld [vmem:[%s6264] sm:$0xff]
  %v6266 = vld [vmem:[%s6264 + $0x8] sm:$0xff]
  %v6267 = vld [vmem:[%s6264 + $0x10] sm:$0xff]
  %v6268 = vld [vmem:[%s6264 + $0x18] sm:$0xff]
  %v6269 = vld [vmem:[%s6264 + $0x20] sm:$0xff]
  %v6270 = vld [vmem:[%s6264 + $0x28] sm:$0xff]
  %v6271 = vld [vmem:[%s6264 + $0x30] sm:$0xff]
  %v6272 = vld [vmem:[%s6264 + $0x38] sm:$0xff]
  %v6273 = vld [vmem:[%s6264 + $0x40] sm:$0xff]
  %v6274 = vld [vmem:[%s6264 + $0x48] sm:$0xff]
  %v6275 = vld [vmem:[%s6264 + $0x50] sm:$0xff]
  %v6276 = vld [vmem:[%s6264 + $0x58] sm:$0xff]
  %v6277 = vld [vmem:[%s6264 + $0x60] sm:$0xff]
  %v6278 = vld [vmem:[%s6264 + $0x68] sm:$0xff]
  %v6279 = vld [vmem:[%s6264 + $0x70] sm:$0xff]
  %v6280 = vld [vmem:[%s6264 + $0x78] sm:$0xff]
  %6282 = vset.pattern.permute.xlu0 0
  %6283 = vperm.xlu0 %6282, %v6265
  %v6284 = vpop.permute.xlu0 %6283
  %6287 = vset.pattern.permute.xlu0 0
  %6288 = vperm.xlu0 %6287, %v6266
  %v6289 = vpop.permute.xlu0 %6288
  %6292 = vset.pattern.permute.xlu0 0
  %6293 = vperm.xlu0 %6292, %v6267
  %v6294 = vpop.permute.xlu0 %6293
  %6297 = vset.pattern.permute.xlu0 0
  %6298 = vperm.xlu0 %6297, %v6268
  %v6299 = vpop.permute.xlu0 %6298
  %6302 = vset.pattern.permute.xlu0 0
  %6303 = vperm.xlu0 %6302, %v6269
  %v6304 = vpop.permute.xlu0 %6303
  %6307 = vset.pattern.permute.xlu0 0
  %6308 = vperm.xlu0 %6307, %v6270
  %v6309 = vpop.permute.xlu0 %6308
  %6312 = vset.pattern.permute.xlu0 0
  %6313 = vperm.xlu0 %6312, %v6271
  %v6314 = vpop.permute.xlu0 %6313
  %6317 = vset.pattern.permute.xlu0 0
  %6318 = vperm.xlu0 %6317, %v6272
  %v6319 = vpop.permute.xlu0 %6318
  %6322 = vset.pattern.permute.xlu0 0
  %6323 = vperm.xlu0 %6322, %v6273
  %v6324 = vpop.permute.xlu0 %6323
  %6327 = vset.pattern.permute.xlu0 0
  %6328 = vperm.xlu0 %6327, %v6274
  %v6329 = vpop.permute.xlu0 %6328
  %6332 = vset.pattern.permute.xlu0 0
  %6333 = vperm.xlu0 %6332, %v6275
  %v6334 = vpop.permute.xlu0 %6333
  %6337 = vset.pattern.permute.xlu0 0
  %6338 = vperm.xlu0 %6337, %v6276
  %v6339 = vpop.permute.xlu0 %6338
  %6342 = vset.pattern.permute.xlu0 0
  %6343 = vperm.xlu0 %6342, %v6277
  %v6344 = vpop.permute.xlu0 %6343
  %6347 = vset.pattern.permute.xlu0 0
  %6348 = vperm.xlu0 %6347, %v6278
  %v6349 = vpop.permute.xlu0 %6348
  %6352 = vset.pattern.permute.xlu0 0
  %6353 = vperm.xlu0 %6352, %v6279
  %v6354 = vpop.permute.xlu0 %6353
  %6357 = vset.pattern.permute.xlu0 0
  %6358 = vperm.xlu0 %6357, %v6280
  %v6359 = vpop.permute.xlu0 %6358
  %v6361 = vmul.f32 %v1113, %v6284
  %v6362 = vmul.f32 %v1112, %v6289
  %v6363 = vmul.f32 %v1111, %v6294
  %v6364 = vmul.f32 %v1110, %v6299
  %v6365 = vmul.f32 %v1109, %v6304
  %v6366 = vmul.f32 %v1108, %v6309
  %v6367 = vmul.f32 %v1107, %v6314
  %v6368 = vmul.f32 %v1106, %v6319
  %v6369 = vmul.f32 %v1105, %v6324
  %v6370 = vmul.f32 %v1104, %v6329
  %v6371 = vmul.f32 %v1103, %v6334
  %v6372 = vmul.f32 %v1102, %v6339
  %v6373 = vmul.f32 %v1101, %v6344
  %v6374 = vmul.f32 %v1100, %v6349
  %v6375 = vmul.f32 %v1099, %v6354
  %v6376 = vmul.f32 %v1114, %v6359
  %s6377 = scalar_lea.vmem %s4, 512
  %v6378 = vld [vmem:[%s6377] sm:$0xff]
  %v6379 = vld [vmem:[%s6377 + $0x8] sm:$0xff]
  %v6380 = vld [vmem:[%s6377 + $0x10] sm:$0xff]
  %v6381 = vld [vmem:[%s6377 + $0x18] sm:$0xff]
  %v6383 = vsel %vm1233, %v6361, 0
  %v6386 = vsel %vm1233, %v6362, 0
  %v6389 = vsel %vm1233, %v6363, 0
  %v6392 = vsel %vm1233, %v6364, 0
  %v6395 = vsel %vm1233, %v6365, 0
  %v6398 = vsel %vm1233, %v6366, 0
  %v6401 = vsel %vm1233, %v6367, 0
  %v6404 = vsel %vm1233, %v6368, 0
  %v6407 = vsel %vm1233, %v6369, 0
  %v6410 = vsel %vm1233, %v6370, 0
  %v6413 = vsel %vm1233, %v6371, 0
  %v6416 = vsel %vm1233, %v6372, 0
  %v6419 = vsel %vm1233, %v6373, 0
  %v6422 = vsel %vm1233, %v6374, 0
  %v6425 = vsel %vm1233, %v6375, 0
  %v6428 = vsel %vm1233, %v6376, 0
  %6430 = vmatprep.subr.mxu0 0.0
  %6431 = vmatpush1.msra.mxu0 %v6378
  %6432 = vmatprep.subr.mxu0 0.0
  %6433 = vmatpush1.msra.mxu0 %v6379
  %6434 = vmatprep.subr.mxu0 0.0
  %6435 = vmatpush1.msra.mxu0 %v6380
  %6436 = vmatprep.subr.mxu0 0.0
  %6437 = vmatpush1.msra.mxu0 %v6381
  %6438 = vmatprep.subr.mxu0 0.0
  %6439 = vmatpush1.msra.mxu0 0.0
  %6440 = vmatprep.subr.mxu0 0.0
  %6441 = vmatpush1.msra.mxu0 0.0
  %6442 = vmatprep.subr.mxu0 0.0
  %6443 = vmatpush1.msra.mxu0 0.0
  %6444 = vmatprep.subr.mxu0 0.0
  %6445 = vmatpush1.msra.mxu0 0.0
  %6446 = vmatprep.subr.mxu0 0.0
  %6447 = vmatpush1.msra.mxu0 0.0
  %6448 = vmatprep.subr.mxu0 0.0
  %6449 = vmatpush1.msra.mxu0 0.0
  %6450 = vmatprep.subr.mxu0 0.0
  %6451 = vmatpush1.msra.mxu0 0.0
  %6452 = vmatprep.subr.mxu0 0.0
  %6453 = vmatpush1.msra.mxu0 0.0
  %6454 = vmatprep.subr.mxu0 0.0
  %6455 = vmatpush1.msra.mxu0 0.0
  %6456 = vmatprep.subr.mxu0 0.0
  %6457 = vmatpush1.msra.mxu0 0.0
  %6458 = vmatprep.subr.mxu0 0.0
  %6459 = vmatpush1.msra.mxu0 0.0
  %6460 = vmatprep.subr.mxu0 0.0
  %6461 = vmatpush1.msra.mxu0 0.0
  %6462 = vmatprep.subr.mxu0 0.0
  %6463 = vmatpush1.msra.mxu0 0.0
  %6464 = vmatprep.subr.mxu0 0.0
  %6465 = vmatpush1.msra.mxu0 0.0
  %6466 = vmatprep.subr.mxu0 0.0
  %6467 = vmatpush1.msra.mxu0 0.0
  %6468 = vmatprep.subr.mxu0 0.0
  %6469 = vmatpush1.msra.mxu0 0.0
  %6470 = vmatprep.subr.mxu0 0.0
  %6471 = vmatpush1.msra.mxu0 0.0
  %6472 = vmatprep.subr.mxu0 0.0
  %6473 = vmatpush1.msra.mxu0 0.0
  %6474 = vmatprep.subr.mxu0 0.0
  %6475 = vmatpush1.msra.mxu0 0.0
  %6476 = vmatprep.subr.mxu0 0.0
  %6477 = vmatpush1.msra.mxu0 0.0
  %6478 = vmatprep.subr.mxu0 0.0
  %6479 = vmatpush1.msra.mxu0 0.0
  %6480 = vmatprep.subr.mxu0 0.0
  %6481 = vmatpush1.msra.mxu0 0.0
  %6482 = vmatprep.subr.mxu0 0.0
  %6483 = vmatpush1.msra.mxu0 0.0
  %6484 = vmatprep.subr.mxu0 0.0
  %6485 = vmatpush1.msra.mxu0 0.0
  %6486 = vmatprep.subr.mxu0 0.0
  %6487 = vmatpush1.msra.mxu0 0.0
  %6488 = vmatprep.subr.mxu0 0.0
  %6489 = vmatpush1.msra.mxu0 0.0
  %6490 = vmatprep.subr.mxu0 0.0
  %6491 = vmatpush1.msra.mxu0 0.0
  %6492 = vmatprep.subr.mxu0 0.0
  %6493 = vmatpush1.msra.mxu0 0.0
  %6494 = vmatprep.mubr.f32.mxu0 0.0
  %6495 = vmatmul.mubr.f32.gmra.mrb[0].mxu0 %v6383
  %v6496 = vpop.f32.mrb[0].mxu0
  %v6497 = vadd.f32 0.0, %v6496
  %v6498 = vpop.f32.mrb[0].mxu0
  %6499 = vmatprep.mubr.f32.mxu0 0.0
  %6500 = vmatmul.mubr.f32.gmra.mrb[0].mxu0 %v6386
  %v6501 = vpop.f32.mrb[0].mxu0
  %v6502 = vadd.f32 0.0, %v6501
  %v6503 = vpop.f32.mrb[0].mxu0
  %6504 = vmatprep.mubr.f32.mxu0 0.0
  %6505 = vmatmul.mubr.f32.gmra.mrb[0].mxu0 %v6389
  %v6506 = vpop.f32.mrb[0].mxu0
  %v6507 = vadd.f32 0.0, %v6506
  %v6508 = vpop.f32.mrb[0].mxu0
  %6509 = vmatprep.mubr.f32.mxu0 0.0
  %6510 = vmatmul.mubr.f32.gmra.mrb[0].mxu0 %v6392
  %v6511 = vpop.f32.mrb[0].mxu0
  %v6512 = vadd.f32 0.0, %v6511
  %v6513 = vpop.f32.mrb[0].mxu0
  %6514 = vmatprep.mubr.f32.mxu0 0.0
  %6515 = vmatmul.mubr.f32.gmra.mrb[0].mxu0 %v6395
  %v6516 = vpop.f32.mrb[0].mxu0
  %v6517 = vadd.f32 0.0, %v6516
  %v6518 = vpop.f32.mrb[0].mxu0
  %6519 = vmatprep.mubr.f32.mxu0 0.0
  %6520 = vmatmul.mubr.f32.gmra.mrb[0].mxu0 %v6398
  %v6521 = vpop.f32.mrb[0].mxu0
  %v6522 = vadd.f32 0.0, %v6521
  %v6523 = vpop.f32.mrb[0].mxu0
  %6524 = vmatprep.mubr.f32.mxu0 0.0
  %6525 = vmatmul.mubr.f32.gmra.mrb[0].mxu0 %v6401
  %v6526 = vpop.f32.mrb[0].mxu0
  %v6527 = vadd.f32 0.0, %v6526
  %v6528 = vpop.f32.mrb[0].mxu0
  %6529 = vmatprep.mubr.f32.mxu0 0.0
  %6530 = vmatmul.mubr.f32.gmra.mrb[0].mxu0 %v6404
  %v6531 = vpop.f32.mrb[0].mxu0
  %v6532 = vadd.f32 0.0, %v6531
  %v6533 = vpop.f32.mrb[0].mxu0
  %6534 = vmatprep.mubr.f32.mxu0 0.0
  %6535 = vmatmul.mubr.f32.gmra.mrb[0].mxu0 %v6407
  %v6536 = vpop.f32.mrb[0].mxu0
  %v6537 = vadd.f32 0.0, %v6536
  %v6538 = vpop.f32.mrb[0].mxu0
  %6539 = vmatprep.mubr.f32.mxu0 0.0
  %6540 = vmatmul.mubr.f32.gmra.mrb[0].mxu0 %v6410
  %v6541 = vpop.f32.mrb[0].mxu0
  %v6542 = vadd.f32 0.0, %v6541
  %v6543 = vpop.f32.mrb[0].mxu0
  %6544 = vmatprep.mubr.f32.mxu0 0.0
  %6545 = vmatmul.mubr.f32.gmra.mrb[0].mxu0 %v6413
  %v6546 = vpop.f32.mrb[0].mxu0
  %v6547 = vadd.f32 0.0, %v6546
  %v6548 = vpop.f32.mrb[0].mxu0
  %6549 = vmatprep.mubr.f32.mxu0 0.0
  %6550 = vmatmul.mubr.f32.gmra.mrb[0].mxu0 %v6416
  %v6551 = vpop.f32.mrb[0].mxu0
  %v6552 = vadd.f32 0.0, %v6551
  %v6553 = vpop.f32.mrb[0].mxu0
  %6554 = vmatprep.mubr.f32.mxu0 0.0
  %6555 = vmatmul.mubr.f32.gmra.mrb[0].mxu0 %v6419
  %v6556 = vpop.f32.mrb[0].mxu0
  %v6557 = vadd.f32 0.0, %v6556
  %v6558 = vpop.f32.mrb[0].mxu0
  %6559 = vmatprep.mubr.f32.mxu0 0.0
  %6560 = vmatmul.mubr.f32.gmra.mrb[0].mxu0 %v6422
  %v6561 = vpop.f32.mrb[0].mxu0
  %v6562 = vadd.f32 0.0, %v6561
  %v6563 = vpop.f32.mrb[0].mxu0
  %6564 = vmatprep.mubr.f32.mxu0 0.0
  %6565 = vmatmul.mubr.f32.gmra.mrb[0].mxu0 %v6425
  %v6566 = vpop.f32.mrb[0].mxu0
  %v6567 = vadd.f32 0.0, %v6566
  %v6568 = vpop.f32.mrb[0].mxu0
  %6569 = vmatprep.mubr.f32.mxu0 0.0
  %6570 = vmatmul.mubr.f32.gmra.mrb[0].mxu0 %v6428
  %v6571 = vpop.f32.mrb[0].mxu0
  %v6572 = vadd.f32 0.0, %v6571
  %v6573 = vpop.f32.mrb[0].mxu0
  %6574 = vdwg.mxu0
  %v6575 = vadd.f32 %v6248, %v6497
  %v6576 = vadd.f32 %v6249, %v6502
  %v6577 = vadd.f32 %v6250, %v6507
  %v6578 = vadd.f32 %v6251, %v6512
  %v6579 = vadd.f32 %v6252, %v6517
  %v6580 = vadd.f32 %v6253, %v6522
  %v6581 = vadd.f32 %v6254, %v6527
  %v6582 = vadd.f32 %v6255, %v6532
  %v6583 = vadd.f32 %v6256, %v6537
  %v6584 = vadd.f32 %v6257, %v6542
  %v6585 = vadd.f32 %v6258, %v6547
  %v6586 = vadd.f32 %v6259, %v6552
  %v6587 = vadd.f32 %v6260, %v6557
  %v6588 = vadd.f32 %v6261, %v6562
  %v6589 = vadd.f32 %v6262, %v6567
  %v6590 = vadd.f32 %v6263, %v6572
  %s6591 = scalar_lea.vmem %s6, 2176
  %v6592 = vld [vmem:[%s6591] sm:$0xff]
  %v6593 = vld [vmem:[%s6591 + $0x8] sm:$0xff]
  %v6594 = vld [vmem:[%s6591 + $0x10] sm:$0xff]
  %v6595 = vld [vmem:[%s6591 + $0x18] sm:$0xff]
  %v6596 = vld [vmem:[%s6591 + $0x20] sm:$0xff]
  %v6597 = vld [vmem:[%s6591 + $0x28] sm:$0xff]
  %v6598 = vld [vmem:[%s6591 + $0x30] sm:$0xff]
  %v6599 = vld [vmem:[%s6591 + $0x38] sm:$0xff]
  %v6600 = vld [vmem:[%s6591 + $0x40] sm:$0xff]
  %v6601 = vld [vmem:[%s6591 + $0x48] sm:$0xff]
  %v6602 = vld [vmem:[%s6591 + $0x50] sm:$0xff]
  %v6603 = vld [vmem:[%s6591 + $0x58] sm:$0xff]
  %v6604 = vld [vmem:[%s6591 + $0x60] sm:$0xff]
  %v6605 = vld [vmem:[%s6591 + $0x68] sm:$0xff]
  %v6606 = vld [vmem:[%s6591 + $0x70] sm:$0xff]
  %v6607 = vld [vmem:[%s6591 + $0x78] sm:$0xff]
  %6609 = vset.pattern.permute.xlu0 0
  %6610 = vperm.xlu0 %6609, %v6592
  %v6611 = vpop.permute.xlu0 %6610
  %6614 = vset.pattern.permute.xlu0 0
  %6615 = vperm.xlu0 %6614, %v6593
  %v6616 = vpop.permute.xlu0 %6615
  %6619 = vset.pattern.permute.xlu0 0
  %6620 = vperm.xlu0 %6619, %v6594
  %v6621 = vpop.permute.xlu0 %6620
  %6624 = vset.pattern.permute.xlu0 0
  %6625 = vperm.xlu0 %6624, %v6595
  %v6626 = vpop.permute.xlu0 %6625
  %6629 = vset.pattern.permute.xlu0 0
  %6630 = vperm.xlu0 %6629, %v6596
  %v6631 = vpop.permute.xlu0 %6630
  %6634 = vset.pattern.permute.xlu0 0
  %6635 = vperm.xlu0 %6634, %v6597
  %v6636 = vpop.permute.xlu0 %6635
  %6639 = vset.pattern.permute.xlu0 0
  %6640 = vperm.xlu0 %6639, %v6598
  %v6641 = vpop.permute.xlu0 %6640
  %6644 = vset.pattern.permute.xlu0 0
  %6645 = vperm.xlu0 %6644, %v6599
  %v6646 = vpop.permute.xlu0 %6645
  %6649 = vset.pattern.permute.xlu0 0
  %6650 = vperm.xlu0 %6649, %v6600
  %v6651 = vpop.permute.xlu0 %6650
  %6654 = vset.pattern.permute.xlu0 0
  %6655 = vperm.xlu0 %6654, %v6601
  %v6656 = vpop.permute.xlu0 %6655
  %6659 = vset.pattern.permute.xlu0 0
  %6660 = vperm.xlu0 %6659, %v6602
  %v6661 = vpop.permute.xlu0 %6660
  %6664 = vset.pattern.permute.xlu0 0
  %6665 = vperm.xlu0 %6664, %v6603
  %v6666 = vpop.permute.xlu0 %6665
  %6669 = vset.pattern.permute.xlu0 0
  %6670 = vperm.xlu0 %6669, %v6604
  %v6671 = vpop.permute.xlu0 %6670
  %6674 = vset.pattern.permute.xlu0 0
  %6675 = vperm.xlu0 %6674, %v6605
  %v6676 = vpop.permute.xlu0 %6675
  %6679 = vset.pattern.permute.xlu0 0
  %6680 = vperm.xlu0 %6679, %v6606
  %v6681 = vpop.permute.xlu0 %6680
  %6684 = vset.pattern.permute.xlu0 0
  %6685 = vperm.xlu0 %6684, %v6607
  %v6686 = vpop.permute.xlu0 %6685
  %v6688 = vmul.f32 %v858, %v6611
  %v6689 = vmul.f32 %v863, %v6616
  %v6690 = vmul.f32 %v868, %v6621
  %v6691 = vmul.f32 %v873, %v6626
  %v6692 = vmul.f32 %v878, %v6631
  %v6693 = vmul.f32 %v883, %v6636
  %v6694 = vmul.f32 %v888, %v6641
  %v6695 = vmul.f32 %v893, %v6646
  %v6696 = vmul.f32 %v898, %v6651
  %v6697 = vmul.f32 %v903, %v6656
  %v6698 = vmul.f32 %v908, %v6661
  %v6699 = vmul.f32 %v913, %v6666
  %v6700 = vmul.f32 %v918, %v6671
  %v6701 = vmul.f32 %v923, %v6676
  %v6702 = vmul.f32 %v928, %v6681
  %v6703 = vmul.f32 %v853, %v6686
  %s6704 = scalar_lea.vmem %s4, 544
  %v6705 = vld [vmem:[%s6704] sm:$0xff]
  %v6706 = vld [vmem:[%s6704 + $0x8] sm:$0xff]
  %v6707 = vld [vmem:[%s6704 + $0x10] sm:$0xff]
  %v6708 = vld [vmem:[%s6704 + $0x18] sm:$0xff]
  %v6710 = vsel %vm1233, %v6688, 0
  %v6713 = vsel %vm1233, %v6689, 0
  %v6716 = vsel %vm1233, %v6690, 0
  %v6719 = vsel %vm1233, %v6691, 0
  %v6722 = vsel %vm1233, %v6692, 0
  %v6725 = vsel %vm1233, %v6693, 0
  %v6728 = vsel %vm1233, %v6694, 0
  %v6731 = vsel %vm1233, %v6695, 0
  %v6734 = vsel %vm1233, %v6696, 0
  %v6737 = vsel %vm1233, %v6697, 0
  %v6740 = vsel %vm1233, %v6698, 0
  %v6743 = vsel %vm1233, %v6699, 0
  %v6746 = vsel %vm1233, %v6700, 0
  %v6749 = vsel %vm1233, %v6701, 0
  %v6752 = vsel %vm1233, %v6702, 0
  %v6755 = vsel %vm1233, %v6703, 0
  %6757 = vmatprep.subr.mxu0 0.0
  %6758 = vmatpush1.msra.mxu0 %v6705
  %6759 = vmatprep.subr.mxu0 0.0
  %6760 = vmatpush1.msra.mxu0 %v6706
  %6761 = vmatprep.subr.mxu0 0.0
  %6762 = vmatpush1.msra.mxu0 %v6707
  %6763 = vmatprep.subr.mxu0 0.0
  %6764 = vmatpush1.msra.mxu0 %v6708
  %6765 = vmatprep.subr.mxu0 0.0
  %6766 = vmatpush1.msra.mxu0 0.0
  %6767 = vmatprep.subr.mxu0 0.0
  %6768 = vmatpush1.msra.mxu0 0.0
  %6769 = vmatprep.subr.mxu0 0.0
  %6770 = vmatpush1.msra.mxu0 0.0
  %6771 = vmatprep.subr.mxu0 0.0
  %6772 = vmatpush1.msra.mxu0 0.0
  %6773 = vmatprep.subr.mxu0 0.0
  %6774 = vmatpush1.msra.mxu0 0.0
  %6775 = vmatprep.subr.mxu0 0.0
  %6776 = vmatpush1.msra.mxu0 0.0
  %6777 = vmatprep.subr.mxu0 0.0
  %6778 = vmatpush1.msra.mxu0 0.0
  %6779 = vmatprep.subr.mxu0 0.0
  %6780 = vmatpush1.msra.mxu0 0.0
  %6781 = vmatprep.subr.mxu0 0.0
  %6782 = vmatpush1.msra.mxu0 0.0
  %6783 = vmatprep.subr.mxu0 0.0
  %6784 = vmatpush1.msra.mxu0 0.0
  %6785 = vmatprep.subr.mxu0 0.0
  %6786 = vmatpush1.msra.mxu0 0.0
  %6787 = vmatprep.subr.mxu0 0.0
  %6788 = vmatpush1.msra.mxu0 0.0
  %6789 = vmatprep.subr.mxu0 0.0
  %6790 = vmatpush1.msra.mxu0 0.0
  %6791 = vmatprep.subr.mxu0 0.0
  %6792 = vmatpush1.msra.mxu0 0.0
  %6793 = vmatprep.subr.mxu0 0.0
  %6794 = vmatpush1.msra.mxu0 0.0
  %6795 = vmatprep.subr.mxu0 0.0
  %6796 = vmatpush1.msra.mxu0 0.0
  %6797 = vmatprep.subr.mxu0 0.0
  %6798 = vmatpush1.msra.mxu0 0.0
  %6799 = vmatprep.subr.mxu0 0.0
  %6800 = vmatpush1.msra.mxu0 0.0
  %6801 = vmatprep.subr.mxu0 0.0
  %6802 = vmatpush1.msra.mxu0 0.0
  %6803 = vmatprep.subr.mxu0 0.0
  %6804 = vmatpush1.msra.mxu0 0.0
  %6805 = vmatprep.subr.mxu0 0.0
  %6806 = vmatpush1.msra.mxu0 0.0
  %6807 = vmatprep.subr.mxu0 0.0
  %6808 = vmatpush1.msra.mxu0 0.0
  %6809 = vmatprep.subr.mxu0 0.0
  %6810 = vmatpush1.msra.mxu0 0.0
  %6811 = vmatprep.subr.mxu0 0.0
  %6812 = vmatpush1.msra.mxu0 0.0
  %6813 = vmatprep.subr.mxu0 0.0
  %6814 = vmatpush1.msra.mxu0 0.0
  %6815 = vmatprep.subr.mxu0 0.0
  %6816 = vmatpush1.msra.mxu0 0.0
  %6817 = vmatprep.subr.mxu0 0.0
  %6818 = vmatpush1.msra.mxu0 0.0
  %6819 = vmatprep.subr.mxu0 0.0
  %6820 = vmatpush1.msra.mxu0 0.0
  %6821 = vmatprep.mubr.f32.mxu0 0.0
  %6822 = vmatmul.mubr.f32.gmra.mrb[0].mxu0 %v6710
  %v6823 = vpop.f32.mrb[0].mxu0
  %v6824 = vadd.f32 0.0, %v6823
  %v6825 = vpop.f32.mrb[0].mxu0
  %6826 = vmatprep.mubr.f32.mxu0 0.0
  %6827 = vmatmul.mubr.f32.gmra.mrb[0].mxu0 %v6713
  %v6828 = vpop.f32.mrb[0].mxu0
  %v6829 = vadd.f32 0.0, %v6828
  %v6830 = vpop.f32.mrb[0].mxu0
  %6831 = vmatprep.mubr.f32.mxu0 0.0
  %6832 = vmatmul.mubr.f32.gmra.mrb[0].mxu0 %v6716
  %v6833 = vpop.f32.mrb[0].mxu0
  %v6834 = vadd.f32 0.0, %v6833
  %v6835 = vpop.f32.mrb[0].mxu0
  %6836 = vmatprep.mubr.f32.mxu0 0.0
  %6837 = vmatmul.mubr.f32.gmra.mrb[0].mxu0 %v6719
  %v6838 = vpop.f32.mrb[0].mxu0
  %v6839 = vadd.f32 0.0, %v6838
  %v6840 = vpop.f32.mrb[0].mxu0
  %6841 = vmatprep.mubr.f32.mxu0 0.0
  %6842 = vmatmul.mubr.f32.gmra.mrb[0].mxu0 %v6722
  %v6843 = vpop.f32.mrb[0].mxu0
  %v6844 = vadd.f32 0.0, %v6843
  %v6845 = vpop.f32.mrb[0].mxu0
  %6846 = vmatprep.mubr.f32.mxu0 0.0
  %6847 = vmatmul.mubr.f32.gmra.mrb[0].mxu0 %v6725
  %v6848 = vpop.f32.mrb[0].mxu0
  %v6849 = vadd.f32 0.0, %v6848
  %v6850 = vpop.f32.mrb[0].mxu0
  %6851 = vmatprep.mubr.f32.mxu0 0.0
  %6852 = vmatmul.mubr.f32.gmra.mrb[0].mxu0 %v6728
  %v6853 = vpop.f32.mrb[0].mxu0
  %v6854 = vadd.f32 0.0, %v6853
  %v6855 = vpop.f32.mrb[0].mxu0
  %6856 = vmatprep.mubr.f32.mxu0 0.0
  %6857 = vmatmul.mubr.f32.gmra.mrb[0].mxu0 %v6731
  %v6858 = vpop.f32.mrb[0].mxu0
  %v6859 = vadd.f32 0.0, %v6858
  %v6860 = vpop.f32.mrb[0].mxu0
  %6861 = vmatprep.mubr.f32.mxu0 0.0
  %6862 = vmatmul.mubr.f32.gmra.mrb[0].mxu0 %v6734
  %v6863 = vpop.f32.mrb[0].mxu0
  %v6864 = vadd.f32 0.0, %v6863
  %v6865 = vpop.f32.mrb[0].mxu0
  %6866 = vmatprep.mubr.f32.mxu0 0.0
  %6867 = vmatmul.mubr.f32.gmra.mrb[0].mxu0 %v6737
  %v6868 = vpop.f32.mrb[0].mxu0
  %v6869 = vadd.f32 0.0, %v6868
  %v6870 = vpop.f32.mrb[0].mxu0
  %6871 = vmatprep.mubr.f32.mxu0 0.0
  %6872 = vmatmul.mubr.f32.gmra.mrb[0].mxu0 %v6740
  %v6873 = vpop.f32.mrb[0].mxu0
  %v6874 = vadd.f32 0.0, %v6873
  %v6875 = vpop.f32.mrb[0].mxu0
  %6876 = vmatprep.mubr.f32.mxu0 0.0
  %6877 = vmatmul.mubr.f32.gmra.mrb[0].mxu0 %v6743
  %v6878 = vpop.f32.mrb[0].mxu0
  %v6879 = vadd.f32 0.0, %v6878
  %v6880 = vpop.f32.mrb[0].mxu0
  %6881 = vmatprep.mubr.f32.mxu0 0.0
  %6882 = vmatmul.mubr.f32.gmra.mrb[0].mxu0 %v6746
  %v6883 = vpop.f32.mrb[0].mxu0
  %v6884 = vadd.f32 0.0, %v6883
  %v6885 = vpop.f32.mrb[0].mxu0
  %6886 = vmatprep.mubr.f32.mxu0 0.0
  %6887 = vmatmul.mubr.f32.gmra.mrb[0].mxu0 %v6749
  %v6888 = vpop.f32.mrb[0].mxu0
  %v6889 = vadd.f32 0.0, %v6888
  %v6890 = vpop.f32.mrb[0].mxu0
  %6891 = vmatprep.mubr.f32.mxu0 0.0
  %6892 = vmatmul.mubr.f32.gmra.mrb[0].mxu0 %v6752
  %v6893 = vpop.f32.mrb[0].mxu0
  %v6894 = vadd.f32 0.0, %v6893
  %v6895 = vpop.f32.mrb[0].mxu0
  %6896 = vmatprep.mubr.f32.mxu0 0.0
  %6897 = vmatmul.mubr.f32.gmra.mrb[0].mxu0 %v6755
  %v6898 = vpop.f32.mrb[0].mxu0
  %v6899 = vadd.f32 0.0, %v6898
  %v6900 = vpop.f32.mrb[0].mxu0
  %6901 = vdwg.mxu0
  %v6902 = vadd.f32 %v6575, %v6824
  %v6903 = vadd.f32 %v6576, %v6829
  %v6904 = vadd.f32 %v6577, %v6834
  %v6905 = vadd.f32 %v6578, %v6839
  %v6906 = vadd.f32 %v6579, %v6844
  %v6907 = vadd.f32 %v6580, %v6849
  %v6908 = vadd.f32 %v6581, %v6854
  %v6909 = vadd.f32 %v6582, %v6859
  %v6910 = vadd.f32 %v6583, %v6864
  %v6911 = vadd.f32 %v6584, %v6869
  %v6912 = vadd.f32 %v6585, %v6874
  %v6913 = vadd.f32 %v6586, %v6879
  %v6914 = vadd.f32 %v6587, %v6884
  %v6915 = vadd.f32 %v6588, %v6889
  %v6916 = vadd.f32 %v6589, %v6894
  %v6917 = vadd.f32 %v6590, %v6899
  %s6918 = scalar_lea.vmem %s6, 2304
  %v6919 = vld [vmem:[%s6918] sm:$0xff]
  %v6920 = vld [vmem:[%s6918 + $0x8] sm:$0xff]
  %v6921 = vld [vmem:[%s6918 + $0x10] sm:$0xff]
  %v6922 = vld [vmem:[%s6918 + $0x18] sm:$0xff]
  %v6923 = vld [vmem:[%s6918 + $0x20] sm:$0xff]
  %v6924 = vld [vmem:[%s6918 + $0x28] sm:$0xff]
  %v6925 = vld [vmem:[%s6918 + $0x30] sm:$0xff]
  %v6926 = vld [vmem:[%s6918 + $0x38] sm:$0xff]
  %v6927 = vld [vmem:[%s6918 + $0x40] sm:$0xff]
  %v6928 = vld [vmem:[%s6918 + $0x48] sm:$0xff]
  %v6929 = vld [vmem:[%s6918 + $0x50] sm:$0xff]
  %v6930 = vld [vmem:[%s6918 + $0x58] sm:$0xff]
  %v6931 = vld [vmem:[%s6918 + $0x60] sm:$0xff]
  %v6932 = vld [vmem:[%s6918 + $0x68] sm:$0xff]
  %v6933 = vld [vmem:[%s6918 + $0x70] sm:$0xff]
  %v6934 = vld [vmem:[%s6918 + $0x78] sm:$0xff]
  %6936 = vset.pattern.permute.xlu0 0
  %6937 = vperm.xlu0 %6936, %v6919
  %v6938 = vpop.permute.xlu0 %6937
  %6941 = vset.pattern.permute.xlu0 0
  %6942 = vperm.xlu0 %6941, %v6920
  %v6943 = vpop.permute.xlu0 %6942
  %6946 = vset.pattern.permute.xlu0 0
  %6947 = vperm.xlu0 %6946, %v6921
  %v6948 = vpop.permute.xlu0 %6947
  %6951 = vset.pattern.permute.xlu0 0
  %6952 = vperm.xlu0 %6951, %v6922
  %v6953 = vpop.permute.xlu0 %6952
  %6956 = vset.pattern.permute.xlu0 0
  %6957 = vperm.xlu0 %6956, %v6923
  %v6958 = vpop.permute.xlu0 %6957
  %6961 = vset.pattern.permute.xlu0 0
  %6962 = vperm.xlu0 %6961, %v6924
  %v6963 = vpop.permute.xlu0 %6962
  %6966 = vset.pattern.permute.xlu0 0
  %6967 = vperm.xlu0 %6966, %v6925
  %v6968 = vpop.permute.xlu0 %6967
  %6971 = vset.pattern.permute.xlu0 0
  %6972 = vperm.xlu0 %6971, %v6926
  %v6973 = vpop.permute.xlu0 %6972
  %6976 = vset.pattern.permute.xlu0 0
  %6977 = vperm.xlu0 %6976, %v6927
  %v6978 = vpop.permute.xlu0 %6977
  %6981 = vset.pattern.permute.xlu0 0
  %6982 = vperm.xlu0 %6981, %v6928
  %v6983 = vpop.permute.xlu0 %6982
  %6986 = vset.pattern.permute.xlu0 0
  %6987 = vperm.xlu0 %6986, %v6929
  %v6988 = vpop.permute.xlu0 %6987
  %6991 = vset.pattern.permute.xlu0 0
  %6992 = vperm.xlu0 %6991, %v6930
  %v6993 = vpop.permute.xlu0 %6992
  %6996 = vset.pattern.permute.xlu0 0
  %6997 = vperm.xlu0 %6996, %v6931
  %v6998 = vpop.permute.xlu0 %6997
  %7001 = vset.pattern.permute.xlu0 0
  %7002 = vperm.xlu0 %7001, %v6932
  %v7003 = vpop.permute.xlu0 %7002
  %7006 = vset.pattern.permute.xlu0 0
  %7007 = vperm.xlu0 %7006, %v6933
  %v7008 = vpop.permute.xlu0 %7007
  %7011 = vset.pattern.permute.xlu0 0
  %7012 = vperm.xlu0 %7011, %v6934
  %v7013 = vpop.permute.xlu0 %7012
  %v7015 = vmul.f32 %v1977, %v6938
  %v7016 = vmul.f32 %v1976, %v6943
  %v7017 = vmul.f32 %v1975, %v6948
  %v7018 = vmul.f32 %v1974, %v6953
  %v7019 = vmul.f32 %v1973, %v6958
  %v7020 = vmul.f32 %v1972, %v6963
  %v7021 = vmul.f32 %v1971, %v6968
  %v7022 = vmul.f32 %v1970, %v6973
  %v7023 = vmul.f32 %v1969, %v6978
  %v7024 = vmul.f32 %v1968, %v6983
  %v7025 = vmul.f32 %v1967, %v6988
  %v7026 = vmul.f32 %v1966, %v6993
  %v7027 = vmul.f32 %v1965, %v6998
  %v7028 = vmul.f32 %v1964, %v7003
  %v7029 = vmul.f32 %v1979, %v7008
  %v7030 = vmul.f32 %v1978, %v7013
  %s7031 = scalar_lea.vmem %s4, 576
  %v7032 = vld [vmem:[%s7031] sm:$0xff]
  %v7033 = vld [vmem:[%s7031 + $0x8] sm:$0xff]
  %v7034 = vld [vmem:[%s7031 + $0x10] sm:$0xff]
  %v7035 = vld [vmem:[%s7031 + $0x18] sm:$0xff]
  %v7037 = vsel %vm1233, %v7015, 0
  %v7040 = vsel %vm1233, %v7016, 0
  %v7043 = vsel %vm1233, %v7017, 0
  %v7046 = vsel %vm1233, %v7018, 0
  %v7049 = vsel %vm1233, %v7019, 0
  %v7052 = vsel %vm1233, %v7020, 0
  %v7055 = vsel %vm1233, %v7021, 0
  %v7058 = vsel %vm1233, %v7022, 0
  %v7061 = vsel %vm1233, %v7023, 0
  %v7064 = vsel %vm1233, %v7024, 0
  %v7067 = vsel %vm1233, %v7025, 0
  %v7070 = vsel %vm1233, %v7026, 0
  %v7073 = vsel %vm1233, %v7027, 0
  %v7076 = vsel %vm1233, %v7028, 0
  %v7079 = vsel %vm1233, %v7029, 0
  %v7082 = vsel %vm1233, %v7030, 0
  %7084 = vmatprep.subr.mxu0 0.0
  %7085 = vmatpush1.msra.mxu0 %v7032
  %7086 = vmatprep.subr.mxu0 0.0
  %7087 = vmatpush1.msra.mxu0 %v7033
  %7088 = vmatprep.subr.mxu0 0.0
  %7089 = vmatpush1.msra.mxu0 %v7034
  %7090 = vmatprep.subr.mxu0 0.0
  %7091 = vmatpush1.msra.mxu0 %v7035
  %7092 = vmatprep.subr.mxu0 0.0
  %7093 = vmatpush1.msra.mxu0 0.0
  %7094 = vmatprep.subr.mxu0 0.0
  %7095 = vmatpush1.msra.mxu0 0.0
  %7096 = vmatprep.subr.mxu0 0.0
  %7097 = vmatpush1.msra.mxu0 0.0
  %7098 = vmatprep.subr.mxu0 0.0
  %7099 = vmatpush1.msra.mxu0 0.0
  %7100 = vmatprep.subr.mxu0 0.0
  %7101 = vmatpush1.msra.mxu0 0.0
  %7102 = vmatprep.subr.mxu0 0.0
  %7103 = vmatpush1.msra.mxu0 0.0
  %7104 = vmatprep.subr.mxu0 0.0
  %7105 = vmatpush1.msra.mxu0 0.0
  %7106 = vmatprep.subr.mxu0 0.0
  %7107 = vmatpush1.msra.mxu0 0.0
  %7108 = vmatprep.subr.mxu0 0.0
  %7109 = vmatpush1.msra.mxu0 0.0
  %7110 = vmatprep.subr.mxu0 0.0
  %7111 = vmatpush1.msra.mxu0 0.0
  %7112 = vmatprep.subr.mxu0 0.0
  %7113 = vmatpush1.msra.mxu0 0.0
  %7114 = vmatprep.subr.mxu0 0.0
  %7115 = vmatpush1.msra.mxu0 0.0
  %7116 = vmatprep.subr.mxu0 0.0
  %7117 = vmatpush1.msra.mxu0 0.0
  %7118 = vmatprep.subr.mxu0 0.0
  %7119 = vmatpush1.msra.mxu0 0.0
  %7120 = vmatprep.subr.mxu0 0.0
  %7121 = vmatpush1.msra.mxu0 0.0
  %7122 = vmatprep.subr.mxu0 0.0
  %7123 = vmatpush1.msra.mxu0 0.0
  %7124 = vmatprep.subr.mxu0 0.0
  %7125 = vmatpush1.msra.mxu0 0.0
  %7126 = vmatprep.subr.mxu0 0.0
  %7127 = vmatpush1.msra.mxu0 0.0
  %7128 = vmatprep.subr.mxu0 0.0
  %7129 = vmatpush1.msra.mxu0 0.0
  %7130 = vmatprep.subr.mxu0 0.0
  %7131 = vmatpush1.msra.mxu0 0.0
  %7132 = vmatprep.subr.mxu0 0.0
  %7133 = vmatpush1.msra.mxu0 0.0
  %7134 = vmatprep.subr.mxu0 0.0
  %7135 = vmatpush1.msra.mxu0 0.0
  %7136 = vmatprep.subr.mxu0 0.0
  %7137 = vmatpush1.msra.mxu0 0.0
  %7138 = vmatprep.subr.mxu0 0.0
  %7139 = vmatpush1.msra.mxu0 0.0
  %7140 = vmatprep.subr.mxu0 0.0
  %7141 = vmatpush1.msra.mxu0 0.0
  %7142 = vmatprep.subr.mxu0 0.0
  %7143 = vmatpush1.msra.mxu0 0.0
  %7144 = vmatprep.subr.mxu0 0.0
  %7145 = vmatpush1.msra.mxu0 0.0
  %7146 = vmatprep.subr.mxu0 0.0
  %7147 = vmatpush1.msra.mxu0 0.0
  %7148 = vmatprep.mubr.f32.mxu0 0.0
  %7149 = vmatmul.mubr.f32.gmra.mrb[0].mxu0 %v7037
  %v7150 = vpop.f32.mrb[0].mxu0
  %v7151 = vadd.f32 0.0, %v7150
  %v7152 = vpop.f32.mrb[0].mxu0
  %7153 = vmatprep.mubr.f32.mxu0 0.0
  %7154 = vmatmul.mubr.f32.gmra.mrb[0].mxu0 %v7040
  %v7155 = vpop.f32.mrb[0].mxu0
  %v7156 = vadd.f32 0.0, %v7155
  %v7157 = vpop.f32.mrb[0].mxu0
  %7158 = vmatprep.mubr.f32.mxu0 0.0
  %7159 = vmatmul.mubr.f32.gmra.mrb[0].mxu0 %v7043
  %v7160 = vpop.f32.mrb[0].mxu0
  %v7161 = vadd.f32 0.0, %v7160
  %v7162 = vpop.f32.mrb[0].mxu0
  %7163 = vmatprep.mubr.f32.mxu0 0.0
  %7164 = vmatmul.mubr.f32.gmra.mrb[0].mxu0 %v7046
  %v7165 = vpop.f32.mrb[0].mxu0
  %v7166 = vadd.f32 0.0, %v7165
  %v7167 = vpop.f32.mrb[0].mxu0
  %7168 = vmatprep.mubr.f32.mxu0 0.0
  %7169 = vmatmul.mubr.f32.gmra.mrb[0].mxu0 %v7049
  %v7170 = vpop.f32.mrb[0].mxu0
  %v7171 = vadd.f32 0.0, %v7170
  %v7172 = vpop.f32.mrb[0].mxu0
  %7173 = vmatprep.mubr.f32.mxu0 0.0
  %7174 = vmatmul.mubr.f32.gmra.mrb[0].mxu0 %v7052
  %v7175 = vpop.f32.mrb[0].mxu0
  %v7176 = vadd.f32 0.0, %v7175
  %v7177 = vpop.f32.mrb[0].mxu0
  %7178 = vmatprep.mubr.f32.mxu0 0.0
  %7179 = vmatmul.mubr.f32.gmra.mrb[0].mxu0 %v7055
  %v7180 = vpop.f32.mrb[0].mxu0
  %v7181 = vadd.f32 0.0, %v7180
  %v7182 = vpop.f32.mrb[0].mxu0
  %7183 = vmatprep.mubr.f32.mxu0 0.0
  %7184 = vmatmul.mubr.f32.gmra.mrb[0].mxu0 %v7058
  %v7185 = vpop.f32.mrb[0].mxu0
  %v7186 = vadd.f32 0.0, %v7185
  %v7187 = vpop.f32.mrb[0].mxu0
  %7188 = vmatprep.mubr.f32.mxu0 0.0
  %7189 = vmatmul.mubr.f32.gmra.mrb[0].mxu0 %v7061
  %v7190 = vpop.f32.mrb[0].mxu0
  %v7191 = vadd.f32 0.0, %v7190
  %v7192 = vpop.f32.mrb[0].mxu0
  %7193 = vmatprep.mubr.f32.mxu0 0.0
  %7194 = vmatmul.mubr.f32.gmra.mrb[0].mxu0 %v7064
  %v7195 = vpop.f32.mrb[0].mxu0
  %v7196 = vadd.f32 0.0, %v7195
  %v7197 = vpop.f32.mrb[0].mxu0
  %7198 = vmatprep.mubr.f32.mxu0 0.0
  %7199 = vmatmul.mubr.f32.gmra.mrb[0].mxu0 %v7067
  %v7200 = vpop.f32.mrb[0].mxu0
  %v7201 = vadd.f32 0.0, %v7200
  %v7202 = vpop.f32.mrb[0].mxu0
  %7203 = vmatprep.mubr.f32.mxu0 0.0
  %7204 = vmatmul.mubr.f32.gmra.mrb[0].mxu0 %v7070
  %v7205 = vpop.f32.mrb[0].mxu0
  %v7206 = vadd.f32 0.0, %v7205
  %v7207 = vpop.f32.mrb[0].mxu0
  %7208 = vmatprep.mubr.f32.mxu0 0.0
  %7209 = vmatmul.mubr.f32.gmra.mrb[0].mxu0 %v7073
  %v7210 = vpop.f32.mrb[0].mxu0
  %v7211 = vadd.f32 0.0, %v7210
  %v7212 = vpop.f32.mrb[0].mxu0
  %7213 = vmatprep.mubr.f32.mxu0 0.0
  %7214 = vmatmul.mubr.f32.gmra.mrb[0].mxu0 %v7076
  %v7215 = vpop.f32.mrb[0].mxu0
  %v7216 = vadd.f32 0.0, %v7215
  %v7217 = vpop.f32.mrb[0].mxu0
  %7218 = vmatprep.mubr.f32.mxu0 0.0
  %7219 = vmatmul.mubr.f32.gmra.mrb[0].mxu0 %v7079
  %v7220 = vpop.f32.mrb[0].mxu0
  %v7221 = vadd.f32 0.0, %v7220
  %v7222 = vpop.f32.mrb[0].mxu0
  %7223 = vmatprep.mubr.f32.mxu0 0.0
  %7224 = vmatmul.mubr.f32.gmra.mrb[0].mxu0 %v7082
  %v7225 = vpop.f32.mrb[0].mxu0
  %v7226 = vadd.f32 0.0, %v7225
  %v7227 = vpop.f32.mrb[0].mxu0
  %7228 = vdwg.mxu0
  %v7229 = vadd.f32 %v6902, %v7151
  %v7230 = vadd.f32 %v6903, %v7156
  %v7231 = vadd.f32 %v6904, %v7161
  %v7232 = vadd.f32 %v6905, %v7166
  %v7233 = vadd.f32 %v6906, %v7171
  %v7234 = vadd.f32 %v6907, %v7176
  %v7235 = vadd.f32 %v6908, %v7181
  %v7236 = vadd.f32 %v6909, %v7186
  %v7237 = vadd.f32 %v6910, %v7191
  %v7238 = vadd.f32 %v6911, %v7196
  %v7239 = vadd.f32 %v6912, %v7201
  %v7240 = vadd.f32 %v6913, %v7206
  %v7241 = vadd.f32 %v6914, %v7211
  %v7242 = vadd.f32 %v6915, %v7216
  %v7243 = vadd.f32 %v6916, %v7221
  %v7244 = vadd.f32 %v6917, %v7226
  %s7245 = scalar_lea.vmem %s6, 2432
  %v7246 = vld [vmem:[%s7245] sm:$0xff]
  %v7247 = vld [vmem:[%s7245 + $0x8] sm:$0xff]
  %v7248 = vld [vmem:[%s7245 + $0x10] sm:$0xff]
  %v7249 = vld [vmem:[%s7245 + $0x18] sm:$0xff]
  %v7250 = vld [vmem:[%s7245 + $0x20] sm:$0xff]
  %v7251 = vld [vmem:[%s7245 + $0x28] sm:$0xff]
  %v7252 = vld [vmem:[%s7245 + $0x30] sm:$0xff]
  %v7253 = vld [vmem:[%s7245 + $0x38] sm:$0xff]
  %v7254 = vld [vmem:[%s7245 + $0x40] sm:$0xff]
  %v7255 = vld [vmem:[%s7245 + $0x48] sm:$0xff]
  %v7256 = vld [vmem:[%s7245 + $0x50] sm:$0xff]
  %v7257 = vld [vmem:[%s7245 + $0x58] sm:$0xff]
  %v7258 = vld [vmem:[%s7245 + $0x60] sm:$0xff]
  %v7259 = vld [vmem:[%s7245 + $0x68] sm:$0xff]
  %v7260 = vld [vmem:[%s7245 + $0x70] sm:$0xff]
  %v7261 = vld [vmem:[%s7245 + $0x78] sm:$0xff]
  %7263 = vset.pattern.permute.xlu0 0
  %7264 = vperm.xlu0 %7263, %v7246
  %v7265 = vpop.permute.xlu0 %7264
  %7268 = vset.pattern.permute.xlu0 0
  %7269 = vperm.xlu0 %7268, %v7247
  %v7270 = vpop.permute.xlu0 %7269
  %7273 = vset.pattern.permute.xlu0 0
  %7274 = vperm.xlu0 %7273, %v7248
  %v7275 = vpop.permute.xlu0 %7274
  %7278 = vset.pattern.permute.xlu0 0
  %7279 = vperm.xlu0 %7278, %v7249
  %v7280 = vpop.permute.xlu0 %7279
  %7283 = vset.pattern.permute.xlu0 0
  %7284 = vperm.xlu0 %7283, %v7250
  %v7285 = vpop.permute.xlu0 %7284
  %7288 = vset.pattern.permute.xlu0 0
  %7289 = vperm.xlu0 %7288, %v7251
  %v7290 = vpop.permute.xlu0 %7289
  %7293 = vset.pattern.permute.xlu0 0
  %7294 = vperm.xlu0 %7293, %v7252
  %v7295 = vpop.permute.xlu0 %7294
  %7298 = vset.pattern.permute.xlu0 0
  %7299 = vperm.xlu0 %7298, %v7253
  %v7300 = vpop.permute.xlu0 %7299
  %7303 = vset.pattern.permute.xlu0 0
  %7304 = vperm.xlu0 %7303, %v7254
  %v7305 = vpop.permute.xlu0 %7304
  %7308 = vset.pattern.permute.xlu0 0
  %7309 = vperm.xlu0 %7308, %v7255
  %v7310 = vpop.permute.xlu0 %7309
  %7313 = vset.pattern.permute.xlu0 0
  %7314 = vperm.xlu0 %7313, %v7256
  %v7315 = vpop.permute.xlu0 %7314
  %7318 = vset.pattern.permute.xlu0 0
  %7319 = vperm.xlu0 %7318, %v7257
  %v7320 = vpop.permute.xlu0 %7319
  %7323 = vset.pattern.permute.xlu0 0
  %7324 = vperm.xlu0 %7323, %v7258
  %v7325 = vpop.permute.xlu0 %7324
  %7328 = vset.pattern.permute.xlu0 0
  %7329 = vperm.xlu0 %7328, %v7259
  %v7330 = vpop.permute.xlu0 %7329
  %7333 = vset.pattern.permute.xlu0 0
  %7334 = vperm.xlu0 %7333, %v7260
  %v7335 = vpop.permute.xlu0 %7334
  %7338 = vset.pattern.permute.xlu0 0
  %7339 = vperm.xlu0 %7338, %v7261
  %v7340 = vpop.permute.xlu0 %7339
  %v7342 = vmul.f32 %v2337, %v7265
  %v7343 = vmul.f32 %v2336, %v7270
  %v7344 = vmul.f32 %v2335, %v7275
  %v7345 = vmul.f32 %v2334, %v7280
  %v7346 = vmul.f32 %v2333, %v7285
  %v7347 = vmul.f32 %v2332, %v7290
  %v7348 = vmul.f32 %v2331, %v7295
  %v7349 = vmul.f32 %v2330, %v7300
  %v7350 = vmul.f32 %v2329, %v7305
  %v7351 = vmul.f32 %v2328, %v7310
  %v7352 = vmul.f32 %v2327, %v7315
  %v7353 = vmul.f32 %v2326, %v7320
  %v7354 = vmul.f32 %v2325, %v7325
  %v7355 = vmul.f32 %v2324, %v7330
  %v7356 = vmul.f32 %v2339, %v7335
  %v7357 = vmul.f32 %v2338, %v7340
  %s7358 = scalar_lea.vmem %s4, 608
  %v7359 = vld [vmem:[%s7358] sm:$0xff]
  %v7360 = vld [vmem:[%s7358 + $0x8] sm:$0xff]
  %v7361 = vld [vmem:[%s7358 + $0x10] sm:$0xff]
  %v7362 = vld [vmem:[%s7358 + $0x18] sm:$0xff]
  %v7364 = vsel %vm1233, %v7342, 0
  %v7367 = vsel %vm1233, %v7343, 0
  %v7370 = vsel %vm1233, %v7344, 0
  %v7373 = vsel %vm1233, %v7345, 0
  %v7376 = vsel %vm1233, %v7346, 0
  %v7379 = vsel %vm1233, %v7347, 0
  %v7382 = vsel %vm1233, %v7348, 0
  %v7385 = vsel %vm1233, %v7349, 0
  %v7388 = vsel %vm1233, %v7350, 0
  %v7391 = vsel %vm1233, %v7351, 0
  %v7394 = vsel %vm1233, %v7352, 0
  %v7397 = vsel %vm1233, %v7353, 0
  %v7400 = vsel %vm1233, %v7354, 0
  %v7403 = vsel %vm1233, %v7355, 0
  %v7406 = vsel %vm1233, %v7356, 0
  %v7409 = vsel %vm1233, %v7357, 0
  %7411 = vmatprep.subr.mxu0 0.0
  %7412 = vmatpush1.msra.mxu0 %v7359
  %7413 = vmatprep.subr.mxu0 0.0
  %7414 = vmatpush1.msra.mxu0 %v7360
  %7415 = vmatprep.subr.mxu0 0.0
  %7416 = vmatpush1.msra.mxu0 %v7361
  %7417 = vmatprep.subr.mxu0 0.0
  %7418 = vmatpush1.msra.mxu0 %v7362
  %7419 = vmatprep.subr.mxu0 0.0
  %7420 = vmatpush1.msra.mxu0 0.0
  %7421 = vmatprep.subr.mxu0 0.0
  %7422 = vmatpush1.msra.mxu0 0.0
  %7423 = vmatprep.subr.mxu0 0.0
  %7424 = vmatpush1.msra.mxu0 0.0
  %7425 = vmatprep.subr.mxu0 0.0
  %7426 = vmatpush1.msra.mxu0 0.0
  %7427 = vmatprep.subr.mxu0 0.0
  %7428 = vmatpush1.msra.mxu0 0.0
  %7429 = vmatprep.subr.mxu0 0.0
  %7430 = vmatpush1.msra.mxu0 0.0
  %7431 = vmatprep.subr.mxu0 0.0
  %7432 = vmatpush1.msra.mxu0 0.0
  %7433 = vmatprep.subr.mxu0 0.0
  %7434 = vmatpush1.msra.mxu0 0.0
  %7435 = vmatprep.subr.mxu0 0.0
  %7436 = vmatpush1.msra.mxu0 0.0
  %7437 = vmatprep.subr.mxu0 0.0
  %7438 = vmatpush1.msra.mxu0 0.0
  %7439 = vmatprep.subr.mxu0 0.0
  %7440 = vmatpush1.msra.mxu0 0.0
  %7441 = vmatprep.subr.mxu0 0.0
  %7442 = vmatpush1.msra.mxu0 0.0
  %7443 = vmatprep.subr.mxu0 0.0
  %7444 = vmatpush1.msra.mxu0 0.0
  %7445 = vmatprep.subr.mxu0 0.0
  %7446 = vmatpush1.msra.mxu0 0.0
  %7447 = vmatprep.subr.mxu0 0.0
  %7448 = vmatpush1.msra.mxu0 0.0
  %7449 = vmatprep.subr.mxu0 0.0
  %7450 = vmatpush1.msra.mxu0 0.0
  %7451 = vmatprep.subr.mxu0 0.0
  %7452 = vmatpush1.msra.mxu0 0.0
  %7453 = vmatprep.subr.mxu0 0.0
  %7454 = vmatpush1.msra.mxu0 0.0
  %7455 = vmatprep.subr.mxu0 0.0
  %7456 = vmatpush1.msra.mxu0 0.0
  %7457 = vmatprep.subr.mxu0 0.0
  %7458 = vmatpush1.msra.mxu0 0.0
  %7459 = vmatprep.subr.mxu0 0.0
  %7460 = vmatpush1.msra.mxu0 0.0
  %7461 = vmatprep.subr.mxu0 0.0
  %7462 = vmatpush1.msra.mxu0 0.0
  %7463 = vmatprep.subr.mxu0 0.0
  %7464 = vmatpush1.msra.mxu0 0.0
  %7465 = vmatprep.subr.mxu0 0.0
  %7466 = vmatpush1.msra.mxu0 0.0
  %7467 = vmatprep.subr.mxu0 0.0
  %7468 = vmatpush1.msra.mxu0 0.0
  %7469 = vmatprep.subr.mxu0 0.0
  %7470 = vmatpush1.msra.mxu0 0.0
  %7471 = vmatprep.subr.mxu0 0.0
  %7472 = vmatpush1.msra.mxu0 0.0
  %7473 = vmatprep.subr.mxu0 0.0
  %7474 = vmatpush1.msra.mxu0 0.0
  %7475 = vmatprep.mubr.f32.mxu0 0.0
  %7476 = vmatmul.mubr.f32.gmra.mrb[0].mxu0 %v7364
  %v7477 = vpop.f32.mrb[0].mxu0
  %v7478 = vadd.f32 0.0, %v7477
  %v7479 = vpop.f32.mrb[0].mxu0
  %7480 = vmatprep.mubr.f32.mxu0 0.0
  %7481 = vmatmul.mubr.f32.gmra.mrb[0].mxu0 %v7367
  %v7482 = vpop.f32.mrb[0].mxu0
  %v7483 = vadd.f32 0.0, %v7482
  %v7484 = vpop.f32.mrb[0].mxu0
  %7485 = vmatprep.mubr.f32.mxu0 0.0
  %7486 = vmatmul.mubr.f32.gmra.mrb[0].mxu0 %v7370
  %v7487 = vpop.f32.mrb[0].mxu0
  %v7488 = vadd.f32 0.0, %v7487
  %v7489 = vpop.f32.mrb[0].mxu0
  %7490 = vmatprep.mubr.f32.mxu0 0.0
  %7491 = vmatmul.mubr.f32.gmra.mrb[0].mxu0 %v7373
  %v7492 = vpop.f32.mrb[0].mxu0
  %v7493 = vadd.f32 0.0, %v7492
  %v7494 = vpop.f32.mrb[0].mxu0
  %7495 = vmatprep.mubr.f32.mxu0 0.0
  %7496 = vmatmul.mubr.f32.gmra.mrb[0].mxu0 %v7376
  %v7497 = vpop.f32.mrb[0].mxu0
  %v7498 = vadd.f32 0.0, %v7497
  %v7499 = vpop.f32.mrb[0].mxu0
  %7500 = vmatprep.mubr.f32.mxu0 0.0
  %7501 = vmatmul.mubr.f32.gmra.mrb[0].mxu0 %v7379
  %v7502 = vpop.f32.mrb[0].mxu0
  %v7503 = vadd.f32 0.0, %v7502
  %v7504 = vpop.f32.mrb[0].mxu0
  %7505 = vmatprep.mubr.f32.mxu0 0.0
  %7506 = vmatmul.mubr.f32.gmra.mrb[0].mxu0 %v7382
  %v7507 = vpop.f32.mrb[0].mxu0
  %v7508 = vadd.f32 0.0, %v7507
  %v7509 = vpop.f32.mrb[0].mxu0
  %7510 = vmatprep.mubr.f32.mxu0 0.0
  %7511 = vmatmul.mubr.f32.gmra.mrb[0].mxu0 %v7385
  %v7512 = vpop.f32.mrb[0].mxu0
  %v7513 = vadd.f32 0.0, %v7512
  %v7514 = vpop.f32.mrb[0].mxu0
  %7515 = vmatprep.mubr.f32.mxu0 0.0
  %7516 = vmatmul.mubr.f32.gmra.mrb[0].mxu0 %v7388
  %v7517 = vpop.f32.mrb[0].mxu0
  %v7518 = vadd.f32 0.0, %v7517
  %v7519 = vpop.f32.mrb[0].mxu0
  %7520 = vmatprep.mubr.f32.mxu0 0.0
  %7521 = vmatmul.mubr.f32.gmra.mrb[0].mxu0 %v7391
  %v7522 = vpop.f32.mrb[0].mxu0
  %v7523 = vadd.f32 0.0, %v7522
  %v7524 = vpop.f32.mrb[0].mxu0
  %7525 = vmatprep.mubr.f32.mxu0 0.0
  %7526 = vmatmul.mubr.f32.gmra.mrb[0].mxu0 %v7394
  %v7527 = vpop.f32.mrb[0].mxu0
  %v7528 = vadd.f32 0.0, %v7527
  %v7529 = vpop.f32.mrb[0].mxu0
  %7530 = vmatprep.mubr.f32.mxu0 0.0
  %7531 = vmatmul.mubr.f32.gmra.mrb[0].mxu0 %v7397
  %v7532 = vpop.f32.mrb[0].mxu0
  %v7533 = vadd.f32 0.0, %v7532
  %v7534 = vpop.f32.mrb[0].mxu0
  %7535 = vmatprep.mubr.f32.mxu0 0.0
  %7536 = vmatmul.mubr.f32.gmra.mrb[0].mxu0 %v7400
  %v7537 = vpop.f32.mrb[0].mxu0
  %v7538 = vadd.f32 0.0, %v7537
  %v7539 = vpop.f32.mrb[0].mxu0
  %7540 = vmatprep.mubr.f32.mxu0 0.0
  %7541 = vmatmul.mubr.f32.gmra.mrb[0].mxu0 %v7403
  %v7542 = vpop.f32.mrb[0].mxu0
  %v7543 = vadd.f32 0.0, %v7542
  %v7544 = vpop.f32.mrb[0].mxu0
  %7545 = vmatprep.mubr.f32.mxu0 0.0
  %7546 = vmatmul.mubr.f32.gmra.mrb[0].mxu0 %v7406
  %v7547 = vpop.f32.mrb[0].mxu0
  %v7548 = vadd.f32 0.0, %v7547
  %v7549 = vpop.f32.mrb[0].mxu0
  %7550 = vmatprep.mubr.f32.mxu0 0.0
  %7551 = vmatmul.mubr.f32.gmra.mrb[0].mxu0 %v7409
  %v7552 = vpop.f32.mrb[0].mxu0
  %v7553 = vadd.f32 0.0, %v7552
  %v7554 = vpop.f32.mrb[0].mxu0
  %7555 = vdwg.mxu0
  %v7556 = vadd.f32 %v7229, %v7478
  %v7557 = vadd.f32 %v7230, %v7483
  %v7558 = vadd.f32 %v7231, %v7488
  %v7559 = vadd.f32 %v7232, %v7493
  %v7560 = vadd.f32 %v7233, %v7498
  %v7561 = vadd.f32 %v7234, %v7503
  %v7562 = vadd.f32 %v7235, %v7508
  %v7563 = vadd.f32 %v7236, %v7513
  %v7564 = vadd.f32 %v7237, %v7518
  %v7565 = vadd.f32 %v7238, %v7523
  %v7566 = vadd.f32 %v7239, %v7528
  %v7567 = vadd.f32 %v7240, %v7533
  %v7568 = vadd.f32 %v7241, %v7538
  %v7569 = vadd.f32 %v7242, %v7543
  %v7570 = vadd.f32 %v7243, %v7548
  %v7571 = vadd.f32 %v7244, %v7553
  %s7572 = scalar_lea.vmem %s6, 2560
  %v7573 = vld [vmem:[%s7572] sm:$0xff]
  %v7574 = vld [vmem:[%s7572 + $0x8] sm:$0xff]
  %v7575 = vld [vmem:[%s7572 + $0x10] sm:$0xff]
  %v7576 = vld [vmem:[%s7572 + $0x18] sm:$0xff]
  %v7577 = vld [vmem:[%s7572 + $0x20] sm:$0xff]
  %v7578 = vld [vmem:[%s7572 + $0x28] sm:$0xff]
  %v7579 = vld [vmem:[%s7572 + $0x30] sm:$0xff]
  %v7580 = vld [vmem:[%s7572 + $0x38] sm:$0xff]
  %v7581 = vld [vmem:[%s7572 + $0x40] sm:$0xff]
  %v7582 = vld [vmem:[%s7572 + $0x48] sm:$0xff]
  %v7583 = vld [vmem:[%s7572 + $0x50] sm:$0xff]
  %v7584 = vld [vmem:[%s7572 + $0x58] sm:$0xff]
  %v7585 = vld [vmem:[%s7572 + $0x60] sm:$0xff]
  %v7586 = vld [vmem:[%s7572 + $0x68] sm:$0xff]
  %v7587 = vld [vmem:[%s7572 + $0x70] sm:$0xff]
  %v7588 = vld [vmem:[%s7572 + $0x78] sm:$0xff]
  %7590 = vset.pattern.permute.xlu0 0
  %7591 = vperm.xlu0 %7590, %v7573
  %v7592 = vpop.permute.xlu0 %7591
  %7595 = vset.pattern.permute.xlu0 0
  %7596 = vperm.xlu0 %7595, %v7574
  %v7597 = vpop.permute.xlu0 %7596
  %7600 = vset.pattern.permute.xlu0 0
  %7601 = vperm.xlu0 %7600, %v7575
  %v7602 = vpop.permute.xlu0 %7601
  %7605 = vset.pattern.permute.xlu0 0
  %7606 = vperm.xlu0 %7605, %v7576
  %v7607 = vpop.permute.xlu0 %7606
  %7610 = vset.pattern.permute.xlu0 0
  %7611 = vperm.xlu0 %7610, %v7577
  %v7612 = vpop.permute.xlu0 %7611
  %7615 = vset.pattern.permute.xlu0 0
  %7616 = vperm.xlu0 %7615, %v7578
  %v7617 = vpop.permute.xlu0 %7616
  %7620 = vset.pattern.permute.xlu0 0
  %7621 = vperm.xlu0 %7620, %v7579
  %v7622 = vpop.permute.xlu0 %7621
  %7625 = vset.pattern.permute.xlu0 0
  %7626 = vperm.xlu0 %7625, %v7580
  %v7627 = vpop.permute.xlu0 %7626
  %7630 = vset.pattern.permute.xlu0 0
  %7631 = vperm.xlu0 %7630, %v7581
  %v7632 = vpop.permute.xlu0 %7631
  %7635 = vset.pattern.permute.xlu0 0
  %7636 = vperm.xlu0 %7635, %v7582
  %v7637 = vpop.permute.xlu0 %7636
  %7640 = vset.pattern.permute.xlu0 0
  %7641 = vperm.xlu0 %7640, %v7583
  %v7642 = vpop.permute.xlu0 %7641
  %7645 = vset.pattern.permute.xlu0 0
  %7646 = vperm.xlu0 %7645, %v7584
  %v7647 = vpop.permute.xlu0 %7646
  %7650 = vset.pattern.permute.xlu0 0
  %7651 = vperm.xlu0 %7650, %v7585
  %v7652 = vpop.permute.xlu0 %7651
  %7655 = vset.pattern.permute.xlu0 0
  %7656 = vperm.xlu0 %7655, %v7586
  %v7657 = vpop.permute.xlu0 %7656
  %7660 = vset.pattern.permute.xlu0 0
  %7661 = vperm.xlu0 %7660, %v7587
  %v7662 = vpop.permute.xlu0 %7661
  %7665 = vset.pattern.permute.xlu0 0
  %7666 = vperm.xlu0 %7665, %v7588
  %v7667 = vpop.permute.xlu0 %7666
  %v7669 = vmul.f32 %v963, %v7592
  %v7670 = vmul.f32 %v962, %v7597
  %v7671 = vmul.f32 %v961, %v7602
  %v7672 = vmul.f32 %v960, %v7607
  %v7673 = vmul.f32 %v959, %v7612
  %v7674 = vmul.f32 %v958, %v7617
  %v7675 = vmul.f32 %v957, %v7622
  %v7676 = vmul.f32 %v956, %v7627
  %v7677 = vmul.f32 %v955, %v7632
  %v7678 = vmul.f32 %v954, %v7637
  %v7679 = vmul.f32 %v953, %v7642
  %v7680 = vmul.f32 %v952, %v7647
  %v7681 = vmul.f32 %v951, %v7652
  %v7682 = vmul.f32 %v950, %v7657
  %v7683 = vmul.f32 %v965, %v7662
  %v7684 = vmul.f32 %v964, %v7667
  %s7685 = scalar_lea.vmem %s4, 640
  %v7686 = vld [vmem:[%s7685] sm:$0xff]
  %v7687 = vld [vmem:[%s7685 + $0x8] sm:$0xff]
  %v7688 = vld [vmem:[%s7685 + $0x10] sm:$0xff]
  %v7689 = vld [vmem:[%s7685 + $0x18] sm:$0xff]
  %v7691 = vsel %vm1233, %v7669, 0
  %v7694 = vsel %vm1233, %v7670, 0
  %v7697 = vsel %vm1233, %v7671, 0
  %v7700 = vsel %vm1233, %v7672, 0
  %v7703 = vsel %vm1233, %v7673, 0
  %v7706 = vsel %vm1233, %v7674, 0
  %v7709 = vsel %vm1233, %v7675, 0
  %v7712 = vsel %vm1233, %v7676, 0
  %v7715 = vsel %vm1233, %v7677, 0
  %v7718 = vsel %vm1233, %v7678, 0
  %v7721 = vsel %vm1233, %v7679, 0
  %v7724 = vsel %vm1233, %v7680, 0
  %v7727 = vsel %vm1233, %v7681, 0
  %v7730 = vsel %vm1233, %v7682, 0
  %v7733 = vsel %vm1233, %v7683, 0
  %v7736 = vsel %vm1233, %v7684, 0
  %7738 = vmatprep.subr.mxu0 0.0
  %7739 = vmatpush1.msra.mxu0 %v7686
  %7740 = vmatprep.subr.mxu0 0.0
  %7741 = vmatpush1.msra.mxu0 %v7687
  %7742 = vmatprep.subr.mxu0 0.0
  %7743 = vmatpush1.msra.mxu0 %v7688
  %7744 = vmatprep.subr.mxu0 0.0
  %7745 = vmatpush1.msra.mxu0 %v7689
  %7746 = vmatprep.subr.mxu0 0.0
  %7747 = vmatpush1.msra.mxu0 0.0
  %7748 = vmatprep.subr.mxu0 0.0
  %7749 = vmatpush1.msra.mxu0 0.0
  %7750 = vmatprep.subr.mxu0 0.0
  %7751 = vmatpush1.msra.mxu0 0.0
  %7752 = vmatprep.subr.mxu0 0.0
  %7753 = vmatpush1.msra.mxu0 0.0
  %7754 = vmatprep.subr.mxu0 0.0
  %7755 = vmatpush1.msra.mxu0 0.0
  %7756 = vmatprep.subr.mxu0 0.0
  %7757 = vmatpush1.msra.mxu0 0.0
  %7758 = vmatprep.subr.mxu0 0.0
  %7759 = vmatpush1.msra.mxu0 0.0
  %7760 = vmatprep.subr.mxu0 0.0
  %7761 = vmatpush1.msra.mxu0 0.0
  %7762 = vmatprep.subr.mxu0 0.0
  %7763 = vmatpush1.msra.mxu0 0.0
  %7764 = vmatprep.subr.mxu0 0.0
  %7765 = vmatpush1.msra.mxu0 0.0
  %7766 = vmatprep.subr.mxu0 0.0
  %7767 = vmatpush1.msra.mxu0 0.0
  %7768 = vmatprep.subr.mxu0 0.0
  %7769 = vmatpush1.msra.mxu0 0.0
  %7770 = vmatprep.subr.mxu0 0.0
  %7771 = vmatpush1.msra.mxu0 0.0
  %7772 = vmatprep.subr.mxu0 0.0
  %7773 = vmatpush1.msra.mxu0 0.0
  %7774 = vmatprep.subr.mxu0 0.0
  %7775 = vmatpush1.msra.mxu0 0.0
  %7776 = vmatprep.subr.mxu0 0.0
  %7777 = vmatpush1.msra.mxu0 0.0
  %7778 = vmatprep.subr.mxu0 0.0
  %7779 = vmatpush1.msra.mxu0 0.0
  %7780 = vmatprep.subr.mxu0 0.0
  %7781 = vmatpush1.msra.mxu0 0.0
  %7782 = vmatprep.subr.mxu0 0.0
  %7783 = vmatpush1.msra.mxu0 0.0
  %7784 = vmatprep.subr.mxu0 0.0
  %7785 = vmatpush1.msra.mxu0 0.0
  %7786 = vmatprep.subr.mxu0 0.0
  %7787 = vmatpush1.msra.mxu0 0.0
  %7788 = vmatprep.subr.mxu0 0.0
  %7789 = vmatpush1.msra.mxu0 0.0
  %7790 = vmatprep.subr.mxu0 0.0
  %7791 = vmatpush1.msra.mxu0 0.0
  %7792 = vmatprep.subr.mxu0 0.0
  %7793 = vmatpush1.msra.mxu0 0.0
  %7794 = vmatprep.subr.mxu0 0.0
  %7795 = vmatpush1.msra.mxu0 0.0
  %7796 = vmatprep.subr.mxu0 0.0
  %7797 = vmatpush1.msra.mxu0 0.0
  %7798 = vmatprep.subr.mxu0 0.0
  %7799 = vmatpush1.msra.mxu0 0.0
  %7800 = vmatprep.subr.mxu0 0.0
  %7801 = vmatpush1.msra.mxu0 0.0
  %7802 = vmatprep.mubr.f32.mxu0 0.0
  %7803 = vmatmul.mubr.f32.gmra.mrb[0].mxu0 %v7691
  %v7804 = vpop.f32.mrb[0].mxu0
  %v7805 = vadd.f32 0.0, %v7804
  %v7806 = vpop.f32.mrb[0].mxu0
  %7807 = vmatprep.mubr.f32.mxu0 0.0
  %7808 = vmatmul.mubr.f32.gmra.mrb[0].mxu0 %v7694
  %v7809 = vpop.f32.mrb[0].mxu0
  %v7810 = vadd.f32 0.0, %v7809
  %v7811 = vpop.f32.mrb[0].mxu0
  %7812 = vmatprep.mubr.f32.mxu0 0.0
  %7813 = vmatmul.mubr.f32.gmra.mrb[0].mxu0 %v7697
  %v7814 = vpop.f32.mrb[0].mxu0
  %v7815 = vadd.f32 0.0, %v7814
  %v7816 = vpop.f32.mrb[0].mxu0
  %7817 = vmatprep.mubr.f32.mxu0 0.0
  %7818 = vmatmul.mubr.f32.gmra.mrb[0].mxu0 %v7700
  %v7819 = vpop.f32.mrb[0].mxu0
  %v7820 = vadd.f32 0.0, %v7819
  %v7821 = vpop.f32.mrb[0].mxu0
  %7822 = vmatprep.mubr.f32.mxu0 0.0
  %7823 = vmatmul.mubr.f32.gmra.mrb[0].mxu0 %v7703
  %v7824 = vpop.f32.mrb[0].mxu0
  %v7825 = vadd.f32 0.0, %v7824
  %v7826 = vpop.f32.mrb[0].mxu0
  %7827 = vmatprep.mubr.f32.mxu0 0.0
  %7828 = vmatmul.mubr.f32.gmra.mrb[0].mxu0 %v7706
  %v7829 = vpop.f32.mrb[0].mxu0
  %v7830 = vadd.f32 0.0, %v7829
  %v7831 = vpop.f32.mrb[0].mxu0
  %7832 = vmatprep.mubr.f32.mxu0 0.0
  %7833 = vmatmul.mubr.f32.gmra.mrb[0].mxu0 %v7709
  %v7834 = vpop.f32.mrb[0].mxu0
  %v7835 = vadd.f32 0.0, %v7834
  %v7836 = vpop.f32.mrb[0].mxu0
  %7837 = vmatprep.mubr.f32.mxu0 0.0
  %7838 = vmatmul.mubr.f32.gmra.mrb[0].mxu0 %v7712
  %v7839 = vpop.f32.mrb[0].mxu0
  %v7840 = vadd.f32 0.0, %v7839
  %v7841 = vpop.f32.mrb[0].mxu0
  %7842 = vmatprep.mubr.f32.mxu0 0.0
  %7843 = vmatmul.mubr.f32.gmra.mrb[0].mxu0 %v7715
  %v7844 = vpop.f32.mrb[0].mxu0
  %v7845 = vadd.f32 0.0, %v7844
  %v7846 = vpop.f32.mrb[0].mxu0
  %7847 = vmatprep.mubr.f32.mxu0 0.0
  %7848 = vmatmul.mubr.f32.gmra.mrb[0].mxu0 %v7718
  %v7849 = vpop.f32.mrb[0].mxu0
  %v7850 = vadd.f32 0.0, %v7849
  %v7851 = vpop.f32.mrb[0].mxu0
  %7852 = vmatprep.mubr.f32.mxu0 0.0
  %7853 = vmatmul.mubr.f32.gmra.mrb[0].mxu0 %v7721
  %v7854 = vpop.f32.mrb[0].mxu0
  %v7855 = vadd.f32 0.0, %v7854
  %v7856 = vpop.f32.mrb[0].mxu0
  %7857 = vmatprep.mubr.f32.mxu0 0.0
  %7858 = vmatmul.mubr.f32.gmra.mrb[0].mxu0 %v7724
  %v7859 = vpop.f32.mrb[0].mxu0
  %v7860 = vadd.f32 0.0, %v7859
  %v7861 = vpop.f32.mrb[0].mxu0
  %7862 = vmatprep.mubr.f32.mxu0 0.0
  %7863 = vmatmul.mubr.f32.gmra.mrb[0].mxu0 %v7727
  %v7864 = vpop.f32.mrb[0].mxu0
  %v7865 = vadd.f32 0.0, %v7864
  %v7866 = vpop.f32.mrb[0].mxu0
  %7867 = vmatprep.mubr.f32.mxu0 0.0
  %7868 = vmatmul.mubr.f32.gmra.mrb[0].mxu0 %v7730
  %v7869 = vpop.f32.mrb[0].mxu0
  %v7870 = vadd.f32 0.0, %v7869
  %v7871 = vpop.f32.mrb[0].mxu0
  %7872 = vmatprep.mubr.f32.mxu0 0.0
  %7873 = vmatmul.mubr.f32.gmra.mrb[0].mxu0 %v7733
  %v7874 = vpop.f32.mrb[0].mxu0
  %v7875 = vadd.f32 0.0, %v7874
  %v7876 = vpop.f32.mrb[0].mxu0
  %7877 = vmatprep.mubr.f32.mxu0 0.0
  %7878 = vmatmul.mubr.f32.gmra.mrb[0].mxu0 %v7736
  %v7879 = vpop.f32.mrb[0].mxu0
  %v7880 = vadd.f32 0.0, %v7879
  %v7881 = vpop.f32.mrb[0].mxu0
  %7882 = vdwg.mxu0
  %v7883 = vadd.f32 %v7556, %v7805
  %v7884 = vadd.f32 %v7557, %v7810
  %v7885 = vadd.f32 %v7558, %v7815
  %v7886 = vadd.f32 %v7559, %v7820
  %v7887 = vadd.f32 %v7560, %v7825
  %v7888 = vadd.f32 %v7561, %v7830
  %v7889 = vadd.f32 %v7562, %v7835
  %v7890 = vadd.f32 %v7563, %v7840
  %v7891 = vadd.f32 %v7564, %v7845
  %v7892 = vadd.f32 %v7565, %v7850
  %v7893 = vadd.f32 %v7566, %v7855
  %v7894 = vadd.f32 %v7567, %v7860
  %v7895 = vadd.f32 %v7568, %v7865
  %v7896 = vadd.f32 %v7569, %v7870
  %v7897 = vadd.f32 %v7570, %v7875
  %v7898 = vadd.f32 %v7571, %v7880
  %s7899 = scalar_lea.vmem %s6, 2688
  %v7900 = vld [vmem:[%s7899] sm:$0xff]
  %v7901 = vld [vmem:[%s7899 + $0x8] sm:$0xff]
  %v7902 = vld [vmem:[%s7899 + $0x10] sm:$0xff]
  %v7903 = vld [vmem:[%s7899 + $0x18] sm:$0xff]
  %v7904 = vld [vmem:[%s7899 + $0x20] sm:$0xff]
  %v7905 = vld [vmem:[%s7899 + $0x28] sm:$0xff]
  %v7906 = vld [vmem:[%s7899 + $0x30] sm:$0xff]
  %v7907 = vld [vmem:[%s7899 + $0x38] sm:$0xff]
  %v7908 = vld [vmem:[%s7899 + $0x40] sm:$0xff]
  %v7909 = vld [vmem:[%s7899 + $0x48] sm:$0xff]
  %v7910 = vld [vmem:[%s7899 + $0x50] sm:$0xff]
  %v7911 = vld [vmem:[%s7899 + $0x58] sm:$0xff]
  %v7912 = vld [vmem:[%s7899 + $0x60] sm:$0xff]
  %v7913 = vld [vmem:[%s7899 + $0x68] sm:$0xff]
  %v7914 = vld [vmem:[%s7899 + $0x70] sm:$0xff]
  %v7915 = vld [vmem:[%s7899 + $0x78] sm:$0xff]
  %7917 = vset.pattern.permute.xlu0 0
  %7918 = vperm.xlu0 %7917, %v7900
  %v7919 = vpop.permute.xlu0 %7918
  %7922 = vset.pattern.permute.xlu0 0
  %7923 = vperm.xlu0 %7922, %v7901
  %v7924 = vpop.permute.xlu0 %7923
  %7927 = vset.pattern.permute.xlu0 0
  %7928 = vperm.xlu0 %7927, %v7902
  %v7929 = vpop.permute.xlu0 %7928
  %7932 = vset.pattern.permute.xlu0 0
  %7933 = vperm.xlu0 %7932, %v7903
  %v7934 = vpop.permute.xlu0 %7933
  %7937 = vset.pattern.permute.xlu0 0
  %7938 = vperm.xlu0 %7937, %v7904
  %v7939 = vpop.permute.xlu0 %7938
  %7942 = vset.pattern.permute.xlu0 0
  %7943 = vperm.xlu0 %7942, %v7905
  %v7944 = vpop.permute.xlu0 %7943
  %7947 = vset.pattern.permute.xlu0 0
  %7948 = vperm.xlu0 %7947, %v7906
  %v7949 = vpop.permute.xlu0 %7948
  %7952 = vset.pattern.permute.xlu0 0
  %7953 = vperm.xlu0 %7952, %v7907
  %v7954 = vpop.permute.xlu0 %7953
  %7957 = vset.pattern.permute.xlu0 0
  %7958 = vperm.xlu0 %7957, %v7908
  %v7959 = vpop.permute.xlu0 %7958
  %7962 = vset.pattern.permute.xlu0 0
  %7963 = vperm.xlu0 %7962, %v7909
  %v7964 = vpop.permute.xlu0 %7963
  %7967 = vset.pattern.permute.xlu0 0
  %7968 = vperm.xlu0 %7967, %v7910
  %v7969 = vpop.permute.xlu0 %7968
  %7972 = vset.pattern.permute.xlu0 0
  %7973 = vperm.xlu0 %7972, %v7911
  %v7974 = vpop.permute.xlu0 %7973
  %7977 = vset.pattern.permute.xlu0 0
  %7978 = vperm.xlu0 %7977, %v7912
  %v7979 = vpop.permute.xlu0 %7978
  %7982 = vset.pattern.permute.xlu0 0
  %7983 = vperm.xlu0 %7982, %v7913
  %v7984 = vpop.permute.xlu0 %7983
  %7987 = vset.pattern.permute.xlu0 0
  %7988 = vperm.xlu0 %7987, %v7914
  %v7989 = vpop.permute.xlu0 %7988
  %7992 = vset.pattern.permute.xlu0 0
  %7993 = vperm.xlu0 %7992, %v7915
  %v7994 = vpop.permute.xlu0 %7993
  %v7996 = vmul.f32 %v1112, %v7919
  %v7997 = vmul.f32 %v1111, %v7924
  %v7998 = vmul.f32 %v1110, %v7929
  %v7999 = vmul.f32 %v1109, %v7934
  %v8000 = vmul.f32 %v1108, %v7939
  %v8001 = vmul.f32 %v1107, %v7944
  %v8002 = vmul.f32 %v1106, %v7949
  %v8003 = vmul.f32 %v1105, %v7954
  %v8004 = vmul.f32 %v1104, %v7959
  %v8005 = vmul.f32 %v1103, %v7964
  %v8006 = vmul.f32 %v1102, %v7969
  %v8007 = vmul.f32 %v1101, %v7974
  %v8008 = vmul.f32 %v1100, %v7979
  %v8009 = vmul.f32 %v1099, %v7984
  %v8010 = vmul.f32 %v1114, %v7989
  %v8011 = vmul.f32 %v1113, %v7994
  %s8012 = scalar_lea.vmem %s4, 672
  %v8013 = vld [vmem:[%s8012] sm:$0xff]
  %v8014 = vld [vmem:[%s8012 + $0x8] sm:$0xff]
  %v8015 = vld [vmem:[%s8012 + $0x10] sm:$0xff]
  %v8016 = vld [vmem:[%s8012 + $0x18] sm:$0xff]
  %v8018 = vsel %vm1233, %v7996, 0
  %v8021 = vsel %vm1233, %v7997, 0
  %v8024 = vsel %vm1233, %v7998, 0
  %v8027 = vsel %vm1233, %v7999, 0
  %v8030 = vsel %vm1233, %v8000, 0
  %v8033 = vsel %vm1233, %v8001, 0
  %v8036 = vsel %vm1233, %v8002, 0
  %v8039 = vsel %vm1233, %v8003, 0
  %v8042 = vsel %vm1233, %v8004, 0
  %v8045 = vsel %vm1233, %v8005, 0
  %v8048 = vsel %vm1233, %v8006, 0
  %v8051 = vsel %vm1233, %v8007, 0
  %v8054 = vsel %vm1233, %v8008, 0
  %v8057 = vsel %vm1233, %v8009, 0
  %v8060 = vsel %vm1233, %v8010, 0
  %v8063 = vsel %vm1233, %v8011, 0
  %8065 = vmatprep.subr.mxu0 0.0
  %8066 = vmatpush1.msra.mxu0 %v8013
  %8067 = vmatprep.subr.mxu0 0.0
  %8068 = vmatpush1.msra.mxu0 %v8014
  %8069 = vmatprep.subr.mxu0 0.0
  %8070 = vmatpush1.msra.mxu0 %v8015
  %8071 = vmatprep.subr.mxu0 0.0
  %8072 = vmatpush1.msra.mxu0 %v8016
  %8073 = vmatprep.subr.mxu0 0.0
  %8074 = vmatpush1.msra.mxu0 0.0
  %8075 = vmatprep.subr.mxu0 0.0
  %8076 = vmatpush1.msra.mxu0 0.0
  %8077 = vmatprep.subr.mxu0 0.0
  %8078 = vmatpush1.msra.mxu0 0.0
  %8079 = vmatprep.subr.mxu0 0.0
  %8080 = vmatpush1.msra.mxu0 0.0
  %8081 = vmatprep.subr.mxu0 0.0
  %8082 = vmatpush1.msra.mxu0 0.0
  %8083 = vmatprep.subr.mxu0 0.0
  %8084 = vmatpush1.msra.mxu0 0.0
  %8085 = vmatprep.subr.mxu0 0.0
  %8086 = vmatpush1.msra.mxu0 0.0
  %8087 = vmatprep.subr.mxu0 0.0
  %8088 = vmatpush1.msra.mxu0 0.0
  %8089 = vmatprep.subr.mxu0 0.0
  %8090 = vmatpush1.msra.mxu0 0.0
  %8091 = vmatprep.subr.mxu0 0.0
  %8092 = vmatpush1.msra.mxu0 0.0
  %8093 = vmatprep.subr.mxu0 0.0
  %8094 = vmatpush1.msra.mxu0 0.0
  %8095 = vmatprep.subr.mxu0 0.0
  %8096 = vmatpush1.msra.mxu0 0.0
  %8097 = vmatprep.subr.mxu0 0.0
  %8098 = vmatpush1.msra.mxu0 0.0
  %8099 = vmatprep.subr.mxu0 0.0
  %8100 = vmatpush1.msra.mxu0 0.0
  %8101 = vmatprep.subr.mxu0 0.0
  %8102 = vmatpush1.msra.mxu0 0.0
  %8103 = vmatprep.subr.mxu0 0.0
  %8104 = vmatpush1.msra.mxu0 0.0
  %8105 = vmatprep.subr.mxu0 0.0
  %8106 = vmatpush1.msra.mxu0 0.0
  %8107 = vmatprep.subr.mxu0 0.0
  %8108 = vmatpush1.msra.mxu0 0.0
  %8109 = vmatprep.subr.mxu0 0.0
  %8110 = vmatpush1.msra.mxu0 0.0
  %8111 = vmatprep.subr.mxu0 0.0
  %8112 = vmatpush1.msra.mxu0 0.0
  %8113 = vmatprep.subr.mxu0 0.0
  %8114 = vmatpush1.msra.mxu0 0.0
  %8115 = vmatprep.subr.mxu0 0.0
  %8116 = vmatpush1.msra.mxu0 0.0
  %8117 = vmatprep.subr.mxu0 0.0
  %8118 = vmatpush1.msra.mxu0 0.0
  %8119 = vmatprep.subr.mxu0 0.0
  %8120 = vmatpush1.msra.mxu0 0.0
  %8121 = vmatprep.subr.mxu0 0.0
  %8122 = vmatpush1.msra.mxu0 0.0
  %8123 = vmatprep.subr.mxu0 0.0
  %8124 = vmatpush1.msra.mxu0 0.0
  %8125 = vmatprep.subr.mxu0 0.0
  %8126 = vmatpush1.msra.mxu0 0.0
  %8127 = vmatprep.subr.mxu0 0.0
  %8128 = vmatpush1.msra.mxu0 0.0
  %8129 = vmatprep.mubr.f32.mxu0 0.0
  %8130 = vmatmul.mubr.f32.gmra.mrb[0].mxu0 %v8018
  %v8131 = vpop.f32.mrb[0].mxu0
  %v8132 = vadd.f32 0.0, %v8131
  %v8133 = vpop.f32.mrb[0].mxu0
  %8134 = vmatprep.mubr.f32.mxu0 0.0
  %8135 = vmatmul.mubr.f32.gmra.mrb[0].mxu0 %v8021
  %v8136 = vpop.f32.mrb[0].mxu0
  %v8137 = vadd.f32 0.0, %v8136
  %v8138 = vpop.f32.mrb[0].mxu0
  %8139 = vmatprep.mubr.f32.mxu0 0.0
  %8140 = vmatmul.mubr.f32.gmra.mrb[0].mxu0 %v8024
  %v8141 = vpop.f32.mrb[0].mxu0
  %v8142 = vadd.f32 0.0, %v8141
  %v8143 = vpop.f32.mrb[0].mxu0
  %8144 = vmatprep.mubr.f32.mxu0 0.0
  %8145 = vmatmul.mubr.f32.gmra.mrb[0].mxu0 %v8027
  %v8146 = vpop.f32.mrb[0].mxu0
  %v8147 = vadd.f32 0.0, %v8146
  %v8148 = vpop.f32.mrb[0].mxu0
  %8149 = vmatprep.mubr.f32.mxu0 0.0
  %8150 = vmatmul.mubr.f32.gmra.mrb[0].mxu0 %v8030
  %v8151 = vpop.f32.mrb[0].mxu0
  %v8152 = vadd.f32 0.0, %v8151
  %v8153 = vpop.f32.mrb[0].mxu0
  %8154 = vmatprep.mubr.f32.mxu0 0.0
  %8155 = vmatmul.mubr.f32.gmra.mrb[0].mxu0 %v8033
  %v8156 = vpop.f32.mrb[0].mxu0
  %v8157 = vadd.f32 0.0, %v8156
  %v8158 = vpop.f32.mrb[0].mxu0
  %8159 = vmatprep.mubr.f32.mxu0 0.0
  %8160 = vmatmul.mubr.f32.gmra.mrb[0].mxu0 %v8036
  %v8161 = vpop.f32.mrb[0].mxu0
  %v8162 = vadd.f32 0.0, %v8161
  %v8163 = vpop.f32.mrb[0].mxu0
  %8164 = vmatprep.mubr.f32.mxu0 0.0
  %8165 = vmatmul.mubr.f32.gmra.mrb[0].mxu0 %v8039
  %v8166 = vpop.f32.mrb[0].mxu0
  %v8167 = vadd.f32 0.0, %v8166
  %v8168 = vpop.f32.mrb[0].mxu0
  %8169 = vmatprep.mubr.f32.mxu0 0.0
  %8170 = vmatmul.mubr.f32.gmra.mrb[0].mxu0 %v8042
  %v8171 = vpop.f32.mrb[0].mxu0
  %v8172 = vadd.f32 0.0, %v8171
  %v8173 = vpop.f32.mrb[0].mxu0
  %8174 = vmatprep.mubr.f32.mxu0 0.0
  %8175 = vmatmul.mubr.f32.gmra.mrb[0].mxu0 %v8045
  %v8176 = vpop.f32.mrb[0].mxu0
  %v8177 = vadd.f32 0.0, %v8176
  %v8178 = vpop.f32.mrb[0].mxu0
  %8179 = vmatprep.mubr.f32.mxu0 0.0
  %8180 = vmatmul.mubr.f32.gmra.mrb[0].mxu0 %v8048
  %v8181 = vpop.f32.mrb[0].mxu0
  %v8182 = vadd.f32 0.0, %v8181
  %v8183 = vpop.f32.mrb[0].mxu0
  %8184 = vmatprep.mubr.f32.mxu0 0.0
  %8185 = vmatmul.mubr.f32.gmra.mrb[0].mxu0 %v8051
  %v8186 = vpop.f32.mrb[0].mxu0
  %v8187 = vadd.f32 0.0, %v8186
  %v8188 = vpop.f32.mrb[0].mxu0
  %8189 = vmatprep.mubr.f32.mxu0 0.0
  %8190 = vmatmul.mubr.f32.gmra.mrb[0].mxu0 %v8054
  %v8191 = vpop.f32.mrb[0].mxu0
  %v8192 = vadd.f32 0.0, %v8191
  %v8193 = vpop.f32.mrb[0].mxu0
  %8194 = vmatprep.mubr.f32.mxu0 0.0
  %8195 = vmatmul.mubr.f32.gmra.mrb[0].mxu0 %v8057
  %v8196 = vpop.f32.mrb[0].mxu0
  %v8197 = vadd.f32 0.0, %v8196
  %v8198 = vpop.f32.mrb[0].mxu0
  %8199 = vmatprep.mubr.f32.mxu0 0.0
  %8200 = vmatmul.mubr.f32.gmra.mrb[0].mxu0 %v8060
  %v8201 = vpop.f32.mrb[0].mxu0
  %v8202 = vadd.f32 0.0, %v8201
  %v8203 = vpop.f32.mrb[0].mxu0
  %8204 = vmatprep.mubr.f32.mxu0 0.0
  %8205 = vmatmul.mubr.f32.gmra.mrb[0].mxu0 %v8063
  %v8206 = vpop.f32.mrb[0].mxu0
  %v8207 = vadd.f32 0.0, %v8206
  %v8208 = vpop.f32.mrb[0].mxu0
  %8209 = vdwg.mxu0
  %v8210 = vadd.f32 %v7883, %v8132
  %v8211 = vadd.f32 %v7884, %v8137
  %v8212 = vadd.f32 %v7885, %v8142
  %v8213 = vadd.f32 %v7886, %v8147
  %v8214 = vadd.f32 %v7887, %v8152
  %v8215 = vadd.f32 %v7888, %v8157
  %v8216 = vadd.f32 %v7889, %v8162
  %v8217 = vadd.f32 %v7890, %v8167
  %v8218 = vadd.f32 %v7891, %v8172
  %v8219 = vadd.f32 %v7892, %v8177
  %v8220 = vadd.f32 %v7893, %v8182
  %v8221 = vadd.f32 %v7894, %v8187
  %v8222 = vadd.f32 %v7895, %v8192
  %v8223 = vadd.f32 %v7896, %v8197
  %v8224 = vadd.f32 %v7897, %v8202
  %v8225 = vadd.f32 %v7898, %v8207
  %s8226 = scalar_lea.vmem %s6, 2816
  %v8227 = vld [vmem:[%s8226] sm:$0xff]
  %v8228 = vld [vmem:[%s8226 + $0x8] sm:$0xff]
  %v8229 = vld [vmem:[%s8226 + $0x10] sm:$0xff]
  %v8230 = vld [vmem:[%s8226 + $0x18] sm:$0xff]
  %v8231 = vld [vmem:[%s8226 + $0x20] sm:$0xff]
  %v8232 = vld [vmem:[%s8226 + $0x28] sm:$0xff]
  %v8233 = vld [vmem:[%s8226 + $0x30] sm:$0xff]
  %v8234 = vld [vmem:[%s8226 + $0x38] sm:$0xff]
  %v8235 = vld [vmem:[%s8226 + $0x40] sm:$0xff]
  %v8236 = vld [vmem:[%s8226 + $0x48] sm:$0xff]
  %v8237 = vld [vmem:[%s8226 + $0x50] sm:$0xff]
  %v8238 = vld [vmem:[%s8226 + $0x58] sm:$0xff]
  %v8239 = vld [vmem:[%s8226 + $0x60] sm:$0xff]
  %v8240 = vld [vmem:[%s8226 + $0x68] sm:$0xff]
  %v8241 = vld [vmem:[%s8226 + $0x70] sm:$0xff]
  %v8242 = vld [vmem:[%s8226 + $0x78] sm:$0xff]
  %8244 = vset.pattern.permute.xlu0 0
  %8245 = vperm.xlu0 %8244, %v8227
  %v8246 = vpop.permute.xlu0 %8245
  %8249 = vset.pattern.permute.xlu0 0
  %8250 = vperm.xlu0 %8249, %v8228
  %v8251 = vpop.permute.xlu0 %8250
  %8254 = vset.pattern.permute.xlu0 0
  %8255 = vperm.xlu0 %8254, %v8229
  %v8256 = vpop.permute.xlu0 %8255
  %8259 = vset.pattern.permute.xlu0 0
  %8260 = vperm.xlu0 %8259, %v8230
  %v8261 = vpop.permute.xlu0 %8260
  %8264 = vset.pattern.permute.xlu0 0
  %8265 = vperm.xlu0 %8264, %v8231
  %v8266 = vpop.permute.xlu0 %8265
  %8269 = vset.pattern.permute.xlu0 0
  %8270 = vperm.xlu0 %8269, %v8232
  %v8271 = vpop.permute.xlu0 %8270
  %8274 = vset.pattern.permute.xlu0 0
  %8275 = vperm.xlu0 %8274, %v8233
  %v8276 = vpop.permute.xlu0 %8275
  %8279 = vset.pattern.permute.xlu0 0
  %8280 = vperm.xlu0 %8279, %v8234
  %v8281 = vpop.permute.xlu0 %8280
  %8284 = vset.pattern.permute.xlu0 0
  %8285 = vperm.xlu0 %8284, %v8235
  %v8286 = vpop.permute.xlu0 %8285
  %8289 = vset.pattern.permute.xlu0 0
  %8290 = vperm.xlu0 %8289, %v8236
  %v8291 = vpop.permute.xlu0 %8290
  %8294 = vset.pattern.permute.xlu0 0
  %8295 = vperm.xlu0 %8294, %v8237
  %v8296 = vpop.permute.xlu0 %8295
  %8299 = vset.pattern.permute.xlu0 0
  %8300 = vperm.xlu0 %8299, %v8238
  %v8301 = vpop.permute.xlu0 %8300
  %8304 = vset.pattern.permute.xlu0 0
  %8305 = vperm.xlu0 %8304, %v8239
  %v8306 = vpop.permute.xlu0 %8305
  %8309 = vset.pattern.permute.xlu0 0
  %8310 = vperm.xlu0 %8309, %v8240
  %v8311 = vpop.permute.xlu0 %8310
  %8314 = vset.pattern.permute.xlu0 0
  %8315 = vperm.xlu0 %8314, %v8241
  %v8316 = vpop.permute.xlu0 %8315
  %8319 = vset.pattern.permute.xlu0 0
  %8320 = vperm.xlu0 %8319, %v8242
  %v8321 = vpop.permute.xlu0 %8320
  %v8323 = vmul.f32 %v863, %v8246
  %v8324 = vmul.f32 %v868, %v8251
  %v8325 = vmul.f32 %v873, %v8256
  %v8326 = vmul.f32 %v878, %v8261
  %v8327 = vmul.f32 %v883, %v8266
  %v8328 = vmul.f32 %v888, %v8271
  %v8329 = vmul.f32 %v893, %v8276
  %v8330 = vmul.f32 %v898, %v8281
  %v8331 = vmul.f32 %v903, %v8286
  %v8332 = vmul.f32 %v908, %v8291
  %v8333 = vmul.f32 %v913, %v8296
  %v8334 = vmul.f32 %v918, %v8301
  %v8335 = vmul.f32 %v923, %v8306
  %v8336 = vmul.f32 %v928, %v8311
  %v8337 = vmul.f32 %v853, %v8316
  %v8338 = vmul.f32 %v858, %v8321
  %s8339 = scalar_lea.vmem %s4, 704
  %v8340 = vld [vmem:[%s8339] sm:$0xff]
  %v8341 = vld [vmem:[%s8339 + $0x8] sm:$0xff]
  %v8342 = vld [vmem:[%s8339 + $0x10] sm:$0xff]
  %v8343 = vld [vmem:[%s8339 + $0x18] sm:$0xff]
  %v8345 = vsel %vm1233, %v8323, 0
  %v8348 = vsel %vm1233, %v8324, 0
  %v8351 = vsel %vm1233, %v8325, 0
  %v8354 = vsel %vm1233, %v8326, 0
  %v8357 = vsel %vm1233, %v8327, 0
  %v8360 = vsel %vm1233, %v8328, 0
  %v8363 = vsel %vm1233, %v8329, 0
  %v8366 = vsel %vm1233, %v8330, 0
  %v8369 = vsel %vm1233, %v8331, 0
  %v8372 = vsel %vm1233, %v8332, 0
  %v8375 = vsel %vm1233, %v8333, 0
  %v8378 = vsel %vm1233, %v8334, 0
  %v8381 = vsel %vm1233, %v8335, 0
  %v8384 = vsel %vm1233, %v8336, 0
  %v8387 = vsel %vm1233, %v8337, 0
  %v8390 = vsel %vm1233, %v8338, 0
  %8392 = vmatprep.subr.mxu0 0.0
  %8393 = vmatpush1.msra.mxu0 %v8340
  %8394 = vmatprep.subr.mxu0 0.0
  %8395 = vmatpush1.msra.mxu0 %v8341
  %8396 = vmatprep.subr.mxu0 0.0
  %8397 = vmatpush1.msra.mxu0 %v8342
  %8398 = vmatprep.subr.mxu0 0.0
  %8399 = vmatpush1.msra.mxu0 %v8343
  %8400 = vmatprep.subr.mxu0 0.0
  %8401 = vmatpush1.msra.mxu0 0.0
  %8402 = vmatprep.subr.mxu0 0.0
  %8403 = vmatpush1.msra.mxu0 0.0
  %8404 = vmatprep.subr.mxu0 0.0
  %8405 = vmatpush1.msra.mxu0 0.0
  %8406 = vmatprep.subr.mxu0 0.0
  %8407 = vmatpush1.msra.mxu0 0.0
  %8408 = vmatprep.subr.mxu0 0.0
  %8409 = vmatpush1.msra.mxu0 0.0
  %8410 = vmatprep.subr.mxu0 0.0
  %8411 = vmatpush1.msra.mxu0 0.0
  %8412 = vmatprep.subr.mxu0 0.0
  %8413 = vmatpush1.msra.mxu0 0.0
  %8414 = vmatprep.subr.mxu0 0.0
  %8415 = vmatpush1.msra.mxu0 0.0
  %8416 = vmatprep.subr.mxu0 0.0
  %8417 = vmatpush1.msra.mxu0 0.0
  %8418 = vmatprep.subr.mxu0 0.0
  %8419 = vmatpush1.msra.mxu0 0.0
  %8420 = vmatprep.subr.mxu0 0.0
  %8421 = vmatpush1.msra.mxu0 0.0
  %8422 = vmatprep.subr.mxu0 0.0
  %8423 = vmatpush1.msra.mxu0 0.0
  %8424 = vmatprep.subr.mxu0 0.0
  %8425 = vmatpush1.msra.mxu0 0.0
  %8426 = vmatprep.subr.mxu0 0.0
  %8427 = vmatpush1.msra.mxu0 0.0
  %8428 = vmatprep.subr.mxu0 0.0
  %8429 = vmatpush1.msra.mxu0 0.0
  %8430 = vmatprep.subr.mxu0 0.0
  %8431 = vmatpush1.msra.mxu0 0.0
  %8432 = vmatprep.subr.mxu0 0.0
  %8433 = vmatpush1.msra.mxu0 0.0
  %8434 = vmatprep.subr.mxu0 0.0
  %8435 = vmatpush1.msra.mxu0 0.0
  %8436 = vmatprep.subr.mxu0 0.0
  %8437 = vmatpush1.msra.mxu0 0.0
  %8438 = vmatprep.subr.mxu0 0.0
  %8439 = vmatpush1.msra.mxu0 0.0
  %8440 = vmatprep.subr.mxu0 0.0
  %8441 = vmatpush1.msra.mxu0 0.0
  %8442 = vmatprep.subr.mxu0 0.0
  %8443 = vmatpush1.msra.mxu0 0.0
  %8444 = vmatprep.subr.mxu0 0.0
  %8445 = vmatpush1.msra.mxu0 0.0
  %8446 = vmatprep.subr.mxu0 0.0
  %8447 = vmatpush1.msra.mxu0 0.0
  %8448 = vmatprep.subr.mxu0 0.0
  %8449 = vmatpush1.msra.mxu0 0.0
  %8450 = vmatprep.subr.mxu0 0.0
  %8451 = vmatpush1.msra.mxu0 0.0
  %8452 = vmatprep.subr.mxu0 0.0
  %8453 = vmatpush1.msra.mxu0 0.0
  %8454 = vmatprep.subr.mxu0 0.0
  %8455 = vmatpush1.msra.mxu0 0.0
  %8456 = vmatprep.mubr.f32.mxu0 0.0
  %8457 = vmatmul.mubr.f32.gmra.mrb[0].mxu0 %v8345
  %v8458 = vpop.f32.mrb[0].mxu0
  %v8459 = vadd.f32 0.0, %v8458
  %v8460 = vpop.f32.mrb[0].mxu0
  %8461 = vmatprep.mubr.f32.mxu0 0.0
  %8462 = vmatmul.mubr.f32.gmra.mrb[0].mxu0 %v8348
  %v8463 = vpop.f32.mrb[0].mxu0
  %v8464 = vadd.f32 0.0, %v8463
  %v8465 = vpop.f32.mrb[0].mxu0
  %8466 = vmatprep.mubr.f32.mxu0 0.0
  %8467 = vmatmul.mubr.f32.gmra.mrb[0].mxu0 %v8351
  %v8468 = vpop.f32.mrb[0].mxu0
  %v8469 = vadd.f32 0.0, %v8468
  %v8470 = vpop.f32.mrb[0].mxu0
  %8471 = vmatprep.mubr.f32.mxu0 0.0
  %8472 = vmatmul.mubr.f32.gmra.mrb[0].mxu0 %v8354
  %v8473 = vpop.f32.mrb[0].mxu0
  %v8474 = vadd.f32 0.0, %v8473
  %v8475 = vpop.f32.mrb[0].mxu0
  %8476 = vmatprep.mubr.f32.mxu0 0.0
  %8477 = vmatmul.mubr.f32.gmra.mrb[0].mxu0 %v8357
  %v8478 = vpop.f32.mrb[0].mxu0
  %v8479 = vadd.f32 0.0, %v8478
  %v8480 = vpop.f32.mrb[0].mxu0
  %8481 = vmatprep.mubr.f32.mxu0 0.0
  %8482 = vmatmul.mubr.f32.gmra.mrb[0].mxu0 %v8360
  %v8483 = vpop.f32.mrb[0].mxu0
  %v8484 = vadd.f32 0.0, %v8483
  %v8485 = vpop.f32.mrb[0].mxu0
  %8486 = vmatprep.mubr.f32.mxu0 0.0
  %8487 = vmatmul.mubr.f32.gmra.mrb[0].mxu0 %v8363
  %v8488 = vpop.f32.mrb[0].mxu0
  %v8489 = vadd.f32 0.0, %v8488
  %v8490 = vpop.f32.mrb[0].mxu0
  %8491 = vmatprep.mubr.f32.mxu0 0.0
  %8492 = vmatmul.mubr.f32.gmra.mrb[0].mxu0 %v8366
  %v8493 = vpop.f32.mrb[0].mxu0
  %v8494 = vadd.f32 0.0, %v8493
  %v8495 = vpop.f32.mrb[0].mxu0
  %8496 = vmatprep.mubr.f32.mxu0 0.0
  %8497 = vmatmul.mubr.f32.gmra.mrb[0].mxu0 %v8369
  %v8498 = vpop.f32.mrb[0].mxu0
  %v8499 = vadd.f32 0.0, %v8498
  %v8500 = vpop.f32.mrb[0].mxu0
  %8501 = vmatprep.mubr.f32.mxu0 0.0
  %8502 = vmatmul.mubr.f32.gmra.mrb[0].mxu0 %v8372
  %v8503 = vpop.f32.mrb[0].mxu0
  %v8504 = vadd.f32 0.0, %v8503
  %v8505 = vpop.f32.mrb[0].mxu0
  %8506 = vmatprep.mubr.f32.mxu0 0.0
  %8507 = vmatmul.mubr.f32.gmra.mrb[0].mxu0 %v8375
  %v8508 = vpop.f32.mrb[0].mxu0
  %v8509 = vadd.f32 0.0, %v8508
  %v8510 = vpop.f32.mrb[0].mxu0
  %8511 = vmatprep.mubr.f32.mxu0 0.0
  %8512 = vmatmul.mubr.f32.gmra.mrb[0].mxu0 %v8378
  %v8513 = vpop.f32.mrb[0].mxu0
  %v8514 = vadd.f32 0.0, %v8513
  %v8515 = vpop.f32.mrb[0].mxu0
  %8516 = vmatprep.mubr.f32.mxu0 0.0
  %8517 = vmatmul.mubr.f32.gmra.mrb[0].mxu0 %v8381
  %v8518 = vpop.f32.mrb[0].mxu0
  %v8519 = vadd.f32 0.0, %v8518
  %v8520 = vpop.f32.mrb[0].mxu0
  %8521 = vmatprep.mubr.f32.mxu0 0.0
  %8522 = vmatmul.mubr.f32.gmra.mrb[0].mxu0 %v8384
  %v8523 = vpop.f32.mrb[0].mxu0
  %v8524 = vadd.f32 0.0, %v8523
  %v8525 = vpop.f32.mrb[0].mxu0
  %8526 = vmatprep.mubr.f32.mxu0 0.0
  %8527 = vmatmul.mubr.f32.gmra.mrb[0].mxu0 %v8387
  %v8528 = vpop.f32.mrb[0].mxu0
  %v8529 = vadd.f32 0.0, %v8528
  %v8530 = vpop.f32.mrb[0].mxu0
  %8531 = vmatprep.mubr.f32.mxu0 0.0
  %8532 = vmatmul.mubr.f32.gmra.mrb[0].mxu0 %v8390
  %v8533 = vpop.f32.mrb[0].mxu0
  %v8534 = vadd.f32 0.0, %v8533
  %v8535 = vpop.f32.mrb[0].mxu0
  %8536 = vdwg.mxu0
  %v8537 = vadd.f32 %v8210, %v8459
  %v8538 = vadd.f32 %v8211, %v8464
  %v8539 = vadd.f32 %v8212, %v8469
  %v8540 = vadd.f32 %v8213, %v8474
  %v8541 = vadd.f32 %v8214, %v8479
  %v8542 = vadd.f32 %v8215, %v8484
  %v8543 = vadd.f32 %v8216, %v8489
  %v8544 = vadd.f32 %v8217, %v8494
  %v8545 = vadd.f32 %v8218, %v8499
  %v8546 = vadd.f32 %v8219, %v8504
  %v8547 = vadd.f32 %v8220, %v8509
  %v8548 = vadd.f32 %v8221, %v8514
  %v8549 = vadd.f32 %v8222, %v8519
  %v8550 = vadd.f32 %v8223, %v8524
  %v8551 = vadd.f32 %v8224, %v8529
  %v8552 = vadd.f32 %v8225, %v8534
  %s8553 = scalar_lea.vmem %s6, 2944
  %v8554 = vld [vmem:[%s8553] sm:$0xff]
  %v8555 = vld [vmem:[%s8553 + $0x8] sm:$0xff]
  %v8556 = vld [vmem:[%s8553 + $0x10] sm:$0xff]
  %v8557 = vld [vmem:[%s8553 + $0x18] sm:$0xff]
  %v8558 = vld [vmem:[%s8553 + $0x20] sm:$0xff]
  %v8559 = vld [vmem:[%s8553 + $0x28] sm:$0xff]
  %v8560 = vld [vmem:[%s8553 + $0x30] sm:$0xff]
  %v8561 = vld [vmem:[%s8553 + $0x38] sm:$0xff]
  %v8562 = vld [vmem:[%s8553 + $0x40] sm:$0xff]
  %v8563 = vld [vmem:[%s8553 + $0x48] sm:$0xff]
  %v8564 = vld [vmem:[%s8553 + $0x50] sm:$0xff]
  %v8565 = vld [vmem:[%s8553 + $0x58] sm:$0xff]
  %v8566 = vld [vmem:[%s8553 + $0x60] sm:$0xff]
  %v8567 = vld [vmem:[%s8553 + $0x68] sm:$0xff]
  %v8568 = vld [vmem:[%s8553 + $0x70] sm:$0xff]
  %v8569 = vld [vmem:[%s8553 + $0x78] sm:$0xff]
  %8571 = vset.pattern.permute.xlu0 0
  %8572 = vperm.xlu0 %8571, %v8554
  %v8573 = vpop.permute.xlu0 %8572
  %8576 = vset.pattern.permute.xlu0 0
  %8577 = vperm.xlu0 %8576, %v8555
  %v8578 = vpop.permute.xlu0 %8577
  %8581 = vset.pattern.permute.xlu0 0
  %8582 = vperm.xlu0 %8581, %v8556
  %v8583 = vpop.permute.xlu0 %8582
  %8586 = vset.pattern.permute.xlu0 0
  %8587 = vperm.xlu0 %8586, %v8557
  %v8588 = vpop.permute.xlu0 %8587
  %8591 = vset.pattern.permute.xlu0 0
  %8592 = vperm.xlu0 %8591, %v8558
  %v8593 = vpop.permute.xlu0 %8592
  %8596 = vset.pattern.permute.xlu0 0
  %8597 = vperm.xlu0 %8596, %v8559
  %v8598 = vpop.permute.xlu0 %8597
  %8601 = vset.pattern.permute.xlu0 0
  %8602 = vperm.xlu0 %8601, %v8560
  %v8603 = vpop.permute.xlu0 %8602
  %8606 = vset.pattern.permute.xlu0 0
  %8607 = vperm.xlu0 %8606, %v8561
  %v8608 = vpop.permute.xlu0 %8607
  %8611 = vset.pattern.permute.xlu0 0
  %8612 = vperm.xlu0 %8611, %v8562
  %v8613 = vpop.permute.xlu0 %8612
  %8616 = vset.pattern.permute.xlu0 0
  %8617 = vperm.xlu0 %8616, %v8563
  %v8618 = vpop.permute.xlu0 %8617
  %8621 = vset.pattern.permute.xlu0 0
  %8622 = vperm.xlu0 %8621, %v8564
  %v8623 = vpop.permute.xlu0 %8622
  %8626 = vset.pattern.permute.xlu0 0
  %8627 = vperm.xlu0 %8626, %v8565
  %v8628 = vpop.permute.xlu0 %8627
  %8631 = vset.pattern.permute.xlu0 0
  %8632 = vperm.xlu0 %8631, %v8566
  %v8633 = vpop.permute.xlu0 %8632
  %8636 = vset.pattern.permute.xlu0 0
  %8637 = vperm.xlu0 %8636, %v8567
  %v8638 = vpop.permute.xlu0 %8637
  %8641 = vset.pattern.permute.xlu0 0
  %8642 = vperm.xlu0 %8641, %v8568
  %v8643 = vpop.permute.xlu0 %8642
  %8646 = vset.pattern.permute.xlu0 0
  %8647 = vperm.xlu0 %8646, %v8569
  %v8648 = vpop.permute.xlu0 %8647
  %v8650 = vmul.f32 %v1976, %v8573
  %v8651 = vmul.f32 %v1975, %v8578
  %v8652 = vmul.f32 %v1974, %v8583
  %v8653 = vmul.f32 %v1973, %v8588
  %v8654 = vmul.f32 %v1972, %v8593
  %v8655 = vmul.f32 %v1971, %v8598
  %v8656 = vmul.f32 %v1970, %v8603
  %v8657 = vmul.f32 %v1969, %v8608
  %v8658 = vmul.f32 %v1968, %v8613
  %v8659 = vmul.f32 %v1967, %v8618
  %v8660 = vmul.f32 %v1966, %v8623
  %v8661 = vmul.f32 %v1965, %v8628
  %v8662 = vmul.f32 %v1964, %v8633
  %v8663 = vmul.f32 %v1979, %v8638
  %v8664 = vmul.f32 %v1978, %v8643
  %v8665 = vmul.f32 %v1977, %v8648
  %s8666 = scalar_lea.vmem %s4, 736
  %v8667 = vld [vmem:[%s8666] sm:$0xff]
  %v8668 = vld [vmem:[%s8666 + $0x8] sm:$0xff]
  %v8669 = vld [vmem:[%s8666 + $0x10] sm:$0xff]
  %v8670 = vld [vmem:[%s8666 + $0x18] sm:$0xff]
  %v8672 = vsel %vm1233, %v8650, 0
  %v8675 = vsel %vm1233, %v8651, 0
  %v8678 = vsel %vm1233, %v8652, 0
  %v8681 = vsel %vm1233, %v8653, 0
  %v8684 = vsel %vm1233, %v8654, 0
  %v8687 = vsel %vm1233, %v8655, 0
  %v8690 = vsel %vm1233, %v8656, 0
  %v8693 = vsel %vm1233, %v8657, 0
  %v8696 = vsel %vm1233, %v8658, 0
  %v8699 = vsel %vm1233, %v8659, 0
  %v8702 = vsel %vm1233, %v8660, 0
  %v8705 = vsel %vm1233, %v8661, 0
  %v8708 = vsel %vm1233, %v8662, 0
  %v8711 = vsel %vm1233, %v8663, 0
  %v8714 = vsel %vm1233, %v8664, 0
  %v8717 = vsel %vm1233, %v8665, 0
  %8719 = vmatprep.subr.mxu0 0.0
  %8720 = vmatpush1.msra.mxu0 %v8667
  %8721 = vmatprep.subr.mxu0 0.0
  %8722 = vmatpush1.msra.mxu0 %v8668
  %8723 = vmatprep.subr.mxu0 0.0
  %8724 = vmatpush1.msra.mxu0 %v8669
  %8725 = vmatprep.subr.mxu0 0.0
  %8726 = vmatpush1.msra.mxu0 %v8670
  %8727 = vmatprep.subr.mxu0 0.0
  %8728 = vmatpush1.msra.mxu0 0.0
  %8729 = vmatprep.subr.mxu0 0.0
  %8730 = vmatpush1.msra.mxu0 0.0
  %8731 = vmatprep.subr.mxu0 0.0
  %8732 = vmatpush1.msra.mxu0 0.0
  %8733 = vmatprep.subr.mxu0 0.0
  %8734 = vmatpush1.msra.mxu0 0.0
  %8735 = vmatprep.subr.mxu0 0.0
  %8736 = vmatpush1.msra.mxu0 0.0
  %8737 = vmatprep.subr.mxu0 0.0
  %8738 = vmatpush1.msra.mxu0 0.0
  %8739 = vmatprep.subr.mxu0 0.0
  %8740 = vmatpush1.msra.mxu0 0.0
  %8741 = vmatprep.subr.mxu0 0.0
  %8742 = vmatpush1.msra.mxu0 0.0
  %8743 = vmatprep.subr.mxu0 0.0
  %8744 = vmatpush1.msra.mxu0 0.0
  %8745 = vmatprep.subr.mxu0 0.0
  %8746 = vmatpush1.msra.mxu0 0.0
  %8747 = vmatprep.subr.mxu0 0.0
  %8748 = vmatpush1.msra.mxu0 0.0
  %8749 = vmatprep.subr.mxu0 0.0
  %8750 = vmatpush1.msra.mxu0 0.0
  %8751 = vmatprep.subr.mxu0 0.0
  %8752 = vmatpush1.msra.mxu0 0.0
  %8753 = vmatprep.subr.mxu0 0.0
  %8754 = vmatpush1.msra.mxu0 0.0
  %8755 = vmatprep.subr.mxu0 0.0
  %8756 = vmatpush1.msra.mxu0 0.0
  %8757 = vmatprep.subr.mxu0 0.0
  %8758 = vmatpush1.msra.mxu0 0.0
  %8759 = vmatprep.subr.mxu0 0.0
  %8760 = vmatpush1.msra.mxu0 0.0
  %8761 = vmatprep.subr.mxu0 0.0
  %8762 = vmatpush1.msra.mxu0 0.0
  %8763 = vmatprep.subr.mxu0 0.0
  %8764 = vmatpush1.msra.mxu0 0.0
  %8765 = vmatprep.subr.mxu0 0.0
  %8766 = vmatpush1.msra.mxu0 0.0
  %8767 = vmatprep.subr.mxu0 0.0
  %8768 = vmatpush1.msra.mxu0 0.0
  %8769 = vmatprep.subr.mxu0 0.0
  %8770 = vmatpush1.msra.mxu0 0.0
  %8771 = vmatprep.subr.mxu0 0.0
  %8772 = vmatpush1.msra.mxu0 0.0
  %8773 = vmatprep.subr.mxu0 0.0
  %8774 = vmatpush1.msra.mxu0 0.0
  %8775 = vmatprep.subr.mxu0 0.0
  %8776 = vmatpush1.msra.mxu0 0.0
  %8777 = vmatprep.subr.mxu0 0.0
  %8778 = vmatpush1.msra.mxu0 0.0
  %8779 = vmatprep.subr.mxu0 0.0
  %8780 = vmatpush1.msra.mxu0 0.0
  %8781 = vmatprep.subr.mxu0 0.0
  %8782 = vmatpush1.msra.mxu0 0.0
  %8783 = vmatprep.mubr.f32.mxu0 0.0
  %8784 = vmatmul.mubr.f32.gmra.mrb[0].mxu0 %v8672
  %v8785 = vpop.f32.mrb[0].mxu0
  %v8786 = vadd.f32 0.0, %v8785
  %v8787 = vpop.f32.mrb[0].mxu0
  %8788 = vmatprep.mubr.f32.mxu0 0.0
  %8789 = vmatmul.mubr.f32.gmra.mrb[0].mxu0 %v8675
  %v8790 = vpop.f32.mrb[0].mxu0
  %v8791 = vadd.f32 0.0, %v8790
  %v8792 = vpop.f32.mrb[0].mxu0
  %8793 = vmatprep.mubr.f32.mxu0 0.0
  %8794 = vmatmul.mubr.f32.gmra.mrb[0].mxu0 %v8678
  %v8795 = vpop.f32.mrb[0].mxu0
  %v8796 = vadd.f32 0.0, %v8795
  %v8797 = vpop.f32.mrb[0].mxu0
  %8798 = vmatprep.mubr.f32.mxu0 0.0
  %8799 = vmatmul.mubr.f32.gmra.mrb[0].mxu0 %v8681
  %v8800 = vpop.f32.mrb[0].mxu0
  %v8801 = vadd.f32 0.0, %v8800
  %v8802 = vpop.f32.mrb[0].mxu0
  %8803 = vmatprep.mubr.f32.mxu0 0.0
  %8804 = vmatmul.mubr.f32.gmra.mrb[0].mxu0 %v8684
  %v8805 = vpop.f32.mrb[0].mxu0
  %v8806 = vadd.f32 0.0, %v8805
  %v8807 = vpop.f32.mrb[0].mxu0
  %8808 = vmatprep.mubr.f32.mxu0 0.0
  %8809 = vmatmul.mubr.f32.gmra.mrb[0].mxu0 %v8687
  %v8810 = vpop.f32.mrb[0].mxu0
  %v8811 = vadd.f32 0.0, %v8810
  %v8812 = vpop.f32.mrb[0].mxu0
  %8813 = vmatprep.mubr.f32.mxu0 0.0
  %8814 = vmatmul.mubr.f32.gmra.mrb[0].mxu0 %v8690
  %v8815 = vpop.f32.mrb[0].mxu0
  %v8816 = vadd.f32 0.0, %v8815
  %v8817 = vpop.f32.mrb[0].mxu0
  %8818 = vmatprep.mubr.f32.mxu0 0.0
  %8819 = vmatmul.mubr.f32.gmra.mrb[0].mxu0 %v8693
  %v8820 = vpop.f32.mrb[0].mxu0
  %v8821 = vadd.f32 0.0, %v8820
  %v8822 = vpop.f32.mrb[0].mxu0
  %8823 = vmatprep.mubr.f32.mxu0 0.0
  %8824 = vmatmul.mubr.f32.gmra.mrb[0].mxu0 %v8696
  %v8825 = vpop.f32.mrb[0].mxu0
  %v8826 = vadd.f32 0.0, %v8825
  %v8827 = vpop.f32.mrb[0].mxu0
  %8828 = vmatprep.mubr.f32.mxu0 0.0
  %8829 = vmatmul.mubr.f32.gmra.mrb[0].mxu0 %v8699
  %v8830 = vpop.f32.mrb[0].mxu0
  %v8831 = vadd.f32 0.0, %v8830
  %v8832 = vpop.f32.mrb[0].mxu0
  %8833 = vmatprep.mubr.f32.mxu0 0.0
  %8834 = vmatmul.mubr.f32.gmra.mrb[0].mxu0 %v8702
  %v8835 = vpop.f32.mrb[0].mxu0
  %v8836 = vadd.f32 0.0, %v8835
  %v8837 = vpop.f32.mrb[0].mxu0
  %8838 = vmatprep.mubr.f32.mxu0 0.0
  %8839 = vmatmul.mubr.f32.gmra.mrb[0].mxu0 %v8705
  %v8840 = vpop.f32.mrb[0].mxu0
  %v8841 = vadd.f32 0.0, %v8840
  %v8842 = vpop.f32.mrb[0].mxu0
  %8843 = vmatprep.mubr.f32.mxu0 0.0
  %8844 = vmatmul.mubr.f32.gmra.mrb[0].mxu0 %v8708
  %v8845 = vpop.f32.mrb[0].mxu0
  %v8846 = vadd.f32 0.0, %v8845
  %v8847 = vpop.f32.mrb[0].mxu0
  %8848 = vmatprep.mubr.f32.mxu0 0.0
  %8849 = vmatmul.mubr.f32.gmra.mrb[0].mxu0 %v8711
  %v8850 = vpop.f32.mrb[0].mxu0
  %v8851 = vadd.f32 0.0, %v8850
  %v8852 = vpop.f32.mrb[0].mxu0
  %8853 = vmatprep.mubr.f32.mxu0 0.0
  %8854 = vmatmul.mubr.f32.gmra.mrb[0].mxu0 %v8714
  %v8855 = vpop.f32.mrb[0].mxu0
  %v8856 = vadd.f32 0.0, %v8855
  %v8857 = vpop.f32.mrb[0].mxu0
  %8858 = vmatprep.mubr.f32.mxu0 0.0
  %8859 = vmatmul.mubr.f32.gmra.mrb[0].mxu0 %v8717
  %v8860 = vpop.f32.mrb[0].mxu0
  %v8861 = vadd.f32 0.0, %v8860
  %v8862 = vpop.f32.mrb[0].mxu0
  %8863 = vdwg.mxu0
  %v8864 = vadd.f32 %v8537, %v8786
  %v8865 = vadd.f32 %v8538, %v8791
  %v8866 = vadd.f32 %v8539, %v8796
  %v8867 = vadd.f32 %v8540, %v8801
  %v8868 = vadd.f32 %v8541, %v8806
  %v8869 = vadd.f32 %v8542, %v8811
  %v8870 = vadd.f32 %v8543, %v8816
  %v8871 = vadd.f32 %v8544, %v8821
  %v8872 = vadd.f32 %v8545, %v8826
  %v8873 = vadd.f32 %v8546, %v8831
  %v8874 = vadd.f32 %v8547, %v8836
  %v8875 = vadd.f32 %v8548, %v8841
  %v8876 = vadd.f32 %v8549, %v8846
  %v8877 = vadd.f32 %v8550, %v8851
  %v8878 = vadd.f32 %v8551, %v8856
  %v8879 = vadd.f32 %v8552, %v8861
  %s8880 = scalar_lea.vmem %s6, 3072
  %v8881 = vld [vmem:[%s8880] sm:$0xff]
  %v8882 = vld [vmem:[%s8880 + $0x8] sm:$0xff]
  %v8883 = vld [vmem:[%s8880 + $0x10] sm:$0xff]
  %v8884 = vld [vmem:[%s8880 + $0x18] sm:$0xff]
  %v8885 = vld [vmem:[%s8880 + $0x20] sm:$0xff]
  %v8886 = vld [vmem:[%s8880 + $0x28] sm:$0xff]
  %v8887 = vld [vmem:[%s8880 + $0x30] sm:$0xff]
  %v8888 = vld [vmem:[%s8880 + $0x38] sm:$0xff]
  %v8889 = vld [vmem:[%s8880 + $0x40] sm:$0xff]
  %v8890 = vld [vmem:[%s8880 + $0x48] sm:$0xff]
  %v8891 = vld [vmem:[%s8880 + $0x50] sm:$0xff]
  %v8892 = vld [vmem:[%s8880 + $0x58] sm:$0xff]
  %v8893 = vld [vmem:[%s8880 + $0x60] sm:$0xff]
  %v8894 = vld [vmem:[%s8880 + $0x68] sm:$0xff]
  %v8895 = vld [vmem:[%s8880 + $0x70] sm:$0xff]
  %v8896 = vld [vmem:[%s8880 + $0x78] sm:$0xff]
  %8898 = vset.pattern.permute.xlu0 0
  %8899 = vperm.xlu0 %8898, %v8881
  %v8900 = vpop.permute.xlu0 %8899
  %8903 = vset.pattern.permute.xlu0 0
  %8904 = vperm.xlu0 %8903, %v8882
  %v8905 = vpop.permute.xlu0 %8904
  %8908 = vset.pattern.permute.xlu0 0
  %8909 = vperm.xlu0 %8908, %v8883
  %v8910 = vpop.permute.xlu0 %8909
  %8913 = vset.pattern.permute.xlu0 0
  %8914 = vperm.xlu0 %8913, %v8884
  %v8915 = vpop.permute.xlu0 %8914
  %8918 = vset.pattern.permute.xlu0 0
  %8919 = vperm.xlu0 %8918, %v8885
  %v8920 = vpop.permute.xlu0 %8919
  %8923 = vset.pattern.permute.xlu0 0
  %8924 = vperm.xlu0 %8923, %v8886
  %v8925 = vpop.permute.xlu0 %8924
  %8928 = vset.pattern.permute.xlu0 0
  %8929 = vperm.xlu0 %8928, %v8887
  %v8930 = vpop.permute.xlu0 %8929
  %8933 = vset.pattern.permute.xlu0 0
  %8934 = vperm.xlu0 %8933, %v8888
  %v8935 = vpop.permute.xlu0 %8934
  %8938 = vset.pattern.permute.xlu0 0
  %8939 = vperm.xlu0 %8938, %v8889
  %v8940 = vpop.permute.xlu0 %8939
  %8943 = vset.pattern.permute.xlu0 0
  %8944 = vperm.xlu0 %8943, %v8890
  %v8945 = vpop.permute.xlu0 %8944
  %8948 = vset.pattern.permute.xlu0 0
  %8949 = vperm.xlu0 %8948, %v8891
  %v8950 = vpop.permute.xlu0 %8949
  %8953 = vset.pattern.permute.xlu0 0
  %8954 = vperm.xlu0 %8953, %v8892
  %v8955 = vpop.permute.xlu0 %8954
  %8958 = vset.pattern.permute.xlu0 0
  %8959 = vperm.xlu0 %8958, %v8893
  %v8960 = vpop.permute.xlu0 %8959
  %8963 = vset.pattern.permute.xlu0 0
  %8964 = vperm.xlu0 %8963, %v8894
  %v8965 = vpop.permute.xlu0 %8964
  %8968 = vset.pattern.permute.xlu0 0
  %8969 = vperm.xlu0 %8968, %v8895
  %v8970 = vpop.permute.xlu0 %8969
  %8973 = vset.pattern.permute.xlu0 0
  %8974 = vperm.xlu0 %8973, %v8896
  %v8975 = vpop.permute.xlu0 %8974
  %v8977 = vmul.f32 %v2336, %v8900
  %v8978 = vmul.f32 %v2335, %v8905
  %v8979 = vmul.f32 %v2334, %v8910
  %v8980 = vmul.f32 %v2333, %v8915
  %v8981 = vmul.f32 %v2332, %v8920
  %v8982 = vmul.f32 %v2331, %v8925
  %v8983 = vmul.f32 %v2330, %v8930
  %v8984 = vmul.f32 %v2329, %v8935
  %v8985 = vmul.f32 %v2328, %v8940
  %v8986 = vmul.f32 %v2327, %v8945
  %v8987 = vmul.f32 %v2326, %v8950
  %v8988 = vmul.f32 %v2325, %v8955
  %v8989 = vmul.f32 %v2324, %v8960
  %v8990 = vmul.f32 %v2339, %v8965
  %v8991 = vmul.f32 %v2338, %v8970
  %v8992 = vmul.f32 %v2337, %v8975
  %s8993 = scalar_lea.vmem %s4, 768
  %v8994 = vld [vmem:[%s8993] sm:$0xff]
  %v8995 = vld [vmem:[%s8993 + $0x8] sm:$0xff]
  %v8996 = vld [vmem:[%s8993 + $0x10] sm:$0xff]
  %v8997 = vld [vmem:[%s8993 + $0x18] sm:$0xff]
  %v8999 = vsel %vm1233, %v8977, 0
  %v9002 = vsel %vm1233, %v8978, 0
  %v9005 = vsel %vm1233, %v8979, 0
  %v9008 = vsel %vm1233, %v8980, 0
  %v9011 = vsel %vm1233, %v8981, 0
  %v9014 = vsel %vm1233, %v8982, 0
  %v9017 = vsel %vm1233, %v8983, 0
  %v9020 = vsel %vm1233, %v8984, 0
  %v9023 = vsel %vm1233, %v8985, 0
  %v9026 = vsel %vm1233, %v8986, 0
  %v9029 = vsel %vm1233, %v8987, 0
  %v9032 = vsel %vm1233, %v8988, 0
  %v9035 = vsel %vm1233, %v8989, 0
  %v9038 = vsel %vm1233, %v8990, 0
  %v9041 = vsel %vm1233, %v8991, 0
  %v9044 = vsel %vm1233, %v8992, 0
  %9046 = vmatprep.subr.mxu0 0.0
  %9047 = vmatpush1.msra.mxu0 %v8994
  %9048 = vmatprep.subr.mxu0 0.0
  %9049 = vmatpush1.msra.mxu0 %v8995
  %9050 = vmatprep.subr.mxu0 0.0
  %9051 = vmatpush1.msra.mxu0 %v8996
  %9052 = vmatprep.subr.mxu0 0.0
  %9053 = vmatpush1.msra.mxu0 %v8997
  %9054 = vmatprep.subr.mxu0 0.0
  %9055 = vmatpush1.msra.mxu0 0.0
  %9056 = vmatprep.subr.mxu0 0.0
  %9057 = vmatpush1.msra.mxu0 0.0
  %9058 = vmatprep.subr.mxu0 0.0
  %9059 = vmatpush1.msra.mxu0 0.0
  %9060 = vmatprep.subr.mxu0 0.0
  %9061 = vmatpush1.msra.mxu0 0.0
  %9062 = vmatprep.subr.mxu0 0.0
  %9063 = vmatpush1.msra.mxu0 0.0
  %9064 = vmatprep.subr.mxu0 0.0
  %9065 = vmatpush1.msra.mxu0 0.0
  %9066 = vmatprep.subr.mxu0 0.0
  %9067 = vmatpush1.msra.mxu0 0.0
  %9068 = vmatprep.subr.mxu0 0.0
  %9069 = vmatpush1.msra.mxu0 0.0
  %9070 = vmatprep.subr.mxu0 0.0
  %9071 = vmatpush1.msra.mxu0 0.0
  %9072 = vmatprep.subr.mxu0 0.0
  %9073 = vmatpush1.msra.mxu0 0.0
  %9074 = vmatprep.subr.mxu0 0.0
  %9075 = vmatpush1.msra.mxu0 0.0
  %9076 = vmatprep.subr.mxu0 0.0
  %9077 = vmatpush1.msra.mxu0 0.0
  %9078 = vmatprep.subr.mxu0 0.0
  %9079 = vmatpush1.msra.mxu0 0.0
  %9080 = vmatprep.subr.mxu0 0.0
  %9081 = vmatpush1.msra.mxu0 0.0
  %9082 = vmatprep.subr.mxu0 0.0
  %9083 = vmatpush1.msra.mxu0 0.0
  %9084 = vmatprep.subr.mxu0 0.0
  %9085 = vmatpush1.msra.mxu0 0.0
  %9086 = vmatprep.subr.mxu0 0.0
  %9087 = vmatpush1.msra.mxu0 0.0
  %9088 = vmatprep.subr.mxu0 0.0
  %9089 = vmatpush1.msra.mxu0 0.0
  %9090 = vmatprep.subr.mxu0 0.0
  %9091 = vmatpush1.msra.mxu0 0.0
  %9092 = vmatprep.subr.mxu0 0.0
  %9093 = vmatpush1.msra.mxu0 0.0
  %9094 = vmatprep.subr.mxu0 0.0
  %9095 = vmatpush1.msra.mxu0 0.0
  %9096 = vmatprep.subr.mxu0 0.0
  %9097 = vmatpush1.msra.mxu0 0.0
  %9098 = vmatprep.subr.mxu0 0.0
  %9099 = vmatpush1.msra.mxu0 0.0
  %9100 = vmatprep.subr.mxu0 0.0
  %9101 = vmatpush1.msra.mxu0 0.0
  %9102 = vmatprep.subr.mxu0 0.0
  %9103 = vmatpush1.msra.mxu0 0.0
  %9104 = vmatprep.subr.mxu0 0.0
  %9105 = vmatpush1.msra.mxu0 0.0
  %9106 = vmatprep.subr.mxu0 0.0
  %9107 = vmatpush1.msra.mxu0 0.0
  %9108 = vmatprep.subr.mxu0 0.0
  %9109 = vmatpush1.msra.mxu0 0.0
  %9110 = vmatprep.mubr.f32.mxu0 0.0
  %9111 = vmatmul.mubr.f32.gmra.mrb[0].mxu0 %v8999
  %v9112 = vpop.f32.mrb[0].mxu0
  %v9113 = vadd.f32 0.0, %v9112
  %v9114 = vpop.f32.mrb[0].mxu0
  %9115 = vmatprep.mubr.f32.mxu0 0.0
  %9116 = vmatmul.mubr.f32.gmra.mrb[0].mxu0 %v9002
  %v9117 = vpop.f32.mrb[0].mxu0
  %v9118 = vadd.f32 0.0, %v9117
  %v9119 = vpop.f32.mrb[0].mxu0
  %9120 = vmatprep.mubr.f32.mxu0 0.0
  %9121 = vmatmul.mubr.f32.gmra.mrb[0].mxu0 %v9005
  %v9122 = vpop.f32.mrb[0].mxu0
  %v9123 = vadd.f32 0.0, %v9122
  %v9124 = vpop.f32.mrb[0].mxu0
  %9125 = vmatprep.mubr.f32.mxu0 0.0
  %9126 = vmatmul.mubr.f32.gmra.mrb[0].mxu0 %v9008
  %v9127 = vpop.f32.mrb[0].mxu0
  %v9128 = vadd.f32 0.0, %v9127
  %v9129 = vpop.f32.mrb[0].mxu0
  %9130 = vmatprep.mubr.f32.mxu0 0.0
  %9131 = vmatmul.mubr.f32.gmra.mrb[0].mxu0 %v9011
  %v9132 = vpop.f32.mrb[0].mxu0
  %v9133 = vadd.f32 0.0, %v9132
  %v9134 = vpop.f32.mrb[0].mxu0
  %9135 = vmatprep.mubr.f32.mxu0 0.0
  %9136 = vmatmul.mubr.f32.gmra.mrb[0].mxu0 %v9014
  %v9137 = vpop.f32.mrb[0].mxu0
  %v9138 = vadd.f32 0.0, %v9137
  %v9139 = vpop.f32.mrb[0].mxu0
  %9140 = vmatprep.mubr.f32.mxu0 0.0
  %9141 = vmatmul.mubr.f32.gmra.mrb[0].mxu0 %v9017
  %v9142 = vpop.f32.mrb[0].mxu0
  %v9143 = vadd.f32 0.0, %v9142
  %v9144 = vpop.f32.mrb[0].mxu0
  %9145 = vmatprep.mubr.f32.mxu0 0.0
  %9146 = vmatmul.mubr.f32.gmra.mrb[0].mxu0 %v9020
  %v9147 = vpop.f32.mrb[0].mxu0
  %v9148 = vadd.f32 0.0, %v9147
  %v9149 = vpop.f32.mrb[0].mxu0
  %9150 = vmatprep.mubr.f32.mxu0 0.0
  %9151 = vmatmul.mubr.f32.gmra.mrb[0].mxu0 %v9023
  %v9152 = vpop.f32.mrb[0].mxu0
  %v9153 = vadd.f32 0.0, %v9152
  %v9154 = vpop.f32.mrb[0].mxu0
  %9155 = vmatprep.mubr.f32.mxu0 0.0
  %9156 = vmatmul.mubr.f32.gmra.mrb[0].mxu0 %v9026
  %v9157 = vpop.f32.mrb[0].mxu0
  %v9158 = vadd.f32 0.0, %v9157
  %v9159 = vpop.f32.mrb[0].mxu0
  %9160 = vmatprep.mubr.f32.mxu0 0.0
  %9161 = vmatmul.mubr.f32.gmra.mrb[0].mxu0 %v9029
  %v9162 = vpop.f32.mrb[0].mxu0
  %v9163 = vadd.f32 0.0, %v9162
  %v9164 = vpop.f32.mrb[0].mxu0
  %9165 = vmatprep.mubr.f32.mxu0 0.0
  %9166 = vmatmul.mubr.f32.gmra.mrb[0].mxu0 %v9032
  %v9167 = vpop.f32.mrb[0].mxu0
  %v9168 = vadd.f32 0.0, %v9167
  %v9169 = vpop.f32.mrb[0].mxu0
  %9170 = vmatprep.mubr.f32.mxu0 0.0
  %9171 = vmatmul.mubr.f32.gmra.mrb[0].mxu0 %v9035
  %v9172 = vpop.f32.mrb[0].mxu0
  %v9173 = vadd.f32 0.0, %v9172
  %v9174 = vpop.f32.mrb[0].mxu0
  %9175 = vmatprep.mubr.f32.mxu0 0.0
  %9176 = vmatmul.mubr.f32.gmra.mrb[0].mxu0 %v9038
  %v9177 = vpop.f32.mrb[0].mxu0
  %v9178 = vadd.f32 0.0, %v9177
  %v9179 = vpop.f32.mrb[0].mxu0
  %9180 = vmatprep.mubr.f32.mxu0 0.0
  %9181 = vmatmul.mubr.f32.gmra.mrb[0].mxu0 %v9041
  %v9182 = vpop.f32.mrb[0].mxu0
  %v9183 = vadd.f32 0.0, %v9182
  %v9184 = vpop.f32.mrb[0].mxu0
  %9185 = vmatprep.mubr.f32.mxu0 0.0
  %9186 = vmatmul.mubr.f32.gmra.mrb[0].mxu0 %v9044
  %v9187 = vpop.f32.mrb[0].mxu0
  %v9188 = vadd.f32 0.0, %v9187
  %v9189 = vpop.f32.mrb[0].mxu0
  %9190 = vdwg.mxu0
  %v9191 = vadd.f32 %v8864, %v9113
  %v9192 = vadd.f32 %v8865, %v9118
  %v9193 = vadd.f32 %v8866, %v9123
  %v9194 = vadd.f32 %v8867, %v9128
  %v9195 = vadd.f32 %v8868, %v9133
  %v9196 = vadd.f32 %v8869, %v9138
  %v9197 = vadd.f32 %v8870, %v9143
  %v9198 = vadd.f32 %v8871, %v9148
  %v9199 = vadd.f32 %v8872, %v9153
  %v9200 = vadd.f32 %v8873, %v9158
  %v9201 = vadd.f32 %v8874, %v9163
  %v9202 = vadd.f32 %v8875, %v9168
  %v9203 = vadd.f32 %v8876, %v9173
  %v9204 = vadd.f32 %v8877, %v9178
  %v9205 = vadd.f32 %v8878, %v9183
  %v9206 = vadd.f32 %v8879, %v9188
  %v9207 = vld [vmem:[%s5] sm:$0x1]
  %v9209 = vlaneseq
  %v9210 = vshrl.u32 %v9209, 7
  %v9211 = vsub.s32 0, %v9210
  %v9212 = vrot.slane %v9207, %v9211
  %v9214 = vadd.f32 %v9191, %v9212
  %v9215 = vadd.f32 %v9192, %v9212
  %v9216 = vadd.f32 %v9193, %v9212
  %v9217 = vadd.f32 %v9194, %v9212
  %v9218 = vadd.f32 %v9195, %v9212
  %v9219 = vadd.f32 %v9196, %v9212
  %v9220 = vadd.f32 %v9197, %v9212
  %v9221 = vadd.f32 %v9198, %v9212
  %v9222 = vadd.f32 %v9199, %v9212
  %v9223 = vadd.f32 %v9200, %v9212
  %v9224 = vadd.f32 %v9201, %v9212
  %v9225 = vadd.f32 %v9202, %v9212
  %v9226 = vadd.f32 %v9203, %v9212
  %v9227 = vadd.f32 %v9204, %v9212
  %v9228 = vadd.f32 %v9205, %v9212
  %v9229 = vadd.f32 %v9206, %v9212
  %v9230 = vmax.f32 %v9214, 0.0
  %v9231 = vmax.f32 %v9215, 0.0
  %v9232 = vmax.f32 %v9216, 0.0
  %v9233 = vmax.f32 %v9217, 0.0
  %v9234 = vmax.f32 %v9218, 0.0
  %v9235 = vmax.f32 %v9219, 0.0
  %v9236 = vmax.f32 %v9220, 0.0
  %v9237 = vmax.f32 %v9221, 0.0
  %v9238 = vmax.f32 %v9222, 0.0
  %v9239 = vmax.f32 %v9223, 0.0
  %v9240 = vmax.f32 %v9224, 0.0
  %v9241 = vmax.f32 %v9225, 0.0
  %v9242 = vmax.f32 %v9226, 0.0
  %v9243 = vmax.f32 %v9227, 0.0
  %v9244 = vmax.f32 %v9228, 0.0
  %v9245 = vmax.f32 %v9229, 0.0
  %v9246 = vld [vmem:[%s7] sm:$0xff]
  %v9247 = vld [vmem:[%s7 + $0x8] sm:$0xff]
  %v9248 = vld [vmem:[%s7 + $0x10] sm:$0xff]
  %v9249 = vld [vmem:[%s7 + $0x18] sm:$0xff]
  %v9250 = vld [vmem:[%s7 + $0x20] sm:$0xff]
  %v9251 = vld [vmem:[%s7 + $0x28] sm:$0xff]
  %v9252 = vld [vmem:[%s7 + $0x30] sm:$0xff]
  %v9253 = vld [vmem:[%s7 + $0x38] sm:$0xff]
  %v9254 = vld [vmem:[%s7 + $0x40] sm:$0xff]
  %v9255 = vld [vmem:[%s7 + $0x48] sm:$0xff]
  %v9256 = vld [vmem:[%s7 + $0x50] sm:$0xff]
  %v9257 = vld [vmem:[%s7 + $0x58] sm:$0xff]
  %v9258 = vld [vmem:[%s7 + $0x60] sm:$0xff]
  %v9259 = vld [vmem:[%s7 + $0x68] sm:$0xff]
  %v9260 = vld [vmem:[%s7 + $0x70] sm:$0xff]
  %v9261 = vld [vmem:[%s7 + $0x78] sm:$0xff]
  %9262 = vmatprep.subr.mxu0 0.0
  %9263 = vmatpush1.msra.mxu0 %v9230
  %9264 = vmatprep.subr.mxu0 0.0
  %9265 = vmatpush1.msra.mxu0 %v9231
  %9266 = vmatprep.subr.mxu0 0.0
  %9267 = vmatpush1.msra.mxu0 %v9232
  %9268 = vmatprep.subr.mxu0 0.0
  %9269 = vmatpush1.msra.mxu0 %v9233
  %9270 = vmatprep.subr.mxu0 0.0
  %9271 = vmatpush1.msra.mxu0 %v9234
  %9272 = vmatprep.subr.mxu0 0.0
  %9273 = vmatpush1.msra.mxu0 %v9235
  %9274 = vmatprep.subr.mxu0 0.0
  %9275 = vmatpush1.msra.mxu0 %v9236
  %9276 = vmatprep.subr.mxu0 0.0
  %9277 = vmatpush1.msra.mxu0 %v9237
  %9278 = vmatprep.subr.mxu0 0.0
  %9279 = vmatpush1.msra.mxu0 %v9238
  %9280 = vmatprep.subr.mxu0 0.0
  %9281 = vmatpush1.msra.mxu0 %v9239
  %9282 = vmatprep.subr.mxu0 0.0
  %9283 = vmatpush1.msra.mxu0 %v9240
  %9284 = vmatprep.subr.mxu0 0.0
  %9285 = vmatpush1.msra.mxu0 %v9241
  %9286 = vmatprep.subr.mxu0 0.0
  %9287 = vmatpush1.msra.mxu0 %v9242
  %9288 = vmatprep.subr.mxu0 0.0
  %9289 = vmatpush1.msra.mxu0 %v9243
  %9290 = vmatprep.subr.mxu0 0.0
  %9291 = vmatpush1.msra.mxu0 %v9244
  %9292 = vmatprep.subr.mxu0 0.0
  %9293 = vmatpush1.msra.mxu0 %v9245
  %9294 = vmatprep.subr.mxu0 0.0
  %9295 = vmatpush1.msra.mxu0 0.0
  %9296 = vmatprep.subr.mxu0 0.0
  %9297 = vmatpush1.msra.mxu0 0.0
  %9298 = vmatprep.subr.mxu0 0.0
  %9299 = vmatpush1.msra.mxu0 0.0
  %9300 = vmatprep.subr.mxu0 0.0
  %9301 = vmatpush1.msra.mxu0 0.0
  %9302 = vmatprep.subr.mxu0 0.0
  %9303 = vmatpush1.msra.mxu0 0.0
  %9304 = vmatprep.subr.mxu0 0.0
  %9305 = vmatpush1.msra.mxu0 0.0
  %9306 = vmatprep.subr.mxu0 0.0
  %9307 = vmatpush1.msra.mxu0 0.0
  %9308 = vmatprep.subr.mxu0 0.0
  %9309 = vmatpush1.msra.mxu0 0.0
  %9310 = vmatprep.subr.mxu0 0.0
  %9311 = vmatpush1.msra.mxu0 0.0
  %9312 = vmatprep.subr.mxu0 0.0
  %9313 = vmatpush1.msra.mxu0 0.0
  %9314 = vmatprep.subr.mxu0 0.0
  %9315 = vmatpush1.msra.mxu0 0.0
  %9316 = vmatprep.subr.mxu0 0.0
  %9317 = vmatpush1.msra.mxu0 0.0
  %9318 = vmatprep.subr.mxu0 0.0
  %9319 = vmatpush1.msra.mxu0 0.0
  %9320 = vmatprep.subr.mxu0 0.0
  %9321 = vmatpush1.msra.mxu0 0.0
  %9322 = vmatprep.subr.mxu0 0.0
  %9323 = vmatpush1.msra.mxu0 0.0
  %9324 = vmatprep.subr.mxu0 0.0
  %9325 = vmatpush1.msra.mxu0 0.0
  %9326 = vmatprep.mubr.f32.mxu0 0.0
  %9327 = vmatmul.mubr.f32.gmra.mrb[0].mxu0 %v9246
  %v9328 = vpop.f32.mrb[0].mxu0
  %v9329 = vadd.f32 0.0, %v9328
  %v9330 = vpop.f32.mrb[0].mxu0
  %9331 = vmatprep.mubr.f32.mxu0 0.0
  %9332 = vmatmul.mubr.f32.gmra.mrb[0].mxu0 %v9247
  %v9333 = vpop.f32.mrb[0].mxu0
  %v9334 = vadd.f32 0.0, %v9333
  %v9335 = vpop.f32.mrb[0].mxu0
  %9336 = vmatprep.mubr.f32.mxu0 0.0
  %9337 = vmatmul.mubr.f32.gmra.mrb[0].mxu0 %v9248
  %v9338 = vpop.f32.mrb[0].mxu0
  %v9339 = vadd.f32 0.0, %v9338
  %v9340 = vpop.f32.mrb[0].mxu0
  %9341 = vmatprep.mubr.f32.mxu0 0.0
  %9342 = vmatmul.mubr.f32.gmra.mrb[0].mxu0 %v9249
  %v9343 = vpop.f32.mrb[0].mxu0
  %v9344 = vadd.f32 0.0, %v9343
  %v9345 = vpop.f32.mrb[0].mxu0
  %9346 = vmatprep.mubr.f32.mxu0 0.0
  %9347 = vmatmul.mubr.f32.gmra.mrb[0].mxu0 %v9250
  %v9348 = vpop.f32.mrb[0].mxu0
  %v9349 = vadd.f32 0.0, %v9348
  %v9350 = vpop.f32.mrb[0].mxu0
  %9351 = vmatprep.mubr.f32.mxu0 0.0
  %9352 = vmatmul.mubr.f32.gmra.mrb[0].mxu0 %v9251
  %v9353 = vpop.f32.mrb[0].mxu0
  %v9354 = vadd.f32 0.0, %v9353
  %v9355 = vpop.f32.mrb[0].mxu0
  %9356 = vmatprep.mubr.f32.mxu0 0.0
  %9357 = vmatmul.mubr.f32.gmra.mrb[0].mxu0 %v9252
  %v9358 = vpop.f32.mrb[0].mxu0
  %v9359 = vadd.f32 0.0, %v9358
  %v9360 = vpop.f32.mrb[0].mxu0
  %9361 = vmatprep.mubr.f32.mxu0 0.0
  %9362 = vmatmul.mubr.f32.gmra.mrb[0].mxu0 %v9253
  %v9363 = vpop.f32.mrb[0].mxu0
  %v9364 = vadd.f32 0.0, %v9363
  %v9365 = vpop.f32.mrb[0].mxu0
  %9366 = vmatprep.mubr.f32.mxu0 0.0
  %9367 = vmatmul.mubr.f32.gmra.mrb[0].mxu0 %v9254
  %v9368 = vpop.f32.mrb[0].mxu0
  %v9369 = vadd.f32 0.0, %v9368
  %v9370 = vpop.f32.mrb[0].mxu0
  %9371 = vmatprep.mubr.f32.mxu0 0.0
  %9372 = vmatmul.mubr.f32.gmra.mrb[0].mxu0 %v9255
  %v9373 = vpop.f32.mrb[0].mxu0
  %v9374 = vadd.f32 0.0, %v9373
  %v9375 = vpop.f32.mrb[0].mxu0
  %9376 = vmatprep.mubr.f32.mxu0 0.0
  %9377 = vmatmul.mubr.f32.gmra.mrb[0].mxu0 %v9256
  %v9378 = vpop.f32.mrb[0].mxu0
  %v9379 = vadd.f32 0.0, %v9378
  %v9380 = vpop.f32.mrb[0].mxu0
  %9381 = vmatprep.mubr.f32.mxu0 0.0
  %9382 = vmatmul.mubr.f32.gmra.mrb[0].mxu0 %v9257
  %v9383 = vpop.f32.mrb[0].mxu0
  %v9384 = vadd.f32 0.0, %v9383
  %v9385 = vpop.f32.mrb[0].mxu0
  %9386 = vmatprep.mubr.f32.mxu0 0.0
  %9387 = vmatmul.mubr.f32.gmra.mrb[0].mxu0 %v9258
  %v9388 = vpop.f32.mrb[0].mxu0
  %v9389 = vadd.f32 0.0, %v9388
  %v9390 = vpop.f32.mrb[0].mxu0
  %9391 = vmatprep.mubr.f32.mxu0 0.0
  %9392 = vmatmul.mubr.f32.gmra.mrb[0].mxu0 %v9259
  %v9393 = vpop.f32.mrb[0].mxu0
  %v9394 = vadd.f32 0.0, %v9393
  %v9395 = vpop.f32.mrb[0].mxu0
  %9396 = vmatprep.mubr.f32.mxu0 0.0
  %9397 = vmatmul.mubr.f32.gmra.mrb[0].mxu0 %v9260
  %v9398 = vpop.f32.mrb[0].mxu0
  %v9399 = vadd.f32 0.0, %v9398
  %v9400 = vpop.f32.mrb[0].mxu0
  %9401 = vmatprep.mubr.f32.mxu0 0.0
  %9402 = vmatmul.mubr.f32.gmra.mrb[0].mxu0 %v9261
  %v9403 = vpop.f32.mrb[0].mxu0
  %v9404 = vadd.f32 0.0, %v9403
  %v9405 = vpop.f32.mrb[0].mxu0
  %9406 = vdwg.mxu0
  %v9407 = vld [vmem:[%s8] sm:$0xff]
  %v9408 = vld [vmem:[%s8 + $0x8] sm:$0xff]
  %v9409 = vld [vmem:[%s8 + $0x10] sm:$0xff]
  %v9410 = vld [vmem:[%s8 + $0x18] sm:$0xff]
  %v9411 = vld [vmem:[%s8 + $0x20] sm:$0xff]
  %v9412 = vld [vmem:[%s8 + $0x28] sm:$0xff]
  %v9413 = vld [vmem:[%s8 + $0x30] sm:$0xff]
  %v9414 = vld [vmem:[%s8 + $0x38] sm:$0xff]
  %v9415 = vld [vmem:[%s8 + $0x40] sm:$0xff]
  %v9416 = vld [vmem:[%s8 + $0x48] sm:$0xff]
  %v9417 = vld [vmem:[%s8 + $0x50] sm:$0xff]
  %v9418 = vld [vmem:[%s8 + $0x58] sm:$0xff]
  %v9419 = vld [vmem:[%s8 + $0x60] sm:$0xff]
  %v9420 = vld [vmem:[%s8 + $0x68] sm:$0xff]
  %v9421 = vld [vmem:[%s8 + $0x70] sm:$0xff]
  %v9422 = vld [vmem:[%s8 + $0x78] sm:$0xff]
  %v9423 = vld [vmem:[%s8 + $0x80] sm:$0xff]
  %v9424 = vld [vmem:[%s8 + $0x88] sm:$0xff]
  %v9425 = vld [vmem:[%s8 + $0x90] sm:$0xff]
  %v9426 = vld [vmem:[%s8 + $0x98] sm:$0xff]
  %v9427 = vld [vmem:[%s8 + $0xa0] sm:$0xff]
  %v9428 = vld [vmem:[%s8 + $0xa8] sm:$0xff]
  %v9429 = vld [vmem:[%s8 + $0xb0] sm:$0xff]
  %v9430 = vld [vmem:[%s8 + $0xb8] sm:$0xff]
  %v9431 = vld [vmem:[%s8 + $0xc0] sm:$0xff]
  %v9432 = vld [vmem:[%s8 + $0xc8] sm:$0xff]
  %v9433 = vld [vmem:[%s8 + $0xd0] sm:$0xff]
  %v9434 = vld [vmem:[%s8 + $0xd8] sm:$0xff]
  %v9435 = vld [vmem:[%s8 + $0xe0] sm:$0xff]
  %v9436 = vld [vmem:[%s8 + $0xe8] sm:$0xff]
  %v9437 = vld [vmem:[%s8 + $0xf0] sm:$0xff]
  %v9438 = vld [vmem:[%s8 + $0xf8] sm:$0xff]
  %v9439 = vld [vmem:[%s8 + $0x100] sm:$0xff]
  %v9440 = vld [vmem:[%s8 + $0x108] sm:$0xff]
  %v9441 = vld [vmem:[%s8 + $0x110] sm:$0xff]
  %v9442 = vld [vmem:[%s8 + $0x118] sm:$0xff]
  %v9443 = vld [vmem:[%s8 + $0x120] sm:$0xff]
  %v9444 = vld [vmem:[%s8 + $0x128] sm:$0xff]
  %v9445 = vld [vmem:[%s8 + $0x130] sm:$0xff]
  %v9446 = vld [vmem:[%s8 + $0x138] sm:$0xff]
  %v9447 = vld [vmem:[%s8 + $0x140] sm:$0xff]
  %v9448 = vld [vmem:[%s8 + $0x148] sm:$0xff]
  %v9449 = vld [vmem:[%s8 + $0x150] sm:$0xff]
  %v9450 = vld [vmem:[%s8 + $0x158] sm:$0xff]
  %v9451 = vld [vmem:[%s8 + $0x160] sm:$0xff]
  %v9452 = vld [vmem:[%s8 + $0x168] sm:$0xff]
  %v9453 = vld [vmem:[%s8 + $0x170] sm:$0xff]
  %v9454 = vld [vmem:[%s8 + $0x178] sm:$0xff]
  %v9455 = vld [vmem:[%s8 + $0x180] sm:$0xff]
  %v9456 = vld [vmem:[%s8 + $0x188] sm:$0xff]
  %v9457 = vld [vmem:[%s8 + $0x190] sm:$0xff]
  %v9458 = vld [vmem:[%s8 + $0x198] sm:$0xff]
  %v9459 = vld [vmem:[%s8 + $0x1a0] sm:$0xff]
  %v9460 = vld [vmem:[%s8 + $0x1a8] sm:$0xff]
  %v9461 = vld [vmem:[%s8 + $0x1b0] sm:$0xff]
  %v9462 = vld [vmem:[%s8 + $0x1b8] sm:$0xff]
  %v9463 = vld [vmem:[%s8 + $0x1c0] sm:$0xff]
  %v9464 = vld [vmem:[%s8 + $0x1c8] sm:$0xff]
  %v9465 = vld [vmem:[%s8 + $0x1d0] sm:$0xff]
  %v9466 = vld [vmem:[%s8 + $0x1d8] sm:$0xff]
  %v9467 = vld [vmem:[%s8 + $0x1e0] sm:$0xff]
  %v9468 = vld [vmem:[%s8 + $0x1e8] sm:$0xff]
  %v9469 = vld [vmem:[%s8 + $0x1f0] sm:$0xff]
  %v9470 = vld [vmem:[%s8 + $0x1f8] sm:$0xff]
  %v9471 = vld [vmem:[%s8 + $0x200] sm:$0xff]
  %v9472 = vld [vmem:[%s8 + $0x208] sm:$0xff]
  %v9473 = vld [vmem:[%s8 + $0x210] sm:$0xff]
  %v9474 = vld [vmem:[%s8 + $0x218] sm:$0xff]
  %v9475 = vld [vmem:[%s8 + $0x220] sm:$0xff]
  %v9476 = vld [vmem:[%s8 + $0x228] sm:$0xff]
  %v9477 = vld [vmem:[%s8 + $0x230] sm:$0xff]
  %v9478 = vld [vmem:[%s8 + $0x238] sm:$0xff]
  %v9479 = vld [vmem:[%s8 + $0x240] sm:$0xff]
  %v9480 = vld [vmem:[%s8 + $0x248] sm:$0xff]
  %v9481 = vld [vmem:[%s8 + $0x250] sm:$0xff]
  %v9482 = vld [vmem:[%s8 + $0x258] sm:$0xff]
  %v9483 = vld [vmem:[%s8 + $0x260] sm:$0xff]
  %v9484 = vld [vmem:[%s8 + $0x268] sm:$0xff]
  %v9485 = vld [vmem:[%s8 + $0x270] sm:$0xff]
  %v9486 = vld [vmem:[%s8 + $0x278] sm:$0xff]
  %v9487 = vld [vmem:[%s8 + $0x280] sm:$0xff]
  %v9488 = vld [vmem:[%s8 + $0x288] sm:$0xff]
  %v9489 = vld [vmem:[%s8 + $0x290] sm:$0xff]
  %v9490 = vld [vmem:[%s8 + $0x298] sm:$0xff]
  %v9491 = vld [vmem:[%s8 + $0x2a0] sm:$0xff]
  %v9492 = vld [vmem:[%s8 + $0x2a8] sm:$0xff]
  %v9493 = vld [vmem:[%s8 + $0x2b0] sm:$0xff]
  %v9494 = vld [vmem:[%s8 + $0x2b8] sm:$0xff]
  %v9495 = vld [vmem:[%s8 + $0x2c0] sm:$0xff]
  %v9496 = vld [vmem:[%s8 + $0x2c8] sm:$0xff]
  %v9497 = vld [vmem:[%s8 + $0x2d0] sm:$0xff]
  %v9498 = vld [vmem:[%s8 + $0x2d8] sm:$0xff]
  %v9499 = vld [vmem:[%s8 + $0x2e0] sm:$0xff]
  %v9500 = vld [vmem:[%s8 + $0x2e8] sm:$0xff]
  %v9501 = vld [vmem:[%s8 + $0x2f0] sm:$0xff]
  %v9502 = vld [vmem:[%s8 + $0x2f8] sm:$0xff]
  %v9503 = vld [vmem:[%s8 + $0x300] sm:$0xff]
  %v9504 = vld [vmem:[%s8 + $0x308] sm:$0xff]
  %v9505 = vld [vmem:[%s8 + $0x310] sm:$0xff]
  %v9506 = vld [vmem:[%s8 + $0x318] sm:$0xff]
  %v9507 = vld [vmem:[%s8 + $0x320] sm:$0xff]
  %v9508 = vld [vmem:[%s8 + $0x328] sm:$0xff]
  %v9509 = vld [vmem:[%s8 + $0x330] sm:$0xff]
  %v9510 = vld [vmem:[%s8 + $0x338] sm:$0xff]
  %v9511 = vld [vmem:[%s8 + $0x340] sm:$0xff]
  %v9512 = vld [vmem:[%s8 + $0x348] sm:$0xff]
  %v9513 = vld [vmem:[%s8 + $0x350] sm:$0xff]
  %v9514 = vld [vmem:[%s8 + $0x358] sm:$0xff]
  %v9515 = vld [vmem:[%s8 + $0x360] sm:$0xff]
  %v9516 = vld [vmem:[%s8 + $0x368] sm:$0xff]
  %v9517 = vld [vmem:[%s8 + $0x370] sm:$0xff]
  %v9518 = vld [vmem:[%s8 + $0x378] sm:$0xff]
  %v9519 = vld [vmem:[%s8 + $0x380] sm:$0xff]
  %v9520 = vld [vmem:[%s8 + $0x388] sm:$0xff]
  %v9521 = vld [vmem:[%s8 + $0x390] sm:$0xff]
  %v9522 = vld [vmem:[%s8 + $0x398] sm:$0xff]
  %v9523 = vld [vmem:[%s8 + $0x3a0] sm:$0xff]
  %v9524 = vld [vmem:[%s8 + $0x3a8] sm:$0xff]
  %v9525 = vld [vmem:[%s8 + $0x3b0] sm:$0xff]
  %v9526 = vld [vmem:[%s8 + $0x3b8] sm:$0xff]
  %v9527 = vld [vmem:[%s8 + $0x3c0] sm:$0xff]
  %v9528 = vld [vmem:[%s8 + $0x3c8] sm:$0xff]
  %v9529 = vld [vmem:[%s8 + $0x3d0] sm:$0xff]
  %v9530 = vld [vmem:[%s8 + $0x3d8] sm:$0xff]
  %v9531 = vld [vmem:[%s8 + $0x3e0] sm:$0xff]
  %v9532 = vld [vmem:[%s8 + $0x3e8] sm:$0xff]
  %v9533 = vld [vmem:[%s8 + $0x3f0] sm:$0xff]
  %v9534 = vld [vmem:[%s8 + $0x3f8] sm:$0xff]
  %v9535 = vld [vmem:[%s8 + $0x400] sm:$0xff]
  %v9536 = vld [vmem:[%s8 + $0x408] sm:$0xff]
  %v9537 = vld [vmem:[%s8 + $0x410] sm:$0xff]
  %v9538 = vld [vmem:[%s8 + $0x418] sm:$0xff]
  %v9539 = vld [vmem:[%s8 + $0x420] sm:$0xff]
  %v9540 = vld [vmem:[%s8 + $0x428] sm:$0xff]
  %v9541 = vld [vmem:[%s8 + $0x430] sm:$0xff]
  %v9542 = vld [vmem:[%s8 + $0x438] sm:$0xff]
  %v9543 = vld [vmem:[%s8 + $0x440] sm:$0xff]
  %v9544 = vld [vmem:[%s8 + $0x448] sm:$0xff]
  %v9545 = vld [vmem:[%s8 + $0x450] sm:$0xff]
  %v9546 = vld [vmem:[%s8 + $0x458] sm:$0xff]
  %v9547 = vld [vmem:[%s8 + $0x460] sm:$0xff]
  %v9548 = vld [vmem:[%s8 + $0x468] sm:$0xff]
  %v9549 = vld [vmem:[%s8 + $0x470] sm:$0xff]
  %v9550 = vld [vmem:[%s8 + $0x478] sm:$0xff]
  %v9551 = vld [vmem:[%s8 + $0x480] sm:$0xff]
  %v9552 = vld [vmem:[%s8 + $0x488] sm:$0xff]
  %v9553 = vld [vmem:[%s8 + $0x490] sm:$0xff]
  %v9554 = vld [vmem:[%s8 + $0x498] sm:$0xff]
  %v9555 = vld [vmem:[%s8 + $0x4a0] sm:$0xff]
  %v9556 = vld [vmem:[%s8 + $0x4a8] sm:$0xff]
  %v9557 = vld [vmem:[%s8 + $0x4b0] sm:$0xff]
  %v9558 = vld [vmem:[%s8 + $0x4b8] sm:$0xff]
  %v9559 = vld [vmem:[%s8 + $0x4c0] sm:$0xff]
  %v9560 = vld [vmem:[%s8 + $0x4c8] sm:$0xff]
  %v9561 = vld [vmem:[%s8 + $0x4d0] sm:$0xff]
  %v9562 = vld [vmem:[%s8 + $0x4d8] sm:$0xff]
  %v9563 = vld [vmem:[%s8 + $0x4e0] sm:$0xff]
  %v9564 = vld [vmem:[%s8 + $0x4e8] sm:$0xff]
  %v9565 = vld [vmem:[%s8 + $0x4f0] sm:$0xff]
  %v9566 = vld [vmem:[%s8 + $0x4f8] sm:$0xff]
  %v9567 = vld [vmem:[%s8 + $0x500] sm:$0xff]
  %v9568 = vld [vmem:[%s8 + $0x508] sm:$0xff]
  %v9569 = vld [vmem:[%s8 + $0x510] sm:$0xff]
  %v9570 = vld [vmem:[%s8 + $0x518] sm:$0xff]
  %v9571 = vld [vmem:[%s8 + $0x520] sm:$0xff]
  %v9572 = vld [vmem:[%s8 + $0x528] sm:$0xff]
  %v9573 = vld [vmem:[%s8 + $0x530] sm:$0xff]
  %v9574 = vld [vmem:[%s8 + $0x538] sm:$0xff]
  %v9575 = vld [vmem:[%s8 + $0x540] sm:$0xff]
  %v9576 = vld [vmem:[%s8 + $0x548] sm:$0xff]
  %v9577 = vld [vmem:[%s8 + $0x550] sm:$0xff]
  %v9578 = vld [vmem:[%s8 + $0x558] sm:$0xff]
  %v9579 = vld [vmem:[%s8 + $0x560] sm:$0xff]
  %v9580 = vld [vmem:[%s8 + $0x568] sm:$0xff]
  %v9581 = vld [vmem:[%s8 + $0x570] sm:$0xff]
  %v9582 = vld [vmem:[%s8 + $0x578] sm:$0xff]
  %v9583 = vld [vmem:[%s8 + $0x580] sm:$0xff]
  %v9584 = vld [vmem:[%s8 + $0x588] sm:$0xff]
  %v9585 = vld [vmem:[%s8 + $0x590] sm:$0xff]
  %v9586 = vld [vmem:[%s8 + $0x598] sm:$0xff]
  %v9587 = vld [vmem:[%s8 + $0x5a0] sm:$0xff]
  %v9588 = vld [vmem:[%s8 + $0x5a8] sm:$0xff]
  %v9589 = vld [vmem:[%s8 + $0x5b0] sm:$0xff]
  %v9590 = vld [vmem:[%s8 + $0x5b8] sm:$0xff]
  %v9591 = vld [vmem:[%s8 + $0x5c0] sm:$0xff]
  %v9592 = vld [vmem:[%s8 + $0x5c8] sm:$0xff]
  %v9593 = vld [vmem:[%s8 + $0x5d0] sm:$0xff]
  %v9594 = vld [vmem:[%s8 + $0x5d8] sm:$0xff]
  %v9595 = vld [vmem:[%s8 + $0x5e0] sm:$0xff]
  %v9596 = vld [vmem:[%s8 + $0x5e8] sm:$0xff]
  %v9597 = vld [vmem:[%s8 + $0x5f0] sm:$0xff]
  %v9598 = vld [vmem:[%s8 + $0x5f8] sm:$0xff]
  %v9599 = vld [vmem:[%s8 + $0x600] sm:$0xff]
  %v9600 = vld [vmem:[%s8 + $0x608] sm:$0xff]
  %v9601 = vld [vmem:[%s8 + $0x610] sm:$0xff]
  %v9602 = vld [vmem:[%s8 + $0x618] sm:$0xff]
  %v9603 = vld [vmem:[%s8 + $0x620] sm:$0xff]
  %v9604 = vld [vmem:[%s8 + $0x628] sm:$0xff]
  %v9605 = vld [vmem:[%s8 + $0x630] sm:$0xff]
  %v9606 = vld [vmem:[%s8 + $0x638] sm:$0xff]
  %v9607 = vld [vmem:[%s8 + $0x640] sm:$0xff]
  %v9608 = vld [vmem:[%s8 + $0x648] sm:$0xff]
  %v9609 = vld [vmem:[%s8 + $0x650] sm:$0xff]
  %v9610 = vld [vmem:[%s8 + $0x658] sm:$0xff]
  %v9611 = vld [vmem:[%s8 + $0x660] sm:$0xff]
  %v9612 = vld [vmem:[%s8 + $0x668] sm:$0xff]
  %v9613 = vld [vmem:[%s8 + $0x670] sm:$0xff]
  %v9614 = vld [vmem:[%s8 + $0x678] sm:$0xff]
  %v9615 = vld [vmem:[%s8 + $0x680] sm:$0xff]
  %v9616 = vld [vmem:[%s8 + $0x688] sm:$0xff]
  %v9617 = vld [vmem:[%s8 + $0x690] sm:$0xff]
  %v9618 = vld [vmem:[%s8 + $0x698] sm:$0xff]
  %v9619 = vld [vmem:[%s8 + $0x6a0] sm:$0xff]
  %v9620 = vld [vmem:[%s8 + $0x6a8] sm:$0xff]
  %v9621 = vld [vmem:[%s8 + $0x6b0] sm:$0xff]
  %v9622 = vld [vmem:[%s8 + $0x6b8] sm:$0xff]
  %v9623 = vld [vmem:[%s8 + $0x6c0] sm:$0xff]
  %v9624 = vld [vmem:[%s8 + $0x6c8] sm:$0xff]
  %v9625 = vld [vmem:[%s8 + $0x6d0] sm:$0xff]
  %v9626 = vld [vmem:[%s8 + $0x6d8] sm:$0xff]
  %v9627 = vld [vmem:[%s8 + $0x6e0] sm:$0xff]
  %v9628 = vld [vmem:[%s8 + $0x6e8] sm:$0xff]
  %v9629 = vld [vmem:[%s8 + $0x6f0] sm:$0xff]
  %v9630 = vld [vmem:[%s8 + $0x6f8] sm:$0xff]
  %v9631 = vld [vmem:[%s8 + $0x700] sm:$0xff]
  %v9632 = vld [vmem:[%s8 + $0x708] sm:$0xff]
  %v9633 = vld [vmem:[%s8 + $0x710] sm:$0xff]
  %v9634 = vld [vmem:[%s8 + $0x718] sm:$0xff]
  %v9635 = vld [vmem:[%s8 + $0x720] sm:$0xff]
  %v9636 = vld [vmem:[%s8 + $0x728] sm:$0xff]
  %v9637 = vld [vmem:[%s8 + $0x730] sm:$0xff]
  %v9638 = vld [vmem:[%s8 + $0x738] sm:$0xff]
  %v9639 = vld [vmem:[%s8 + $0x740] sm:$0xff]
  %v9640 = vld [vmem:[%s8 + $0x748] sm:$0xff]
  %v9641 = vld [vmem:[%s8 + $0x750] sm:$0xff]
  %v9642 = vld [vmem:[%s8 + $0x758] sm:$0xff]
  %v9643 = vld [vmem:[%s8 + $0x760] sm:$0xff]
  %v9644 = vld [vmem:[%s8 + $0x768] sm:$0xff]
  %v9645 = vld [vmem:[%s8 + $0x770] sm:$0xff]
  %v9646 = vld [vmem:[%s8 + $0x778] sm:$0xff]
  %v9647 = vld [vmem:[%s8 + $0x780] sm:$0xff]
  %v9648 = vld [vmem:[%s8 + $0x788] sm:$0xff]
  %v9649 = vld [vmem:[%s8 + $0x790] sm:$0xff]
  %v9650 = vld [vmem:[%s8 + $0x798] sm:$0xff]
  %v9651 = vld [vmem:[%s8 + $0x7a0] sm:$0xff]
  %v9652 = vld [vmem:[%s8 + $0x7a8] sm:$0xff]
  %v9653 = vld [vmem:[%s8 + $0x7b0] sm:$0xff]
  %v9654 = vld [vmem:[%s8 + $0x7b8] sm:$0xff]
  %v9655 = vld [vmem:[%s8 + $0x7c0] sm:$0xff]
  %v9656 = vld [vmem:[%s8 + $0x7c8] sm:$0xff]
  %v9657 = vld [vmem:[%s8 + $0x7d0] sm:$0xff]
  %v9658 = vld [vmem:[%s8 + $0x7d8] sm:$0xff]
  %v9659 = vld [vmem:[%s8 + $0x7e0] sm:$0xff]
  %v9660 = vld [vmem:[%s8 + $0x7e8] sm:$0xff]
  %v9661 = vld [vmem:[%s8 + $0x7f0] sm:$0xff]
  %v9662 = vld [vmem:[%s8 + $0x7f8] sm:$0xff]
  %v9663 = vld [vmem:[%s9] sm:$0x1]
  %v9665 = vlaneseq
  %v9666 = vshrl.u32 %v9665, 7
  %v9667 = vsub.s32 0, %v9666
  %v9668 = vrot.slane %v9663, %v9667
  %9670 = vmatprep.subr.mxu0 0.0
  %9671 = vmatpush1.msra.mxu0 %v9407
  %9672 = vmatprep.subr.mxu0 0.0
  %9673 = vmatpush1.msra.mxu0 %v9408
  %9674 = vmatprep.subr.mxu0 0.0
  %9675 = vmatpush1.msra.mxu0 %v9409
  %9676 = vmatprep.subr.mxu0 0.0
  %9677 = vmatpush1.msra.mxu0 %v9410
  %9678 = vmatprep.subr.mxu0 0.0
  %9679 = vmatpush1.msra.mxu0 %v9411
  %9680 = vmatprep.subr.mxu0 0.0
  %9681 = vmatpush1.msra.mxu0 %v9412
  %9682 = vmatprep.subr.mxu0 0.0
  %9683 = vmatpush1.msra.mxu0 %v9413
  %9684 = vmatprep.subr.mxu0 0.0
  %9685 = vmatpush1.msra.mxu0 %v9414
  %9686 = vmatprep.subr.mxu0 0.0
  %9687 = vmatpush1.msra.mxu0 %v9415
  %9688 = vmatprep.subr.mxu0 0.0
  %9689 = vmatpush1.msra.mxu0 %v9416
  %9690 = vmatprep.subr.mxu0 0.0
  %9691 = vmatpush1.msra.mxu0 %v9417
  %9692 = vmatprep.subr.mxu0 0.0
  %9693 = vmatpush1.msra.mxu0 %v9418
  %9694 = vmatprep.subr.mxu0 0.0
  %9695 = vmatpush1.msra.mxu0 %v9419
  %9696 = vmatprep.subr.mxu0 0.0
  %9697 = vmatpush1.msra.mxu0 %v9420
  %9698 = vmatprep.subr.mxu0 0.0
  %9699 = vmatpush1.msra.mxu0 %v9421
  %9700 = vmatprep.subr.mxu0 0.0
  %9701 = vmatpush1.msra.mxu0 %v9422
  %9702 = vmatprep.subr.mxu0 0.0
  %9703 = vmatpush1.msra.mxu0 %v9423
  %9704 = vmatprep.subr.mxu0 0.0
  %9705 = vmatpush1.msra.mxu0 %v9424
  %9706 = vmatprep.subr.mxu0 0.0
  %9707 = vmatpush1.msra.mxu0 %v9425
  %9708 = vmatprep.subr.mxu0 0.0
  %9709 = vmatpush1.msra.mxu0 %v9426
  %9710 = vmatprep.subr.mxu0 0.0
  %9711 = vmatpush1.msra.mxu0 %v9427
  %9712 = vmatprep.subr.mxu0 0.0
  %9713 = vmatpush1.msra.mxu0 %v9428
  %9714 = vmatprep.subr.mxu0 0.0
  %9715 = vmatpush1.msra.mxu0 %v9429
  %9716 = vmatprep.subr.mxu0 0.0
  %9717 = vmatpush1.msra.mxu0 %v9430
  %9718 = vmatprep.subr.mxu0 0.0
  %9719 = vmatpush1.msra.mxu0 %v9431
  %9720 = vmatprep.subr.mxu0 0.0
  %9721 = vmatpush1.msra.mxu0 %v9432
  %9722 = vmatprep.subr.mxu0 0.0
  %9723 = vmatpush1.msra.mxu0 %v9433
  %9724 = vmatprep.subr.mxu0 0.0
  %9725 = vmatpush1.msra.mxu0 %v9434
  %9726 = vmatprep.subr.mxu0 0.0
  %9727 = vmatpush1.msra.mxu0 %v9435
  %9728 = vmatprep.subr.mxu0 0.0
  %9729 = vmatpush1.msra.mxu0 %v9436
  %9730 = vmatprep.subr.mxu0 0.0
  %9731 = vmatpush1.msra.mxu0 %v9437
  %9732 = vmatprep.subr.mxu0 0.0
  %9733 = vmatpush1.msra.mxu0 %v9438
  %9734 = vmatprep.mubr.f32.mxu0 %v9334
  %9735 = vmatmul.mubr.f32.gmra.mrb[0].mxu0 %v9329
  %v9736 = vpop.f32.mrb[0].mxu0
  %v9737 = vadd.f32 %v9668, %v9736
  %v9738 = vpop.f32.mrb[0].mxu0
  %9739 = vdwg.mxu0
  %9740 = vmatprep.subr.mxu0 0.0
  %9741 = vmatpush1.msra.mxu0 %v9439
  %9742 = vmatprep.subr.mxu0 0.0
  %9743 = vmatpush1.msra.mxu0 %v9440
  %9744 = vmatprep.subr.mxu0 0.0
  %9745 = vmatpush1.msra.mxu0 %v9441
  %9746 = vmatprep.subr.mxu0 0.0
  %9747 = vmatpush1.msra.mxu0 %v9442
  %9748 = vmatprep.subr.mxu0 0.0
  %9749 = vmatpush1.msra.mxu0 %v9443
  %9750 = vmatprep.subr.mxu0 0.0
  %9751 = vmatpush1.msra.mxu0 %v9444
  %9752 = vmatprep.subr.mxu0 0.0
  %9753 = vmatpush1.msra.mxu0 %v9445
  %9754 = vmatprep.subr.mxu0 0.0
  %9755 = vmatpush1.msra.mxu0 %v9446
  %9756 = vmatprep.subr.mxu0 0.0
  %9757 = vmatpush1.msra.mxu0 %v9447
  %9758 = vmatprep.subr.mxu0 0.0
  %9759 = vmatpush1.msra.mxu0 %v9448
  %9760 = vmatprep.subr.mxu0 0.0
  %9761 = vmatpush1.msra.mxu0 %v9449
  %9762 = vmatprep.subr.mxu0 0.0
  %9763 = vmatpush1.msra.mxu0 %v9450
  %9764 = vmatprep.subr.mxu0 0.0
  %9765 = vmatpush1.msra.mxu0 %v9451
  %9766 = vmatprep.subr.mxu0 0.0
  %9767 = vmatpush1.msra.mxu0 %v9452
  %9768 = vmatprep.subr.mxu0 0.0
  %9769 = vmatpush1.msra.mxu0 %v9453
  %9770 = vmatprep.subr.mxu0 0.0
  %9771 = vmatpush1.msra.mxu0 %v9454
  %9772 = vmatprep.subr.mxu0 0.0
  %9773 = vmatpush1.msra.mxu0 %v9455
  %9774 = vmatprep.subr.mxu0 0.0
  %9775 = vmatpush1.msra.mxu0 %v9456
  %9776 = vmatprep.subr.mxu0 0.0
  %9777 = vmatpush1.msra.mxu0 %v9457
  %9778 = vmatprep.subr.mxu0 0.0
  %9779 = vmatpush1.msra.mxu0 %v9458
  %9780 = vmatprep.subr.mxu0 0.0
  %9781 = vmatpush1.msra.mxu0 %v9459
  %9782 = vmatprep.subr.mxu0 0.0
  %9783 = vmatpush1.msra.mxu0 %v9460
  %9784 = vmatprep.subr.mxu0 0.0
  %9785 = vmatpush1.msra.mxu0 %v9461
  %9786 = vmatprep.subr.mxu0 0.0
  %9787 = vmatpush1.msra.mxu0 %v9462
  %9788 = vmatprep.subr.mxu0 0.0
  %9789 = vmatpush1.msra.mxu0 %v9463
  %9790 = vmatprep.subr.mxu0 0.0
  %9791 = vmatpush1.msra.mxu0 %v9464
  %9792 = vmatprep.subr.mxu0 0.0
  %9793 = vmatpush1.msra.mxu0 %v9465
  %9794 = vmatprep.subr.mxu0 0.0
  %9795 = vmatpush1.msra.mxu0 %v9466
  %9796 = vmatprep.subr.mxu0 0.0
  %9797 = vmatpush1.msra.mxu0 %v9467
  %9798 = vmatprep.subr.mxu0 0.0
  %9799 = vmatpush1.msra.mxu0 %v9468
  %9800 = vmatprep.subr.mxu0 0.0
  %9801 = vmatpush1.msra.mxu0 %v9469
  %9802 = vmatprep.subr.mxu0 0.0
  %9803 = vmatpush1.msra.mxu0 %v9470
  %9804 = vmatprep.mubr.f32.mxu0 %v9344
  %9805 = vmatmul.mubr.f32.gmra.mrb[0].mxu0 %v9339
  %v9806 = vpop.f32.mrb[0].mxu0
  %v9807 = vadd.f32 %v9737, %v9806
  %v9808 = vpop.f32.mrb[0].mxu0
  %9809 = vdwg.mxu0
  %9810 = vmatprep.subr.mxu0 0.0
  %9811 = vmatpush1.msra.mxu0 %v9471
  %9812 = vmatprep.subr.mxu0 0.0
  %9813 = vmatpush1.msra.mxu0 %v9472
  %9814 = vmatprep.subr.mxu0 0.0
  %9815 = vmatpush1.msra.mxu0 %v9473
  %9816 = vmatprep.subr.mxu0 0.0
  %9817 = vmatpush1.msra.mxu0 %v9474
  %9818 = vmatprep.subr.mxu0 0.0
  %9819 = vmatpush1.msra.mxu0 %v9475
  %9820 = vmatprep.subr.mxu0 0.0
  %9821 = vmatpush1.msra.mxu0 %v9476
  %9822 = vmatprep.subr.mxu0 0.0
  %9823 = vmatpush1.msra.mxu0 %v9477
  %9824 = vmatprep.subr.mxu0 0.0
  %9825 = vmatpush1.msra.mxu0 %v9478
  %9826 = vmatprep.subr.mxu0 0.0
  %9827 = vmatpush1.msra.mxu0 %v9479
  %9828 = vmatprep.subr.mxu0 0.0
  %9829 = vmatpush1.msra.mxu0 %v9480
  %9830 = vmatprep.subr.mxu0 0.0
  %9831 = vmatpush1.msra.mxu0 %v9481
  %9832 = vmatprep.subr.mxu0 0.0
  %9833 = vmatpush1.msra.mxu0 %v9482
  %9834 = vmatprep.subr.mxu0 0.0
  %9835 = vmatpush1.msra.mxu0 %v9483
  %9836 = vmatprep.subr.mxu0 0.0
  %9837 = vmatpush1.msra.mxu0 %v9484
  %9838 = vmatprep.subr.mxu0 0.0
  %9839 = vmatpush1.msra.mxu0 %v9485
  %9840 = vmatprep.subr.mxu0 0.0
  %9841 = vmatpush1.msra.mxu0 %v9486
  %9842 = vmatprep.subr.mxu0 0.0
  %9843 = vmatpush1.msra.mxu0 %v9487
  %9844 = vmatprep.subr.mxu0 0.0
  %9845 = vmatpush1.msra.mxu0 %v9488
  %9846 = vmatprep.subr.mxu0 0.0
  %9847 = vmatpush1.msra.mxu0 %v9489
  %9848 = vmatprep.subr.mxu0 0.0
  %9849 = vmatpush1.msra.mxu0 %v9490
  %9850 = vmatprep.subr.mxu0 0.0
  %9851 = vmatpush1.msra.mxu0 %v9491
  %9852 = vmatprep.subr.mxu0 0.0
  %9853 = vmatpush1.msra.mxu0 %v9492
  %9854 = vmatprep.subr.mxu0 0.0
  %9855 = vmatpush1.msra.mxu0 %v9493
  %9856 = vmatprep.subr.mxu0 0.0
  %9857 = vmatpush1.msra.mxu0 %v9494
  %9858 = vmatprep.subr.mxu0 0.0
  %9859 = vmatpush1.msra.mxu0 %v9495
  %9860 = vmatprep.subr.mxu0 0.0
  %9861 = vmatpush1.msra.mxu0 %v9496
  %9862 = vmatprep.subr.mxu0 0.0
  %9863 = vmatpush1.msra.mxu0 %v9497
  %9864 = vmatprep.subr.mxu0 0.0
  %9865 = vmatpush1.msra.mxu0 %v9498
  %9866 = vmatprep.subr.mxu0 0.0
  %9867 = vmatpush1.msra.mxu0 %v9499
  %9868 = vmatprep.subr.mxu0 0.0
  %9869 = vmatpush1.msra.mxu0 %v9500
  %9870 = vmatprep.subr.mxu0 0.0
  %9871 = vmatpush1.msra.mxu0 %v9501
  %9872 = vmatprep.subr.mxu0 0.0
  %9873 = vmatpush1.msra.mxu0 %v9502
  %9874 = vmatprep.mubr.f32.mxu0 %v9354
  %9875 = vmatmul.mubr.f32.gmra.mrb[0].mxu0 %v9349
  %v9876 = vpop.f32.mrb[0].mxu0
  %v9877 = vadd.f32 %v9807, %v9876
  %v9878 = vpop.f32.mrb[0].mxu0
  %9879 = vdwg.mxu0
  %9880 = vmatprep.subr.mxu0 0.0
  %9881 = vmatpush1.msra.mxu0 %v9503
  %9882 = vmatprep.subr.mxu0 0.0
  %9883 = vmatpush1.msra.mxu0 %v9504
  %9884 = vmatprep.subr.mxu0 0.0
  %9885 = vmatpush1.msra.mxu0 %v9505
  %9886 = vmatprep.subr.mxu0 0.0
  %9887 = vmatpush1.msra.mxu0 %v9506
  %9888 = vmatprep.subr.mxu0 0.0
  %9889 = vmatpush1.msra.mxu0 %v9507
  %9890 = vmatprep.subr.mxu0 0.0
  %9891 = vmatpush1.msra.mxu0 %v9508
  %9892 = vmatprep.subr.mxu0 0.0
  %9893 = vmatpush1.msra.mxu0 %v9509
  %9894 = vmatprep.subr.mxu0 0.0
  %9895 = vmatpush1.msra.mxu0 %v9510
  %9896 = vmatprep.subr.mxu0 0.0
  %9897 = vmatpush1.msra.mxu0 %v9511
  %9898 = vmatprep.subr.mxu0 0.0
  %9899 = vmatpush1.msra.mxu0 %v9512
  %9900 = vmatprep.subr.mxu0 0.0
  %9901 = vmatpush1.msra.mxu0 %v9513
  %9902 = vmatprep.subr.mxu0 0.0
  %9903 = vmatpush1.msra.mxu0 %v9514
  %9904 = vmatprep.subr.mxu0 0.0
  %9905 = vmatpush1.msra.mxu0 %v9515
  %9906 = vmatprep.subr.mxu0 0.0
  %9907 = vmatpush1.msra.mxu0 %v9516
  %9908 = vmatprep.subr.mxu0 0.0
  %9909 = vmatpush1.msra.mxu0 %v9517
  %9910 = vmatprep.subr.mxu0 0.0
  %9911 = vmatpush1.msra.mxu0 %v9518
  %9912 = vmatprep.subr.mxu0 0.0
  %9913 = vmatpush1.msra.mxu0 %v9519
  %9914 = vmatprep.subr.mxu0 0.0
  %9915 = vmatpush1.msra.mxu0 %v9520
  %9916 = vmatprep.subr.mxu0 0.0
  %9917 = vmatpush1.msra.mxu0 %v9521
  %9918 = vmatprep.subr.mxu0 0.0
  %9919 = vmatpush1.msra.mxu0 %v9522
  %9920 = vmatprep.subr.mxu0 0.0
  %9921 = vmatpush1.msra.mxu0 %v9523
  %9922 = vmatprep.subr.mxu0 0.0
  %9923 = vmatpush1.msra.mxu0 %v9524
  %9924 = vmatprep.subr.mxu0 0.0
  %9925 = vmatpush1.msra.mxu0 %v9525
  %9926 = vmatprep.subr.mxu0 0.0
  %9927 = vmatpush1.msra.mxu0 %v9526
  %9928 = vmatprep.subr.mxu0 0.0
  %9929 = vmatpush1.msra.mxu0 %v9527
  %9930 = vmatprep.subr.mxu0 0.0
  %9931 = vmatpush1.msra.mxu0 %v9528
  %9932 = vmatprep.subr.mxu0 0.0
  %9933 = vmatpush1.msra.mxu0 %v9529
  %9934 = vmatprep.subr.mxu0 0.0
  %9935 = vmatpush1.msra.mxu0 %v9530
  %9936 = vmatprep.subr.mxu0 0.0
  %9937 = vmatpush1.msra.mxu0 %v9531
  %9938 = vmatprep.subr.mxu0 0.0
  %9939 = vmatpush1.msra.mxu0 %v9532
  %9940 = vmatprep.subr.mxu0 0.0
  %9941 = vmatpush1.msra.mxu0 %v9533
  %9942 = vmatprep.subr.mxu0 0.0
  %9943 = vmatpush1.msra.mxu0 %v9534
  %9944 = vmatprep.mubr.f32.mxu0 %v9364
  %9945 = vmatmul.mubr.f32.gmra.mrb[0].mxu0 %v9359
  %v9946 = vpop.f32.mrb[0].mxu0
  %v9947 = vadd.f32 %v9877, %v9946
  %v9948 = vpop.f32.mrb[0].mxu0
  %9949 = vdwg.mxu0
  %9950 = vmatprep.subr.mxu0 0.0
  %9951 = vmatpush1.msra.mxu0 %v9535
  %9952 = vmatprep.subr.mxu0 0.0
  %9953 = vmatpush1.msra.mxu0 %v9536
  %9954 = vmatprep.subr.mxu0 0.0
  %9955 = vmatpush1.msra.mxu0 %v9537
  %9956 = vmatprep.subr.mxu0 0.0
  %9957 = vmatpush1.msra.mxu0 %v9538
  %9958 = vmatprep.subr.mxu0 0.0
  %9959 = vmatpush1.msra.mxu0 %v9539
  %9960 = vmatprep.subr.mxu0 0.0
  %9961 = vmatpush1.msra.mxu0 %v9540
  %9962 = vmatprep.subr.mxu0 0.0
  %9963 = vmatpush1.msra.mxu0 %v9541
  %9964 = vmatprep.subr.mxu0 0.0
  %9965 = vmatpush1.msra.mxu0 %v9542
  %9966 = vmatprep.subr.mxu0 0.0
  %9967 = vmatpush1.msra.mxu0 %v9543
  %9968 = vmatprep.subr.mxu0 0.0
  %9969 = vmatpush1.msra.mxu0 %v9544
  %9970 = vmatprep.subr.mxu0 0.0
  %9971 = vmatpush1.msra.mxu0 %v9545
  %9972 = vmatprep.subr.mxu0 0.0
  %9973 = vmatpush1.msra.mxu0 %v9546
  %9974 = vmatprep.subr.mxu0 0.0
  %9975 = vmatpush1.msra.mxu0 %v9547
  %9976 = vmatprep.subr.mxu0 0.0
  %9977 = vmatpush1.msra.mxu0 %v9548
  %9978 = vmatprep.subr.mxu0 0.0
  %9979 = vmatpush1.msra.mxu0 %v9549
  %9980 = vmatprep.subr.mxu0 0.0
  %9981 = vmatpush1.msra.mxu0 %v9550
  %9982 = vmatprep.subr.mxu0 0.0
  %9983 = vmatpush1.msra.mxu0 %v9551
  %9984 = vmatprep.subr.mxu0 0.0
  %9985 = vmatpush1.msra.mxu0 %v9552
  %9986 = vmatprep.subr.mxu0 0.0
  %9987 = vmatpush1.msra.mxu0 %v9553
  %9988 = vmatprep.subr.mxu0 0.0
  %9989 = vmatpush1.msra.mxu0 %v9554
  %9990 = vmatprep.subr.mxu0 0.0
  %9991 = vmatpush1.msra.mxu0 %v9555
  %9992 = vmatprep.subr.mxu0 0.0
  %9993 = vmatpush1.msra.mxu0 %v9556
  %9994 = vmatprep.subr.mxu0 0.0
  %9995 = vmatpush1.msra.mxu0 %v9557
  %9996 = vmatprep.subr.mxu0 0.0
  %9997 = vmatpush1.msra.mxu0 %v9558
  %9998 = vmatprep.subr.mxu0 0.0
  %9999 = vmatpush1.msra.mxu0 %v9559
  %10000 = vmatprep.subr.mxu0 0.0
  %10001 = vmatpush1.msra.mxu0 %v9560
  %10002 = vmatprep.subr.mxu0 0.0
  %10003 = vmatpush1.msra.mxu0 %v9561
  %10004 = vmatprep.subr.mxu0 0.0
  %10005 = vmatpush1.msra.mxu0 %v9562
  %10006 = vmatprep.subr.mxu0 0.0
  %10007 = vmatpush1.msra.mxu0 %v9563
  %10008 = vmatprep.subr.mxu0 0.0
  %10009 = vmatpush1.msra.mxu0 %v9564
  %10010 = vmatprep.subr.mxu0 0.0
  %10011 = vmatpush1.msra.mxu0 %v9565
  %10012 = vmatprep.subr.mxu0 0.0
  %10013 = vmatpush1.msra.mxu0 %v9566
  %10014 = vmatprep.mubr.f32.mxu0 %v9374
  %10015 = vmatmul.mubr.f32.gmra.mrb[0].mxu0 %v9369
  %v10016 = vpop.f32.mrb[0].mxu0
  %v10017 = vadd.f32 %v9947, %v10016
  %v10018 = vpop.f32.mrb[0].mxu0
  %10019 = vdwg.mxu0
  %10020 = vmatprep.subr.mxu0 0.0
  %10021 = vmatpush1.msra.mxu0 %v9567
  %10022 = vmatprep.subr.mxu0 0.0
  %10023 = vmatpush1.msra.mxu0 %v9568
  %10024 = vmatprep.subr.mxu0 0.0
  %10025 = vmatpush1.msra.mxu0 %v9569
  %10026 = vmatprep.subr.mxu0 0.0
  %10027 = vmatpush1.msra.mxu0 %v9570
  %10028 = vmatprep.subr.mxu0 0.0
  %10029 = vmatpush1.msra.mxu0 %v9571
  %10030 = vmatprep.subr.mxu0 0.0
  %10031 = vmatpush1.msra.mxu0 %v9572
  %10032 = vmatprep.subr.mxu0 0.0
  %10033 = vmatpush1.msra.mxu0 %v9573
  %10034 = vmatprep.subr.mxu0 0.0
  %10035 = vmatpush1.msra.mxu0 %v9574
  %10036 = vmatprep.subr.mxu0 0.0
  %10037 = vmatpush1.msra.mxu0 %v9575
  %10038 = vmatprep.subr.mxu0 0.0
  %10039 = vmatpush1.msra.mxu0 %v9576
  %10040 = vmatprep.subr.mxu0 0.0
  %10041 = vmatpush1.msra.mxu0 %v9577
  %10042 = vmatprep.subr.mxu0 0.0
  %10043 = vmatpush1.msra.mxu0 %v9578
  %10044 = vmatprep.subr.mxu0 0.0
  %10045 = vmatpush1.msra.mxu0 %v9579
  %10046 = vmatprep.subr.mxu0 0.0
  %10047 = vmatpush1.msra.mxu0 %v9580
  %10048 = vmatprep.subr.mxu0 0.0
  %10049 = vmatpush1.msra.mxu0 %v9581
  %10050 = vmatprep.subr.mxu0 0.0
  %10051 = vmatpush1.msra.mxu0 %v9582
  %10052 = vmatprep.subr.mxu0 0.0
  %10053 = vmatpush1.msra.mxu0 %v9583
  %10054 = vmatprep.subr.mxu0 0.0
  %10055 = vmatpush1.msra.mxu0 %v9584
  %10056 = vmatprep.subr.mxu0 0.0
  %10057 = vmatpush1.msra.mxu0 %v9585
  %10058 = vmatprep.subr.mxu0 0.0
  %10059 = vmatpush1.msra.mxu0 %v9586
  %10060 = vmatprep.subr.mxu0 0.0
  %10061 = vmatpush1.msra.mxu0 %v9587
  %10062 = vmatprep.subr.mxu0 0.0
  %10063 = vmatpush1.msra.mxu0 %v9588
  %10064 = vmatprep.subr.mxu0 0.0
  %10065 = vmatpush1.msra.mxu0 %v9589
  %10066 = vmatprep.subr.mxu0 0.0
  %10067 = vmatpush1.msra.mxu0 %v9590
  %10068 = vmatprep.subr.mxu0 0.0
  %10069 = vmatpush1.msra.mxu0 %v9591
  %10070 = vmatprep.subr.mxu0 0.0
  %10071 = vmatpush1.msra.mxu0 %v9592
  %10072 = vmatprep.subr.mxu0 0.0
  %10073 = vmatpush1.msra.mxu0 %v9593
  %10074 = vmatprep.subr.mxu0 0.0
  %10075 = vmatpush1.msra.mxu0 %v9594
  %10076 = vmatprep.subr.mxu0 0.0
  %10077 = vmatpush1.msra.mxu0 %v9595
  %10078 = vmatprep.subr.mxu0 0.0
  %10079 = vmatpush1.msra.mxu0 %v9596
  %10080 = vmatprep.subr.mxu0 0.0
  %10081 = vmatpush1.msra.mxu0 %v9597
  %10082 = vmatprep.subr.mxu0 0.0
  %10083 = vmatpush1.msra.mxu0 %v9598
  %10084 = vmatprep.mubr.f32.mxu0 %v9384
  %10085 = vmatmul.mubr.f32.gmra.mrb[0].mxu0 %v9379
  %v10086 = vpop.f32.mrb[0].mxu0
  %v10087 = vadd.f32 %v10017, %v10086
  %v10088 = vpop.f32.mrb[0].mxu0
  %10089 = vdwg.mxu0
  %10090 = vmatprep.subr.mxu0 0.0
  %10091 = vmatpush1.msra.mxu0 %v9599
  %10092 = vmatprep.subr.mxu0 0.0
  %10093 = vmatpush1.msra.mxu0 %v9600
  %10094 = vmatprep.subr.mxu0 0.0
  %10095 = vmatpush1.msra.mxu0 %v9601
  %10096 = vmatprep.subr.mxu0 0.0
  %10097 = vmatpush1.msra.mxu0 %v9602
  %10098 = vmatprep.subr.mxu0 0.0
  %10099 = vmatpush1.msra.mxu0 %v9603
  %10100 = vmatprep.subr.mxu0 0.0
  %10101 = vmatpush1.msra.mxu0 %v9604
  %10102 = vmatprep.subr.mxu0 0.0
  %10103 = vmatpush1.msra.mxu0 %v9605
  %10104 = vmatprep.subr.mxu0 0.0
  %10105 = vmatpush1.msra.mxu0 %v9606
  %10106 = vmatprep.subr.mxu0 0.0
  %10107 = vmatpush1.msra.mxu0 %v9607
  %10108 = vmatprep.subr.mxu0 0.0
  %10109 = vmatpush1.msra.mxu0 %v9608
  %10110 = vmatprep.subr.mxu0 0.0
  %10111 = vmatpush1.msra.mxu0 %v9609
  %10112 = vmatprep.subr.mxu0 0.0
  %10113 = vmatpush1.msra.mxu0 %v9610
  %10114 = vmatprep.subr.mxu0 0.0
  %10115 = vmatpush1.msra.mxu0 %v9611
  %10116 = vmatprep.subr.mxu0 0.0
  %10117 = vmatpush1.msra.mxu0 %v9612
  %10118 = vmatprep.subr.mxu0 0.0
  %10119 = vmatpush1.msra.mxu0 %v9613
  %10120 = vmatprep.subr.mxu0 0.0
  %10121 = vmatpush1.msra.mxu0 %v9614
  %10122 = vmatprep.subr.mxu0 0.0
  %10123 = vmatpush1.msra.mxu0 %v9615
  %10124 = vmatprep.subr.mxu0 0.0
  %10125 = vmatpush1.msra.mxu0 %v9616
  %10126 = vmatprep.subr.mxu0 0.0
  %10127 = vmatpush1.msra.mxu0 %v9617
  %10128 = vmatprep.subr.mxu0 0.0
  %10129 = vmatpush1.msra.mxu0 %v9618
  %10130 = vmatprep.subr.mxu0 0.0
  %10131 = vmatpush1.msra.mxu0 %v9619
  %10132 = vmatprep.subr.mxu0 0.0
  %10133 = vmatpush1.msra.mxu0 %v9620
  %10134 = vmatprep.subr.mxu0 0.0
  %10135 = vmatpush1.msra.mxu0 %v9621
  %10136 = vmatprep.subr.mxu0 0.0
  %10137 = vmatpush1.msra.mxu0 %v9622
  %10138 = vmatprep.subr.mxu0 0.0
  %10139 = vmatpush1.msra.mxu0 %v9623
  %10140 = vmatprep.subr.mxu0 0.0
  %10141 = vmatpush1.msra.mxu0 %v9624
  %10142 = vmatprep.subr.mxu0 0.0
  %10143 = vmatpush1.msra.mxu0 %v9625
  %10144 = vmatprep.subr.mxu0 0.0
  %10145 = vmatpush1.msra.mxu0 %v9626
  %10146 = vmatprep.subr.mxu0 0.0
  %10147 = vmatpush1.msra.mxu0 %v9627
  %10148 = vmatprep.subr.mxu0 0.0
  %10149 = vmatpush1.msra.mxu0 %v9628
  %10150 = vmatprep.subr.mxu0 0.0
  %10151 = vmatpush1.msra.mxu0 %v9629
  %10152 = vmatprep.subr.mxu0 0.0
  %10153 = vmatpush1.msra.mxu0 %v9630
  %10154 = vmatprep.mubr.f32.mxu0 %v9394
  %10155 = vmatmul.mubr.f32.gmra.mrb[0].mxu0 %v9389
  %v10156 = vpop.f32.mrb[0].mxu0
  %v10157 = vadd.f32 %v10087, %v10156
  %v10158 = vpop.f32.mrb[0].mxu0
  %10159 = vdwg.mxu0
  %10160 = vmatprep.subr.mxu0 0.0
  %10161 = vmatpush1.msra.mxu0 %v9631
  %10162 = vmatprep.subr.mxu0 0.0
  %10163 = vmatpush1.msra.mxu0 %v9632
  %10164 = vmatprep.subr.mxu0 0.0
  %10165 = vmatpush1.msra.mxu0 %v9633
  %10166 = vmatprep.subr.mxu0 0.0
  %10167 = vmatpush1.msra.mxu0 %v9634
  %10168 = vmatprep.subr.mxu0 0.0
  %10169 = vmatpush1.msra.mxu0 %v9635
  %10170 = vmatprep.subr.mxu0 0.0
  %10171 = vmatpush1.msra.mxu0 %v9636
  %10172 = vmatprep.subr.mxu0 0.0
  %10173 = vmatpush1.msra.mxu0 %v9637
  %10174 = vmatprep.subr.mxu0 0.0
  %10175 = vmatpush1.msra.mxu0 %v9638
  %10176 = vmatprep.subr.mxu0 0.0
  %10177 = vmatpush1.msra.mxu0 %v9639
  %10178 = vmatprep.subr.mxu0 0.0
  %10179 = vmatpush1.msra.mxu0 %v9640
  %10180 = vmatprep.subr.mxu0 0.0
  %10181 = vmatpush1.msra.mxu0 %v9641
  %10182 = vmatprep.subr.mxu0 0.0
  %10183 = vmatpush1.msra.mxu0 %v9642
  %10184 = vmatprep.subr.mxu0 0.0
  %10185 = vmatpush1.msra.mxu0 %v9643
  %10186 = vmatprep.subr.mxu0 0.0
  %10187 = vmatpush1.msra.mxu0 %v9644
  %10188 = vmatprep.subr.mxu0 0.0
  %10189 = vmatpush1.msra.mxu0 %v9645
  %10190 = vmatprep.subr.mxu0 0.0
  %10191 = vmatpush1.msra.mxu0 %v9646
  %10192 = vmatprep.subr.mxu0 0.0
  %10193 = vmatpush1.msra.mxu0 %v9647
  %10194 = vmatprep.subr.mxu0 0.0
  %10195 = vmatpush1.msra.mxu0 %v9648
  %10196 = vmatprep.subr.mxu0 0.0
  %10197 = vmatpush1.msra.mxu0 %v9649
  %10198 = vmatprep.subr.mxu0 0.0
  %10199 = vmatpush1.msra.mxu0 %v9650
  %10200 = vmatprep.subr.mxu0 0.0
  %10201 = vmatpush1.msra.mxu0 %v9651
  %10202 = vmatprep.subr.mxu0 0.0
  %10203 = vmatpush1.msra.mxu0 %v9652
  %10204 = vmatprep.subr.mxu0 0.0
  %10205 = vmatpush1.msra.mxu0 %v9653
  %10206 = vmatprep.subr.mxu0 0.0
  %10207 = vmatpush1.msra.mxu0 %v9654
  %10208 = vmatprep.subr.mxu0 0.0
  %10209 = vmatpush1.msra.mxu0 %v9655
  %10210 = vmatprep.subr.mxu0 0.0
  %10211 = vmatpush1.msra.mxu0 %v9656
  %10212 = vmatprep.subr.mxu0 0.0
  %10213 = vmatpush1.msra.mxu0 %v9657
  %10214 = vmatprep.subr.mxu0 0.0
  %10215 = vmatpush1.msra.mxu0 %v9658
  %10216 = vmatprep.subr.mxu0 0.0
  %10217 = vmatpush1.msra.mxu0 %v9659
  %10218 = vmatprep.subr.mxu0 0.0
  %10219 = vmatpush1.msra.mxu0 %v9660
  %10220 = vmatprep.subr.mxu0 0.0
  %10221 = vmatpush1.msra.mxu0 %v9661
  %10222 = vmatprep.subr.mxu0 0.0
  %10223 = vmatpush1.msra.mxu0 %v9662
  %10224 = vmatprep.mubr.f32.mxu0 %v9404
  %10225 = vmatmul.mubr.f32.gmra.mrb[0].mxu0 %v9399
  %v10226 = vpop.f32.mrb[0].mxu0
  %v10227 = vadd.f32 %v10157, %v10226
  %v10228 = vpop.f32.mrb[0].mxu0
  %10229 = vdwg.mxu0
  %v10230 = vmax.f32 %v10227, 0.0
  %v10231 = vld [vmem:[%s10] sm:$0xff]
  %v10232 = vld [vmem:[%s10 + $0x8] sm:$0xff]
  %v10233 = vld [vmem:[%s10 + $0x10] sm:$0xff]
  %v10234 = vld [vmem:[%s10 + $0x18] sm:$0xff]
  %v10235 = vld [vmem:[%s10 + $0x20] sm:$0xff]
  %v10236 = vld [vmem:[%s10 + $0x28] sm:$0xff]
  %v10237 = vld [vmem:[%s10 + $0x30] sm:$0xff]
  %v10238 = vld [vmem:[%s10 + $0x38] sm:$0xff]
  %v10239 = vld [vmem:[%s10 + $0x40] sm:$0xff]
  %v10240 = vld [vmem:[%s10 + $0x48] sm:$0xff]
  %v10241 = vld [vmem:[%s10 + $0x50] sm:$0xff]
  %v10242 = vld [vmem:[%s10 + $0x58] sm:$0xff]
  %v10243 = vld [vmem:[%s10 + $0x60] sm:$0xff]
  %v10244 = vld [vmem:[%s10 + $0x68] sm:$0xff]
  %v10245 = vld [vmem:[%s10 + $0x70] sm:$0xff]
  %v10246 = vld [vmem:[%s10 + $0x78] sm:$0xff]
  %v10247 = vld [vmem:[%s11] sm:$0x1]
  %v10249 = vlaneseq
  %v10250 = vshrl.u32 %v10249, 7
  %v10251 = vsub.s32 0, %v10250
  %v10252 = vrot.slane %v10247, %v10251
  %10254 = vmatprep.subr.mxu0 0.0
  %10255 = vmatpush1.msra.mxu0 %v10231
  %10256 = vmatprep.subr.mxu0 0.0
  %10257 = vmatpush1.msra.mxu0 %v10232
  %10258 = vmatprep.subr.mxu0 0.0
  %10259 = vmatpush1.msra.mxu0 %v10233
  %10260 = vmatprep.subr.mxu0 0.0
  %10261 = vmatpush1.msra.mxu0 %v10234
  %10262 = vmatprep.subr.mxu0 0.0
  %10263 = vmatpush1.msra.mxu0 %v10235
  %10264 = vmatprep.subr.mxu0 0.0
  %10265 = vmatpush1.msra.mxu0 %v10236
  %10266 = vmatprep.subr.mxu0 0.0
  %10267 = vmatpush1.msra.mxu0 %v10237
  %10268 = vmatprep.subr.mxu0 0.0
  %10269 = vmatpush1.msra.mxu0 %v10238
  %10270 = vmatprep.subr.mxu0 0.0
  %10271 = vmatpush1.msra.mxu0 %v10239
  %10272 = vmatprep.subr.mxu0 0.0
  %10273 = vmatpush1.msra.mxu0 %v10240
  %10274 = vmatprep.subr.mxu0 0.0
  %10275 = vmatpush1.msra.mxu0 %v10241
  %10276 = vmatprep.subr.mxu0 0.0
  %10277 = vmatpush1.msra.mxu0 %v10242
  %10278 = vmatprep.subr.mxu0 0.0
  %10279 = vmatpush1.msra.mxu0 %v10243
  %10280 = vmatprep.subr.mxu0 0.0
  %10281 = vmatpush1.msra.mxu0 %v10244
  %10282 = vmatprep.subr.mxu0 0.0
  %10283 = vmatpush1.msra.mxu0 %v10245
  %10284 = vmatprep.subr.mxu0 0.0
  %10285 = vmatpush1.msra.mxu0 %v10246
  %10286 = vmatprep.subr.mxu0 0.0
  %10287 = vmatpush1.msra.mxu0 0.0
  %10288 = vmatprep.subr.mxu0 0.0
  %10289 = vmatpush1.msra.mxu0 0.0
  %10290 = vmatprep.subr.mxu0 0.0
  %10291 = vmatpush1.msra.mxu0 0.0
  %10292 = vmatprep.subr.mxu0 0.0
  %10293 = vmatpush1.msra.mxu0 0.0
  %10294 = vmatprep.subr.mxu0 0.0
  %10295 = vmatpush1.msra.mxu0 0.0
  %10296 = vmatprep.subr.mxu0 0.0
  %10297 = vmatpush1.msra.mxu0 0.0
  %10298 = vmatprep.subr.mxu0 0.0
  %10299 = vmatpush1.msra.mxu0 0.0
  %10300 = vmatprep.subr.mxu0 0.0
  %10301 = vmatpush1.msra.mxu0 0.0
  %10302 = vmatprep.subr.mxu0 0.0
  %10303 = vmatpush1.msra.mxu0 0.0
  %10304 = vmatprep.subr.mxu0 0.0
  %10305 = vmatpush1.msra.mxu0 0.0
  %10306 = vmatprep.subr.mxu0 0.0
  %10307 = vmatpush1.msra.mxu0 0.0
  %10308 = vmatprep.subr.mxu0 0.0
  %10309 = vmatpush1.msra.mxu0 0.0
  %10310 = vmatprep.subr.mxu0 0.0
  %10311 = vmatpush1.msra.mxu0 0.0
  %10312 = vmatprep.subr.mxu0 0.0
  %10313 = vmatpush1.msra.mxu0 0.0
  %10314 = vmatprep.subr.mxu0 0.0
  %10315 = vmatpush1.msra.mxu0 0.0
  %10316 = vmatprep.subr.mxu0 0.0
  %10317 = vmatpush1.msra.mxu0 0.0
  %10318 = vmatprep.mubr.f32.mxu0 0.0
  %10319 = vmatmul.mubr.f32.gmra.mrb[0].mxu0 %v10230
  %v10320 = vpop.f32.mrb[0].mxu0
  %v10321 = vadd.f32 %v10252, %v10320
  %v10322 = vpop.f32.mrb[0].mxu0
  %10323 = vdwg.mxu0
  %10324 = vst [vmem:[%s12] sm:$0xff] %v10321
  // Predicated region
  $region50: #{simple_cnn_forward.1} parent=0 // pred_check
    _
  $region51: #{simple_cnn_forward.1} parent=0 // pred_check_branch
    %10326 = sbr.rel (0) target = $region53
  $region52: #{simple_cnn_forward.1} parent=0 // pred_region
    _
  $region53: #{simple_cnn_forward.1} parent=0 // pred_fallthru
    _
  // Predicated region
  $region54: #{simple_cnn_forward.1} parent=0 // pred_check
    _
  $region55: #{simple_cnn_forward.1} parent=0 // pred_check_branch
    %10328 = sbr.rel (0) target = $region57
  $region56: #{simple_cnn_forward.1} parent=0 // pred_region
    _
  $region57: #{simple_cnn_forward.1} parent=0 // pred_fallthru
    _

</llo_original>
